<compile_context>
chip_gen: v6e
topology: v6e:2x2x1
jax: 0.10.0
libtpu: 0.0.40
codegen_flags: <defaults>
</compile_context>

<pallas_src>
import numpy as np

import jax
import jax.numpy as jnp
from jax.experimental import pallas as pl
from jax.experimental.pallas import tpu as pltpu

# ----------------------------- configuration --------------------------------
CHANNELS = (8, 16, 24, 32)    # channels[0..3]
LAYERS = (2, 2, 2)            # layers per stage (conv2, conv3, conv4)
FEATURE_DIM = 32
NUM_CLASSES = 16
BN_EPS = 1e-5
LANE = 128                    # lane-dense width every activation is padded to
_MM_DTYPE = jnp.bfloat16      # MXU operand dtype (accumulation stays f32)


def _pad_lane(x):
    return -(-x // LANE) * LANE


def _mm(a, b):
    """MXU matmul: bf16 operands, f32 accumulation."""
    return jnp.dot(a.astype(_MM_DTYPE), b.astype(_MM_DTYPE),
                   preferred_element_type=jnp.float32)


# ----------------------------- Pallas kernel --------------------------------
def _make_kernel(ops):
    """Fused whole-network kernel body for ONE sample (grid over batch).

    refs = (x_ref, *const_refs, v_ref, y_ref).  `ops` is a static list of
    (kind, meta) tuples describing which constant refs each layer consumes.
    """

    def kernel(*refs):
        x_ref = refs[0]
        v_ref, y_ref = refs[-2], refs[-1]
        crefs = refs[1:-2]

        X = x_ref[...]                       # (H, 128) f32, one sample
        feat = None
        logits = None
        ci = 0

        for kind, meta in ops:
            if kind == "conv_s":             # conv, stacked row taps (1 matmul)
                k, ho = meta["k"], meta["ho"]
                rs, cw, b = crefs[ci], crefs[ci + 1], crefs[ci + 2]
                ci += 3
                t = _mm(rs[...], X)                          # (k*Ho, Lin)
                y = jnp.concatenate(                         # (Ho, k*Lin)
                    [t[d * ho:(d + 1) * ho, :] for d in range(k)], axis=1)
                X = jnp.maximum(_mm(y, cw[...]) + b[...], 0.0)
            elif kind == "conv_t":           # conv, per-tap ref-sliced rows
                k = meta["k"]
                rs, cw, b = crefs[ci], crefs[ci + 1], crefs[ci + 2]
                ci += 3
                y = jnp.concatenate([_mm(rs[d], X) for d in range(k)], axis=1)
                X = jnp.maximum(_mm(y, cw[...]) + b[...], 0.0)
            elif kind == "conv1x1":          # 1x1 conv + folded BN + ReLU
                cw, b = crefs[ci], crefs[ci + 1]
                ci += 2
                X = jnp.maximum(_mm(X, cw[...]) + b[...], 0.0)
            elif kind == "maxpool":
                # OOB / padded taps contribute 0; inputs are post-ReLU (>= 0),
                # so this matches PyTorch's -inf-padded MaxPool2d.
                k, ho, lo = meta["k"], meta["ho"], meta["lo"]
                rs, cs = crefs[ci], crefs[ci + 1]
                ci += 2
                t = _mm(rs[...], X)                          # (k*Ho, Lin)
                u = _mm(t, cs[...])                          # (k*Ho, k*Lo)
                res = None
                for di in range(k):
                    for dj in range(k):
                        blk = u[di * ho:(di + 1) * ho, dj * lo:(dj + 1) * lo]
                        res = blk if res is None else jnp.maximum(res, blk)
                X = res
            elif kind == "avgpool":          # AvgPool2d(2, stride=2)
                ra, ca = crefs[ci], crefs[ci + 1]
                ci += 2
                X = _mm(_mm(ra[...], X), ca[...])
            elif kind == "gpool":            # adaptive_avg_pool2d(1) + flatten
                if meta["has_row"]:
                    rg, cg = crefs[ci], crefs[ci + 1]
                    ci += 2
                    feat = _mm(_mm(rg[...], X), cg[...])
                else:
                    cg = crefs[ci]
                    ci += 1
                    feat = _mm(X, cg[...])
            elif kind == "linear":           # classifier epilogue
                w, b = crefs[ci], crefs[ci + 1]
                ci += 2
                logits = _mm(feat, w[...]) + b[...]

        v_ref[...] = feat.astype(v_ref.dtype)
        y_ref[...] = logits.astype(y_ref.dtype)

    return kernel


# -------------------- host-side constant folding (numpy) --------------------
def _fold_bn(bn):
    scale = np.asarray(bn["gamma"], np.float32) / np.sqrt(
        np.asarray(bn["var"], np.float32) + BN_EPS)
    bias = (np.asarray(bn["beta"], np.float32)
            - np.asarray(bn["mean"], np.float32) * scale)
    return scale, bias


def build_osnet_forward(params, n, in_h, in_w):
    """Folds params into matmul constants; returns forward(x, training)."""
    ops = []        # static op descriptors consumed by the kernel closure
    consts = []     # flat list of constant device arrays (kernel inputs)
    flops = [0]     # per-sample MXU flops (cost hint)
    geom = {"H": in_h, "W": in_w, "C": 3}

    def add_conv(w_jnp, bn, stride, pad):
        wnp = np.asarray(w_jnp, np.float32)
        cout, cin, kh, kw = wnp.shape
        H, W, C = geom["H"], geom["W"], geom["C"]
        assert cin == C
        scale, bias = _fold_bn(bn)
        Ho = (H + 2 * pad - kh) // stride + 1
        Wo = (W + 2 * pad - kw) // stride + 1
        li, lo = _pad_lane(W * C), _pad_lane(Wo * cout)
        bias_row = np.zeros((1, lo), np.float32)
        for wo in range(Wo):
            bias_row[0, wo * cout:(wo + 1) * cout] = bias

        if kh == 1 and kw == 1 and stride == 1 and pad == 0:
            cw = np.zeros((li, lo), np.float32)
            for wi in range(W):
                cw[wi * cin:(wi + 1) * cin, wi * cout:(wi + 1) * cout] = (
                    wnp[:, :, 0, 0].T * scale[None, :])
            consts.extend([jnp.asarray(cw, _MM_DTYPE), jnp.asarray(bias_row)])
            ops.append(("conv1x1", {}))
            flops[0] += 2 * H * li * lo
        else:
            # column taps dj, zero padding, conv weights and BN scale folded
            # into ONE (kh*Lin, Lout) matrix so the tap sum happens in the MXU.
            cw = np.zeros((kh * li, lo), np.float32)
            for di in range(kh):
                for dj in range(kw):
                    for wo in range(Wo):
                        wi = wo * stride + dj - pad
                        if 0 <= wi < W:
                            cw[di * li + wi * cin:di * li + (wi + 1) * cin,
                               wo * cout:(wo + 1) * cout] += (
                                   wnp[:, :, di, dj].T * scale[None, :])
            if Ho % 8 == 0:
                # stacked row selector: one matmul, sublane-aligned row blocks
                rs = np.zeros((kh * Ho, H), np.float32)
                for di in range(kh):
                    for ho in range(Ho):
                        hi = ho * stride + di - pad
                        if 0 <= hi < H:
                            rs[di * Ho + ho, hi] = 1.0
                ops.append(("conv_s", {"k": kh, "ho": Ho}))
            else:
                # per-tap row selectors, indexed via static ref slices
                rs = np.zeros((kh, Ho, H), np.float32)
                for di in range(kh):
                    for ho in range(Ho):
                        hi = ho * stride + di - pad
                        if 0 <= hi < H:
                            rs[di, ho, hi] = 1.0
                ops.append(("conv_t", {"k": kh}))
            consts.extend([jnp.asarray(rs, _MM_DTYPE),
                           jnp.asarray(cw, _MM_DTYPE),
                           jnp.asarray(bias_row)])
            flops[0] += 2 * (kh * Ho) * H * li + 2 * Ho * (kh * li) * lo
        geom.update(H=Ho, W=Wo, C=cout)

    def add_maxpool(k, stride, pad):
        H, W, C = geom["H"], geom["W"], geom["C"]
        Ho = (H + 2 * pad - k) // stride + 1
        Wo = (W + 2 * pad - k) // stride + 1
        li, lo = _pad_lane(W * C), _pad_lane(Wo * C)
        assert Ho % 8 == 0, "maxpool path assumes sublane-aligned row blocks"
        rs = np.zeros((k * Ho, H), np.float32)
        for di in range(k):
            for ho in range(Ho):
                hi = ho * stride + di - pad
                if 0 <= hi < H:
                    rs[di * Ho + ho, hi] = 1.0
        cs = np.zeros((li, k * lo), np.float32)
        for dj in range(k):
            for wo in range(Wo):
                wi = wo * stride + dj - pad
                if 0 <= wi < W:
                    for c in range(C):
                        cs[wi * C + c, dj * lo + wo * C + c] = 1.0
        consts.extend([jnp.asarray(rs, _MM_DTYPE), jnp.asarray(cs, _MM_DTYPE)])
        ops.append(("maxpool", {"k": k, "ho": Ho, "lo": lo}))
        flops[0] += 2 * (k * Ho) * H * li + 2 * (k * Ho) * li * (k * lo)
        geom.update(H=Ho, W=Wo)

    def add_avgpool():            # AvgPool2d(2, stride=2)
        H, W, C = geom["H"], geom["W"], geom["C"]
        Ho, Wo = H // 2, W // 2
        li, lo = _pad_lane(W * C), _pad_lane(Wo * C)
        ra = np.zeros((Ho, H), np.float32)
        for ho in range(Ho):
            ra[ho, 2 * ho] = 0.5
            ra[ho, 2 * ho + 1] = 0.5
        ca = np.zeros((li, lo), np.float32)
        for wo in range(Wo):
            for d in (0, 1):
                for c in range(C):
                    ca[(2 * wo + d) * C + c, wo * C + c] = 0.5
        consts.extend([jnp.asarray(ra, _MM_DTYPE), jnp.asarray(ca, _MM_DTYPE)])
        ops.append(("avgpool", {}))
        flops[0] += 2 * Ho * H * li + 2 * Ho * li * lo
        geom.update(H=Ho, W=Wo)

    def add_gpool():              # adaptive_avg_pool2d(1) + flatten
        H, W, C = geom["H"], geom["W"], geom["C"]
        li = _pad_lane(W * C)
        cg = np.zeros((li, C), np.float32)
        for wi in range(W):
            for c in range(C):
                cg[wi * C + c, c] = 1.0 / W
        if H > 1:
            rg = np.full((1, H), 1.0 / H, np.float32)
            consts.extend([jnp.asarray(rg, _MM_DTYPE),
                           jnp.asarray(cg, _MM_DTYPE)])
            flops[0] += 2 * H * li + 2 * li * C
        else:
            consts.append(jnp.asarray(cg, _MM_DTYPE))
            flops[0] += 2 * li * C
        ops.append(("gpool", {"has_row": H > 1}))
        geom.update(H=1, W=1)

    def add_linear(w_jnp, b_jnp):
        wct = np.asarray(w_jnp, np.float32).T          # (feature_dim, classes)
        consts.extend([
            jnp.asarray(wct, _MM_DTYPE),
            jnp.asarray(np.asarray(b_jnp, np.float32)[None, :])])
        ops.append(("linear", {}))
        flops[0] += 2 * wct.shape[0] * wct.shape[1]

    # -- network definition (matches the PyTorch module, eval-mode BN) -------
    add_conv(params["conv1"]["w"], params["conv1"]["bn"], stride=2, pad=3)
    add_maxpool(3, 2, 1)
    for name in ("conv2", "conv3", "conv4"):
        for layer in params[name]:
            k = int(layer["w"].shape[2])
            add_conv(layer["w"], layer["bn"], stride=1, pad=k // 2)
        add_avgpool()    # reduce_spatial_size: Conv1x1 above + AvgPool2d(2,2)
    add_conv(params["conv5"]["w"], params["conv5"]["bn"], stride=1, pad=0)
    add_gpool()
    add_linear(params["classifier"]["w"], params["classifier"]["b"])

    num_classes = int(params["classifier"]["w"].shape[0])
    feature_dim = int(params["classifier"]["w"].shape[1])
    lane0 = _pad_lane(in_w * 3)

    const_arrays = tuple(consts)
    const_bytes = sum(int(c.size) * int(c.dtype.itemsize) for c in const_arrays)
    io_bytes = (n * in_h * lane0 * 4
                + n * (feature_dim + num_classes) * 4 + const_bytes)

    def _const_spec(c):
        nd = c.ndim
        return pl.BlockSpec(c.shape, lambda i, _nd=nd: (0,) * _nd)

    fused_call = pl.pallas_call(
        _make_kernel(ops),
        grid=(n,),
        in_specs=[pl.BlockSpec((None, in_h, lane0), lambda i: (i, 0, 0))]
                 + [_const_spec(c) for c in const_arrays],
        out_specs=(pl.BlockSpec((None, 1, feature_dim), lambda i: (i, 0, 0)),
                   pl.BlockSpec((None, 1, num_classes), lambda i: (i, 0, 0))),
        out_shape=(jax.ShapeDtypeStruct((n, 1, feature_dim), jnp.float32),
                   jax.ShapeDtypeStruct((n, 1, num_classes), jnp.float32)),
        compiler_params=pltpu.CompilerParams(
            dimension_semantics=("parallel",),
            vmem_limit_bytes=32 * 1024 * 1024),
        cost_estimate=pl.CostEstimate(flops=int(n * flops[0]),
                                      transcendentals=0,
                                      bytes_accessed=int(io_bytes)),
    )

    @jax.jit
    def _run(x_nchw):
        # NCHW -> per-sample (H, W*Cin) layout, lane-padded to 128.
        x = jnp.transpose(x_nchw.astype(jnp.float32), (0, 2, 3, 1))
        x = x.reshape(n, in_h, in_w * 3)
        x = jnp.pad(x, ((0, 0), (0, 0), (0, lane0 - in_w * 3)))
        v3, y3 = fused_call(x, *const_arrays)
        return v3[:, 0, :], y3[:, 0, :]

    def forward(x_nchw, training=False):
        v, y = _run(x_nchw)
        return y if training else v   # matches OSNet.forward (loss='softmax')

    return forward


# ----------------------------- parameter init -------------------------------
def _kaiming_conv(key, c_out, c_in, kh, kw):
    fan_out = c_out * kh * kw     # mode='fan_out', nonlinearity='relu'
    std = (2.0 / fan_out) ** 0.5
    return std * jax.random.normal(key, (c_out, c_in, kh, kw), jnp.float32)


def _bn_params(c):
    return dict(gamma=jnp.ones((c,), jnp.float32),
                beta=jnp.zeros((c,), jnp.float32),
                mean=jnp.zeros((c,), jnp.float32),
                var=jnp.ones((c,), jnp.float32))


def init_params(key):
    keys = iter(jax.random.split(key, 64))
    p = {}
    p["conv1"] = dict(w=_kaiming_conv(next(keys), CHANNELS[0], 3, 7, 7),
                      bn=_bn_params(CHANNELS[0]))

    def make_stage(in_c, out_c, n_layers):
        stage = []
        c = in_c
        for _ in range(n_layers):   # `block` = 3x3 ConvLayer (see TODO above)
            stage.append(dict(w=_kaiming_conv(next(keys), out_c, c, 3, 3),
                              bn=_bn_params(out_c)))
            c = out_c
        # reduce_spatial_size: Conv1x1 (+ AvgPool2d(2,2) applied afterwards)
        stage.append(dict(w=_kaiming_conv(next(keys), out_c, out_c, 1, 1),
                          bn=_bn_params(out_c)))
        return stage

    p["conv2"] = make_stage(CHANNELS[0], CHANNELS[1], LAYERS[0])
    p["conv3"] = make_stage(CHANNELS[1], CHANNELS[2], LAYERS[1])
    p["conv4"] = make_stage(CHANNELS[2], CHANNELS[3], LAYERS[2])
    p["conv5"] = dict(w=_kaiming_conv(next(keys), FEATURE_DIM, CHANNELS[3], 1, 1),
                      bn=_bn_params(FEATURE_DIM))
    p["classifier"] = dict(
        w=0.01 * jax.random.normal(next(keys), (NUM_CLASSES, FEATURE_DIM),
                                   jnp.float32),
        b=jnp.zeros((NUM_CLASSES,), jnp.float32))
    return p


# ----------------------- pure-XLA reference (for checking) ------------------
def reference_forward(x_nchw, params):
    x = jnp.transpose(x_nchw, (0, 2, 3, 1)).astype(jnp.float32)

    def conv_bn_relu(x, w, bn, stride, pad):
        scale = bn["gamma"] / jnp.sqrt(bn["var"] + BN_EPS)
        bias = bn["beta"] - bn["mean"] * scale
        y = jax.lax.conv_general_dilated(
            x, jnp.transpose(w, (2, 3, 1, 0)), (stride, stride),
            [(pad, pad), (pad, pad)],
            dimension_numbers=("NHWC", "HWIO", "NHWC"))
        return jnp.maximum(y * scale + bias, 0.0)

    def maxpool(x, k, s, p):
        return jax.lax.reduce_window(
            x, -jnp.inf, jax.lax.max, (1, k, k, 1), (1, s, s, 1),
            [(0, 0), (p, p), (p, p), (0, 0)])

    def avgpool2(x):
        s = jax.lax.reduce_window(
            x, 0.0, jax.lax.add, (1, 2, 2, 1), (1, 2, 2, 1), "VALID")
        return s * 0.25

    x = conv_bn_relu(x, params["conv1"]["w"], params["conv1"]["bn"], 2, 3)
    x = maxpool(x, 3, 2, 1)
    for name in ("conv2", "conv3", "conv4"):
        for layer in params[name]:
            k = int(layer["w"].shape[2])
            x = conv_bn_relu(x, layer["w"], layer["bn"], 1, k // 2)
        x = avgpool2(x)
    x = conv_bn_relu(x, params["conv5"]["w"], params["conv5"]["bn"], 1, 0)
    v = jnp.mean(x, axis=(1, 2))
    y = v @ params["classifier"]["w"].T + params["classifier"]["b"]
    return v, y


# ----------------------------- main ------------------------------------------
if __name__ == "__main__":
    key = jax.random.PRNGKey(0)
    pkey, xkey = jax.random.split(key)
    params = init_params(pkey)

    N, H, W = 2, 32, 32
    x = jax.random.normal(xkey, (N, 3, H, W), jnp.float32)

    forward = build_osnet_forward(params, N, H, W)
    v = forward(x, training=False)   # eval path: pooled feature vector
    y = forward(x, training=True)    # train path: softmax logits
    jax.block_until_ready((v, y))

    assert v.shape == (N, FEATURE_DIM), v.shape
    assert y.shape == (N, NUM_CLASSES), y.shape
    assert bool(jnp.all(jnp.isfinite(v))) and bool(jnp.all(jnp.isfinite(y)))

    # numerical sanity vs. a pure-XLA reference (bf16 MXU operands -> loose tol)
    v_ref, y_ref = reference_forward(x, params)
    np.testing.assert_allclose(np.asarray(v), np.asarray(v_ref),
                               rtol=0.15, atol=0.08)
    np.testing.assert_allclose(np.asarray(y), np.asarray(y_ref),
                               rtol=0.15, atol=0.08)
    print("KERNEL_OK")
</pallas_src>

<mosaic_0001>
module attributes {stable_mosaic.version = 11 : i64} {
  func.func @kernel(%arg0: i32, %arg1: memref<1x32x128xf32, #tpu.memory_space<vmem>>, %arg2: memref<112x32xbf16, #tpu.memory_space<vmem>>, %arg3: memref<896x128xbf16, #tpu.memory_space<vmem>>, %arg4: memref<1x128xf32, #tpu.memory_space<vmem>>, %arg5: memref<24x16xbf16, #tpu.memory_space<vmem>>, %arg6: memref<128x384xbf16, #tpu.memory_space<vmem>>, %arg7: memref<24x8xbf16, #tpu.memory_space<vmem>>, %arg8: memref<384x128xbf16, #tpu.memory_space<vmem>>, %arg9: memref<1x128xf32, #tpu.memory_space<vmem>>, %arg10: memref<24x8xbf16, #tpu.memory_space<vmem>>, %arg11: memref<384x128xbf16, #tpu.memory_space<vmem>>, %arg12: memref<1x128xf32, #tpu.memory_space<vmem>>, %arg13: memref<128x128xbf16, #tpu.memory_space<vmem>>, %arg14: memref<1x128xf32, #tpu.memory_space<vmem>>, %arg15: memref<4x8xbf16, #tpu.memory_space<vmem>>, %arg16: memref<128x128xbf16, #tpu.memory_space<vmem>>, %arg17: memref<3x4x4xbf16, #tpu.memory_space<vmem>>, %arg18: memref<384x128xbf16, #tpu.memory_space<vmem>>, %arg19: memref<1x128xf32, #tpu.memory_space<vmem>>, %arg20: memref<3x4x4xbf16, #tpu.memory_space<vmem>>, %arg21: memref<384x128xbf16, #tpu.memory_space<vmem>>, %arg22: memref<1x128xf32, #tpu.memory_space<vmem>>, %arg23: memref<128x128xbf16, #tpu.memory_space<vmem>>, %arg24: memref<1x128xf32, #tpu.memory_space<vmem>>, %arg25: memref<2x4xbf16, #tpu.memory_space<vmem>>, %arg26: memref<128x128xbf16, #tpu.memory_space<vmem>>, %arg27: memref<3x2x2xbf16, #tpu.memory_space<vmem>>, %arg28: memref<384x128xbf16, #tpu.memory_space<vmem>>, %arg29: memref<1x128xf32, #tpu.memory_space<vmem>>, %arg30: memref<3x2x2xbf16, #tpu.memory_space<vmem>>, %arg31: memref<384x128xbf16, #tpu.memory_space<vmem>>, %arg32: memref<1x128xf32, #tpu.memory_space<vmem>>, %arg33: memref<128x128xbf16, #tpu.memory_space<vmem>>, %arg34: memref<1x128xf32, #tpu.memory_space<vmem>>, %arg35: memref<1x2xbf16, #tpu.memory_space<vmem>>, %arg36: memref<128x128xbf16, #tpu.memory_space<vmem>>, %arg37: memref<128x128xbf16, #tpu.memory_space<vmem>>, %arg38: memref<1x128xf32, #tpu.memory_space<vmem>>, %arg39: memref<128x32xbf16, #tpu.memory_space<vmem>>, %arg40: memref<32x16xbf16, #tpu.memory_space<vmem>>, %arg41: memref<1x16xf32, #tpu.memory_space<vmem>>, %arg42: memref<1x1x32xf32, #tpu.memory_space<vmem>>, %arg43: memref<1x1x16xf32, #tpu.memory_space<vmem>>) attributes {dimension_semantics = [#tpu.dimension_semantics<parallel>], iteration_bounds = array<i64: 2>, scalar_prefetch = 0 : i64, scratch_operands = 0 : i64, tpu.core_type = #tpu.core_type<tc>, window_params = [{transform_indices = @transform_0, window_bounds = array<i64: 1, 32, 128>}, {pipeline_mode = #tpu.pipeline_mode<synchronous>, transform_indices = @transform_1, window_bounds = array<i64: 112, 32>}, {pipeline_mode = #tpu.pipeline_mode<synchronous>, transform_indices = @transform_2, window_bounds = array<i64: 896, 128>}, {pipeline_mode = #tpu.pipeline_mode<synchronous>, transform_indices = @transform_3, window_bounds = array<i64: 1, 128>}, {pipeline_mode = #tpu.pipeline_mode<synchronous>, transform_indices = @transform_4, window_bounds = array<i64: 24, 16>}, {pipeline_mode = #tpu.pipeline_mode<synchronous>, transform_indices = @transform_5, window_bounds = array<i64: 128, 384>}, {pipeline_mode = #tpu.pipeline_mode<synchronous>, transform_indices = @transform_6, window_bounds = array<i64: 24, 8>}, {pipeline_mode = #tpu.pipeline_mode<synchronous>, transform_indices = @transform_7, window_bounds = array<i64: 384, 128>}, {pipeline_mode = #tpu.pipeline_mode<synchronous>, transform_indices = @transform_8, window_bounds = array<i64: 1, 128>}, {pipeline_mode = #tpu.pipeline_mode<synchronous>, transform_indices = @transform_9, window_bounds = array<i64: 24, 8>}, {pipeline_mode = #tpu.pipeline_mode<synchronous>, transform_indices = @transform_10, window_bounds = array<i64: 384, 128>}, {pipeline_mode = #tpu.pipeline_mode<synchronous>, transform_indices = @transform_11, window_bounds = array<i64: 1, 128>}, {pipeline_mode = #tpu.pipeline_mode<synchronous>, transform_indices = @transform_12, window_bounds = array<i64: 128, 128>}, {pipeline_mode = #tpu.pipeline_mode<synchronous>, transform_indices = @transform_13, window_bounds = array<i64: 1, 128>}, {pipeline_mode = #tpu.pipeline_mode<synchronous>, transform_indices = @transform_14, window_bounds = array<i64: 4, 8>}, {pipeline_mode = #tpu.pipeline_mode<synchronous>, transform_indices = @transform_15, window_bounds = array<i64: 128, 128>}, {pipeline_mode = #tpu.pipeline_mode<synchronous>, transform_indices = @transform_16, window_bounds = array<i64: 3, 4, 4>}, {pipeline_mode = #tpu.pipeline_mode<synchronous>, transform_indices = @transform_17, window_bounds = array<i64: 384, 128>}, {pipeline_mode = #tpu.pipeline_mode<synchronous>, transform_indices = @transform_18, window_bounds = array<i64: 1, 128>}, {pipeline_mode = #tpu.pipeline_mode<synchronous>, transform_indices = @transform_19, window_bounds = array<i64: 3, 4, 4>}, {pipeline_mode = #tpu.pipeline_mode<synchronous>, transform_indices = @transform_20, window_bounds = array<i64: 384, 128>}, {pipeline_mode = #tpu.pipeline_mode<synchronous>, transform_indices = @transform_21, window_bounds = array<i64: 1, 128>}, {pipeline_mode = #tpu.pipeline_mode<synchronous>, transform_indices = @transform_22, window_bounds = array<i64: 128, 128>}, {pipeline_mode = #tpu.pipeline_mode<synchronous>, transform_indices = @transform_23, window_bounds = array<i64: 1, 128>}, {pipeline_mode = #tpu.pipeline_mode<synchronous>, transform_indices = @transform_24, window_bounds = array<i64: 2, 4>}, {pipeline_mode = #tpu.pipeline_mode<synchronous>, transform_indices = @transform_25, window_bounds = array<i64: 128, 128>}, {pipeline_mode = #tpu.pipeline_mode<synchronous>, transform_indices = @transform_26, window_bounds = array<i64: 3, 2, 2>}, {pipeline_mode = #tpu.pipeline_mode<synchronous>, transform_indices = @transform_27, window_bounds = array<i64: 384, 128>}, {pipeline_mode = #tpu.pipeline_mode<synchronous>, transform_indices = @transform_28, window_bounds = array<i64: 1, 128>}, {pipeline_mode = #tpu.pipeline_mode<synchronous>, transform_indices = @transform_29, window_bounds = array<i64: 3, 2, 2>}, {pipeline_mode = #tpu.pipeline_mode<synchronous>, transform_indices = @transform_30, window_bounds = array<i64: 384, 128>}, {pipeline_mode = #tpu.pipeline_mode<synchronous>, transform_indices = @transform_31, window_bounds = array<i64: 1, 128>}, {pipeline_mode = #tpu.pipeline_mode<synchronous>, transform_indices = @transform_32, window_bounds = array<i64: 128, 128>}, {pipeline_mode = #tpu.pipeline_mode<synchronous>, transform_indices = @transform_33, window_bounds = array<i64: 1, 128>}, {pipeline_mode = #tpu.pipeline_mode<synchronous>, transform_indices = @transform_34, window_bounds = array<i64: 1, 2>}, {pipeline_mode = #tpu.pipeline_mode<synchronous>, transform_indices = @transform_35, window_bounds = array<i64: 128, 128>}, {pipeline_mode = #tpu.pipeline_mode<synchronous>, transform_indices = @transform_36, window_bounds = array<i64: 128, 128>}, {pipeline_mode = #tpu.pipeline_mode<synchronous>, transform_indices = @transform_37, window_bounds = array<i64: 1, 128>}, {pipeline_mode = #tpu.pipeline_mode<synchronous>, transform_indices = @transform_38, window_bounds = array<i64: 128, 32>}, {pipeline_mode = #tpu.pipeline_mode<synchronous>, transform_indices = @transform_39, window_bounds = array<i64: 32, 16>}, {pipeline_mode = #tpu.pipeline_mode<synchronous>, transform_indices = @transform_40, window_bounds = array<i64: 1, 16>}, {transform_indices = @transform_41, window_bounds = array<i64: 1, 1, 32>}, {transform_indices = @transform_42, window_bounds = array<i64: 1, 1, 16>}]} {
    %c0 = arith.constant 0 : index
    %c0_0 = arith.constant 0 : index
    %c0_1 = arith.constant 0 : index
    %0 = vector.load %arg1[%c0, %c0_0, %c0_1] : memref<1x32x128xf32, #tpu.memory_space<vmem>>, vector<1x32x128xf32>
    %1 = vector.shape_cast %0 : vector<1x32x128xf32> to vector<32x128xf32>
    %c0_2 = arith.constant 0 : index
    %c0_3 = arith.constant 0 : index
    %2 = vector.load %arg2[%c0_2, %c0_3] : memref<112x32xbf16, #tpu.memory_space<vmem>>, vector<112x32xbf16>
    %3 = arith.truncf %1 : vector<32x128xf32> to vector<32x128xbf16>
    %cst = arith.constant dense<0.000000e+00> : vector<112x128xf32>
    %4 = tpu.matmul %2, %3, %cst {dimension_numbers = #tpu.dot_dimension_numbers<[1], [0], [0], [1], [0, 0, 1, 1], [], []>} : vector<112x32xbf16>, vector<32x128xbf16>, vector<112x128xf32> -> vector<112x128xf32>
    %5 = vector.extract_strided_slice %4 {offsets = [0, 0], sizes = [16, 128], strides = [1, 1]} : vector<112x128xf32> to vector<16x128xf32>
    %6 = vector.extract_strided_slice %4 {offsets = [16, 0], sizes = [16, 128], strides = [1, 1]} : vector<112x128xf32> to vector<16x128xf32>
    %7 = vector.extract_strided_slice %4 {offsets = [32, 0], sizes = [16, 128], strides = [1, 1]} : vector<112x128xf32> to vector<16x128xf32>
    %8 = vector.extract_strided_slice %4 {offsets = [48, 0], sizes = [16, 128], strides = [1, 1]} : vector<112x128xf32> to vector<16x128xf32>
    %9 = vector.extract_strided_slice %4 {offsets = [64, 0], sizes = [16, 128], strides = [1, 1]} : vector<112x128xf32> to vector<16x128xf32>
    %10 = vector.extract_strided_slice %4 {offsets = [80, 0], sizes = [16, 128], strides = [1, 1]} : vector<112x128xf32> to vector<16x128xf32>
    %11 = vector.extract_strided_slice %4 {offsets = [96, 0], sizes = [16, 128], strides = [1, 1]} : vector<112x128xf32> to vector<16x128xf32>
    %12 = tpu.concatenate %5, %6, %7, %8, %9, %10, %11 in 1 : vector<16x128xf32>, vector<16x128xf32>, vector<16x128xf32>, vector<16x128xf32>, vector<16x128xf32>, vector<16x128xf32>, vector<16x128xf32> -> vector<16x896xf32>
    %c0_4 = arith.constant 0 : index
    %c0_5 = arith.constant 0 : index
    %13 = vector.load %arg3[%c0_4, %c0_5] : memref<896x128xbf16, #tpu.memory_space<vmem>>, vector<896x128xbf16>
    %14 = arith.truncf %12 : vector<16x896xf32> to vector<16x896xbf16>
    %cst_6 = arith.constant dense<0.000000e+00> : vector<16x128xf32>
    %15 = tpu.matmul %14, %13, %cst_6 {dimension_numbers = #tpu.dot_dimension_numbers<[1], [0], [0], [1], [0, 0, 1, 1], [], []>} : vector<16x896xbf16>, vector<896x128xbf16>, vector<16x128xf32> -> vector<16x128xf32>
    %c0_7 = arith.constant 0 : index
    %c0_8 = arith.constant 0 : index
    %16 = vector.load %arg4[%c0_7, %c0_8] : memref<1x128xf32, #tpu.memory_space<vmem>>, vector<1x128xf32>
    %17 = vector.broadcast %16 : vector<1x128xf32> to vector<16x128xf32>
    %18 = arith.addf %15, %17 : vector<16x128xf32>
    %cst_9 = arith.constant 0.000000e+00 : f32
    %19 = vector.broadcast %cst_9 : f32 to vector<16x128xf32>
    %20 = arith.maximumf %18, %19 : vector<16x128xf32>
    %c0_10 = arith.constant 0 : index
    %c0_11 = arith.constant 0 : index
    %21 = vector.load %arg5[%c0_10, %c0_11] : memref<24x16xbf16, #tpu.memory_space<vmem>>, vector<24x16xbf16>
    %22 = arith.truncf %20 : vector<16x128xf32> to vector<16x128xbf16>
    %cst_12 = arith.constant dense<0.000000e+00> : vector<24x128xf32>
    %23 = tpu.matmul %21, %22, %cst_12 {dimension_numbers = #tpu.dot_dimension_numbers<[1], [0], [0], [1], [0, 0, 1, 1], [], []>} : vector<24x16xbf16>, vector<16x128xbf16>, vector<24x128xf32> -> vector<24x128xf32>
    %c0_13 = arith.constant 0 : index
    %c0_14 = arith.constant 0 : index
    %24 = vector.load %arg6[%c0_13, %c0_14] : memref<128x384xbf16, #tpu.memory_space<vmem>>, vector<128x384xbf16>
    %25 = arith.truncf %23 : vector<24x128xf32> to vector<24x128xbf16>
    %cst_15 = arith.constant dense<0.000000e+00> : vector<24x384xf32>
    %26 = tpu.matmul %25, %24, %cst_15 {dimension_numbers = #tpu.dot_dimension_numbers<[1], [0], [0], [1], [0, 0, 1, 1], [], []>} : vector<24x128xbf16>, vector<128x384xbf16>, vector<24x384xf32> -> vector<24x384xf32>
    %27 = vector.extract_strided_slice %26 {offsets = [0, 0], sizes = [8, 128], strides = [1, 1]} : vector<24x384xf32> to vector<8x128xf32>
    %28 = vector.extract_strided_slice %26 {offsets = [0, 128], sizes = [8, 128], strides = [1, 1]} : vector<24x384xf32> to vector<8x128xf32>
    %29 = arith.maximumf %27, %28 : vector<8x128xf32>
    %30 = vector.extract_strided_slice %26 {offsets = [0, 256], sizes = [8, 128], strides = [1, 1]} : vector<24x384xf32> to vector<8x128xf32>
    %31 = arith.maximumf %29, %30 : vector<8x128xf32>
    %32 = vector.extract_strided_slice %26 {offsets = [8, 0], sizes = [8, 128], strides = [1, 1]} : vector<24x384xf32> to vector<8x128xf32>
    %33 = arith.maximumf %31, %32 : vector<8x128xf32>
    %34 = vector.extract_strided_slice %26 {offsets = [8, 128], sizes = [8, 128], strides = [1, 1]} : vector<24x384xf32> to vector<8x128xf32>
    %35 = arith.maximumf %33, %34 : vector<8x128xf32>
    %36 = vector.extract_strided_slice %26 {offsets = [8, 256], sizes = [8, 128], strides = [1, 1]} : vector<24x384xf32> to vector<8x128xf32>
    %37 = arith.maximumf %35, %36 : vector<8x128xf32>
    %38 = vector.extract_strided_slice %26 {offsets = [16, 0], sizes = [8, 128], strides = [1, 1]} : vector<24x384xf32> to vector<8x128xf32>
    %39 = arith.maximumf %37, %38 : vector<8x128xf32>
    %40 = vector.extract_strided_slice %26 {offsets = [16, 128], sizes = [8, 128], strides = [1, 1]} : vector<24x384xf32> to vector<8x128xf32>
    %41 = arith.maximumf %39, %40 : vector<8x128xf32>
    %42 = vector.extract_strided_slice %26 {offsets = [16, 256], sizes = [8, 128], strides = [1, 1]} : vector<24x384xf32> to vector<8x128xf32>
    %43 = arith.maximumf %41, %42 : vector<8x128xf32>
    %c0_16 = arith.constant 0 : index
    %c0_17 = arith.constant 0 : index
    %44 = vector.load %arg7[%c0_16, %c0_17] : memref<24x8xbf16, #tpu.memory_space<vmem>>, vector<24x8xbf16>
    %45 = arith.truncf %43 : vector<8x128xf32> to vector<8x128xbf16>
    %cst_18 = arith.constant dense<0.000000e+00> : vector<24x128xf32>
    %46 = tpu.matmul %44, %45, %cst_18 {dimension_numbers = #tpu.dot_dimension_numbers<[1], [0], [0], [1], [0, 0, 1, 1], [], []>} : vector<24x8xbf16>, vector<8x128xbf16>, vector<24x128xf32> -> vector<24x128xf32>
    %47 = vector.extract_strided_slice %46 {offsets = [0, 0], sizes = [8, 128], strides = [1, 1]} : vector<24x128xf32> to vector<8x128xf32>
    %48 = vector.extract_strided_slice %46 {offsets = [8, 0], sizes = [8, 128], strides = [1, 1]} : vector<24x128xf32> to vector<8x128xf32>
    %49 = vector.extract_strided_slice %46 {offsets = [16, 0], sizes = [8, 128], strides = [1, 1]} : vector<24x128xf32> to vector<8x128xf32>
    %50 = tpu.concatenate %47, %48, %49 in 1 : vector<8x128xf32>, vector<8x128xf32>, vector<8x128xf32> -> vector<8x384xf32>
    %c0_19 = arith.constant 0 : index
    %c0_20 = arith.constant 0 : index
    %51 = vector.load %arg8[%c0_19, %c0_20] : memref<384x128xbf16, #tpu.memory_space<vmem>>, vector<384x128xbf16>
    %52 = arith.truncf %50 : vector<8x384xf32> to vector<8x384xbf16>
    %cst_21 = arith.constant dense<0.000000e+00> : vector<8x128xf32>
    %53 = tpu.matmul %52, %51, %cst_21 {dimension_numbers = #tpu.dot_dimension_numbers<[1], [0], [0], [1], [0, 0, 1, 1], [], []>} : vector<8x384xbf16>, vector<384x128xbf16>, vector<8x128xf32> -> vector<8x128xf32>
    %c0_22 = arith.constant 0 : index
    %c0_23 = arith.constant 0 : index
    %54 = vector.load %arg9[%c0_22, %c0_23] : memref<1x128xf32, #tpu.memory_space<vmem>>, vector<1x128xf32>
    %55 = vector.broadcast %54 : vector<1x128xf32> to vector<8x128xf32>
    %56 = arith.addf %53, %55 : vector<8x128xf32>
    %cst_24 = arith.constant 0.000000e+00 : f32
    %57 = vector.broadcast %cst_24 : f32 to vector<8x128xf32>
    %58 = arith.maximumf %56, %57 : vector<8x128xf32>
    %c0_25 = arith.constant 0 : index
    %c0_26 = arith.constant 0 : index
    %59 = vector.load %arg10[%c0_25, %c0_26] : memref<24x8xbf16, #tpu.memory_space<vmem>>, vector<24x8xbf16>
    %60 = arith.truncf %58 : vector<8x128xf32> to vector<8x128xbf16>
    %cst_27 = arith.constant dense<0.000000e+00> : vector<24x128xf32>
    %61 = tpu.matmul %59, %60, %cst_27 {dimension_numbers = #tpu.dot_dimension_numbers<[1], [0], [0], [1], [0, 0, 1, 1], [], []>} : vector<24x8xbf16>, vector<8x128xbf16>, vector<24x128xf32> -> vector<24x128xf32>
    %62 = vector.extract_strided_slice %61 {offsets = [0, 0], sizes = [8, 128], strides = [1, 1]} : vector<24x128xf32> to vector<8x128xf32>
    %63 = vector.extract_strided_slice %61 {offsets = [8, 0], sizes = [8, 128], strides = [1, 1]} : vector<24x128xf32> to vector<8x128xf32>
    %64 = vector.extract_strided_slice %61 {offsets = [16, 0], sizes = [8, 128], strides = [1, 1]} : vector<24x128xf32> to vector<8x128xf32>
    %65 = tpu.concatenate %62, %63, %64 in 1 : vector<8x128xf32>, vector<8x128xf32>, vector<8x128xf32> -> vector<8x384xf32>
    %c0_28 = arith.constant 0 : index
    %c0_29 = arith.constant 0 : index
    %66 = vector.load %arg11[%c0_28, %c0_29] : memref<384x128xbf16, #tpu.memory_space<vmem>>, vector<384x128xbf16>
    %67 = arith.truncf %65 : vector<8x384xf32> to vector<8x384xbf16>
    %cst_30 = arith.constant dense<0.000000e+00> : vector<8x128xf32>
    %68 = tpu.matmul %67, %66, %cst_30 {dimension_numbers = #tpu.dot_dimension_numbers<[1], [0], [0], [1], [0, 0, 1, 1], [], []>} : vector<8x384xbf16>, vector<384x128xbf16>, vector<8x128xf32> -> vector<8x128xf32>
    %c0_31 = arith.constant 0 : index
    %c0_32 = arith.constant 0 : index
    %69 = vector.load %arg12[%c0_31, %c0_32] : memref<1x128xf32, #tpu.memory_space<vmem>>, vector<1x128xf32>
    %70 = vector.broadcast %69 : vector<1x128xf32> to vector<8x128xf32>
    %71 = arith.addf %68, %70 : vector<8x128xf32>
    %cst_33 = arith.constant 0.000000e+00 : f32
    %72 = vector.broadcast %cst_33 : f32 to vector<8x128xf32>
    %73 = arith.maximumf %71, %72 : vector<8x128xf32>
    %c0_34 = arith.constant 0 : index
    %c0_35 = arith.constant 0 : index
    %74 = vector.load %arg13[%c0_34, %c0_35] : memref<128x128xbf16, #tpu.memory_space<vmem>>, vector<128x128xbf16>
    %75 = arith.truncf %73 : vector<8x128xf32> to vector<8x128xbf16>
    %cst_36 = arith.constant dense<0.000000e+00> : vector<8x128xf32>
    %76 = tpu.matmul %75, %74, %cst_36 {dimension_numbers = #tpu.dot_dimension_numbers<[1], [0], [0], [1], [0, 0, 1, 1], [], []>} : vector<8x128xbf16>, vector<128x128xbf16>, vector<8x128xf32> -> vector<8x128xf32>
    %c0_37 = arith.constant 0 : index
    %c0_38 = arith.constant 0 : index
    %77 = vector.load %arg14[%c0_37, %c0_38] : memref<1x128xf32, #tpu.memory_space<vmem>>, vector<1x128xf32>
    %78 = vector.broadcast %77 : vector<1x128xf32> to vector<8x128xf32>
    %79 = arith.addf %76, %78 : vector<8x128xf32>
    %cst_39 = arith.constant 0.000000e+00 : f32
    %80 = vector.broadcast %cst_39 : f32 to vector<8x128xf32>
    %81 = arith.maximumf %79, %80 : vector<8x128xf32>
    %c0_40 = arith.constant 0 : index
    %c0_41 = arith.constant 0 : index
    %82 = vector.load %arg15[%c0_40, %c0_41] : memref<4x8xbf16, #tpu.memory_space<vmem>>, vector<4x8xbf16>
    %83 = arith.truncf %81 : vector<8x128xf32> to vector<8x128xbf16>
    %cst_42 = arith.constant dense<0.000000e+00> : vector<4x128xf32>
    %84 = tpu.matmul %82, %83, %cst_42 {dimension_numbers = #tpu.dot_dimension_numbers<[1], [0], [0], [1], [0, 0, 1, 1], [], []>} : vector<4x8xbf16>, vector<8x128xbf16>, vector<4x128xf32> -> vector<4x128xf32>
    %c0_43 = arith.constant 0 : index
    %c0_44 = arith.constant 0 : index
    %85 = vector.load %arg16[%c0_43, %c0_44] : memref<128x128xbf16, #tpu.memory_space<vmem>>, vector<128x128xbf16>
    %86 = arith.truncf %84 : vector<4x128xf32> to vector<4x128xbf16>
    %cst_45 = arith.constant dense<0.000000e+00> : vector<4x128xf32>
    %87 = tpu.matmul %86, %85, %cst_45 {dimension_numbers = #tpu.dot_dimension_numbers<[1], [0], [0], [1], [0, 0, 1, 1], [], []>} : vector<4x128xbf16>, vector<128x128xbf16>, vector<4x128xf32> -> vector<4x128xf32>
    %c0_46 = arith.constant 0 : index
    %c0_47 = arith.constant 0 : index
    %c0_48 = arith.constant 0 : index
    %88 = vector.load %arg17[%c0_46, %c0_47, %c0_48] : memref<3x4x4xbf16, #tpu.memory_space<vmem>>, vector<1x4x4xbf16>
    %89 = vector.shape_cast %88 : vector<1x4x4xbf16> to vector<4x4xbf16>
    %90 = arith.truncf %87 : vector<4x128xf32> to vector<4x128xbf16>
    %cst_49 = arith.constant dense<0.000000e+00> : vector<4x128xf32>
    %91 = tpu.matmul %89, %90, %cst_49 {dimension_numbers = #tpu.dot_dimension_numbers<[1], [0], [0], [1], [0, 0, 1, 1], [], []>} : vector<4x4xbf16>, vector<4x128xbf16>, vector<4x128xf32> -> vector<4x128xf32>
    %c1 = arith.constant 1 : index
    %c0_50 = arith.constant 0 : index
    %c0_51 = arith.constant 0 : index
    %92 = vector.load %arg17[%c1, %c0_50, %c0_51] : memref<3x4x4xbf16, #tpu.memory_space<vmem>>, vector<1x4x4xbf16>
    %93 = vector.shape_cast %92 : vector<1x4x4xbf16> to vector<4x4xbf16>
    %94 = arith.truncf %87 : vector<4x128xf32> to vector<4x128xbf16>
    %cst_52 = arith.constant dense<0.000000e+00> : vector<4x128xf32>
    %95 = tpu.matmul %93, %94, %cst_52 {dimension_numbers = #tpu.dot_dimension_numbers<[1], [0], [0], [1], [0, 0, 1, 1], [], []>} : vector<4x4xbf16>, vector<4x128xbf16>, vector<4x128xf32> -> vector<4x128xf32>
    %c2 = arith.constant 2 : index
    %c0_53 = arith.constant 0 : index
    %c0_54 = arith.constant 0 : index
    %96 = vector.load %arg17[%c2, %c0_53, %c0_54] : memref<3x4x4xbf16, #tpu.memory_space<vmem>>, vector<1x4x4xbf16>
    %97 = vector.shape_cast %96 : vector<1x4x4xbf16> to vector<4x4xbf16>
    %98 = arith.truncf %87 : vector<4x128xf32> to vector<4x128xbf16>
    %cst_55 = arith.constant dense<0.000000e+00> : vector<4x128xf32>
    %99 = tpu.matmul %97, %98, %cst_55 {dimension_numbers = #tpu.dot_dimension_numbers<[1], [0], [0], [1], [0, 0, 1, 1], [], []>} : vector<4x4xbf16>, vector<4x128xbf16>, vector<4x128xf32> -> vector<4x128xf32>
    %100 = tpu.concatenate %91, %95, %99 in 1 : vector<4x128xf32>, vector<4x128xf32>, vector<4x128xf32> -> vector<4x384xf32>
    %c0_56 = arith.constant 0 : index
    %c0_57 = arith.constant 0 : index
    %101 = vector.load %arg18[%c0_56, %c0_57] : memref<384x128xbf16, #tpu.memory_space<vmem>>, vector<384x128xbf16>
    %102 = arith.truncf %100 : vector<4x384xf32> to vector<4x384xbf16>
    %cst_58 = arith.constant dense<0.000000e+00> : vector<4x128xf32>
    %103 = tpu.matmul %102, %101, %cst_58 {dimension_numbers = #tpu.dot_dimension_numbers<[1], [0], [0], [1], [0, 0, 1, 1], [], []>} : vector<4x384xbf16>, vector<384x128xbf16>, vector<4x128xf32> -> vector<4x128xf32>
    %c0_59 = arith.constant 0 : index
    %c0_60 = arith.constant 0 : index
    %104 = vector.load %arg19[%c0_59, %c0_60] : memref<1x128xf32, #tpu.memory_space<vmem>>, vector<1x128xf32>
    %105 = vector.broadcast %104 : vector<1x128xf32> to vector<4x128xf32>
    %106 = arith.addf %103, %105 : vector<4x128xf32>
    %cst_61 = arith.constant 0.000000e+00 : f32
    %107 = vector.broadcast %cst_61 : f32 to vector<4x128xf32>
    %108 = arith.maximumf %106, %107 : vector<4x128xf32>
    %c0_62 = arith.constant 0 : index
    %c0_63 = arith.constant 0 : index
    %c0_64 = arith.constant 0 : index
    %109 = vector.load %arg20[%c0_62, %c0_63, %c0_64] : memref<3x4x4xbf16, #tpu.memory_space<vmem>>, vector<1x4x4xbf16>
    %110 = vector.shape_cast %109 : vector<1x4x4xbf16> to vector<4x4xbf16>
    %111 = arith.truncf %108 : vector<4x128xf32> to vector<4x128xbf16>
    %cst_65 = arith.constant dense<0.000000e+00> : vector<4x128xf32>
    %112 = tpu.matmul %110, %111, %cst_65 {dimension_numbers = #tpu.dot_dimension_numbers<[1], [0], [0], [1], [0, 0, 1, 1], [], []>} : vector<4x4xbf16>, vector<4x128xbf16>, vector<4x128xf32> -> vector<4x128xf32>
    %c1_66 = arith.constant 1 : index
    %c0_67 = arith.constant 0 : index
    %c0_68 = arith.constant 0 : index
    %113 = vector.load %arg20[%c1_66, %c0_67, %c0_68] : memref<3x4x4xbf16, #tpu.memory_space<vmem>>, vector<1x4x4xbf16>
    %114 = vector.shape_cast %113 : vector<1x4x4xbf16> to vector<4x4xbf16>
    %115 = arith.truncf %108 : vector<4x128xf32> to vector<4x128xbf16>
    %cst_69 = arith.constant dense<0.000000e+00> : vector<4x128xf32>
    %116 = tpu.matmul %114, %115, %cst_69 {dimension_numbers = #tpu.dot_dimension_numbers<[1], [0], [0], [1], [0, 0, 1, 1], [], []>} : vector<4x4xbf16>, vector<4x128xbf16>, vector<4x128xf32> -> vector<4x128xf32>
    %c2_70 = arith.constant 2 : index
    %c0_71 = arith.constant 0 : index
    %c0_72 = arith.constant 0 : index
    %117 = vector.load %arg20[%c2_70, %c0_71, %c0_72] : memref<3x4x4xbf16, #tpu.memory_space<vmem>>, vector<1x4x4xbf16>
    %118 = vector.shape_cast %117 : vector<1x4x4xbf16> to vector<4x4xbf16>
    %119 = arith.truncf %108 : vector<4x128xf32> to vector<4x128xbf16>
    %cst_73 = arith.constant dense<0.000000e+00> : vector<4x128xf32>
    %120 = tpu.matmul %118, %119, %cst_73 {dimension_numbers = #tpu.dot_dimension_numbers<[1], [0], [0], [1], [0, 0, 1, 1], [], []>} : vector<4x4xbf16>, vector<4x128xbf16>, vector<4x128xf32> -> vector<4x128xf32>
    %121 = tpu.concatenate %112, %116, %120 in 1 : vector<4x128xf32>, vector<4x128xf32>, vector<4x128xf32> -> vector<4x384xf32>
    %c0_74 = arith.constant 0 : index
    %c0_75 = arith.constant 0 : index
    %122 = vector.load %arg21[%c0_74, %c0_75] : memref<384x128xbf16, #tpu.memory_space<vmem>>, vector<384x128xbf16>
    %123 = arith.truncf %121 : vector<4x384xf32> to vector<4x384xbf16>
    %cst_76 = arith.constant dense<0.000000e+00> : vector<4x128xf32>
    %124 = tpu.matmul %123, %122, %cst_76 {dimension_numbers = #tpu.dot_dimension_numbers<[1], [0], [0], [1], [0, 0, 1, 1], [], []>} : vector<4x384xbf16>, vector<384x128xbf16>, vector<4x128xf32> -> vector<4x128xf32>
    %c0_77 = arith.constant 0 : index
    %c0_78 = arith.constant 0 : index
    %125 = vector.load %arg22[%c0_77, %c0_78] : memref<1x128xf32, #tpu.memory_space<vmem>>, vector<1x128xf32>
    %126 = vector.broadcast %125 : vector<1x128xf32> to vector<4x128xf32>
    %127 = arith.addf %124, %126 : vector<4x128xf32>
    %cst_79 = arith.constant 0.000000e+00 : f32
    %128 = vector.broadcast %cst_79 : f32 to vector<4x128xf32>
    %129 = arith.maximumf %127, %128 : vector<4x128xf32>
    %c0_80 = arith.constant 0 : index
    %c0_81 = arith.constant 0 : index
    %130 = vector.load %arg23[%c0_80, %c0_81] : memref<128x128xbf16, #tpu.memory_space<vmem>>, vector<128x128xbf16>
    %131 = arith.truncf %129 : vector<4x128xf32> to vector<4x128xbf16>
    %cst_82 = arith.constant dense<0.000000e+00> : vector<4x128xf32>
    %132 = tpu.matmul %131, %130, %cst_82 {dimension_numbers = #tpu.dot_dimension_numbers<[1], [0], [0], [1], [0, 0, 1, 1], [], []>} : vector<4x128xbf16>, vector<128x128xbf16>, vector<4x128xf32> -> vector<4x128xf32>
    %c0_83 = arith.constant 0 : index
    %c0_84 = arith.constant 0 : index
    %133 = vector.load %arg24[%c0_83, %c0_84] : memref<1x128xf32, #tpu.memory_space<vmem>>, vector<1x128xf32>
    %134 = vector.broadcast %133 : vector<1x128xf32> to vector<4x128xf32>
    %135 = arith.addf %132, %134 : vector<4x128xf32>
    %cst_85 = arith.constant 0.000000e+00 : f32
    %136 = vector.broadcast %cst_85 : f32 to vector<4x128xf32>
    %137 = arith.maximumf %135, %136 : vector<4x128xf32>
    %c0_86 = arith.constant 0 : index
    %c0_87 = arith.constant 0 : index
    %138 = vector.load %arg25[%c0_86, %c0_87] : memref<2x4xbf16, #tpu.memory_space<vmem>>, vector<2x4xbf16>
    %139 = arith.truncf %137 : vector<4x128xf32> to vector<4x128xbf16>
    %cst_88 = arith.constant dense<0.000000e+00> : vector<2x128xf32>
    %140 = tpu.matmul %138, %139, %cst_88 {dimension_numbers = #tpu.dot_dimension_numbers<[1], [0], [0], [1], [0, 0, 1, 1], [], []>} : vector<2x4xbf16>, vector<4x128xbf16>, vector<2x128xf32> -> vector<2x128xf32>
    %c0_89 = arith.constant 0 : index
    %c0_90 = arith.constant 0 : index
    %141 = vector.load %arg26[%c0_89, %c0_90] : memref<128x128xbf16, #tpu.memory_space<vmem>>, vector<128x128xbf16>
    %142 = arith.truncf %140 : vector<2x128xf32> to vector<2x128xbf16>
    %cst_91 = arith.constant dense<0.000000e+00> : vector<2x128xf32>
    %143 = tpu.matmul %142, %141, %cst_91 {dimension_numbers = #tpu.dot_dimension_numbers<[1], [0], [0], [1], [0, 0, 1, 1], [], []>} : vector<2x128xbf16>, vector<128x128xbf16>, vector<2x128xf32> -> vector<2x128xf32>
    %c0_92 = arith.constant 0 : index
    %c0_93 = arith.constant 0 : index
    %c0_94 = arith.constant 0 : index
    %144 = vector.load %arg27[%c0_92, %c0_93, %c0_94] : memref<3x2x2xbf16, #tpu.memory_space<vmem>>, vector<1x2x2xbf16>
    %145 = vector.shape_cast %144 : vector<1x2x2xbf16> to vector<2x2xbf16>
    %146 = arith.truncf %143 : vector<2x128xf32> to vector<2x128xbf16>
    %cst_95 = arith.constant dense<0.000000e+00> : vector<2x128xf32>
    %147 = tpu.matmul %145, %146, %cst_95 {dimension_numbers = #tpu.dot_dimension_numbers<[1], [0], [0], [1], [0, 0, 1, 1], [], []>} : vector<2x2xbf16>, vector<2x128xbf16>, vector<2x128xf32> -> vector<2x128xf32>
    %c1_96 = arith.constant 1 : index
    %c0_97 = arith.constant 0 : index
    %c0_98 = arith.constant 0 : index
    %148 = vector.load %arg27[%c1_96, %c0_97, %c0_98] : memref<3x2x2xbf16, #tpu.memory_space<vmem>>, vector<1x2x2xbf16>
    %149 = vector.shape_cast %148 : vector<1x2x2xbf16> to vector<2x2xbf16>
    %150 = arith.truncf %143 : vector<2x128xf32> to vector<2x128xbf16>
    %cst_99 = arith.constant dense<0.000000e+00> : vector<2x128xf32>
    %151 = tpu.matmul %149, %150, %cst_99 {dimension_numbers = #tpu.dot_dimension_numbers<[1], [0], [0], [1], [0, 0, 1, 1], [], []>} : vector<2x2xbf16>, vector<2x128xbf16>, vector<2x128xf32> -> vector<2x128xf32>
    %c2_100 = arith.constant 2 : index
    %c0_101 = arith.constant 0 : index
    %c0_102 = arith.constant 0 : index
    %152 = vector.load %arg27[%c2_100, %c0_101, %c0_102] : memref<3x2x2xbf16, #tpu.memory_space<vmem>>, vector<1x2x2xbf16>
    %153 = vector.shape_cast %152 : vector<1x2x2xbf16> to vector<2x2xbf16>
    %154 = arith.truncf %143 : vector<2x128xf32> to vector<2x128xbf16>
    %cst_103 = arith.constant dense<0.000000e+00> : vector<2x128xf32>
    %155 = tpu.matmul %153, %154, %cst_103 {dimension_numbers = #tpu.dot_dimension_numbers<[1], [0], [0], [1], [0, 0, 1, 1], [], []>} : vector<2x2xbf16>, vector<2x128xbf16>, vector<2x128xf32> -> vector<2x128xf32>
    %156 = tpu.concatenate %147, %151, %155 in 1 : vector<2x128xf32>, vector<2x128xf32>, vector<2x128xf32> -> vector<2x384xf32>
    %c0_104 = arith.constant 0 : index
    %c0_105 = arith.constant 0 : index
    %157 = vector.load %arg28[%c0_104, %c0_105] : memref<384x128xbf16, #tpu.memory_space<vmem>>, vector<384x128xbf16>
    %158 = arith.truncf %156 : vector<2x384xf32> to vector<2x384xbf16>
    %cst_106 = arith.constant dense<0.000000e+00> : vector<2x128xf32>
    %159 = tpu.matmul %158, %157, %cst_106 {dimension_numbers = #tpu.dot_dimension_numbers<[1], [0], [0], [1], [0, 0, 1, 1], [], []>} : vector<2x384xbf16>, vector<384x128xbf16>, vector<2x128xf32> -> vector<2x128xf32>
    %c0_107 = arith.constant 0 : index
    %c0_108 = arith.constant 0 : index
    %160 = vector.load %arg29[%c0_107, %c0_108] : memref<1x128xf32, #tpu.memory_space<vmem>>, vector<1x128xf32>
    %161 = vector.broadcast %160 : vector<1x128xf32> to vector<2x128xf32>
    %162 = arith.addf %159, %161 : vector<2x128xf32>
    %cst_109 = arith.constant 0.000000e+00 : f32
    %163 = vector.broadcast %cst_109 : f32 to vector<2x128xf32>
    %164 = arith.maximumf %162, %163 : vector<2x128xf32>
    %c0_110 = arith.constant 0 : index
    %c0_111 = arith.constant 0 : index
    %c0_112 = arith.constant 0 : index
    %165 = vector.load %arg30[%c0_110, %c0_111, %c0_112] : memref<3x2x2xbf16, #tpu.memory_space<vmem>>, vector<1x2x2xbf16>
    %166 = vector.shape_cast %165 : vector<1x2x2xbf16> to vector<2x2xbf16>
    %167 = arith.truncf %164 : vector<2x128xf32> to vector<2x128xbf16>
    %cst_113 = arith.constant dense<0.000000e+00> : vector<2x128xf32>
    %168 = tpu.matmul %166, %167, %cst_113 {dimension_numbers = #tpu.dot_dimension_numbers<[1], [0], [0], [1], [0, 0, 1, 1], [], []>} : vector<2x2xbf16>, vector<2x128xbf16>, vector<2x128xf32> -> vector<2x128xf32>
    %c1_114 = arith.constant 1 : index
    %c0_115 = arith.constant 0 : index
    %c0_116 = arith.constant 0 : index
    %169 = vector.load %arg30[%c1_114, %c0_115, %c0_116] : memref<3x2x2xbf16, #tpu.memory_space<vmem>>, vector<1x2x2xbf16>
    %170 = vector.shape_cast %169 : vector<1x2x2xbf16> to vector<2x2xbf16>
    %171 = arith.truncf %164 : vector<2x128xf32> to vector<2x128xbf16>
    %cst_117 = arith.constant dense<0.000000e+00> : vector<2x128xf32>
    %172 = tpu.matmul %170, %171, %cst_117 {dimension_numbers = #tpu.dot_dimension_numbers<[1], [0], [0], [1], [0, 0, 1, 1], [], []>} : vector<2x2xbf16>, vector<2x128xbf16>, vector<2x128xf32> -> vector<2x128xf32>
    %c2_118 = arith.constant 2 : index
    %c0_119 = arith.constant 0 : index
    %c0_120 = arith.constant 0 : index
    %173 = vector.load %arg30[%c2_118, %c0_119, %c0_120] : memref<3x2x2xbf16, #tpu.memory_space<vmem>>, vector<1x2x2xbf16>
    %174 = vector.shape_cast %173 : vector<1x2x2xbf16> to vector<2x2xbf16>
    %175 = arith.truncf %164 : vector<2x128xf32> to vector<2x128xbf16>
    %cst_121 = arith.constant dense<0.000000e+00> : vector<2x128xf32>
    %176 = tpu.matmul %174, %175, %cst_121 {dimension_numbers = #tpu.dot_dimension_numbers<[1], [0], [0], [1], [0, 0, 1, 1], [], []>} : vector<2x2xbf16>, vector<2x128xbf16>, vector<2x128xf32> -> vector<2x128xf32>
    %177 = tpu.concatenate %168, %172, %176 in 1 : vector<2x128xf32>, vector<2x128xf32>, vector<2x128xf32> -> vector<2x384xf32>
    %c0_122 = arith.constant 0 : index
    %c0_123 = arith.constant 0 : index
    %178 = vector.load %arg31[%c0_122, %c0_123] : memref<384x128xbf16, #tpu.memory_space<vmem>>, vector<384x128xbf16>
    %179 = arith.truncf %177 : vector<2x384xf32> to vector<2x384xbf16>
    %cst_124 = arith.constant dense<0.000000e+00> : vector<2x128xf32>
    %180 = tpu.matmul %179, %178, %cst_124 {dimension_numbers = #tpu.dot_dimension_numbers<[1], [0], [0], [1], [0, 0, 1, 1], [], []>} : vector<2x384xbf16>, vector<384x128xbf16>, vector<2x128xf32> -> vector<2x128xf32>
    %c0_125 = arith.constant 0 : index
    %c0_126 = arith.constant 0 : index
    %181 = vector.load %arg32[%c0_125, %c0_126] : memref<1x128xf32, #tpu.memory_space<vmem>>, vector<1x128xf32>
    %182 = vector.broadcast %181 : vector<1x128xf32> to vector<2x128xf32>
    %183 = arith.addf %180, %182 : vector<2x128xf32>
    %cst_127 = arith.constant 0.000000e+00 : f32
    %184 = vector.broadcast %cst_127 : f32 to vector<2x128xf32>
    %185 = arith.maximumf %183, %184 : vector<2x128xf32>
    %c0_128 = arith.constant 0 : index
    %c0_129 = arith.constant 0 : index
    %186 = vector.load %arg33[%c0_128, %c0_129] : memref<128x128xbf16, #tpu.memory_space<vmem>>, vector<128x128xbf16>
    %187 = arith.truncf %185 : vector<2x128xf32> to vector<2x128xbf16>
    %cst_130 = arith.constant dense<0.000000e+00> : vector<2x128xf32>
    %188 = tpu.matmul %187, %186, %cst_130 {dimension_numbers = #tpu.dot_dimension_numbers<[1], [0], [0], [1], [0, 0, 1, 1], [], []>} : vector<2x128xbf16>, vector<128x128xbf16>, vector<2x128xf32> -> vector<2x128xf32>
    %c0_131 = arith.constant 0 : index
    %c0_132 = arith.constant 0 : index
    %189 = vector.load %arg34[%c0_131, %c0_132] : memref<1x128xf32, #tpu.memory_space<vmem>>, vector<1x128xf32>
    %190 = vector.broadcast %189 : vector<1x128xf32> to vector<2x128xf32>
    %191 = arith.addf %188, %190 : vector<2x128xf32>
    %cst_133 = arith.constant 0.000000e+00 : f32
    %192 = vector.broadcast %cst_133 : f32 to vector<2x128xf32>
    %193 = arith.maximumf %191, %192 : vector<2x128xf32>
    %c0_134 = arith.constant 0 : index
    %c0_135 = arith.constant 0 : index
    %194 = vector.load %arg35[%c0_134, %c0_135] : memref<1x2xbf16, #tpu.memory_space<vmem>>, vector<1x2xbf16>
    %195 = arith.truncf %193 : vector<2x128xf32> to vector<2x128xbf16>
    %cst_136 = arith.constant dense<0.000000e+00> : vector<1x128xf32>
    %196 = tpu.matmul %194, %195, %cst_136 {dimension_numbers = #tpu.dot_dimension_numbers<[1], [0], [0], [1], [0, 0, 1, 1], [], []>} : vector<1x2xbf16>, vector<2x128xbf16>, vector<1x128xf32> -> vector<1x128xf32>
    %c0_137 = arith.constant 0 : index
    %c0_138 = arith.constant 0 : index
    %197 = vector.load %arg36[%c0_137, %c0_138] : memref<128x128xbf16, #tpu.memory_space<vmem>>, vector<128x128xbf16>
    %198 = arith.truncf %196 : vector<1x128xf32> to vector<1x128xbf16>
    %cst_139 = arith.constant dense<0.000000e+00> : vector<1x128xf32>
    %199 = tpu.matmul %198, %197, %cst_139 {dimension_numbers = #tpu.dot_dimension_numbers<[1], [0], [0], [1], [0, 0, 1, 1], [], []>} : vector<1x128xbf16>, vector<128x128xbf16>, vector<1x128xf32> -> vector<1x128xf32>
    %c0_140 = arith.constant 0 : index
    %c0_141 = arith.constant 0 : index
    %200 = vector.load %arg37[%c0_140, %c0_141] : memref<128x128xbf16, #tpu.memory_space<vmem>>, vector<128x128xbf16>
    %201 = arith.truncf %199 : vector<1x128xf32> to vector<1x128xbf16>
    %cst_142 = arith.constant dense<0.000000e+00> : vector<1x128xf32>
    %202 = tpu.matmul %201, %200, %cst_142 {dimension_numbers = #tpu.dot_dimension_numbers<[1], [0], [0], [1], [0, 0, 1, 1], [], []>} : vector<1x128xbf16>, vector<128x128xbf16>, vector<1x128xf32> -> vector<1x128xf32>
    %c0_143 = arith.constant 0 : index
    %c0_144 = arith.constant 0 : index
    %203 = vector.load %arg38[%c0_143, %c0_144] : memref<1x128xf32, #tpu.memory_space<vmem>>, vector<1x128xf32>
    %204 = arith.addf %202, %203 : vector<1x128xf32>
    %cst_145 = arith.constant 0.000000e+00 : f32
    %205 = vector.broadcast %cst_145 : f32 to vector<1x128xf32>
    %206 = arith.maximumf %204, %205 : vector<1x128xf32>
    %c0_146 = arith.constant 0 : index
    %c0_147 = arith.constant 0 : index
    %207 = vector.load %arg39[%c0_146, %c0_147] : memref<128x32xbf16, #tpu.memory_space<vmem>>, vector<128x32xbf16>
    %208 = arith.truncf %206 : vector<1x128xf32> to vector<1x128xbf16>
    %cst_148 = arith.constant dense<0.000000e+00> : vector<1x32xf32>
    %209 = tpu.matmul %208, %207, %cst_148 {dimension_numbers = #tpu.dot_dimension_numbers<[1], [0], [0], [1], [0, 0, 1, 1], [], []>} : vector<1x128xbf16>, vector<128x32xbf16>, vector<1x32xf32> -> vector<1x32xf32>
    %c0_149 = arith.constant 0 : index
    %c0_150 = arith.constant 0 : index
    %210 = vector.load %arg40[%c0_149, %c0_150] : memref<32x16xbf16, #tpu.memory_space<vmem>>, vector<32x16xbf16>
    %211 = arith.truncf %209 : vector<1x32xf32> to vector<1x32xbf16>
    %cst_151 = arith.constant dense<0.000000e+00> : vector<1x16xf32>
    %212 = tpu.matmul %211, %210, %cst_151 {dimension_numbers = #tpu.dot_dimension_numbers<[1], [0], [0], [1], [0, 0, 1, 1], [], []>} : vector<1x32xbf16>, vector<32x16xbf16>, vector<1x16xf32> -> vector<1x16xf32>
    %c0_152 = arith.constant 0 : index
    %c0_153 = arith.constant 0 : index
    %213 = vector.load %arg41[%c0_152, %c0_153] : memref<1x16xf32, #tpu.memory_space<vmem>>, vector<1x16xf32>
    %214 = arith.addf %212, %213 : vector<1x16xf32>
    %c0_154 = arith.constant 0 : index
    %c0_155 = arith.constant 0 : index
    %c0_156 = arith.constant 0 : index
    %215 = vector.load %arg42[%c0_154, %c0_155, %c0_156] : memref<1x1x32xf32, #tpu.memory_space<vmem>>, vector<1x1x32xf32>
    %216 = vector.shape_cast %215 : vector<1x1x32xf32> to vector<1x32xf32>
    %217 = vector.shape_cast %209 : vector<1x32xf32> to vector<1x1x32xf32>
    tpu.vector_store %arg42[%c0_154, %c0_155, %c0_156], %217 {strides = array<i32>} : memref<1x1x32xf32, #tpu.memory_space<vmem>>, vector<1x1x32xf32>,
    %c0_157 = arith.constant 0 : index
    %c0_158 = arith.constant 0 : index
    %c0_159 = arith.constant 0 : index
    %218 = vector.load %arg43[%c0_157, %c0_158, %c0_159] : memref<1x1x16xf32, #tpu.memory_space<vmem>>, vector<1x1x16xf32>
    %219 = vector.shape_cast %218 : vector<1x1x16xf32> to vector<1x16xf32>
    %220 = vector.shape_cast %214 : vector<1x16xf32> to vector<1x1x16xf32>
    tpu.vector_store %arg43[%c0_157, %c0_158, %c0_159], %220 {strides = array<i32>} : memref<1x1x16xf32, #tpu.memory_space<vmem>>, vector<1x1x16xf32>,
    return
  }
  func.func @transform_0(%arg0: i32) -> (i32, i32, i32) {
    %c0_i32 = arith.constant 0 : i32
    %c0_i32_0 = arith.constant 0 : i32
    %c0_i32_1 = arith.constant 0 : i32
    return %arg0, %c0_i32, %c0_i32_0 : i32, i32, i32
  }
  func.func @transform_1(%arg0: i32) -> (i32, i32) {
    %c0_i32 = arith.constant 0 : i32
    %c0_i32_0 = arith.constant 0 : i32
    %c0_i32_1 = arith.constant 0 : i32
    return %c0_i32, %c0_i32_0 : i32, i32
  }
  func.func @transform_2(%arg0: i32) -> (i32, i32) {
    %c0_i32 = arith.constant 0 : i32
    %c0_i32_0 = arith.constant 0 : i32
    %c0_i32_1 = arith.constant 0 : i32
    return %c0_i32, %c0_i32_0 : i32, i32
  }
  func.func @transform_3(%arg0: i32) -> (i32, i32) {
    %c0_i32 = arith.constant 0 : i32
    %c0_i32_0 = arith.constant 0 : i32
    %c0_i32_1 = arith.constant 0 : i32
    return %c0_i32, %c0_i32_0 : i32, i32
  }
  func.func @transform_4(%arg0: i32) -> (i32, i32) {
    %c0_i32 = arith.constant 0 : i32
    %c0_i32_0 = arith.constant 0 : i32
    %c0_i32_1 = arith.constant 0 : i32
    return %c0_i32, %c0_i32_0 : i32, i32
  }
  func.func @transform_5(%arg0: i32) -> (i32, i32) {
    %c0_i32 = arith.constant 0 : i32
    %c0_i32_0 = arith.constant 0 : i32
    %c0_i32_1 = arith.constant 0 : i32
    return %c0_i32, %c0_i32_0 : i32, i32
  }
  func.func @transform_6(%arg0: i32) -> (i32, i32) {
    %c0_i32 = arith.constant 0 : i32
    %c0_i32_0 = arith.constant 0 : i32
    %c0_i32_1 = arith.constant 0 : i32
    return %c0_i32, %c0_i32_0 : i32, i32
  }
  func.func @transform_7(%arg0: i32) -> (i32, i32) {
    %c0_i32 = arith.constant 0 : i32
    %c0_i32_0 = arith.constant 0 : i32
    %c0_i32_1 = arith.constant 0 : i32
    return %c0_i32, %c0_i32_0 : i32, i32
  }
  func.func @transform_8(%arg0: i32) -> (i32, i32) {
    %c0_i32 = arith.constant 0 : i32
    %c0_i32_0 = arith.constant 0 : i32
    %c0_i32_1 = arith.constant 0 : i32
    return %c0_i32, %c0_i32_0 : i32, i32
  }
  func.func @transform_9(%arg0: i32) -> (i32, i32) {
    %c0_i32 = arith.constant 0 : i32
    %c0_i32_0 = arith.constant 0 : i32
    %c0_i32_1 = arith.constant 0 : i32
    return %c0_i32, %c0_i32_0 : i32, i32
  }
  func.func @transform_10(%arg0: i32) -> (i32, i32) {
    %c0_i32 = arith.constant 0 : i32
    %c0_i32_0 = arith.constant 0 : i32
    %c0_i32_1 = arith.constant 0 : i32
    return %c0_i32, %c0_i32_0 : i32, i32
  }
  func.func @transform_11(%arg0: i32) -> (i32, i32) {
    %c0_i32 = arith.constant 0 : i32
    %c0_i32_0 = arith.constant 0 : i32
    %c0_i32_1 = arith.constant 0 : i32
    return %c0_i32, %c0_i32_0 : i32, i32
  }
  func.func @transform_12(%arg0: i32) -> (i32, i32) {
    %c0_i32 = arith.constant 0 : i32
    %c0_i32_0 = arith.constant 0 : i32
    %c0_i32_1 = arith.constant 0 : i32
    return %c0_i32, %c0_i32_0 : i32, i32
  }
  func.func @transform_13(%arg0: i32) -> (i32, i32) {
    %c0_i32 = arith.constant 0 : i32
    %c0_i32_0 = arith.constant 0 : i32
    %c0_i32_1 = arith.constant 0 : i32
    return %c0_i32, %c0_i32_0 : i32, i32
  }
  func.func @transform_14(%arg0: i32) -> (i32, i32) {
    %c0_i32 = arith.constant 0 : i32
    %c0_i32_0 = arith.constant 0 : i32
    %c0_i32_1 = arith.constant 0 : i32
    return %c0_i32, %c0_i32_0 : i32, i32
  }
  func.func @transform_15(%arg0: i32) -> (i32, i32) {
    %c0_i32 = arith.constant 0 : i32
    %c0_i32_0 = arith.constant 0 : i32
    %c0_i32_1 = arith.constant 0 : i32
    return %c0_i32, %c0_i32_0 : i32, i32
  }
  func.func @transform_16(%arg0: i32) -> (i32, i32, i32) {
    %c0_i32 = arith.constant 0 : i32
    %c0_i32_0 = arith.constant 0 : i32
    %c0_i32_1 = arith.constant 0 : i32
    %c0_i32_2 = arith.constant 0 : i32
    return %c0_i32, %c0_i32_0, %c0_i32_1 : i32, i32, i32
  }
  func.func @transform_17(%arg0: i32) -> (i32, i32) {
    %c0_i32 = arith.constant 0 : i32
    %c0_i32_0 = arith.constant 0 : i32
    %c0_i32_1 = arith.constant 0 : i32
    return %c0_i32, %c0_i32_0 : i32, i32
  }
  func.func @transform_18(%arg0: i32) -> (i32, i32) {
    %c0_i32 = arith.constant 0 : i32
    %c0_i32_0 = arith.constant 0 : i32
    %c0_i32_1 = arith.constant 0 : i32
    return %c0_i32, %c0_i32_0 : i32, i32
  }
  func.func @transform_19(%arg0: i32) -> (i32, i32, i32) {
    %c0_i32 = arith.constant 0 : i32
    %c0_i32_0 = arith.constant 0 : i32
    %c0_i32_1 = arith.constant 0 : i32
    %c0_i32_2 = arith.constant 0 : i32
    return %c0_i32, %c0_i32_0, %c0_i32_1 : i32, i32, i32
  }
  func.func @transform_20(%arg0: i32) -> (i32, i32) {
    %c0_i32 = arith.constant 0 : i32
    %c0_i32_0 = arith.constant 0 : i32
    %c0_i32_1 = arith.constant 0 : i32
    return %c0_i32, %c0_i32_0 : i32, i32
  }
  func.func @transform_21(%arg0: i32) -> (i32, i32) {
    %c0_i32 = arith.constant 0 : i32
    %c0_i32_0 = arith.constant 0 : i32
    %c0_i32_1 = arith.constant 0 : i32
    return %c0_i32, %c0_i32_0 : i32, i32
  }
  func.func @transform_22(%arg0: i32) -> (i32, i32) {
    %c0_i32 = arith.constant 0 : i32
    %c0_i32_0 = arith.constant 0 : i32
    %c0_i32_1 = arith.constant 0 : i32
    return %c0_i32, %c0_i32_0 : i32, i32
  }
  func.func @transform_23(%arg0: i32) -> (i32, i32) {
    %c0_i32 = arith.constant 0 : i32
    %c0_i32_0 = arith.constant 0 : i32
    %c0_i32_1 = arith.constant 0 : i32
    return %c0_i32, %c0_i32_0 : i32, i32
  }
  func.func @transform_24(%arg0: i32) -> (i32, i32) {
    %c0_i32 = arith.constant 0 : i32
    %c0_i32_0 = arith.constant 0 : i32
    %c0_i32_1 = arith.constant 0 : i32
    return %c0_i32, %c0_i32_0 : i32, i32
  }
  func.func @transform_25(%arg0: i32) -> (i32, i32) {
    %c0_i32 = arith.constant 0 : i32
    %c0_i32_0 = arith.constant 0 : i32
    %c0_i32_1 = arith.constant 0 : i32
    return %c0_i32, %c0_i32_0 : i32, i32
  }
  func.func @transform_26(%arg0: i32) -> (i32, i32, i32) {
    %c0_i32 = arith.constant 0 : i32
    %c0_i32_0 = arith.constant 0 : i32
    %c0_i32_1 = arith.constant 0 : i32
    %c0_i32_2 = arith.constant 0 : i32
    return %c0_i32, %c0_i32_0, %c0_i32_1 : i32, i32, i32
  }
  func.func @transform_27(%arg0: i32) -> (i32, i32) {
    %c0_i32 = arith.constant 0 : i32
    %c0_i32_0 = arith.constant 0 : i32
    %c0_i32_1 = arith.constant 0 : i32
    return %c0_i32, %c0_i32_0 : i32, i32
  }
  func.func @transform_28(%arg0: i32) -> (i32, i32) {
    %c0_i32 = arith.constant 0 : i32
    %c0_i32_0 = arith.constant 0 : i32
    %c0_i32_1 = arith.constant 0 : i32
    return %c0_i32, %c0_i32_0 : i32, i32
  }
  func.func @transform_29(%arg0: i32) -> (i32, i32, i32) {
    %c0_i32 = arith.constant 0 : i32
    %c0_i32_0 = arith.constant 0 : i32
    %c0_i32_1 = arith.constant 0 : i32
    %c0_i32_2 = arith.constant 0 : i32
    return %c0_i32, %c0_i32_0, %c0_i32_1 : i32, i32, i32
  }
  func.func @transform_30(%arg0: i32) -> (i32, i32) {
    %c0_i32 = arith.constant 0 : i32
    %c0_i32_0 = arith.constant 0 : i32
    %c0_i32_1 = arith.constant 0 : i32
    return %c0_i32, %c0_i32_0 : i32, i32
  }
  func.func @transform_31(%arg0: i32) -> (i32, i32) {
    %c0_i32 = arith.constant 0 : i32
    %c0_i32_0 = arith.constant 0 : i32
    %c0_i32_1 = arith.constant 0 : i32
    return %c0_i32, %c0_i32_0 : i32, i32
  }
  func.func @transform_32(%arg0: i32) -> (i32, i32) {
    %c0_i32 = arith.constant 0 : i32
    %c0_i32_0 = arith.constant 0 : i32
    %c0_i32_1 = arith.constant 0 : i32
    return %c0_i32, %c0_i32_0 : i32, i32
  }
  func.func @transform_33(%arg0: i32) -> (i32, i32) {
    %c0_i32 = arith.constant 0 : i32
    %c0_i32_0 = arith.constant 0 : i32
    %c0_i32_1 = arith.constant 0 : i32
    return %c0_i32, %c0_i32_0 : i32, i32
  }
  func.func @transform_34(%arg0: i32) -> (i32, i32) {
    %c0_i32 = arith.constant 0 : i32
    %c0_i32_0 = arith.constant 0 : i32
    %c0_i32_1 = arith.constant 0 : i32
    return %c0_i32, %c0_i32_0 : i32, i32
  }
  func.func @transform_35(%arg0: i32) -> (i32, i32) {
    %c0_i32 = arith.constant 0 : i32
    %c0_i32_0 = arith.constant 0 : i32
    %c0_i32_1 = arith.constant 0 : i32
    return %c0_i32, %c0_i32_0 : i32, i32
  }
  func.func @transform_36(%arg0: i32) -> (i32, i32) {
    %c0_i32 = arith.constant 0 : i32
    %c0_i32_0 = arith.constant 0 : i32
    %c0_i32_1 = arith.constant 0 : i32
    return %c0_i32, %c0_i32_0 : i32, i32
  }
  func.func @transform_37(%arg0: i32) -> (i32, i32) {
    %c0_i32 = arith.constant 0 : i32
    %c0_i32_0 = arith.constant 0 : i32
    %c0_i32_1 = arith.constant 0 : i32
    return %c0_i32, %c0_i32_0 : i32, i32
  }
  func.func @transform_38(%arg0: i32) -> (i32, i32) {
    %c0_i32 = arith.constant 0 : i32
    %c0_i32_0 = arith.constant 0 : i32
    %c0_i32_1 = arith.constant 0 : i32
    return %c0_i32, %c0_i32_0 : i32, i32
  }
  func.func @transform_39(%arg0: i32) -> (i32, i32) {
    %c0_i32 = arith.constant 0 : i32
    %c0_i32_0 = arith.constant 0 : i32
    %c0_i32_1 = arith.constant 0 : i32
    return %c0_i32, %c0_i32_0 : i32, i32
  }
  func.func @transform_40(%arg0: i32) -> (i32, i32) {
    %c0_i32 = arith.constant 0 : i32
    %c0_i32_0 = arith.constant 0 : i32
    %c0_i32_1 = arith.constant 0 : i32
    return %c0_i32, %c0_i32_0 : i32, i32
  }
  func.func @transform_41(%arg0: i32) -> (i32, i32, i32) {
    %c0_i32 = arith.constant 0 : i32
    %c0_i32_0 = arith.constant 0 : i32
    %c0_i32_1 = arith.constant 0 : i32
    return %arg0, %c0_i32, %c0_i32_0 : i32, i32, i32
  }
  func.func @transform_42(%arg0: i32) -> (i32, i32, i32) {
    %c0_i32 = arith.constant 0 : i32
    %c0_i32_0 = arith.constant 0 : i32
    %c0_i32_1 = arith.constant 0 : i32
    return %arg0, %c0_i32, %c0_i32_0 : i32, i32, i32
  }
}

</mosaic_0001>

<llo_original>
// kernel: _run.1
$region0: #{_run.1}
  #allocation0 [shape = 'u32[]', space=smem, size = 0x4, offset = 0x4, fixed_abs, tag = 'smem constant byte address 0x4 - core index']
  #allocation1 [shape = 'u32[144,128]{1,0:T(1,128)}', space=vmem, size = 0x12000, scoped, tag = 'internal scratch']
  %s0 = inlined_call_operand.smem [shape: u32[43], index: -1, kind: input, shape index: {}]
  %s1 = sld [smem:[%s0]]
  %s2 = scalar_lea.smem %s0, 1
  %s3 = sld [smem:[%s2]]
  %s4 = scalar_lea.smem %s0, 2
  %s5 = sld [smem:[%s4]]
  %s6 = scalar_lea.smem %s0, 3
  %s7 = sld [smem:[%s6]]
  %s8 = scalar_lea.smem %s0, 4
  %s9 = sld [smem:[%s8]]
  %s10 = scalar_lea.smem %s0, 5
  %s11 = sld [smem:[%s10]]
  %s12 = scalar_lea.smem %s0, 6
  %s13 = sld [smem:[%s12]]
  %s14 = scalar_lea.smem %s0, 7
  %s15 = sld [smem:[%s14]]
  %s16 = scalar_lea.smem %s0, 8
  %s17 = sld [smem:[%s16]]
  %s18 = scalar_lea.smem %s0, 9
  %s19 = sld [smem:[%s18]]
  %s20 = scalar_lea.smem %s0, 10
  %s21 = sld [smem:[%s20]]
  %s22 = scalar_lea.smem %s0, 11
  %s23 = sld [smem:[%s22]]
  %s24 = scalar_lea.smem %s0, 12
  %s25 = sld [smem:[%s24]]
  %s26 = scalar_lea.smem %s0, 13
  %s27 = sld [smem:[%s26]]
  %s28 = scalar_lea.smem %s0, 14
  %s29 = sld [smem:[%s28]]
  %s30 = scalar_lea.smem %s0, 15
  %s31 = sld [smem:[%s30]]
  %s32 = scalar_lea.smem %s0, 16
  %s33 = sld [smem:[%s32]]
  %s34 = scalar_lea.smem %s0, 17
  %s35 = sld [smem:[%s34]]
  %s36 = scalar_lea.smem %s0, 18
  %s37 = sld [smem:[%s36]]
  %s38 = scalar_lea.smem %s0, 19
  %s39 = sld [smem:[%s38]]
  %s40 = scalar_lea.smem %s0, 20
  %s41 = sld [smem:[%s40]]
  %s42 = scalar_lea.smem %s0, 21
  %s43 = sld [smem:[%s42]]
  %s44 = scalar_lea.smem %s0, 22
  %s45 = sld [smem:[%s44]]
  %s46 = scalar_lea.smem %s0, 23
  %s47 = sld [smem:[%s46]]
  %s48 = scalar_lea.smem %s0, 24
  %s49 = sld [smem:[%s48]]
  %s50 = scalar_lea.smem %s0, 25
  %s51 = sld [smem:[%s50]]
  %s52 = scalar_lea.smem %s0, 26
  %s53 = sld [smem:[%s52]]
  %s54 = scalar_lea.smem %s0, 27
  %s55 = sld [smem:[%s54]]
  %s56 = scalar_lea.smem %s0, 28
  %s57 = sld [smem:[%s56]]
  %s58 = scalar_lea.smem %s0, 29
  %s59 = sld [smem:[%s58]]
  %s60 = scalar_lea.smem %s0, 30
  %s61 = sld [smem:[%s60]]
  %s62 = scalar_lea.smem %s0, 31
  %s63 = sld [smem:[%s62]]
  %s64 = scalar_lea.smem %s0, 32
  %s65 = sld [smem:[%s64]]
  %s66 = scalar_lea.smem %s0, 33
  %s67 = sld [smem:[%s66]]
  %s68 = scalar_lea.smem %s0, 34
  %s69 = sld [smem:[%s68]]
  %s70 = scalar_lea.smem %s0, 35
  %s71 = sld [smem:[%s70]]
  %s72 = scalar_lea.smem %s0, 36
  %s73 = sld [smem:[%s72]]
  %s74 = scalar_lea.smem %s0, 37
  %s75 = sld [smem:[%s74]]
  %s76 = scalar_lea.smem %s0, 38
  %s77 = sld [smem:[%s76]]
  %s78 = scalar_lea.smem %s0, 39
  %s79 = sld [smem:[%s78]]
  %s80 = scalar_lea.smem %s0, 40
  %s81 = sld [smem:[%s80]]
  %s82 = scalar_lea.smem %s0, 41
  %s83 = sld [smem:[%s82]]
  %s84 = scalar_lea.smem %s0, 42
  %s85 = sld [smem:[%s84]]
  %86 = xla_tuple %s83, %s85
  %s87 = sld [smem:[#allocation0]]
  $region257: #{_run.1} parent=0
    _
  %s89 = ssub.s32 1, %s87
  %s90 = scalar_select 0, %s89, %s87
  $region1: #{_run.1} parent=0
    #allocation2 [shape = 'u8[28672]{0}', space=vmem, size = 0x7000, scoped, tag = 'input window, operand 1, single buffered']
    #allocation3 [shape = 's32[2]{0}', space=sflag, size = 0x8, scoped, tag = 'scoped memory for _run.1']
    #allocation4 [shape = 's32[2]{0}', space=sflag, size = 0x8, scoped, tag = 'scoped memory for _run.1']
    #allocation5 [shape = 'u8[98304]{0}', space=vmem, size = 0x18000, scoped, tag = 'input window, operand 7, single buffered']
    #allocation6 [shape = 's32[1]{0}', space=sflag, size = 0x4, scoped, tag = 'scoped memory for _run.1']
    #allocation7 [shape = 'u8[98304]{0}', space=vmem, size = 0x18000, scoped, tag = 'input window, operand 10, single buffered']
    #allocation8 [shape = 'u8[98304]{0}', space=vmem, size = 0x18000, scoped, tag = 'input window, operand 17, single buffered']
    #allocation9 [shape = 's32[1]{0}', space=sflag, size = 0x4, scoped, tag = 'scoped memory for _run.1']
    #allocation10 [shape = 'u8[98304]{0}', space=vmem, size = 0x18000, scoped, tag = 'input window, operand 20, single buffered']
    #allocation11 [shape = 'u8[32768]{0}', space=vmem, size = 0x8000, scoped, tag = 'input window, operand 22, single buffered']
    #allocation12 [shape = 's32[1]{0}', space=sflag, size = 0x4, scoped, tag = 'scoped memory for _run.1']
    #allocation13 [shape = 'u8[32768]{0}', space=vmem, size = 0x8000, scoped, tag = 'input window, operand 25, single buffered']
    #allocation14 [shape = 'u8[98304]{0}', space=vmem, size = 0x18000, scoped, tag = 'input window, operand 27, single buffered']
    #allocation15 [shape = 's32[1]{0}', space=sflag, size = 0x4, scoped, tag = 'scoped memory for _run.1']
    #allocation16 [shape = 'u8[98304]{0}', space=vmem, size = 0x18000, scoped, tag = 'input window, operand 30, single buffered']
    #allocation17 [shape = 'u8[32768]{0}', space=vmem, size = 0x8000, scoped, tag = 'input window, operand 32, single buffered']
    #allocation18 [shape = 's32[1]{0}', space=sflag, size = 0x4, scoped, tag = 'scoped memory for _run.1']
    #allocation19 [shape = 'u8[32768]{0}', space=vmem, size = 0x8000, scoped, tag = 'input window, operand 35, single buffered']
    #allocation20 [shape = 'u8[32768]{0}', space=vmem, size = 0x8000, scoped, tag = 'input window, operand 36, single buffered']
    #allocation21 [shape = 's32[1]{0}', space=sflag, size = 0x4, scoped, tag = 'scoped memory for _run.1']
    #allocation22 [shape = 'u8[32768]{0}', space=vmem, size = 0x8000, scoped, tag = 'input window, operand 38, single buffered']
    #allocation23 [shape = 'u8[1024]{0}', space=vmem, size = 0x400, scoped, tag = 'output window, operand 0']
    #allocation24 [shape = 'u8[1024]{0}', space=vmem, size = 0x400, scoped, tag = 'output window, operand 1']
    #allocation25 [shape = 's32[2]{0}', space=sflag, size = 0x8, scoped, tag = 'scoped memory for _run.1']
    %91 = vsyncpa [#allocation3], 0
    %92 = vsyncpa [#allocation6], 0
    %93 = vsyncpa [#allocation9], 0
    %94 = vsyncpa [#allocation12], 0
    %95 = vsyncpa [#allocation15], 0
    %96 = vsyncpa [#allocation18], 0
    %97 = vsyncpa [#allocation21], 0
    %98 = vsyncpa [#allocation4], 0
    %s99 = scalar_lea.sflag [#allocation4], 1
    %100 = vsyncpa %s99, 0
    %101 = vsyncpa [#allocation25], 0
    %s102 = scalar_lea.sflag [#allocation25], 1
    %103 = vsyncpa %s102, 0
    loop: start=0, step=1, limit=4
    $region2: #{_run.1} parent=1 // loop_pre_header
      _
    $region3: #{_run.1} parent=1 // loop_header
      %s105 = sphi 0, %s109
      %p106 = scmp.ge.s32.totalorder %s105, 4
      %s115 = sphi 0, %s117
      %s118 = sphi 0, %s115
      %s119 = sphi 0, %s118
      %s135 = sphi 0, %s119
      %s139 = sphi 0, %s139
      %s141 = sphi 0, %s139
      %s142 = sphi 0, %s141
      %s156 = sphi 0, %s142
      %s160 = sphi 0, %s160
      %s162 = sphi 0, %s160
      %s163 = sphi 0, %s162
      %s177 = sphi 0, %s163
      %s181 = sphi 0, %s181
      %s183 = sphi 0, %s181
      %s184 = sphi 0, %s183
      %s198 = sphi 0, %s184
      %s202 = sphi 0, %s202
      %s204 = sphi 0, %s202
      %s205 = sphi 0, %s204
      %s219 = sphi 0, %s205
      %s223 = sphi 0, %s223
      %s225 = sphi 0, %s223
      %s226 = sphi 0, %s225
      %s240 = sphi 0, %s226
      %s244 = sphi 0, %s244
      %s246 = sphi 0, %s244
      %s247 = sphi 0, %s246
      %s261 = sphi 0, %s247
      %s265 = sphi 0, %s265
      %s267 = sphi 0, %s265
      %s268 = sphi 0, %s267
      %s282 = sphi 0, %s268
      %s286 = sphi 0, %s286
      %s288 = sphi 0, %s286
      %s289 = sphi 0, %s288
      %s303 = sphi 0, %s289
      %s307 = sphi 0, %s307
      %s309 = sphi 0, %s307
      %s310 = sphi 0, %s309
      %s324 = sphi 0, %s310
      %s328 = sphi 0, %s328
      %s330 = sphi 0, %s328
      %s331 = sphi 0, %s330
      %s345 = sphi 0, %s331
      %s349 = sphi 0, %s349
      %s351 = sphi 0, %s349
      %s352 = sphi 0, %s351
      %s366 = sphi 0, %s352
      %s370 = sphi 0, %s370
      %s372 = sphi 0, %s370
      %s373 = sphi 0, %s372
      %s387 = sphi 0, %s373
      %s391 = sphi 0, %s391
      %s393 = sphi 0, %s391
      %s394 = sphi 0, %s393
      %s408 = sphi 0, %s394
      %s412 = sphi 0, %s412
      %s414 = sphi 0, %s412
      %s415 = sphi 0, %s414
      %s429 = sphi 0, %s415
      %s433 = sphi 0, %s433
      %s435 = sphi 0, %s433
      %s436 = sphi 0, %s435
      %s450 = sphi 0, %s436
      %s454 = sphi 0, %s454
      %s456 = sphi 0, %s454
      %s457 = sphi 0, %s456
      %s471 = sphi 0, %s457
      %s475 = sphi 0, %s475
      %s477 = sphi 0, %s475
      %s478 = sphi 0, %s477
      %s492 = sphi 0, %s478
      %s496 = sphi 0, %s496
      %s498 = sphi 0, %s496
      %s499 = sphi 0, %s498
      %s513 = sphi 0, %s499
      %s517 = sphi 0, %s517
      %s519 = sphi 0, %s517
      %s520 = sphi 0, %s519
      %s534 = sphi 0, %s520
      %s538 = sphi 0, %s538
      %s540 = sphi 0, %s538
      %s541 = sphi 0, %s540
      %s555 = sphi 0, %s541
      %s559 = sphi 0, %s559
      %s561 = sphi 0, %s559
      %s562 = sphi 0, %s561
      %s576 = sphi 0, %s562
      %s580 = sphi 0, %s580
      %s582 = sphi 0, %s580
      %s583 = sphi 0, %s582
      %s597 = sphi 0, %s583
      %s601 = sphi 0, %s601
      %s603 = sphi 0, %s601
      %s604 = sphi 0, %s603
      %s618 = sphi 0, %s604
      %s622 = sphi 0, %s622
      %s624 = sphi 0, %s622
      %s625 = sphi 0, %s624
      %s639 = sphi 0, %s625
      %s643 = sphi 0, %s643
      %s645 = sphi 0, %s643
      %s646 = sphi 0, %s645
      %s660 = sphi 0, %s646
      %s664 = sphi 0, %s664
      %s666 = sphi 0, %s664
      %s667 = sphi 0, %s666
      %s681 = sphi 0, %s667
      %s685 = sphi 0, %s685
      %s687 = sphi 0, %s685
      %s688 = sphi 0, %s687
      %s702 = sphi 0, %s688
      %s706 = sphi 0, %s706
      %s708 = sphi 0, %s706
      %s709 = sphi 0, %s708
      %s723 = sphi 0, %s709
      %s727 = sphi 0, %s727
      %s729 = sphi 0, %s727
      %s730 = sphi 0, %s729
      %s744 = sphi 0, %s730
      %s748 = sphi 0, %s748
      %s750 = sphi 0, %s748
      %s751 = sphi 0, %s750
      %s765 = sphi 0, %s751
      %s769 = sphi 0, %s769
      %s771 = sphi 0, %s769
      %s772 = sphi 0, %s771
      %s786 = sphi 0, %s772
      %s790 = sphi 0, %s790
      %s792 = sphi 0, %s790
      %s793 = sphi 0, %s792
      %s807 = sphi 0, %s793
      %s811 = sphi 0, %s811
      %s813 = sphi 0, %s811
      %s814 = sphi 0, %s813
      %s828 = sphi 0, %s814
      %s832 = sphi 0, %s832
      %s834 = sphi 0, %s832
      %s835 = sphi 0, %s834
      %s849 = sphi 0, %s835
      %s853 = sphi 0, %s853
      %s855 = sphi 0, %s853
      %s856 = sphi 0, %s855
      %s870 = sphi 0, %s856
      %s874 = sphi 0, %s874
      %s876 = sphi 0, %s874
      %s877 = sphi 0, %s876
      %s891 = sphi 0, %s877
      %s895 = sphi 0, %s895
      %s897 = sphi 0, %s895
      %s898 = sphi 0, %s897
      %s912 = sphi 0, %s898
      %s916 = sphi 0, %s916
      %s918 = sphi 0, %s916
      %s919 = sphi 0, %s918
      %s933 = sphi 0, %s919
      %s937 = sphi 0, %s937
      %s939 = sphi 0, %s937
      %s940 = sphi 0, %s939
      %s954 = sphi 0, %s940
      %s958 = sphi 0, %s958
      %s960 = sphi 0, %s958
      %s961 = sphi 0, %s960
      %s975 = sphi 0, %s961
      %s981 = sphi 0, %s983
      %s984 = sphi 0, %s981
      %s985 = sphi 0, %s984
      %s1001 = sphi 0, %s985
      %s1007 = sphi 0, %s1009
      %s1010 = sphi 0, %s1007
      %s1011 = sphi 0, %s1010
      %s1027 = sphi 0, %s1011
    $region4: #{_run.1} parent=1 // loop_header_branch
      %108 = sbr.rel (%p106) target = $region8
    $region5: #{_run.1} parent=1 // loop_body
      %s110 = ssub.s32 %s105, 1
      %s111 = ssub.s32 %s105, 2
      %s112 = sadd.s32 %s105, 1
      %s113 = ssub.s32 %s105, %s112
      %p114 = scmp.eq.s32.totalorder %s113, 0
      %s116 = sadd.s32 %s115, 1
      %s117 = scalar_select %p114, %s115, %s116
      %p120 = pneg %p114
      %p121 = scmp.eq.s32.totalorder %s105, 1
      %p122 = por %p120, %p121
      %p123 = scmp.ne.s32.totalorder %s115, %s118
      %p124 = scmp.eq.s32.totalorder %s105, 0
      %p125 = por %p123, %p124
      %p126 = scmp.ne.s32.totalorder %s115, %s118
      %p127 = scmp.eq.s32.totalorder %s110, 1
      %p128 = por %p126, %p127
      %p129 = scmp.ne.s32.totalorder %s118, %s119
      %p130 = scmp.eq.s32.totalorder %s110, 0
      %p131 = por %p129, %p130
      %p132 = scmp.ne.s32.totalorder %s118, %s119
      %p133 = scmp.eq.s32.totalorder %s111, 1
      %p134 = por %p132, %p133
      %p136 = scmp.ne.s32.totalorder %s119, %s135
      %p137 = scmp.eq.s32.totalorder %s111, 0
      %p138 = por %p136, %p137
      %s140 = sadd.s32 %s139, 1
      %p143 = scmp.eq.s32.totalorder %s105, 1
      %p144 = scmp.ne.s32.totalorder %s139, %s141
      %p145 = scmp.eq.s32.totalorder %s105, 0
      %p146 = por %p144, %p145
      %p147 = scmp.ne.s32.totalorder %s139, %s141
      %p148 = scmp.eq.s32.totalorder %s110, 1
      %p149 = por %p147, %p148
      %p150 = scmp.ne.s32.totalorder %s141, %s142
      %p151 = scmp.eq.s32.totalorder %s110, 0
      %p152 = por %p150, %p151
      %p153 = scmp.ne.s32.totalorder %s141, %s142
      %p154 = scmp.eq.s32.totalorder %s111, 1
      %p155 = por %p153, %p154
      %p157 = scmp.ne.s32.totalorder %s142, %s156
      %p158 = scmp.eq.s32.totalorder %s111, 0
      %p159 = por %p157, %p158
      %s161 = sadd.s32 %s160, 1
      %p164 = scmp.eq.s32.totalorder %s105, 1
      %p165 = scmp.ne.s32.totalorder %s160, %s162
      %p166 = scmp.eq.s32.totalorder %s105, 0
      %p167 = por %p165, %p166
      %p168 = scmp.ne.s32.totalorder %s160, %s162
      %p169 = scmp.eq.s32.totalorder %s110, 1
      %p170 = por %p168, %p169
      %p171 = scmp.ne.s32.totalorder %s162, %s163
      %p172 = scmp.eq.s32.totalorder %s110, 0
      %p173 = por %p171, %p172
      %p174 = scmp.ne.s32.totalorder %s162, %s163
      %p175 = scmp.eq.s32.totalorder %s111, 1
      %p176 = por %p174, %p175
      %p178 = scmp.ne.s32.totalorder %s163, %s177
      %p179 = scmp.eq.s32.totalorder %s111, 0
      %p180 = por %p178, %p179
      %s182 = sadd.s32 %s181, 1
      %p185 = scmp.eq.s32.totalorder %s105, 1
      %p186 = scmp.ne.s32.totalorder %s181, %s183
      %p187 = scmp.eq.s32.totalorder %s105, 0
      %p188 = por %p186, %p187
      %p189 = scmp.ne.s32.totalorder %s181, %s183
      %p190 = scmp.eq.s32.totalorder %s110, 1
      %p191 = por %p189, %p190
      %p192 = scmp.ne.s32.totalorder %s183, %s184
      %p193 = scmp.eq.s32.totalorder %s110, 0
      %p194 = por %p192, %p193
      %p195 = scmp.ne.s32.totalorder %s183, %s184
      %p196 = scmp.eq.s32.totalorder %s111, 1
      %p197 = por %p195, %p196
      %p199 = scmp.ne.s32.totalorder %s184, %s198
      %p200 = scmp.eq.s32.totalorder %s111, 0
      %p201 = por %p199, %p200
      %s203 = sadd.s32 %s202, 1
      %p206 = scmp.eq.s32.totalorder %s105, 1
      %p207 = scmp.ne.s32.totalorder %s202, %s204
      %p208 = scmp.eq.s32.totalorder %s105, 0
      %p209 = por %p207, %p208
      %p210 = scmp.ne.s32.totalorder %s202, %s204
      %p211 = scmp.eq.s32.totalorder %s110, 1
      %p212 = por %p210, %p211
      %p213 = scmp.ne.s32.totalorder %s204, %s205
      %p214 = scmp.eq.s32.totalorder %s110, 0
      %p215 = por %p213, %p214
      %p216 = scmp.ne.s32.totalorder %s204, %s205
      %p217 = scmp.eq.s32.totalorder %s111, 1
      %p218 = por %p216, %p217
      %p220 = scmp.ne.s32.totalorder %s205, %s219
      %p221 = scmp.eq.s32.totalorder %s111, 0
      %p222 = por %p220, %p221
      %s224 = sadd.s32 %s223, 1
      %p227 = scmp.eq.s32.totalorder %s105, 1
      %p228 = scmp.ne.s32.totalorder %s223, %s225
      %p229 = scmp.eq.s32.totalorder %s105, 0
      %p230 = por %p228, %p229
      %p231 = scmp.ne.s32.totalorder %s223, %s225
      %p232 = scmp.eq.s32.totalorder %s110, 1
      %p233 = por %p231, %p232
      %p234 = scmp.ne.s32.totalorder %s225, %s226
      %p235 = scmp.eq.s32.totalorder %s110, 0
      %p236 = por %p234, %p235
      %p237 = scmp.ne.s32.totalorder %s225, %s226
      %p238 = scmp.eq.s32.totalorder %s111, 1
      %p239 = por %p237, %p238
      %p241 = scmp.ne.s32.totalorder %s226, %s240
      %p242 = scmp.eq.s32.totalorder %s111, 0
      %p243 = por %p241, %p242
      %s245 = sadd.s32 %s244, 1
      %p248 = scmp.eq.s32.totalorder %s105, 1
      %p249 = scmp.ne.s32.totalorder %s244, %s246
      %p250 = scmp.eq.s32.totalorder %s105, 0
      %p251 = por %p249, %p250
      %p252 = scmp.ne.s32.totalorder %s244, %s246
      %p253 = scmp.eq.s32.totalorder %s110, 1
      %p254 = por %p252, %p253
      %p255 = scmp.ne.s32.totalorder %s246, %s247
      %p256 = scmp.eq.s32.totalorder %s110, 0
      %p257 = por %p255, %p256
      %p258 = scmp.ne.s32.totalorder %s246, %s247
      %p259 = scmp.eq.s32.totalorder %s111, 1
      %p260 = por %p258, %p259
      %p262 = scmp.ne.s32.totalorder %s247, %s261
      %p263 = scmp.eq.s32.totalorder %s111, 0
      %p264 = por %p262, %p263
      %s266 = sadd.s32 %s265, 1
      %p269 = scmp.eq.s32.totalorder %s105, 1
      %p270 = scmp.ne.s32.totalorder %s265, %s267
      %p271 = scmp.eq.s32.totalorder %s105, 0
      %p272 = por %p270, %p271
      %p273 = scmp.ne.s32.totalorder %s265, %s267
      %p274 = scmp.eq.s32.totalorder %s110, 1
      %p275 = por %p273, %p274
      %p276 = scmp.ne.s32.totalorder %s267, %s268
      %p277 = scmp.eq.s32.totalorder %s110, 0
      %p278 = por %p276, %p277
      %p279 = scmp.ne.s32.totalorder %s267, %s268
      %p280 = scmp.eq.s32.totalorder %s111, 1
      %p281 = por %p279, %p280
      %p283 = scmp.ne.s32.totalorder %s268, %s282
      %p284 = scmp.eq.s32.totalorder %s111, 0
      %p285 = por %p283, %p284
      %s287 = sadd.s32 %s286, 1
      %p290 = scmp.eq.s32.totalorder %s105, 1
      %p291 = scmp.ne.s32.totalorder %s286, %s288
      %p292 = scmp.eq.s32.totalorder %s105, 0
      %p293 = por %p291, %p292
      %p294 = scmp.ne.s32.totalorder %s286, %s288
      %p295 = scmp.eq.s32.totalorder %s110, 1
      %p296 = por %p294, %p295
      %p297 = scmp.ne.s32.totalorder %s288, %s289
      %p298 = scmp.eq.s32.totalorder %s110, 0
      %p299 = por %p297, %p298
      %p300 = scmp.ne.s32.totalorder %s288, %s289
      %p301 = scmp.eq.s32.totalorder %s111, 1
      %p302 = por %p300, %p301
      %p304 = scmp.ne.s32.totalorder %s289, %s303
      %p305 = scmp.eq.s32.totalorder %s111, 0
      %p306 = por %p304, %p305
      %s308 = sadd.s32 %s307, 1
      %p311 = scmp.eq.s32.totalorder %s105, 1
      %p312 = scmp.ne.s32.totalorder %s307, %s309
      %p313 = scmp.eq.s32.totalorder %s105, 0
      %p314 = por %p312, %p313
      %p315 = scmp.ne.s32.totalorder %s307, %s309
      %p316 = scmp.eq.s32.totalorder %s110, 1
      %p317 = por %p315, %p316
      %p318 = scmp.ne.s32.totalorder %s309, %s310
      %p319 = scmp.eq.s32.totalorder %s110, 0
      %p320 = por %p318, %p319
      %p321 = scmp.ne.s32.totalorder %s309, %s310
      %p322 = scmp.eq.s32.totalorder %s111, 1
      %p323 = por %p321, %p322
      %p325 = scmp.ne.s32.totalorder %s310, %s324
      %p326 = scmp.eq.s32.totalorder %s111, 0
      %p327 = por %p325, %p326
      %s329 = sadd.s32 %s328, 1
      %p332 = scmp.eq.s32.totalorder %s105, 1
      %p333 = scmp.ne.s32.totalorder %s328, %s330
      %p334 = scmp.eq.s32.totalorder %s105, 0
      %p335 = por %p333, %p334
      %p336 = scmp.ne.s32.totalorder %s328, %s330
      %p337 = scmp.eq.s32.totalorder %s110, 1
      %p338 = por %p336, %p337
      %p339 = scmp.ne.s32.totalorder %s330, %s331
      %p340 = scmp.eq.s32.totalorder %s110, 0
      %p341 = por %p339, %p340
      %p342 = scmp.ne.s32.totalorder %s330, %s331
      %p343 = scmp.eq.s32.totalorder %s111, 1
      %p344 = por %p342, %p343
      %p346 = scmp.ne.s32.totalorder %s331, %s345
      %p347 = scmp.eq.s32.totalorder %s111, 0
      %p348 = por %p346, %p347
      %s350 = sadd.s32 %s349, 1
      %p353 = scmp.eq.s32.totalorder %s105, 1
      %p354 = scmp.ne.s32.totalorder %s349, %s351
      %p355 = scmp.eq.s32.totalorder %s105, 0
      %p356 = por %p354, %p355
      %p357 = scmp.ne.s32.totalorder %s349, %s351
      %p358 = scmp.eq.s32.totalorder %s110, 1
      %p359 = por %p357, %p358
      %p360 = scmp.ne.s32.totalorder %s351, %s352
      %p361 = scmp.eq.s32.totalorder %s110, 0
      %p362 = por %p360, %p361
      %p363 = scmp.ne.s32.totalorder %s351, %s352
      %p364 = scmp.eq.s32.totalorder %s111, 1
      %p365 = por %p363, %p364
      %p367 = scmp.ne.s32.totalorder %s352, %s366
      %p368 = scmp.eq.s32.totalorder %s111, 0
      %p369 = por %p367, %p368
      %s371 = sadd.s32 %s370, 1
      %p374 = scmp.eq.s32.totalorder %s105, 1
      %p375 = scmp.ne.s32.totalorder %s370, %s372
      %p376 = scmp.eq.s32.totalorder %s105, 0
      %p377 = por %p375, %p376
      %p378 = scmp.ne.s32.totalorder %s370, %s372
      %p379 = scmp.eq.s32.totalorder %s110, 1
      %p380 = por %p378, %p379
      %p381 = scmp.ne.s32.totalorder %s372, %s373
      %p382 = scmp.eq.s32.totalorder %s110, 0
      %p383 = por %p381, %p382
      %p384 = scmp.ne.s32.totalorder %s372, %s373
      %p385 = scmp.eq.s32.totalorder %s111, 1
      %p386 = por %p384, %p385
      %p388 = scmp.ne.s32.totalorder %s373, %s387
      %p389 = scmp.eq.s32.totalorder %s111, 0
      %p390 = por %p388, %p389
      %s392 = sadd.s32 %s391, 1
      %p395 = scmp.eq.s32.totalorder %s105, 1
      %p396 = scmp.ne.s32.totalorder %s391, %s393
      %p397 = scmp.eq.s32.totalorder %s105, 0
      %p398 = por %p396, %p397
      %p399 = scmp.ne.s32.totalorder %s391, %s393
      %p400 = scmp.eq.s32.totalorder %s110, 1
      %p401 = por %p399, %p400
      %p402 = scmp.ne.s32.totalorder %s393, %s394
      %p403 = scmp.eq.s32.totalorder %s110, 0
      %p404 = por %p402, %p403
      %p405 = scmp.ne.s32.totalorder %s393, %s394
      %p406 = scmp.eq.s32.totalorder %s111, 1
      %p407 = por %p405, %p406
      %p409 = scmp.ne.s32.totalorder %s394, %s408
      %p410 = scmp.eq.s32.totalorder %s111, 0
      %p411 = por %p409, %p410
      %s413 = sadd.s32 %s412, 1
      %p416 = scmp.eq.s32.totalorder %s105, 1
      %p417 = scmp.ne.s32.totalorder %s412, %s414
      %p418 = scmp.eq.s32.totalorder %s105, 0
      %p419 = por %p417, %p418
      %p420 = scmp.ne.s32.totalorder %s412, %s414
      %p421 = scmp.eq.s32.totalorder %s110, 1
      %p422 = por %p420, %p421
      %p423 = scmp.ne.s32.totalorder %s414, %s415
      %p424 = scmp.eq.s32.totalorder %s110, 0
      %p425 = por %p423, %p424
      %p426 = scmp.ne.s32.totalorder %s414, %s415
      %p427 = scmp.eq.s32.totalorder %s111, 1
      %p428 = por %p426, %p427
      %p430 = scmp.ne.s32.totalorder %s415, %s429
      %p431 = scmp.eq.s32.totalorder %s111, 0
      %p432 = por %p430, %p431
      %s434 = sadd.s32 %s433, 1
      %p437 = scmp.eq.s32.totalorder %s105, 1
      %p438 = scmp.ne.s32.totalorder %s433, %s435
      %p439 = scmp.eq.s32.totalorder %s105, 0
      %p440 = por %p438, %p439
      %p441 = scmp.ne.s32.totalorder %s433, %s435
      %p442 = scmp.eq.s32.totalorder %s110, 1
      %p443 = por %p441, %p442
      %p444 = scmp.ne.s32.totalorder %s435, %s436
      %p445 = scmp.eq.s32.totalorder %s110, 0
      %p446 = por %p444, %p445
      %p447 = scmp.ne.s32.totalorder %s435, %s436
      %p448 = scmp.eq.s32.totalorder %s111, 1
      %p449 = por %p447, %p448
      %p451 = scmp.ne.s32.totalorder %s436, %s450
      %p452 = scmp.eq.s32.totalorder %s111, 0
      %p453 = por %p451, %p452
      %s455 = sadd.s32 %s454, 1
      %p458 = scmp.eq.s32.totalorder %s105, 1
      %p459 = scmp.ne.s32.totalorder %s454, %s456
      %p460 = scmp.eq.s32.totalorder %s105, 0
      %p461 = por %p459, %p460
      %p462 = scmp.ne.s32.totalorder %s454, %s456
      %p463 = scmp.eq.s32.totalorder %s110, 1
      %p464 = por %p462, %p463
      %p465 = scmp.ne.s32.totalorder %s456, %s457
      %p466 = scmp.eq.s32.totalorder %s110, 0
      %p467 = por %p465, %p466
      %p468 = scmp.ne.s32.totalorder %s456, %s457
      %p469 = scmp.eq.s32.totalorder %s111, 1
      %p470 = por %p468, %p469
      %p472 = scmp.ne.s32.totalorder %s457, %s471
      %p473 = scmp.eq.s32.totalorder %s111, 0
      %p474 = por %p472, %p473
      %s476 = sadd.s32 %s475, 1
      %p479 = scmp.eq.s32.totalorder %s105, 1
      %p480 = scmp.ne.s32.totalorder %s475, %s477
      %p481 = scmp.eq.s32.totalorder %s105, 0
      %p482 = por %p480, %p481
      %p483 = scmp.ne.s32.totalorder %s475, %s477
      %p484 = scmp.eq.s32.totalorder %s110, 1
      %p485 = por %p483, %p484
      %p486 = scmp.ne.s32.totalorder %s477, %s478
      %p487 = scmp.eq.s32.totalorder %s110, 0
      %p488 = por %p486, %p487
      %p489 = scmp.ne.s32.totalorder %s477, %s478
      %p490 = scmp.eq.s32.totalorder %s111, 1
      %p491 = por %p489, %p490
      %p493 = scmp.ne.s32.totalorder %s478, %s492
      %p494 = scmp.eq.s32.totalorder %s111, 0
      %p495 = por %p493, %p494
      %s497 = sadd.s32 %s496, 1
      %p500 = scmp.eq.s32.totalorder %s105, 1
      %p501 = scmp.ne.s32.totalorder %s496, %s498
      %p502 = scmp.eq.s32.totalorder %s105, 0
      %p503 = por %p501, %p502
      %p504 = scmp.ne.s32.totalorder %s496, %s498
      %p505 = scmp.eq.s32.totalorder %s110, 1
      %p506 = por %p504, %p505
      %p507 = scmp.ne.s32.totalorder %s498, %s499
      %p508 = scmp.eq.s32.totalorder %s110, 0
      %p509 = por %p507, %p508
      %p510 = scmp.ne.s32.totalorder %s498, %s499
      %p511 = scmp.eq.s32.totalorder %s111, 1
      %p512 = por %p510, %p511
      %p514 = scmp.ne.s32.totalorder %s499, %s513
      %p515 = scmp.eq.s32.totalorder %s111, 0
      %p516 = por %p514, %p515
      %s518 = sadd.s32 %s517, 1
      %p521 = scmp.eq.s32.totalorder %s105, 1
      %p522 = scmp.ne.s32.totalorder %s517, %s519
      %p523 = scmp.eq.s32.totalorder %s105, 0
      %p524 = por %p522, %p523
      %p525 = scmp.ne.s32.totalorder %s517, %s519
      %p526 = scmp.eq.s32.totalorder %s110, 1
      %p527 = por %p525, %p526
      %p528 = scmp.ne.s32.totalorder %s519, %s520
      %p529 = scmp.eq.s32.totalorder %s110, 0
      %p530 = por %p528, %p529
      %p531 = scmp.ne.s32.totalorder %s519, %s520
      %p532 = scmp.eq.s32.totalorder %s111, 1
      %p533 = por %p531, %p532
      %p535 = scmp.ne.s32.totalorder %s520, %s534
      %p536 = scmp.eq.s32.totalorder %s111, 0
      %p537 = por %p535, %p536
      %s539 = sadd.s32 %s538, 1
      %p542 = scmp.eq.s32.totalorder %s105, 1
      %p543 = scmp.ne.s32.totalorder %s538, %s540
      %p544 = scmp.eq.s32.totalorder %s105, 0
      %p545 = por %p543, %p544
      %p546 = scmp.ne.s32.totalorder %s538, %s540
      %p547 = scmp.eq.s32.totalorder %s110, 1
      %p548 = por %p546, %p547
      %p549 = scmp.ne.s32.totalorder %s540, %s541
      %p550 = scmp.eq.s32.totalorder %s110, 0
      %p551 = por %p549, %p550
      %p552 = scmp.ne.s32.totalorder %s540, %s541
      %p553 = scmp.eq.s32.totalorder %s111, 1
      %p554 = por %p552, %p553
      %p556 = scmp.ne.s32.totalorder %s541, %s555
      %p557 = scmp.eq.s32.totalorder %s111, 0
      %p558 = por %p556, %p557
      %s560 = sadd.s32 %s559, 1
      %p563 = scmp.eq.s32.totalorder %s105, 1
      %p564 = scmp.ne.s32.totalorder %s559, %s561
      %p565 = scmp.eq.s32.totalorder %s105, 0
      %p566 = por %p564, %p565
      %p567 = scmp.ne.s32.totalorder %s559, %s561
      %p568 = scmp.eq.s32.totalorder %s110, 1
      %p569 = por %p567, %p568
      %p570 = scmp.ne.s32.totalorder %s561, %s562
      %p571 = scmp.eq.s32.totalorder %s110, 0
      %p572 = por %p570, %p571
      %p573 = scmp.ne.s32.totalorder %s561, %s562
      %p574 = scmp.eq.s32.totalorder %s111, 1
      %p575 = por %p573, %p574
      %p577 = scmp.ne.s32.totalorder %s562, %s576
      %p578 = scmp.eq.s32.totalorder %s111, 0
      %p579 = por %p577, %p578
      %s581 = sadd.s32 %s580, 1
      %p584 = scmp.eq.s32.totalorder %s105, 1
      %p585 = scmp.ne.s32.totalorder %s580, %s582
      %p586 = scmp.eq.s32.totalorder %s105, 0
      %p587 = por %p585, %p586
      %p588 = scmp.ne.s32.totalorder %s580, %s582
      %p589 = scmp.eq.s32.totalorder %s110, 1
      %p590 = por %p588, %p589
      %p591 = scmp.ne.s32.totalorder %s582, %s583
      %p592 = scmp.eq.s32.totalorder %s110, 0
      %p593 = por %p591, %p592
      %p594 = scmp.ne.s32.totalorder %s582, %s583
      %p595 = scmp.eq.s32.totalorder %s111, 1
      %p596 = por %p594, %p595
      %p598 = scmp.ne.s32.totalorder %s583, %s597
      %p599 = scmp.eq.s32.totalorder %s111, 0
      %p600 = por %p598, %p599
      %s602 = sadd.s32 %s601, 1
      %p605 = scmp.eq.s32.totalorder %s105, 1
      %p606 = scmp.ne.s32.totalorder %s601, %s603
      %p607 = scmp.eq.s32.totalorder %s105, 0
      %p608 = por %p606, %p607
      %p609 = scmp.ne.s32.totalorder %s601, %s603
      %p610 = scmp.eq.s32.totalorder %s110, 1
      %p611 = por %p609, %p610
      %p612 = scmp.ne.s32.totalorder %s603, %s604
      %p613 = scmp.eq.s32.totalorder %s110, 0
      %p614 = por %p612, %p613
      %p615 = scmp.ne.s32.totalorder %s603, %s604
      %p616 = scmp.eq.s32.totalorder %s111, 1
      %p617 = por %p615, %p616
      %p619 = scmp.ne.s32.totalorder %s604, %s618
      %p620 = scmp.eq.s32.totalorder %s111, 0
      %p621 = por %p619, %p620
      %s623 = sadd.s32 %s622, 1
      %p626 = scmp.eq.s32.totalorder %s105, 1
      %p627 = scmp.ne.s32.totalorder %s622, %s624
      %p628 = scmp.eq.s32.totalorder %s105, 0
      %p629 = por %p627, %p628
      %p630 = scmp.ne.s32.totalorder %s622, %s624
      %p631 = scmp.eq.s32.totalorder %s110, 1
      %p632 = por %p630, %p631
      %p633 = scmp.ne.s32.totalorder %s624, %s625
      %p634 = scmp.eq.s32.totalorder %s110, 0
      %p635 = por %p633, %p634
      %p636 = scmp.ne.s32.totalorder %s624, %s625
      %p637 = scmp.eq.s32.totalorder %s111, 1
      %p638 = por %p636, %p637
      %p640 = scmp.ne.s32.totalorder %s625, %s639
      %p641 = scmp.eq.s32.totalorder %s111, 0
      %p642 = por %p640, %p641
      %s644 = sadd.s32 %s643, 1
      %p647 = scmp.eq.s32.totalorder %s105, 1
      %p648 = scmp.ne.s32.totalorder %s643, %s645
      %p649 = scmp.eq.s32.totalorder %s105, 0
      %p650 = por %p648, %p649
      %p651 = scmp.ne.s32.totalorder %s643, %s645
      %p652 = scmp.eq.s32.totalorder %s110, 1
      %p653 = por %p651, %p652
      %p654 = scmp.ne.s32.totalorder %s645, %s646
      %p655 = scmp.eq.s32.totalorder %s110, 0
      %p656 = por %p654, %p655
      %p657 = scmp.ne.s32.totalorder %s645, %s646
      %p658 = scmp.eq.s32.totalorder %s111, 1
      %p659 = por %p657, %p658
      %p661 = scmp.ne.s32.totalorder %s646, %s660
      %p662 = scmp.eq.s32.totalorder %s111, 0
      %p663 = por %p661, %p662
      %s665 = sadd.s32 %s664, 1
      %p668 = scmp.eq.s32.totalorder %s105, 1
      %p669 = scmp.ne.s32.totalorder %s664, %s666
      %p670 = scmp.eq.s32.totalorder %s105, 0
      %p671 = por %p669, %p670
      %p672 = scmp.ne.s32.totalorder %s664, %s666
      %p673 = scmp.eq.s32.totalorder %s110, 1
      %p674 = por %p672, %p673
      %p675 = scmp.ne.s32.totalorder %s666, %s667
      %p676 = scmp.eq.s32.totalorder %s110, 0
      %p677 = por %p675, %p676
      %p678 = scmp.ne.s32.totalorder %s666, %s667
      %p679 = scmp.eq.s32.totalorder %s111, 1
      %p680 = por %p678, %p679
      %p682 = scmp.ne.s32.totalorder %s667, %s681
      %p683 = scmp.eq.s32.totalorder %s111, 0
      %p684 = por %p682, %p683
      %s686 = sadd.s32 %s685, 1
      %p689 = scmp.eq.s32.totalorder %s105, 1
      %p690 = scmp.ne.s32.totalorder %s685, %s687
      %p691 = scmp.eq.s32.totalorder %s105, 0
      %p692 = por %p690, %p691
      %p693 = scmp.ne.s32.totalorder %s685, %s687
      %p694 = scmp.eq.s32.totalorder %s110, 1
      %p695 = por %p693, %p694
      %p696 = scmp.ne.s32.totalorder %s687, %s688
      %p697 = scmp.eq.s32.totalorder %s110, 0
      %p698 = por %p696, %p697
      %p699 = scmp.ne.s32.totalorder %s687, %s688
      %p700 = scmp.eq.s32.totalorder %s111, 1
      %p701 = por %p699, %p700
      %p703 = scmp.ne.s32.totalorder %s688, %s702
      %p704 = scmp.eq.s32.totalorder %s111, 0
      %p705 = por %p703, %p704
      %s707 = sadd.s32 %s706, 1
      %p710 = scmp.eq.s32.totalorder %s105, 1
      %p711 = scmp.ne.s32.totalorder %s706, %s708
      %p712 = scmp.eq.s32.totalorder %s105, 0
      %p713 = por %p711, %p712
      %p714 = scmp.ne.s32.totalorder %s706, %s708
      %p715 = scmp.eq.s32.totalorder %s110, 1
      %p716 = por %p714, %p715
      %p717 = scmp.ne.s32.totalorder %s708, %s709
      %p718 = scmp.eq.s32.totalorder %s110, 0
      %p719 = por %p717, %p718
      %p720 = scmp.ne.s32.totalorder %s708, %s709
      %p721 = scmp.eq.s32.totalorder %s111, 1
      %p722 = por %p720, %p721
      %p724 = scmp.ne.s32.totalorder %s709, %s723
      %p725 = scmp.eq.s32.totalorder %s111, 0
      %p726 = por %p724, %p725
      %s728 = sadd.s32 %s727, 1
      %p731 = scmp.eq.s32.totalorder %s105, 1
      %p732 = scmp.ne.s32.totalorder %s727, %s729
      %p733 = scmp.eq.s32.totalorder %s105, 0
      %p734 = por %p732, %p733
      %p735 = scmp.ne.s32.totalorder %s727, %s729
      %p736 = scmp.eq.s32.totalorder %s110, 1
      %p737 = por %p735, %p736
      %p738 = scmp.ne.s32.totalorder %s729, %s730
      %p739 = scmp.eq.s32.totalorder %s110, 0
      %p740 = por %p738, %p739
      %p741 = scmp.ne.s32.totalorder %s729, %s730
      %p742 = scmp.eq.s32.totalorder %s111, 1
      %p743 = por %p741, %p742
      %p745 = scmp.ne.s32.totalorder %s730, %s744
      %p746 = scmp.eq.s32.totalorder %s111, 0
      %p747 = por %p745, %p746
      %s749 = sadd.s32 %s748, 1
      %p752 = scmp.eq.s32.totalorder %s105, 1
      %p753 = scmp.ne.s32.totalorder %s748, %s750
      %p754 = scmp.eq.s32.totalorder %s105, 0
      %p755 = por %p753, %p754
      %p756 = scmp.ne.s32.totalorder %s748, %s750
      %p757 = scmp.eq.s32.totalorder %s110, 1
      %p758 = por %p756, %p757
      %p759 = scmp.ne.s32.totalorder %s750, %s751
      %p760 = scmp.eq.s32.totalorder %s110, 0
      %p761 = por %p759, %p760
      %p762 = scmp.ne.s32.totalorder %s750, %s751
      %p763 = scmp.eq.s32.totalorder %s111, 1
      %p764 = por %p762, %p763
      %p766 = scmp.ne.s32.totalorder %s751, %s765
      %p767 = scmp.eq.s32.totalorder %s111, 0
      %p768 = por %p766, %p767
      %s770 = sadd.s32 %s769, 1
      %p773 = scmp.eq.s32.totalorder %s105, 1
      %p774 = scmp.ne.s32.totalorder %s769, %s771
      %p775 = scmp.eq.s32.totalorder %s105, 0
      %p776 = por %p774, %p775
      %p777 = scmp.ne.s32.totalorder %s769, %s771
      %p778 = scmp.eq.s32.totalorder %s110, 1
      %p779 = por %p777, %p778
      %p780 = scmp.ne.s32.totalorder %s771, %s772
      %p781 = scmp.eq.s32.totalorder %s110, 0
      %p782 = por %p780, %p781
      %p783 = scmp.ne.s32.totalorder %s771, %s772
      %p784 = scmp.eq.s32.totalorder %s111, 1
      %p785 = por %p783, %p784
      %p787 = scmp.ne.s32.totalorder %s772, %s786
      %p788 = scmp.eq.s32.totalorder %s111, 0
      %p789 = por %p787, %p788
      %s791 = sadd.s32 %s790, 1
      %p794 = scmp.eq.s32.totalorder %s105, 1
      %p795 = scmp.ne.s32.totalorder %s790, %s792
      %p796 = scmp.eq.s32.totalorder %s105, 0
      %p797 = por %p795, %p796
      %p798 = scmp.ne.s32.totalorder %s790, %s792
      %p799 = scmp.eq.s32.totalorder %s110, 1
      %p800 = por %p798, %p799
      %p801 = scmp.ne.s32.totalorder %s792, %s793
      %p802 = scmp.eq.s32.totalorder %s110, 0
      %p803 = por %p801, %p802
      %p804 = scmp.ne.s32.totalorder %s792, %s793
      %p805 = scmp.eq.s32.totalorder %s111, 1
      %p806 = por %p804, %p805
      %p808 = scmp.ne.s32.totalorder %s793, %s807
      %p809 = scmp.eq.s32.totalorder %s111, 0
      %p810 = por %p808, %p809
      %s812 = sadd.s32 %s811, 1
      %p815 = scmp.eq.s32.totalorder %s105, 1
      %p816 = scmp.ne.s32.totalorder %s811, %s813
      %p817 = scmp.eq.s32.totalorder %s105, 0
      %p818 = por %p816, %p817
      %p819 = scmp.ne.s32.totalorder %s811, %s813
      %p820 = scmp.eq.s32.totalorder %s110, 1
      %p821 = por %p819, %p820
      %p822 = scmp.ne.s32.totalorder %s813, %s814
      %p823 = scmp.eq.s32.totalorder %s110, 0
      %p824 = por %p822, %p823
      %p825 = scmp.ne.s32.totalorder %s813, %s814
      %p826 = scmp.eq.s32.totalorder %s111, 1
      %p827 = por %p825, %p826
      %p829 = scmp.ne.s32.totalorder %s814, %s828
      %p830 = scmp.eq.s32.totalorder %s111, 0
      %p831 = por %p829, %p830
      %s833 = sadd.s32 %s832, 1
      %p836 = scmp.eq.s32.totalorder %s105, 1
      %p837 = scmp.ne.s32.totalorder %s832, %s834
      %p838 = scmp.eq.s32.totalorder %s105, 0
      %p839 = por %p837, %p838
      %p840 = scmp.ne.s32.totalorder %s832, %s834
      %p841 = scmp.eq.s32.totalorder %s110, 1
      %p842 = por %p840, %p841
      %p843 = scmp.ne.s32.totalorder %s834, %s835
      %p844 = scmp.eq.s32.totalorder %s110, 0
      %p845 = por %p843, %p844
      %p846 = scmp.ne.s32.totalorder %s834, %s835
      %p847 = scmp.eq.s32.totalorder %s111, 1
      %p848 = por %p846, %p847
      %p850 = scmp.ne.s32.totalorder %s835, %s849
      %p851 = scmp.eq.s32.totalorder %s111, 0
      %p852 = por %p850, %p851
      %s854 = sadd.s32 %s853, 1
      %p857 = scmp.eq.s32.totalorder %s105, 1
      %p858 = scmp.ne.s32.totalorder %s853, %s855
      %p859 = scmp.eq.s32.totalorder %s105, 0
      %p860 = por %p858, %p859
      %p861 = scmp.ne.s32.totalorder %s853, %s855
      %p862 = scmp.eq.s32.totalorder %s110, 1
      %p863 = por %p861, %p862
      %p864 = scmp.ne.s32.totalorder %s855, %s856
      %p865 = scmp.eq.s32.totalorder %s110, 0
      %p866 = por %p864, %p865
      %p867 = scmp.ne.s32.totalorder %s855, %s856
      %p868 = scmp.eq.s32.totalorder %s111, 1
      %p869 = por %p867, %p868
      %p871 = scmp.ne.s32.totalorder %s856, %s870
      %p872 = scmp.eq.s32.totalorder %s111, 0
      %p873 = por %p871, %p872
      %s875 = sadd.s32 %s874, 1
      %p878 = scmp.eq.s32.totalorder %s105, 1
      %p879 = scmp.ne.s32.totalorder %s874, %s876
      %p880 = scmp.eq.s32.totalorder %s105, 0
      %p881 = por %p879, %p880
      %p882 = scmp.ne.s32.totalorder %s874, %s876
      %p883 = scmp.eq.s32.totalorder %s110, 1
      %p884 = por %p882, %p883
      %p885 = scmp.ne.s32.totalorder %s876, %s877
      %p886 = scmp.eq.s32.totalorder %s110, 0
      %p887 = por %p885, %p886
      %p888 = scmp.ne.s32.totalorder %s876, %s877
      %p889 = scmp.eq.s32.totalorder %s111, 1
      %p890 = por %p888, %p889
      %p892 = scmp.ne.s32.totalorder %s877, %s891
      %p893 = scmp.eq.s32.totalorder %s111, 0
      %p894 = por %p892, %p893
      %s896 = sadd.s32 %s895, 1
      %p899 = scmp.eq.s32.totalorder %s105, 1
      %p900 = scmp.ne.s32.totalorder %s895, %s897
      %p901 = scmp.eq.s32.totalorder %s105, 0
      %p902 = por %p900, %p901
      %p903 = scmp.ne.s32.totalorder %s895, %s897
      %p904 = scmp.eq.s32.totalorder %s110, 1
      %p905 = por %p903, %p904
      %p906 = scmp.ne.s32.totalorder %s897, %s898
      %p907 = scmp.eq.s32.totalorder %s110, 0
      %p908 = por %p906, %p907
      %p909 = scmp.ne.s32.totalorder %s897, %s898
      %p910 = scmp.eq.s32.totalorder %s111, 1
      %p911 = por %p909, %p910
      %p913 = scmp.ne.s32.totalorder %s898, %s912
      %p914 = scmp.eq.s32.totalorder %s111, 0
      %p915 = por %p913, %p914
      %s917 = sadd.s32 %s916, 1
      %p920 = scmp.eq.s32.totalorder %s105, 1
      %p921 = scmp.ne.s32.totalorder %s916, %s918
      %p922 = scmp.eq.s32.totalorder %s105, 0
      %p923 = por %p921, %p922
      %p924 = scmp.ne.s32.totalorder %s916, %s918
      %p925 = scmp.eq.s32.totalorder %s110, 1
      %p926 = por %p924, %p925
      %p927 = scmp.ne.s32.totalorder %s918, %s919
      %p928 = scmp.eq.s32.totalorder %s110, 0
      %p929 = por %p927, %p928
      %p930 = scmp.ne.s32.totalorder %s918, %s919
      %p931 = scmp.eq.s32.totalorder %s111, 1
      %p932 = por %p930, %p931
      %p934 = scmp.ne.s32.totalorder %s919, %s933
      %p935 = scmp.eq.s32.totalorder %s111, 0
      %p936 = por %p934, %p935
      %s938 = sadd.s32 %s937, 1
      %p941 = scmp.eq.s32.totalorder %s105, 1
      %p942 = scmp.ne.s32.totalorder %s937, %s939
      %p943 = scmp.eq.s32.totalorder %s105, 0
      %p944 = por %p942, %p943
      %p945 = scmp.ne.s32.totalorder %s937, %s939
      %p946 = scmp.eq.s32.totalorder %s110, 1
      %p947 = por %p945, %p946
      %p948 = scmp.ne.s32.totalorder %s939, %s940
      %p949 = scmp.eq.s32.totalorder %s110, 0
      %p950 = por %p948, %p949
      %p951 = scmp.ne.s32.totalorder %s939, %s940
      %p952 = scmp.eq.s32.totalorder %s111, 1
      %p953 = por %p951, %p952
      %p955 = scmp.ne.s32.totalorder %s940, %s954
      %p956 = scmp.eq.s32.totalorder %s111, 0
      %p957 = por %p955, %p956
      %s959 = sadd.s32 %s958, 1
      %p962 = scmp.eq.s32.totalorder %s105, 1
      %p963 = scmp.ne.s32.totalorder %s958, %s960
      %p964 = scmp.eq.s32.totalorder %s105, 0
      %p965 = por %p963, %p964
      %p966 = scmp.ne.s32.totalorder %s958, %s960
      %p967 = scmp.eq.s32.totalorder %s110, 1
      %p968 = por %p966, %p967
      %p969 = scmp.ne.s32.totalorder %s960, %s961
      %p970 = scmp.eq.s32.totalorder %s110, 0
      %p971 = por %p969, %p970
      %p972 = scmp.ne.s32.totalorder %s960, %s961
      %p973 = scmp.eq.s32.totalorder %s111, 1
      %p974 = por %p972, %p973
      %p976 = scmp.ne.s32.totalorder %s961, %s975
      %p977 = scmp.eq.s32.totalorder %s111, 0
      %p978 = por %p976, %p977
      %s979 = ssub.s32 %s105, %s112
      %p980 = scmp.eq.s32.totalorder %s979, 0
      %s982 = sadd.s32 %s981, 1
      %s983 = scalar_select %p980, %s981, %s982
      %p986 = pneg %p980
      %p987 = scmp.eq.s32.totalorder %s105, 1
      %p988 = por %p986, %p987
      %p989 = scmp.ne.s32.totalorder %s981, %s984
      %p990 = scmp.eq.s32.totalorder %s105, 0
      %p991 = por %p989, %p990
      %p992 = scmp.ne.s32.totalorder %s981, %s984
      %p993 = scmp.eq.s32.totalorder %s110, 1
      %p994 = por %p992, %p993
      %p995 = scmp.ne.s32.totalorder %s984, %s985
      %p996 = scmp.eq.s32.totalorder %s110, 0
      %p997 = por %p995, %p996
      %p998 = scmp.ne.s32.totalorder %s984, %s985
      %p999 = scmp.eq.s32.totalorder %s111, 1
      %p1000 = por %p998, %p999
      %p1002 = scmp.ne.s32.totalorder %s985, %s1001
      %p1003 = scmp.eq.s32.totalorder %s111, 0
      %p1004 = por %p1002, %p1003
      %s1005 = ssub.s32 %s105, %s112
      %p1006 = scmp.eq.s32.totalorder %s1005, 0
      %s1008 = sadd.s32 %s1007, 1
      %s1009 = scalar_select %p1006, %s1007, %s1008
      %p1012 = pneg %p1006
      %p1013 = scmp.eq.s32.totalorder %s105, 1
      %p1014 = por %p1012, %p1013
      %p1015 = scmp.ne.s32.totalorder %s1007, %s1010
      %p1016 = scmp.eq.s32.totalorder %s105, 0
      %p1017 = por %p1015, %p1016
      %p1018 = scmp.ne.s32.totalorder %s1007, %s1010
      %p1019 = scmp.eq.s32.totalorder %s110, 1
      %p1020 = por %p1018, %p1019
      %p1021 = scmp.ne.s32.totalorder %s1010, %s1011
      %p1022 = scmp.eq.s32.totalorder %s110, 0
      %p1023 = por %p1021, %p1022
      %p1024 = scmp.ne.s32.totalorder %s1010, %s1011
      %p1025 = scmp.eq.s32.totalorder %s111, 1
      %p1026 = por %p1024, %p1025
      %p1028 = scmp.ne.s32.totalorder %s1011, %s1027
      %p1029 = scmp.eq.s32.totalorder %s111, 0
      %p1030 = por %p1028, %p1029
      %p1031 = scmp.le.s32.totalorder 1, %s105
      %p1032 = scmp.lt.s32.totalorder %s105, 3
      %p1033 = pnand %p1031, %p1032
      %p1034 = pneg %p1033
      // Predicated region
      $region9: #{_run.1} parent=5 // pred_check
        _
      $region10: #{_run.1} parent=5 // pred_check_branch
        %1036 = sbr.rel (%p1033) target = $region12
      $region11: #{_run.1} parent=5 // pred_region
        %s1037 = ssub.s32 %s105, 1
        // Predicated region
        $region13: #{_run.1} parent=11 // pred_check
          %p1038 = pneg %p152
        $region14: #{_run.1} parent=11 // pred_check_branch
          %1040 = sbr.rel (%p1038) target = $region16
        $region15: #{_run.1} parent=11 // pred_region
          %s1042 = ssub.s32 896, 896
          %1043 = vsyncadd [#allocation3], %s1042
          %s1044 = sshll.u32 [#allocation2], 4
          %s1045 = int_to_ptr.vmem [resolvable:$true] %s1044
          %1050 = dma.hbm_to_vmem [thread:$0]  %s3, 896, %s1045, [#allocation3], 64, 64, 4
        $region16: #{_run.1} parent=11 // pred_fallthru
          _
        // Predicated region
        $region17: #{_run.1} parent=11 // pred_check
          %p1051 = pneg %p173
        $region18: #{_run.1} parent=11 // pred_check_branch
          %1053 = sbr.rel (%p1051) target = $region20
        $region19: #{_run.1} parent=11 // pred_region
          _
        $region20: #{_run.1} parent=11 // pred_fallthru
          _
        // Predicated region
        $region21: #{_run.1} parent=11 // pred_check
          %p1054 = pneg %p194
        $region22: #{_run.1} parent=11 // pred_check_branch
          %1056 = sbr.rel (%p1054) target = $region24
        $region23: #{_run.1} parent=11 // pred_region
          _
        $region24: #{_run.1} parent=11 // pred_fallthru
          _
        // Predicated region
        $region25: #{_run.1} parent=11 // pred_check
          %p1057 = pneg %p215
        $region26: #{_run.1} parent=11 // pred_check_branch
          %1059 = sbr.rel (%p1057) target = $region28
        $region27: #{_run.1} parent=11 // pred_region
          _
        $region28: #{_run.1} parent=11 // pred_fallthru
          _
        // Predicated region
        $region29: #{_run.1} parent=11 // pred_check
          %p1060 = pneg %p236
        $region30: #{_run.1} parent=11 // pred_check_branch
          %1062 = sbr.rel (%p1060) target = $region32
        $region31: #{_run.1} parent=11 // pred_region
          _
        $region32: #{_run.1} parent=11 // pred_fallthru
          _
        // Predicated region
        $region33: #{_run.1} parent=11 // pred_check
          %p1063 = pneg %p257
        $region34: #{_run.1} parent=11 // pred_check_branch
          %1065 = sbr.rel (%p1063) target = $region36
        $region35: #{_run.1} parent=11 // pred_region
          _
        $region36: #{_run.1} parent=11 // pred_fallthru
          _
        // Predicated region
        $region37: #{_run.1} parent=11 // pred_check
          %p1066 = pneg %p278
        $region38: #{_run.1} parent=11 // pred_check_branch
          %1068 = sbr.rel (%p1066) target = $region40
        $region39: #{_run.1} parent=11 // pred_region
          %s1070 = ssub.s32 3072, 3072
          %1071 = vsyncadd [#allocation6], %s1070
          %s1072 = sshll.u32 [#allocation5], 4
          %s1073 = int_to_ptr.vmem [resolvable:$true] %s1072
          %1078 = dma.hbm_to_vmem [thread:$0]  %s15, 3072, %s1073, [#allocation6], 64, 64, 4
        $region40: #{_run.1} parent=11 // pred_fallthru
          _
        // Predicated region
        $region41: #{_run.1} parent=11 // pred_check
          %p1079 = pneg %p299
        $region42: #{_run.1} parent=11 // pred_check_branch
          %1081 = sbr.rel (%p1079) target = $region44
        $region43: #{_run.1} parent=11 // pred_region
          _
        $region44: #{_run.1} parent=11 // pred_fallthru
          _
        // Predicated region
        $region45: #{_run.1} parent=11 // pred_check
          %p1082 = pneg %p320
        $region46: #{_run.1} parent=11 // pred_check_branch
          %1084 = sbr.rel (%p1082) target = $region48
        $region47: #{_run.1} parent=11 // pred_region
          _
        $region48: #{_run.1} parent=11 // pred_fallthru
          _
        // Predicated region
        $region49: #{_run.1} parent=11 // pred_check
          %p1085 = pneg %p341
        $region50: #{_run.1} parent=11 // pred_check_branch
          %1087 = sbr.rel (%p1085) target = $region52
        $region51: #{_run.1} parent=11 // pred_region
          %s1089 = ssub.s32 3072, 3072
          %1090 = vsyncadd [#allocation6], %s1089
          %s1091 = sshll.u32 [#allocation7], 4
          %s1092 = int_to_ptr.vmem [resolvable:$true] %s1091
          %1097 = dma.hbm_to_vmem [thread:$0]  %s21, 3072, %s1092, [#allocation6], 64, 64, 4
        $region52: #{_run.1} parent=11 // pred_fallthru
          _
        // Predicated region
        $region53: #{_run.1} parent=11 // pred_check
          %p1098 = pneg %p362
        $region54: #{_run.1} parent=11 // pred_check_branch
          %1100 = sbr.rel (%p1098) target = $region56
        $region55: #{_run.1} parent=11 // pred_region
          _
        $region56: #{_run.1} parent=11 // pred_fallthru
          _
        // Predicated region
        $region57: #{_run.1} parent=11 // pred_check
          %p1101 = pneg %p383
        $region58: #{_run.1} parent=11 // pred_check_branch
          %1103 = sbr.rel (%p1101) target = $region60
        $region59: #{_run.1} parent=11 // pred_region
          _
        $region60: #{_run.1} parent=11 // pred_fallthru
          _
        // Predicated region
        $region61: #{_run.1} parent=11 // pred_check
          %p1104 = pneg %p404
        $region62: #{_run.1} parent=11 // pred_check_branch
          %1106 = sbr.rel (%p1104) target = $region64
        $region63: #{_run.1} parent=11 // pred_region
          _
        $region64: #{_run.1} parent=11 // pred_fallthru
          _
        // Predicated region
        $region65: #{_run.1} parent=11 // pred_check
          %p1107 = pneg %p425
        $region66: #{_run.1} parent=11 // pred_check_branch
          %1109 = sbr.rel (%p1107) target = $region68
        $region67: #{_run.1} parent=11 // pred_region
          _
        $region68: #{_run.1} parent=11 // pred_fallthru
          _
        // Predicated region
        $region69: #{_run.1} parent=11 // pred_check
          %p1110 = pneg %p446
        $region70: #{_run.1} parent=11 // pred_check_branch
          %1112 = sbr.rel (%p1110) target = $region72
        $region71: #{_run.1} parent=11 // pred_region
          _
        $region72: #{_run.1} parent=11 // pred_fallthru
          _
        // Predicated region
        $region73: #{_run.1} parent=11 // pred_check
          %p1113 = pneg %p467
        $region74: #{_run.1} parent=11 // pred_check_branch
          %1115 = sbr.rel (%p1113) target = $region76
        $region75: #{_run.1} parent=11 // pred_region
          _
        $region76: #{_run.1} parent=11 // pred_fallthru
          _
        // Predicated region
        $region77: #{_run.1} parent=11 // pred_check
          %p1116 = pneg %p488
        $region78: #{_run.1} parent=11 // pred_check_branch
          %1118 = sbr.rel (%p1116) target = $region80
        $region79: #{_run.1} parent=11 // pred_region
          %s1120 = ssub.s32 3072, 3072
          %1121 = vsyncadd [#allocation9], %s1120
          %s1122 = sshll.u32 [#allocation8], 4
          %s1123 = int_to_ptr.vmem [resolvable:$true] %s1122
          %1128 = dma.hbm_to_vmem [thread:$0]  %s35, 3072, %s1123, [#allocation9], 64, 64, 4
        $region80: #{_run.1} parent=11 // pred_fallthru
          _
        // Predicated region
        $region81: #{_run.1} parent=11 // pred_check
          %p1129 = pneg %p509
        $region82: #{_run.1} parent=11 // pred_check_branch
          %1131 = sbr.rel (%p1129) target = $region84
        $region83: #{_run.1} parent=11 // pred_region
          _
        $region84: #{_run.1} parent=11 // pred_fallthru
          _
        // Predicated region
        $region85: #{_run.1} parent=11 // pred_check
          %p1132 = pneg %p530
        $region86: #{_run.1} parent=11 // pred_check_branch
          %1134 = sbr.rel (%p1132) target = $region88
        $region87: #{_run.1} parent=11 // pred_region
          _
        $region88: #{_run.1} parent=11 // pred_fallthru
          _
        // Predicated region
        $region89: #{_run.1} parent=11 // pred_check
          %p1135 = pneg %p551
        $region90: #{_run.1} parent=11 // pred_check_branch
          %1137 = sbr.rel (%p1135) target = $region92
        $region91: #{_run.1} parent=11 // pred_region
          %s1139 = ssub.s32 3072, 3072
          %1140 = vsyncadd [#allocation9], %s1139
          %s1141 = sshll.u32 [#allocation10], 4
          %s1142 = int_to_ptr.vmem [resolvable:$true] %s1141
          %1147 = dma.hbm_to_vmem [thread:$0]  %s41, 3072, %s1142, [#allocation9], 64, 64, 4
        $region92: #{_run.1} parent=11 // pred_fallthru
          _
        // Predicated region
        $region93: #{_run.1} parent=11 // pred_check
          %p1148 = pneg %p572
        $region94: #{_run.1} parent=11 // pred_check_branch
          %1150 = sbr.rel (%p1148) target = $region96
        $region95: #{_run.1} parent=11 // pred_region
          _
        $region96: #{_run.1} parent=11 // pred_fallthru
          _
        // Predicated region
        $region97: #{_run.1} parent=11 // pred_check
          %p1151 = pneg %p593
        $region98: #{_run.1} parent=11 // pred_check_branch
          %1153 = sbr.rel (%p1151) target = $region100
        $region99: #{_run.1} parent=11 // pred_region
          %s1155 = ssub.s32 1024, 1024
          %1156 = vsyncadd [#allocation12], %s1155
          %s1157 = sshll.u32 [#allocation11], 4
          %s1158 = int_to_ptr.vmem [resolvable:$true] %s1157
          %1163 = dma.hbm_to_vmem [thread:$0]  %s45, 1024, %s1158, [#allocation12], 64, 64, 4
        $region100: #{_run.1} parent=11 // pred_fallthru
          _
        // Predicated region
        $region101: #{_run.1} parent=11 // pred_check
          %p1164 = pneg %p614
        $region102: #{_run.1} parent=11 // pred_check_branch
          %1166 = sbr.rel (%p1164) target = $region104
        $region103: #{_run.1} parent=11 // pred_region
          _
        $region104: #{_run.1} parent=11 // pred_fallthru
          _
        // Predicated region
        $region105: #{_run.1} parent=11 // pred_check
          %p1167 = pneg %p635
        $region106: #{_run.1} parent=11 // pred_check_branch
          %1169 = sbr.rel (%p1167) target = $region108
        $region107: #{_run.1} parent=11 // pred_region
          _
        $region108: #{_run.1} parent=11 // pred_fallthru
          _
        // Predicated region
        $region109: #{_run.1} parent=11 // pred_check
          %p1170 = pneg %p656
        $region110: #{_run.1} parent=11 // pred_check_branch
          %1172 = sbr.rel (%p1170) target = $region112
        $region111: #{_run.1} parent=11 // pred_region
          %s1174 = ssub.s32 1024, 1024
          %1175 = vsyncadd [#allocation12], %s1174
          %s1176 = sshll.u32 [#allocation13], 4
          %s1177 = int_to_ptr.vmem [resolvable:$true] %s1176
          %1182 = dma.hbm_to_vmem [thread:$0]  %s51, 1024, %s1177, [#allocation12], 64, 64, 4
        $region112: #{_run.1} parent=11 // pred_fallthru
          _
        // Predicated region
        $region113: #{_run.1} parent=11 // pred_check
          %p1183 = pneg %p677
        $region114: #{_run.1} parent=11 // pred_check_branch
          %1185 = sbr.rel (%p1183) target = $region116
        $region115: #{_run.1} parent=11 // pred_region
          _
        $region116: #{_run.1} parent=11 // pred_fallthru
          _
        // Predicated region
        $region117: #{_run.1} parent=11 // pred_check
          %p1186 = pneg %p698
        $region118: #{_run.1} parent=11 // pred_check_branch
          %1188 = sbr.rel (%p1186) target = $region120
        $region119: #{_run.1} parent=11 // pred_region
          %s1190 = ssub.s32 3072, 3072
          %1191 = vsyncadd [#allocation15], %s1190
          %s1192 = sshll.u32 [#allocation14], 4
          %s1193 = int_to_ptr.vmem [resolvable:$true] %s1192
          %1198 = dma.hbm_to_vmem [thread:$0]  %s55, 3072, %s1193, [#allocation15], 64, 64, 4
        $region120: #{_run.1} parent=11 // pred_fallthru
          _
        // Predicated region
        $region121: #{_run.1} parent=11 // pred_check
          %p1199 = pneg %p719
        $region122: #{_run.1} parent=11 // pred_check_branch
          %1201 = sbr.rel (%p1199) target = $region124
        $region123: #{_run.1} parent=11 // pred_region
          _
        $region124: #{_run.1} parent=11 // pred_fallthru
          _
        // Predicated region
        $region125: #{_run.1} parent=11 // pred_check
          %p1202 = pneg %p740
        $region126: #{_run.1} parent=11 // pred_check_branch
          %1204 = sbr.rel (%p1202) target = $region128
        $region127: #{_run.1} parent=11 // pred_region
          _
        $region128: #{_run.1} parent=11 // pred_fallthru
          _
        // Predicated region
        $region129: #{_run.1} parent=11 // pred_check
          %p1205 = pneg %p761
        $region130: #{_run.1} parent=11 // pred_check_branch
          %1207 = sbr.rel (%p1205) target = $region132
        $region131: #{_run.1} parent=11 // pred_region
          %s1209 = ssub.s32 3072, 3072
          %1210 = vsyncadd [#allocation15], %s1209
          %s1211 = sshll.u32 [#allocation16], 4
          %s1212 = int_to_ptr.vmem [resolvable:$true] %s1211
          %1217 = dma.hbm_to_vmem [thread:$0]  %s61, 3072, %s1212, [#allocation15], 64, 64, 4
        $region132: #{_run.1} parent=11 // pred_fallthru
          _
        // Predicated region
        $region133: #{_run.1} parent=11 // pred_check
          %p1218 = pneg %p782
        $region134: #{_run.1} parent=11 // pred_check_branch
          %1220 = sbr.rel (%p1218) target = $region136
        $region135: #{_run.1} parent=11 // pred_region
          _
        $region136: #{_run.1} parent=11 // pred_fallthru
          _
        // Predicated region
        $region137: #{_run.1} parent=11 // pred_check
          %p1221 = pneg %p803
        $region138: #{_run.1} parent=11 // pred_check_branch
          %1223 = sbr.rel (%p1221) target = $region140
        $region139: #{_run.1} parent=11 // pred_region
          %s1225 = ssub.s32 1024, 1024
          %1226 = vsyncadd [#allocation18], %s1225
          %s1227 = sshll.u32 [#allocation17], 4
          %s1228 = int_to_ptr.vmem [resolvable:$true] %s1227
          %1233 = dma.hbm_to_vmem [thread:$0]  %s65, 1024, %s1228, [#allocation18], 64, 64, 4
        $region140: #{_run.1} parent=11 // pred_fallthru
          _
        // Predicated region
        $region141: #{_run.1} parent=11 // pred_check
          %p1234 = pneg %p824
        $region142: #{_run.1} parent=11 // pred_check_branch
          %1236 = sbr.rel (%p1234) target = $region144
        $region143: #{_run.1} parent=11 // pred_region
          _
        $region144: #{_run.1} parent=11 // pred_fallthru
          _
        // Predicated region
        $region145: #{_run.1} parent=11 // pred_check
          %p1237 = pneg %p845
        $region146: #{_run.1} parent=11 // pred_check_branch
          %1239 = sbr.rel (%p1237) target = $region148
        $region147: #{_run.1} parent=11 // pred_region
          _
        $region148: #{_run.1} parent=11 // pred_fallthru
          _
        // Predicated region
        $region149: #{_run.1} parent=11 // pred_check
          %p1240 = pneg %p866
        $region150: #{_run.1} parent=11 // pred_check_branch
          %1242 = sbr.rel (%p1240) target = $region152
        $region151: #{_run.1} parent=11 // pred_region
          %s1244 = ssub.s32 1024, 1024
          %1245 = vsyncadd [#allocation18], %s1244
          %s1246 = sshll.u32 [#allocation19], 4
          %s1247 = int_to_ptr.vmem [resolvable:$true] %s1246
          %1252 = dma.hbm_to_vmem [thread:$0]  %s71, 1024, %s1247, [#allocation18], 64, 64, 4
        $region152: #{_run.1} parent=11 // pred_fallthru
          _
        // Predicated region
        $region153: #{_run.1} parent=11 // pred_check
          %p1253 = pneg %p887
        $region154: #{_run.1} parent=11 // pred_check_branch
          %1255 = sbr.rel (%p1253) target = $region156
        $region155: #{_run.1} parent=11 // pred_region
          %s1257 = ssub.s32 1024, 1024
          %1258 = vsyncadd [#allocation21], %s1257
          %s1259 = sshll.u32 [#allocation20], 4
          %s1260 = int_to_ptr.vmem [resolvable:$true] %s1259
          %1265 = dma.hbm_to_vmem [thread:$0]  %s73, 1024, %s1260, [#allocation21], 64, 64, 4
        $region156: #{_run.1} parent=11 // pred_fallthru
          _
        // Predicated region
        $region157: #{_run.1} parent=11 // pred_check
          %p1266 = pneg %p908
        $region158: #{_run.1} parent=11 // pred_check_branch
          %1268 = sbr.rel (%p1266) target = $region160
        $region159: #{_run.1} parent=11 // pred_region
          _
        $region160: #{_run.1} parent=11 // pred_fallthru
          _
        // Predicated region
        $region161: #{_run.1} parent=11 // pred_check
          %p1269 = pneg %p929
        $region162: #{_run.1} parent=11 // pred_check_branch
          %1271 = sbr.rel (%p1269) target = $region164
        $region163: #{_run.1} parent=11 // pred_region
          %s1273 = ssub.s32 1024, 1024
          %1274 = vsyncadd [#allocation21], %s1273
          %s1275 = sshll.u32 [#allocation22], 4
          %s1276 = int_to_ptr.vmem [resolvable:$true] %s1275
          %1281 = dma.hbm_to_vmem [thread:$0]  %s77, 1024, %s1276, [#allocation21], 64, 64, 4
        $region164: #{_run.1} parent=11 // pred_fallthru
          _
        // Predicated region
        $region165: #{_run.1} parent=11 // pred_check
          %p1282 = pneg %p950
        $region166: #{_run.1} parent=11 // pred_check_branch
          %1284 = sbr.rel (%p1282) target = $region168
        $region167: #{_run.1} parent=11 // pred_region
          _
        $region168: #{_run.1} parent=11 // pred_fallthru
          _
        // Predicated region
        $region169: #{_run.1} parent=11 // pred_check
          %p1285 = pneg %p971
        $region170: #{_run.1} parent=11 // pred_check_branch
          %1287 = sbr.rel (%p1285) target = $region172
        $region171: #{_run.1} parent=11 // pred_region
          _
        $region172: #{_run.1} parent=11 // pred_fallthru
          _
      $region12: #{_run.1} parent=5 // pred_fallthru
        _
      %p1288 = scmp.lt.s32.totalorder %s105, 2
      // Predicated region
      $region173: #{_run.1} parent=5 // pred_check
        %p1289 = pneg %p1288
      $region174: #{_run.1} parent=5 // pred_check_branch
        %1291 = sbr.rel (%p1289) target = $region176
      $region175: #{_run.1} parent=5 // pred_region
        // Predicated region
        $region177: #{_run.1} parent=175 // pred_check
          %p1292 = pneg %p125
        $region178: #{_run.1} parent=175 // pred_check_branch
          %1294 = sbr.rel (%p1292) target = $region180
        $region179: #{_run.1} parent=175 // pred_region
          %p1295 = scmp.lt.s32.totalorder %s105, 1
          %s1296 = scalar_select %p1295, %s105, 1
          %s1297 = smul.addr %s1296, 4
          %s1298 = smul.addr %s1297, 8
          %s1299 = scalar_lea.vmem %s1, %s1298
        $region180: #{_run.1} parent=175 // pred_fallthru
          _
      $region176: #{_run.1} parent=5 // pred_fallthru
        _
      %p1300 = scmp.le.s32.totalorder 1, %s105
      %p1301 = scmp.lt.s32.totalorder %s105, 3
      %p1302 = pnand %p1300, %p1301
      %p1303 = pneg %p1302
      // Predicated region
      $region181: #{_run.1} parent=5 // pred_check
        _
      $region182: #{_run.1} parent=5 // pred_check_branch
        %1305 = sbr.rel (%p1302) target = $region184
      $region183: #{_run.1} parent=5 // pred_region
        %s1306 = ssub.s32 %s105, 1
        // Predicated region
        $region185: #{_run.1} parent=183 // pred_check
          %p1307 = pneg %p152
        $region186: #{_run.1} parent=183 // pred_check_branch
          %1309 = sbr.rel (%p1307) target = $region188
        $region187: #{_run.1} parent=183 // pred_region
          %1310 = dma.done [#allocation3], 896
        $region188: #{_run.1} parent=183 // pred_fallthru
          _
        // Predicated region
        $region189: #{_run.1} parent=183 // pred_check
          %p1311 = pneg %p278
        $region190: #{_run.1} parent=183 // pred_check_branch
          %1313 = sbr.rel (%p1311) target = $region192
        $region191: #{_run.1} parent=183 // pred_region
          %1314 = dma.done [#allocation6], 3072
        $region192: #{_run.1} parent=183 // pred_fallthru
          _
        // Predicated region
        $region193: #{_run.1} parent=183 // pred_check
          %p1315 = pneg %p341
        $region194: #{_run.1} parent=183 // pred_check_branch
          %1317 = sbr.rel (%p1315) target = $region196
        $region195: #{_run.1} parent=183 // pred_region
          %1318 = dma.done [#allocation6], 3072
        $region196: #{_run.1} parent=183 // pred_fallthru
          _
        // Predicated region
        $region197: #{_run.1} parent=183 // pred_check
          %p1319 = pneg %p488
        $region198: #{_run.1} parent=183 // pred_check_branch
          %1321 = sbr.rel (%p1319) target = $region200
        $region199: #{_run.1} parent=183 // pred_region
          %1322 = dma.done [#allocation9], 3072
        $region200: #{_run.1} parent=183 // pred_fallthru
          _
        // Predicated region
        $region201: #{_run.1} parent=183 // pred_check
          %p1323 = pneg %p551
        $region202: #{_run.1} parent=183 // pred_check_branch
          %1325 = sbr.rel (%p1323) target = $region204
        $region203: #{_run.1} parent=183 // pred_region
          %1326 = dma.done [#allocation9], 3072
        $region204: #{_run.1} parent=183 // pred_fallthru
          _
        // Predicated region
        $region205: #{_run.1} parent=183 // pred_check
          %p1327 = pneg %p593
        $region206: #{_run.1} parent=183 // pred_check_branch
          %1329 = sbr.rel (%p1327) target = $region208
        $region207: #{_run.1} parent=183 // pred_region
          %1330 = dma.done [#allocation12], 1024
        $region208: #{_run.1} parent=183 // pred_fallthru
          _
        // Predicated region
        $region209: #{_run.1} parent=183 // pred_check
          %p1331 = pneg %p656
        $region210: #{_run.1} parent=183 // pred_check_branch
          %1333 = sbr.rel (%p1331) target = $region212
        $region211: #{_run.1} parent=183 // pred_region
          %1334 = dma.done [#allocation12], 1024
        $region212: #{_run.1} parent=183 // pred_fallthru
          _
        // Predicated region
        $region213: #{_run.1} parent=183 // pred_check
          %p1335 = pneg %p698
        $region214: #{_run.1} parent=183 // pred_check_branch
          %1337 = sbr.rel (%p1335) target = $region216
        $region215: #{_run.1} parent=183 // pred_region
          %1338 = dma.done [#allocation15], 3072
        $region216: #{_run.1} parent=183 // pred_fallthru
          _
        // Predicated region
        $region217: #{_run.1} parent=183 // pred_check
          %p1339 = pneg %p761
        $region218: #{_run.1} parent=183 // pred_check_branch
          %1341 = sbr.rel (%p1339) target = $region220
        $region219: #{_run.1} parent=183 // pred_region
          %1342 = dma.done [#allocation15], 3072
        $region220: #{_run.1} parent=183 // pred_fallthru
          _
        // Predicated region
        $region221: #{_run.1} parent=183 // pred_check
          %p1343 = pneg %p803
        $region222: #{_run.1} parent=183 // pred_check_branch
          %1345 = sbr.rel (%p1343) target = $region224
        $region223: #{_run.1} parent=183 // pred_region
          %1346 = dma.done [#allocation18], 1024
        $region224: #{_run.1} parent=183 // pred_fallthru
          _
        // Predicated region
        $region225: #{_run.1} parent=183 // pred_check
          %p1347 = pneg %p866
        $region226: #{_run.1} parent=183 // pred_check_branch
          %1349 = sbr.rel (%p1347) target = $region228
        $region227: #{_run.1} parent=183 // pred_region
          %1350 = dma.done [#allocation18], 1024
        $region228: #{_run.1} parent=183 // pred_fallthru
          _
        // Predicated region
        $region229: #{_run.1} parent=183 // pred_check
          %p1351 = pneg %p887
        $region230: #{_run.1} parent=183 // pred_check_branch
          %1353 = sbr.rel (%p1351) target = $region232
        $region231: #{_run.1} parent=183 // pred_region
          %1354 = dma.done [#allocation21], 1024
        $region232: #{_run.1} parent=183 // pred_fallthru
          _
        // Predicated region
        $region233: #{_run.1} parent=183 // pred_check
          %p1355 = pneg %p929
        $region234: #{_run.1} parent=183 // pred_check_branch
          %1357 = sbr.rel (%p1355) target = $region236
        $region235: #{_run.1} parent=183 // pred_region
          %1358 = dma.done [#allocation21], 1024
        $region236: #{_run.1} parent=183 // pred_fallthru
          _
        %p1359 = scmp.lt.s32.totalorder %s110, 1
        %s1360 = scalar_select %p1359, %s110, 1
        %s1361 = smul.addr %s1360, 4
        %s1362 = smul.addr %s1361, 8
        %s1363 = scalar_lea.vmem %s1, %s1362
        %p1364 = pneg %p131
        %p1365 = pneg %p128
        %p1366 = pneg %p152
        %p1367 = pneg %p149
        %p1368 = pneg %p173
        %p1369 = pneg %p170
        %p1370 = pneg %p194
        %p1371 = pneg %p191
        %p1372 = pneg %p215
        %p1373 = pneg %p212
        %p1374 = pneg %p236
        %p1375 = pneg %p233
        %p1376 = pneg %p257
        %p1377 = pneg %p254
        %p1378 = pneg %p278
        %p1379 = pneg %p275
        %p1380 = pneg %p299
        %p1381 = pneg %p296
        %p1382 = pneg %p320
        %p1383 = pneg %p317
        %p1384 = pneg %p341
        %p1385 = pneg %p338
        %p1386 = pneg %p362
        %p1387 = pneg %p359
        %p1388 = pneg %p383
        %p1389 = pneg %p380
        %p1390 = pneg %p404
        %p1391 = pneg %p401
        %p1392 = pneg %p425
        %p1393 = pneg %p422
        %p1394 = pneg %p446
        %p1395 = pneg %p443
        %p1396 = pneg %p467
        %p1397 = pneg %p464
        %p1398 = pneg %p488
        %p1399 = pneg %p485
        %p1400 = pneg %p509
        %p1401 = pneg %p506
        %p1402 = pneg %p530
        %p1403 = pneg %p527
        %p1404 = pneg %p551
        %p1405 = pneg %p548
        %p1406 = pneg %p572
        %p1407 = pneg %p569
        %p1408 = pneg %p593
        %p1409 = pneg %p590
        %p1410 = pneg %p614
        %p1411 = pneg %p611
        %p1412 = pneg %p635
        %p1413 = pneg %p632
        %p1414 = pneg %p656
        %p1415 = pneg %p653
        %p1416 = pneg %p677
        %p1417 = pneg %p674
        %p1418 = pneg %p698
        %p1419 = pneg %p695
        %p1420 = pneg %p719
        %p1421 = pneg %p716
        %p1422 = pneg %p740
        %p1423 = pneg %p737
        %p1424 = pneg %p761
        %p1425 = pneg %p758
        %p1426 = pneg %p782
        %p1427 = pneg %p779
        %p1428 = pneg %p803
        %p1429 = pneg %p800
        %p1430 = pneg %p824
        %p1431 = pneg %p821
        %p1432 = pneg %p845
        %p1433 = pneg %p842
        %p1434 = pneg %p866
        %p1435 = pneg %p863
        %p1436 = pneg %p887
        %p1437 = pneg %p884
        %p1438 = pneg %p908
        %p1439 = pneg %p905
        %p1440 = pneg %p929
        %p1441 = pneg %p926
        %p1442 = pneg %p950
        %p1443 = pneg %p947
        %p1444 = pneg %p971
        %p1445 = pneg %p968
        %p1446 = pneg %p997
        %p1447 = pneg %p994
        %s1448 = sand.u32 %s984, 1
        %s1449 = scalar_lea.sflag [#allocation4], %s1448
        %s1450 = sand.u32 %s984, 1
        %s1451 = scalar_lea.vmem [#allocation23], %s1450
        %p1452 = pneg %p1023
        %p1453 = pneg %p1020
        %s1454 = sand.u32 %s1010, 1
        %s1455 = scalar_lea.sflag [#allocation25], %s1454
        %s1456 = sand.u32 %s1010, 1
        %s1457 = scalar_lea.vmem [#allocation24], %s1456
        %p1458 = scmp.lt.s32.totalorder %s110, 1
        %s1459 = scalar_select %p1458, %s110, 1
        %s1460 = smul.addr %s1459, 4
        %s1461 = smul.addr %s1460, 8
        %s1462 = scalar_lea.vmem %s1, %s1461
        %v1464 = vld [vmem:[%s1462] sm:$0xff]
        %v1465 = vld [vmem:[%s1462 + $0x8] sm:$0xff]
        %v1466 = vld [vmem:[%s1462 + $0x10] sm:$0xff]
        %v1467 = vld [vmem:[%s1462 + $0x18] sm:$0xff]
        %v1468 = vld [vmem:[#allocation2] sm:$0xf]
        %v1469 = vld [vmem:[#allocation2 + $0x4] sm:$0xf]
        %v1470 = vld [vmem:[#allocation2 + $0x8] sm:$0xf]
        %v1471 = vld [vmem:[#allocation2 + $0xc] sm:$0xf]
        %v1472 = vld [vmem:[#allocation2 + $0x10] sm:$0xf]
        %v1473 = vld [vmem:[#allocation2 + $0x14] sm:$0xf]
        %v1474 = vld [vmem:[#allocation2 + $0x18] sm:$0xf]
        %v1475 = vld [vmem:[#allocation2 + $0x1c] sm:$0xf]
        %v1476 = vld [vmem:[#allocation2 + $0x20] sm:$0xf]
        %v1477 = vld [vmem:[#allocation2 + $0x24] sm:$0xf]
        %v1478 = vld [vmem:[#allocation2 + $0x28] sm:$0xf]
        %v1479 = vld [vmem:[#allocation2 + $0x2c] sm:$0xf]
        %v1480 = vld [vmem:[#allocation2 + $0x30] sm:$0xf]
        %v1481 = vld [vmem:[#allocation2 + $0x34] sm:$0xf]
        %v1482 = vpack.c.bf16 %v1465, %v1464
        %v1483 = vpack.c.bf16 %v1467, %v1466
        %v1498 = vunpack.c.l.b16 %v1468
        %v1499 = vunpack.c.l.b16 %v1469
        %v1500 = vunpack.c.l.b16 %v1470
        %v1501 = vunpack.c.l.b16 %v1471
        %v1502 = vunpack.c.l.b16 %v1472
        %v1503 = vunpack.c.l.b16 %v1473
        %v1504 = vunpack.c.l.b16 %v1474
        %v1505 = vunpack.c.l.b16 %v1475
        %v1506 = vunpack.c.l.b16 %v1476
        %v1507 = vunpack.c.l.b16 %v1477
        %v1508 = vunpack.c.l.b16 %v1478
        %v1509 = vunpack.c.l.b16 %v1479
        %v1510 = vunpack.c.l.b16 %v1480
        %v1511 = vunpack.c.l.b16 %v1481
        %v1512 = vpack.c.b16 %v1499, %v1498
        %v1513 = vpack.c.b16 %v1501, %v1500
        %v1514 = vpack.c.b16 %v1503, %v1502
        %v1515 = vpack.c.b16 %v1505, %v1504
        %v1516 = vpack.c.b16 %v1507, %v1506
        %v1517 = vpack.c.b16 %v1509, %v1508
        %v1518 = vpack.c.b16 %v1511, %v1510
        %vm1519 = vcmask 261120
        %v1521 = vsel %vm1519, %v1512, 0
        %v1524 = vsel %vm1519, %v1513, 0
        %v1527 = vsel %vm1519, %v1514, 0
        %v1530 = vsel %vm1519, %v1515, 0
        %v1533 = vsel %vm1519, %v1516, 0
        %v1536 = vsel %vm1519, %v1517, 0
        %v1539 = vsel %vm1519, %v1518, 0
        %1541 = vmatprep.subr.bf16.mxu0 0
        %1542 = vmatpush1.bf16.msra.mxu0 0
        %1543 = vmatprep.subr.bf16.mxu0 0
        %1544 = vmatpush1.bf16.msra.mxu0 0
        %1545 = vmatprep.subr.bf16.mxu0 0
        %1546 = vmatpush1.bf16.msra.mxu0 0
        %1547 = vmatprep.subr.bf16.mxu0 0
        %1548 = vmatpush1.bf16.msra.mxu0 0
        %1549 = vmatprep.subr.bf16.mxu0 0
        %1550 = vmatpush1.bf16.msra.mxu0 0
        %1551 = vmatprep.subr.bf16.mxu0 0
        %1552 = vmatpush1.bf16.msra.mxu0 0
        %1553 = vmatprep.subr.bf16.mxu0 0
        %1554 = vmatpush1.bf16.msra.mxu0 %v1483
        %1555 = vmatprep.subr.bf16.mxu0 0
        %1556 = vmatpush1.bf16.msra.mxu0 %v1482
        %1557 = vmatprep.subr.bf16.mxu0 0
        %1558 = vmatpush2.bf16.msra.mxu0 0
        %1559 = vmatprep.subr.bf16.mxu0 0
        %1560 = vmatpush2.bf16.msra.mxu0 0
        %1561 = vmatprep.subr.bf16.mxu0 0
        %1562 = vmatpush2.bf16.msra.mxu0 0
        %1563 = vmatprep.subr.bf16.mxu0 0
        %1564 = vmatpush2.bf16.msra.mxu0 0
        %1565 = vmatprep.subr.bf16.mxu0 0
        %1566 = vmatpush2.bf16.msra.mxu0 0
        %1567 = vmatprep.subr.bf16.mxu0 0
        %1568 = vmatpush2.bf16.msra.mxu0 0
        %1569 = vmatprep.subr.bf16.mxu0 0
        %1570 = vmatpush2.bf16.msra.mxu0 0
        %1571 = vmatprep.subr.bf16.mxu0 0
        %1572 = vmatpush2.bf16.msra.mxu0 0
        %1573 = vmatprep.mubr.bf16.mxu0 0
        %1574 = vmatmul.mubr.bf16.gmra.mxu0 %v1521
        %v1575 = vpop.f32.mrf.mxu0
        %v1576 = vadd.f32 0.0, %v1575
        %v1577 = vpop.f32.mrf.mxu0
        %v1578 = vpop.f32.mrf.mxu0
        %v1579 = vadd.f32 0.0, %v1578
        %v1580 = vpop.f32.mrf.mxu0
        %1581 = vmatprep.mubr.bf16.mxu0 0
        %1582 = vmatmul.mubr.bf16.gmra.mxu0 %v1524
        %v1583 = vpop.f32.mrf.mxu0
        %v1584 = vadd.f32 0.0, %v1583
        %v1585 = vpop.f32.mrf.mxu0
        %v1586 = vpop.f32.mrf.mxu0
        %v1587 = vadd.f32 0.0, %v1586
        %v1588 = vpop.f32.mrf.mxu0
        %1589 = vmatprep.mubr.bf16.mxu0 0
        %1590 = vmatmul.mubr.bf16.gmra.mxu0 %v1527
        %v1591 = vpop.f32.mrf.mxu0
        %v1592 = vadd.f32 0.0, %v1591
        %v1593 = vpop.f32.mrf.mxu0
        %v1594 = vpop.f32.mrf.mxu0
        %v1595 = vadd.f32 0.0, %v1594
        %v1596 = vpop.f32.mrf.mxu0
        %1597 = vmatprep.mubr.bf16.mxu0 0
        %1598 = vmatmul.mubr.bf16.gmra.mxu0 %v1530
        %v1599 = vpop.f32.mrf.mxu0
        %v1600 = vadd.f32 0.0, %v1599
        %v1601 = vpop.f32.mrf.mxu0
        %v1602 = vpop.f32.mrf.mxu0
        %v1603 = vadd.f32 0.0, %v1602
        %v1604 = vpop.f32.mrf.mxu0
        %1605 = vmatprep.mubr.bf16.mxu0 0
        %1606 = vmatmul.mubr.bf16.gmra.mxu0 %v1533
        %v1607 = vpop.f32.mrf.mxu0
        %v1608 = vadd.f32 0.0, %v1607
        %v1609 = vpop.f32.mrf.mxu0
        %v1610 = vpop.f32.mrf.mxu0
        %v1611 = vadd.f32 0.0, %v1610
        %v1612 = vpop.f32.mrf.mxu0
        %1613 = vmatprep.mubr.bf16.mxu0 0
        %1614 = vmatmul.mubr.bf16.gmra.mxu0 %v1536
        %v1615 = vpop.f32.mrf.mxu0
        %v1616 = vadd.f32 0.0, %v1615
        %v1617 = vpop.f32.mrf.mxu0
        %v1618 = vpop.f32.mrf.mxu0
        %v1619 = vadd.f32 0.0, %v1618
        %v1620 = vpop.f32.mrf.mxu0
        %1621 = vmatprep.mubr.bf16.mxu0 0
        %1622 = vmatmul.mubr.bf16.gmra.mxu0 %v1539
        %v1623 = vpop.f32.mrf.mxu0
        %v1624 = vadd.f32 0.0, %v1623
        %v1625 = vpop.f32.mrf.mxu0
        %v1626 = vpop.f32.mrf.mxu0
        %v1627 = vadd.f32 0.0, %v1626
        %v1628 = vpop.f32.mrf.mxu0
        %1629 = vdwg.mxu0
        %v1630 = vld [vmem:[%s5] sm:$0xf]
        %v1631 = vld [vmem:[%s5 + $0x4] sm:$0xf]
        %v1632 = vld [vmem:[%s5 + $0x8] sm:$0xf]
        %v1633 = vld [vmem:[%s5 + $0xc] sm:$0xf]
        %v1634 = vld [vmem:[%s5 + $0x10] sm:$0xf]
        %v1635 = vld [vmem:[%s5 + $0x14] sm:$0xf]
        %v1636 = vld [vmem:[%s5 + $0x18] sm:$0xf]
        %v1637 = vld [vmem:[%s5 + $0x1c] sm:$0xf]
        %v1638 = vld [vmem:[%s5 + $0x20] sm:$0xf]
        %v1639 = vld [vmem:[%s5 + $0x24] sm:$0xf]
        %v1640 = vld [vmem:[%s5 + $0x28] sm:$0xf]
        %v1641 = vld [vmem:[%s5 + $0x2c] sm:$0xf]
        %v1642 = vld [vmem:[%s5 + $0x30] sm:$0xf]
        %v1643 = vld [vmem:[%s5 + $0x34] sm:$0xf]
        %v1644 = vld [vmem:[%s5 + $0x38] sm:$0xf]
        %v1645 = vld [vmem:[%s5 + $0x3c] sm:$0xf]
        %v1646 = vld [vmem:[%s5 + $0x40] sm:$0xf]
        %v1647 = vld [vmem:[%s5 + $0x44] sm:$0xf]
        %v1648 = vld [vmem:[%s5 + $0x48] sm:$0xf]
        %v1649 = vld [vmem:[%s5 + $0x4c] sm:$0xf]
        %v1650 = vld [vmem:[%s5 + $0x50] sm:$0xf]
        %v1651 = vld [vmem:[%s5 + $0x54] sm:$0xf]
        %v1652 = vld [vmem:[%s5 + $0x58] sm:$0xf]
        %v1653 = vld [vmem:[%s5 + $0x5c] sm:$0xf]
        %v1654 = vld [vmem:[%s5 + $0x60] sm:$0xf]
        %v1655 = vld [vmem:[%s5 + $0x64] sm:$0xf]
        %v1656 = vld [vmem:[%s5 + $0x68] sm:$0xf]
        %v1657 = vld [vmem:[%s5 + $0x6c] sm:$0xf]
        %v1658 = vld [vmem:[%s5 + $0x70] sm:$0xf]
        %v1659 = vld [vmem:[%s5 + $0x74] sm:$0xf]
        %v1660 = vld [vmem:[%s5 + $0x78] sm:$0xf]
        %v1661 = vld [vmem:[%s5 + $0x7c] sm:$0xf]
        %v1662 = vld [vmem:[%s5 + $0x80] sm:$0xf]
        %v1663 = vld [vmem:[%s5 + $0x84] sm:$0xf]
        %v1664 = vld [vmem:[%s5 + $0x88] sm:$0xf]
        %v1665 = vld [vmem:[%s5 + $0x8c] sm:$0xf]
        %v1666 = vld [vmem:[%s5 + $0x90] sm:$0xf]
        %v1667 = vld [vmem:[%s5 + $0x94] sm:$0xf]
        %v1668 = vld [vmem:[%s5 + $0x98] sm:$0xf]
        %v1669 = vld [vmem:[%s5 + $0x9c] sm:$0xf]
        %v1670 = vld [vmem:[%s5 + $0xa0] sm:$0xf]
        %v1671 = vld [vmem:[%s5 + $0xa4] sm:$0xf]
        %v1672 = vld [vmem:[%s5 + $0xa8] sm:$0xf]
        %v1673 = vld [vmem:[%s5 + $0xac] sm:$0xf]
        %v1674 = vld [vmem:[%s5 + $0xb0] sm:$0xf]
        %v1675 = vld [vmem:[%s5 + $0xb4] sm:$0xf]
        %v1676 = vld [vmem:[%s5 + $0xb8] sm:$0xf]
        %v1677 = vld [vmem:[%s5 + $0xbc] sm:$0xf]
        %v1678 = vld [vmem:[%s5 + $0xc0] sm:$0xf]
        %v1679 = vld [vmem:[%s5 + $0xc4] sm:$0xf]
        %v1680 = vld [vmem:[%s5 + $0xc8] sm:$0xf]
        %v1681 = vld [vmem:[%s5 + $0xcc] sm:$0xf]
        %v1682 = vld [vmem:[%s5 + $0xd0] sm:$0xf]
        %v1683 = vld [vmem:[%s5 + $0xd4] sm:$0xf]
        %v1684 = vld [vmem:[%s5 + $0xd8] sm:$0xf]
        %v1685 = vld [vmem:[%s5 + $0xdc] sm:$0xf]
        %v1686 = vld [vmem:[%s5 + $0xe0] sm:$0xf]
        %v1687 = vld [vmem:[%s5 + $0xe4] sm:$0xf]
        %v1688 = vld [vmem:[%s5 + $0xe8] sm:$0xf]
        %v1689 = vld [vmem:[%s5 + $0xec] sm:$0xf]
        %v1690 = vld [vmem:[%s5 + $0xf0] sm:$0xf]
        %v1691 = vld [vmem:[%s5 + $0xf4] sm:$0xf]
        %v1692 = vld [vmem:[%s5 + $0xf8] sm:$0xf]
        %v1693 = vld [vmem:[%s5 + $0xfc] sm:$0xf]
        %v1694 = vld [vmem:[%s5 + $0x100] sm:$0xf]
        %v1695 = vld [vmem:[%s5 + $0x104] sm:$0xf]
        %v1696 = vld [vmem:[%s5 + $0x108] sm:$0xf]
        %v1697 = vld [vmem:[%s5 + $0x10c] sm:$0xf]
        %v1698 = vld [vmem:[%s5 + $0x110] sm:$0xf]
        %v1699 = vld [vmem:[%s5 + $0x114] sm:$0xf]
        %v1700 = vld [vmem:[%s5 + $0x118] sm:$0xf]
        %v1701 = vld [vmem:[%s5 + $0x11c] sm:$0xf]
        %v1702 = vld [vmem:[%s5 + $0x120] sm:$0xf]
        %v1703 = vld [vmem:[%s5 + $0x124] sm:$0xf]
        %v1704 = vld [vmem:[%s5 + $0x128] sm:$0xf]
        %v1705 = vld [vmem:[%s5 + $0x12c] sm:$0xf]
        %v1706 = vld [vmem:[%s5 + $0x130] sm:$0xf]
        %v1707 = vld [vmem:[%s5 + $0x134] sm:$0xf]
        %v1708 = vld [vmem:[%s5 + $0x138] sm:$0xf]
        %v1709 = vld [vmem:[%s5 + $0x13c] sm:$0xf]
        %v1710 = vld [vmem:[%s5 + $0x140] sm:$0xf]
        %v1711 = vld [vmem:[%s5 + $0x144] sm:$0xf]
        %v1712 = vld [vmem:[%s5 + $0x148] sm:$0xf]
        %v1713 = vld [vmem:[%s5 + $0x14c] sm:$0xf]
        %v1714 = vld [vmem:[%s5 + $0x150] sm:$0xf]
        %v1715 = vld [vmem:[%s5 + $0x154] sm:$0xf]
        %v1716 = vld [vmem:[%s5 + $0x158] sm:$0xf]
        %v1717 = vld [vmem:[%s5 + $0x15c] sm:$0xf]
        %v1718 = vld [vmem:[%s5 + $0x160] sm:$0xf]
        %v1719 = vld [vmem:[%s5 + $0x164] sm:$0xf]
        %v1720 = vld [vmem:[%s5 + $0x168] sm:$0xf]
        %v1721 = vld [vmem:[%s5 + $0x16c] sm:$0xf]
        %v1722 = vld [vmem:[%s5 + $0x170] sm:$0xf]
        %v1723 = vld [vmem:[%s5 + $0x174] sm:$0xf]
        %v1724 = vld [vmem:[%s5 + $0x178] sm:$0xf]
        %v1725 = vld [vmem:[%s5 + $0x17c] sm:$0xf]
        %v1726 = vld [vmem:[%s5 + $0x180] sm:$0xf]
        %v1727 = vld [vmem:[%s5 + $0x184] sm:$0xf]
        %v1728 = vld [vmem:[%s5 + $0x188] sm:$0xf]
        %v1729 = vld [vmem:[%s5 + $0x18c] sm:$0xf]
        %v1730 = vld [vmem:[%s5 + $0x190] sm:$0xf]
        %v1731 = vld [vmem:[%s5 + $0x194] sm:$0xf]
        %v1732 = vld [vmem:[%s5 + $0x198] sm:$0xf]
        %v1733 = vld [vmem:[%s5 + $0x19c] sm:$0xf]
        %v1734 = vld [vmem:[%s5 + $0x1a0] sm:$0xf]
        %v1735 = vld [vmem:[%s5 + $0x1a4] sm:$0xf]
        %v1736 = vld [vmem:[%s5 + $0x1a8] sm:$0xf]
        %v1737 = vld [vmem:[%s5 + $0x1ac] sm:$0xf]
        %v1738 = vld [vmem:[%s5 + $0x1b0] sm:$0xf]
        %v1739 = vld [vmem:[%s5 + $0x1b4] sm:$0xf]
        %v1740 = vld [vmem:[%s5 + $0x1b8] sm:$0xf]
        %v1741 = vld [vmem:[%s5 + $0x1bc] sm:$0xf]
        %v1742 = vpack.c.bf16 %v1579, %v1576
        %v1743 = vpack.c.bf16 %v1587, %v1584
        %v1744 = vpack.c.bf16 %v1595, %v1592
        %v1745 = vpack.c.bf16 %v1603, %v1600
        %v1746 = vpack.c.bf16 %v1611, %v1608
        %v1747 = vpack.c.bf16 %v1619, %v1616
        %v1748 = vpack.c.bf16 %v1627, %v1624
        %v1749 = vld [vmem:[%s7] sm:$0x1]
        %v1751 = vlaneseq
        %v1752 = vshrl.u32 %v1751, 7
        %v1753 = vsub.s32 0, %v1752
        %v1754 = vrot.slane %v1749, %v1753
        %v1868 = vunpack.c.l.b16 %v1630
        %v1869 = vunpack.c.l.b16 %v1631
        %v1870 = vunpack.c.l.b16 %v1632
        %v1871 = vunpack.c.l.b16 %v1633
        %v1872 = vunpack.c.l.b16 %v1634
        %v1873 = vunpack.c.l.b16 %v1635
        %v1874 = vunpack.c.l.b16 %v1636
        %v1875 = vunpack.c.l.b16 %v1637
        %v1876 = vunpack.c.l.b16 %v1638
        %v1877 = vunpack.c.l.b16 %v1639
        %v1878 = vunpack.c.l.b16 %v1640
        %v1879 = vunpack.c.l.b16 %v1641
        %v1880 = vunpack.c.l.b16 %v1642
        %v1881 = vunpack.c.l.b16 %v1643
        %v1882 = vunpack.c.l.b16 %v1644
        %v1883 = vunpack.c.l.b16 %v1645
        %v1884 = vunpack.c.l.b16 %v1646
        %v1885 = vunpack.c.l.b16 %v1647
        %v1886 = vunpack.c.l.b16 %v1648
        %v1887 = vunpack.c.l.b16 %v1649
        %v1888 = vunpack.c.l.b16 %v1650
        %v1889 = vunpack.c.l.b16 %v1651
        %v1890 = vunpack.c.l.b16 %v1652
        %v1891 = vunpack.c.l.b16 %v1653
        %v1892 = vunpack.c.l.b16 %v1654
        %v1893 = vunpack.c.l.b16 %v1655
        %v1894 = vunpack.c.l.b16 %v1656
        %v1895 = vunpack.c.l.b16 %v1657
        %v1896 = vunpack.c.l.b16 %v1658
        %v1897 = vunpack.c.l.b16 %v1659
        %v1898 = vunpack.c.l.b16 %v1660
        %v1899 = vunpack.c.l.b16 %v1661
        %v1900 = vunpack.c.l.b16 %v1662
        %v1901 = vunpack.c.l.b16 %v1663
        %v1902 = vunpack.c.l.b16 %v1664
        %v1903 = vunpack.c.l.b16 %v1665
        %v1904 = vunpack.c.l.b16 %v1666
        %v1905 = vunpack.c.l.b16 %v1667
        %v1906 = vunpack.c.l.b16 %v1668
        %v1907 = vunpack.c.l.b16 %v1669
        %v1908 = vunpack.c.l.b16 %v1670
        %v1909 = vunpack.c.l.b16 %v1671
        %v1910 = vunpack.c.l.b16 %v1672
        %v1911 = vunpack.c.l.b16 %v1673
        %v1912 = vunpack.c.l.b16 %v1674
        %v1913 = vunpack.c.l.b16 %v1675
        %v1914 = vunpack.c.l.b16 %v1676
        %v1915 = vunpack.c.l.b16 %v1677
        %v1916 = vunpack.c.l.b16 %v1678
        %v1917 = vunpack.c.l.b16 %v1679
        %v1918 = vunpack.c.l.b16 %v1680
        %v1919 = vunpack.c.l.b16 %v1681
        %v1920 = vunpack.c.l.b16 %v1682
        %v1921 = vunpack.c.l.b16 %v1683
        %v1922 = vunpack.c.l.b16 %v1684
        %v1923 = vunpack.c.l.b16 %v1685
        %v1924 = vunpack.c.l.b16 %v1686
        %v1925 = vunpack.c.l.b16 %v1687
        %v1926 = vunpack.c.l.b16 %v1688
        %v1927 = vunpack.c.l.b16 %v1689
        %v1928 = vunpack.c.l.b16 %v1690
        %v1929 = vunpack.c.l.b16 %v1691
        %v1930 = vunpack.c.l.b16 %v1692
        %v1931 = vunpack.c.l.b16 %v1693
        %v1932 = vunpack.c.l.b16 %v1694
        %v1933 = vunpack.c.l.b16 %v1695
        %v1934 = vunpack.c.l.b16 %v1696
        %v1935 = vunpack.c.l.b16 %v1697
        %v1936 = vunpack.c.l.b16 %v1698
        %v1937 = vunpack.c.l.b16 %v1699
        %v1938 = vunpack.c.l.b16 %v1700
        %v1939 = vunpack.c.l.b16 %v1701
        %v1940 = vunpack.c.l.b16 %v1702
        %v1941 = vunpack.c.l.b16 %v1703
        %v1942 = vunpack.c.l.b16 %v1704
        %v1943 = vunpack.c.l.b16 %v1705
        %v1944 = vunpack.c.l.b16 %v1706
        %v1945 = vunpack.c.l.b16 %v1707
        %v1946 = vunpack.c.l.b16 %v1708
        %v1947 = vunpack.c.l.b16 %v1709
        %v1948 = vunpack.c.l.b16 %v1710
        %v1949 = vunpack.c.l.b16 %v1711
        %v1950 = vunpack.c.l.b16 %v1712
        %v1951 = vunpack.c.l.b16 %v1713
        %v1952 = vunpack.c.l.b16 %v1714
        %v1953 = vunpack.c.l.b16 %v1715
        %v1954 = vunpack.c.l.b16 %v1716
        %v1955 = vunpack.c.l.b16 %v1717
        %v1956 = vunpack.c.l.b16 %v1718
        %v1957 = vunpack.c.l.b16 %v1719
        %v1958 = vunpack.c.l.b16 %v1720
        %v1959 = vunpack.c.l.b16 %v1721
        %v1960 = vunpack.c.l.b16 %v1722
        %v1961 = vunpack.c.l.b16 %v1723
        %v1962 = vunpack.c.l.b16 %v1724
        %v1963 = vunpack.c.l.b16 %v1725
        %v1964 = vunpack.c.l.b16 %v1726
        %v1965 = vunpack.c.l.b16 %v1727
        %v1966 = vunpack.c.l.b16 %v1728
        %v1967 = vunpack.c.l.b16 %v1729
        %v1968 = vunpack.c.l.b16 %v1730
        %v1969 = vunpack.c.l.b16 %v1731
        %v1970 = vunpack.c.l.b16 %v1732
        %v1971 = vunpack.c.l.b16 %v1733
        %v1972 = vunpack.c.l.b16 %v1734
        %v1973 = vunpack.c.l.b16 %v1735
        %v1974 = vunpack.c.l.b16 %v1736
        %v1975 = vunpack.c.l.b16 %v1737
        %v1976 = vunpack.c.l.b16 %v1738
        %v1977 = vunpack.c.l.b16 %v1739
        %v1978 = vunpack.c.l.b16 %v1740
        %v1979 = vunpack.c.l.b16 %v1741
        %v1980 = vpack.c.b16 %v1869, %v1868
        %v1981 = vpack.c.b16 %v1871, %v1870
        %v1982 = vpack.c.b16 %v1873, %v1872
        %v1983 = vpack.c.b16 %v1875, %v1874
        %v1984 = vpack.c.b16 %v1877, %v1876
        %v1985 = vpack.c.b16 %v1879, %v1878
        %v1986 = vpack.c.b16 %v1881, %v1880
        %v1987 = vpack.c.b16 %v1883, %v1882
        %v1988 = vpack.c.b16 %v1885, %v1884
        %v1989 = vpack.c.b16 %v1887, %v1886
        %v1990 = vpack.c.b16 %v1889, %v1888
        %v1991 = vpack.c.b16 %v1891, %v1890
        %v1992 = vpack.c.b16 %v1893, %v1892
        %v1993 = vpack.c.b16 %v1895, %v1894
        %v1994 = vpack.c.b16 %v1897, %v1896
        %v1995 = vpack.c.b16 %v1899, %v1898
        %v1996 = vpack.c.b16 %v1901, %v1900
        %v1997 = vpack.c.b16 %v1903, %v1902
        %v1998 = vpack.c.b16 %v1905, %v1904
        %v1999 = vpack.c.b16 %v1907, %v1906
        %v2000 = vpack.c.b16 %v1909, %v1908
        %v2001 = vpack.c.b16 %v1911, %v1910
        %v2002 = vpack.c.b16 %v1913, %v1912
        %v2003 = vpack.c.b16 %v1915, %v1914
        %v2004 = vpack.c.b16 %v1917, %v1916
        %v2005 = vpack.c.b16 %v1919, %v1918
        %v2006 = vpack.c.b16 %v1921, %v1920
        %v2007 = vpack.c.b16 %v1923, %v1922
        %v2008 = vpack.c.b16 %v1925, %v1924
        %v2009 = vpack.c.b16 %v1927, %v1926
        %v2010 = vpack.c.b16 %v1929, %v1928
        %v2011 = vpack.c.b16 %v1931, %v1930
        %v2012 = vpack.c.b16 %v1933, %v1932
        %v2013 = vpack.c.b16 %v1935, %v1934
        %v2014 = vpack.c.b16 %v1937, %v1936
        %v2015 = vpack.c.b16 %v1939, %v1938
        %v2016 = vpack.c.b16 %v1941, %v1940
        %v2017 = vpack.c.b16 %v1943, %v1942
        %v2018 = vpack.c.b16 %v1945, %v1944
        %v2019 = vpack.c.b16 %v1947, %v1946
        %v2020 = vpack.c.b16 %v1949, %v1948
        %v2021 = vpack.c.b16 %v1951, %v1950
        %v2022 = vpack.c.b16 %v1953, %v1952
        %v2023 = vpack.c.b16 %v1955, %v1954
        %v2024 = vpack.c.b16 %v1957, %v1956
        %v2025 = vpack.c.b16 %v1959, %v1958
        %v2026 = vpack.c.b16 %v1961, %v1960
        %v2027 = vpack.c.b16 %v1963, %v1962
        %v2028 = vpack.c.b16 %v1965, %v1964
        %v2029 = vpack.c.b16 %v1967, %v1966
        %v2030 = vpack.c.b16 %v1969, %v1968
        %v2031 = vpack.c.b16 %v1971, %v1970
        %v2032 = vpack.c.b16 %v1973, %v1972
        %v2033 = vpack.c.b16 %v1975, %v1974
        %v2034 = vpack.c.b16 %v1977, %v1976
        %v2035 = vpack.c.b16 %v1979, %v1978
        %2092 = vmatprep.subr.bf16.mxu0 0
        %2093 = vmatpush1.bf16.msra.mxu0 %v1987
        %2094 = vmatprep.subr.bf16.mxu0 0
        %2095 = vmatpush1.bf16.msra.mxu0 %v1986
        %2096 = vmatprep.subr.bf16.mxu0 0
        %2097 = vmatpush1.bf16.msra.mxu0 %v1985
        %2098 = vmatprep.subr.bf16.mxu0 0
        %2099 = vmatpush1.bf16.msra.mxu0 %v1984
        %2100 = vmatprep.subr.bf16.mxu0 0
        %2101 = vmatpush1.bf16.msra.mxu0 %v1983
        %2102 = vmatprep.subr.bf16.mxu0 0
        %2103 = vmatpush1.bf16.msra.mxu0 %v1982
        %2104 = vmatprep.subr.bf16.mxu0 0
        %2105 = vmatpush1.bf16.msra.mxu0 %v1981
        %2106 = vmatprep.subr.bf16.mxu0 0
        %2107 = vmatpush1.bf16.msra.mxu0 %v1980
        %2108 = vmatprep.subr.bf16.mxu0 0
        %2109 = vmatpush2.bf16.msra.mxu0 %v1995
        %2110 = vmatprep.subr.bf16.mxu0 0
        %2111 = vmatpush2.bf16.msra.mxu0 %v1994
        %2112 = vmatprep.subr.bf16.mxu0 0
        %2113 = vmatpush2.bf16.msra.mxu0 %v1993
        %2114 = vmatprep.subr.bf16.mxu0 0
        %2115 = vmatpush2.bf16.msra.mxu0 %v1992
        %2116 = vmatprep.subr.bf16.mxu0 0
        %2117 = vmatpush2.bf16.msra.mxu0 %v1991
        %2118 = vmatprep.subr.bf16.mxu0 0
        %2119 = vmatpush2.bf16.msra.mxu0 %v1990
        %2120 = vmatprep.subr.bf16.mxu0 0
        %2121 = vmatpush2.bf16.msra.mxu0 %v1989
        %2122 = vmatprep.subr.bf16.mxu0 0
        %2123 = vmatpush2.bf16.msra.mxu0 %v1988
        %2124 = vmatprep.mubr.bf16.mxu0 %v1743
        %2125 = vmatmul.mubr.bf16.gmra.mxu0 %v1742
        %v2126 = vpop.f32.mrf.mxu0
        %v2127 = vadd.f32 %v1754, %v2126
        %v2128 = vpop.f32.mrf.mxu0
        %v2129 = vpop.f32.mrf.mxu0
        %v2130 = vadd.f32 %v1754, %v2129
        %v2131 = vpop.f32.mrf.mxu0
        %2132 = vdwg.mxu0
        %2133 = vmatprep.subr.bf16.mxu0 0
        %2134 = vmatpush1.bf16.msra.mxu0 %v2003
        %2135 = vmatprep.subr.bf16.mxu0 0
        %2136 = vmatpush1.bf16.msra.mxu0 %v2002
        %2137 = vmatprep.subr.bf16.mxu0 0
        %2138 = vmatpush1.bf16.msra.mxu0 %v2001
        %2139 = vmatprep.subr.bf16.mxu0 0
        %2140 = vmatpush1.bf16.msra.mxu0 %v2000
        %2141 = vmatprep.subr.bf16.mxu0 0
        %2142 = vmatpush1.bf16.msra.mxu0 %v1999
        %2143 = vmatprep.subr.bf16.mxu0 0
        %2144 = vmatpush1.bf16.msra.mxu0 %v1998
        %2145 = vmatprep.subr.bf16.mxu0 0
        %2146 = vmatpush1.bf16.msra.mxu0 %v1997
        %2147 = vmatprep.subr.bf16.mxu0 0
        %2148 = vmatpush1.bf16.msra.mxu0 %v1996
        %2149 = vmatprep.subr.bf16.mxu0 0
        %2150 = vmatpush2.bf16.msra.mxu0 %v2011
        %2151 = vmatprep.subr.bf16.mxu0 0
        %2152 = vmatpush2.bf16.msra.mxu0 %v2010
        %2153 = vmatprep.subr.bf16.mxu0 0
        %2154 = vmatpush2.bf16.msra.mxu0 %v2009
        %2155 = vmatprep.subr.bf16.mxu0 0
        %2156 = vmatpush2.bf16.msra.mxu0 %v2008
        %2157 = vmatprep.subr.bf16.mxu0 0
        %2158 = vmatpush2.bf16.msra.mxu0 %v2007
        %2159 = vmatprep.subr.bf16.mxu0 0
        %2160 = vmatpush2.bf16.msra.mxu0 %v2006
        %2161 = vmatprep.subr.bf16.mxu0 0
        %2162 = vmatpush2.bf16.msra.mxu0 %v2005
        %2163 = vmatprep.subr.bf16.mxu0 0
        %2164 = vmatpush2.bf16.msra.mxu0 %v2004
        %2165 = vmatprep.mubr.bf16.mxu0 %v1745
        %2166 = vmatmul.mubr.bf16.gmra.mxu0 %v1744
        %v2167 = vpop.f32.mrf.mxu0
        %v2168 = vadd.f32 %v2127, %v2167
        %v2169 = vpop.f32.mrf.mxu0
        %v2170 = vpop.f32.mrf.mxu0
        %v2171 = vadd.f32 %v2130, %v2170
        %v2172 = vpop.f32.mrf.mxu0
        %2173 = vdwg.mxu0
        %2174 = vmatprep.subr.bf16.mxu0 0
        %2175 = vmatpush1.bf16.msra.mxu0 %v2019
        %2176 = vmatprep.subr.bf16.mxu0 0
        %2177 = vmatpush1.bf16.msra.mxu0 %v2018
        %2178 = vmatprep.subr.bf16.mxu0 0
        %2179 = vmatpush1.bf16.msra.mxu0 %v2017
        %2180 = vmatprep.subr.bf16.mxu0 0
        %2181 = vmatpush1.bf16.msra.mxu0 %v2016
        %2182 = vmatprep.subr.bf16.mxu0 0
        %2183 = vmatpush1.bf16.msra.mxu0 %v2015
        %2184 = vmatprep.subr.bf16.mxu0 0
        %2185 = vmatpush1.bf16.msra.mxu0 %v2014
        %2186 = vmatprep.subr.bf16.mxu0 0
        %2187 = vmatpush1.bf16.msra.mxu0 %v2013
        %2188 = vmatprep.subr.bf16.mxu0 0
        %2189 = vmatpush1.bf16.msra.mxu0 %v2012
        %2190 = vmatprep.subr.bf16.mxu0 0
        %2191 = vmatpush2.bf16.msra.mxu0 %v2027
        %2192 = vmatprep.subr.bf16.mxu0 0
        %2193 = vmatpush2.bf16.msra.mxu0 %v2026
        %2194 = vmatprep.subr.bf16.mxu0 0
        %2195 = vmatpush2.bf16.msra.mxu0 %v2025
        %2196 = vmatprep.subr.bf16.mxu0 0
        %2197 = vmatpush2.bf16.msra.mxu0 %v2024
        %2198 = vmatprep.subr.bf16.mxu0 0
        %2199 = vmatpush2.bf16.msra.mxu0 %v2023
        %2200 = vmatprep.subr.bf16.mxu0 0
        %2201 = vmatpush2.bf16.msra.mxu0 %v2022
        %2202 = vmatprep.subr.bf16.mxu0 0
        %2203 = vmatpush2.bf16.msra.mxu0 %v2021
        %2204 = vmatprep.subr.bf16.mxu0 0
        %2205 = vmatpush2.bf16.msra.mxu0 %v2020
        %2206 = vmatprep.mubr.bf16.mxu0 %v1747
        %2207 = vmatmul.mubr.bf16.gmra.mxu0 %v1746
        %v2208 = vpop.f32.mrf.mxu0
        %v2209 = vadd.f32 %v2168, %v2208
        %v2210 = vpop.f32.mrf.mxu0
        %v2211 = vpop.f32.mrf.mxu0
        %v2212 = vadd.f32 %v2171, %v2211
        %v2213 = vpop.f32.mrf.mxu0
        %2214 = vdwg.mxu0
        %2215 = vmatprep.subr.bf16.mxu0 0
        %2216 = vmatpush1.bf16.msra.mxu0 %v2035
        %2217 = vmatprep.subr.bf16.mxu0 0
        %2218 = vmatpush1.bf16.msra.mxu0 %v2034
        %2219 = vmatprep.subr.bf16.mxu0 0
        %2220 = vmatpush1.bf16.msra.mxu0 %v2033
        %2221 = vmatprep.subr.bf16.mxu0 0
        %2222 = vmatpush1.bf16.msra.mxu0 %v2032
        %2223 = vmatprep.subr.bf16.mxu0 0
        %2224 = vmatpush1.bf16.msra.mxu0 %v2031
        %2225 = vmatprep.subr.bf16.mxu0 0
        %2226 = vmatpush1.bf16.msra.mxu0 %v2030
        %2227 = vmatprep.subr.bf16.mxu0 0
        %2228 = vmatpush1.bf16.msra.mxu0 %v2029
        %2229 = vmatprep.subr.bf16.mxu0 0
        %2230 = vmatpush1.bf16.msra.mxu0 %v2028
        %2231 = vmatprep.subr.bf16.mxu0 0
        %2232 = vmatpush2.bf16.msra.mxu0 0
        %2233 = vmatprep.subr.bf16.mxu0 0
        %2234 = vmatpush2.bf16.msra.mxu0 0
        %2235 = vmatprep.subr.bf16.mxu0 0
        %2236 = vmatpush2.bf16.msra.mxu0 0
        %2237 = vmatprep.subr.bf16.mxu0 0
        %2238 = vmatpush2.bf16.msra.mxu0 0
        %2239 = vmatprep.subr.bf16.mxu0 0
        %2240 = vmatpush2.bf16.msra.mxu0 0
        %2241 = vmatprep.subr.bf16.mxu0 0
        %2242 = vmatpush2.bf16.msra.mxu0 0
        %2243 = vmatprep.subr.bf16.mxu0 0
        %2244 = vmatpush2.bf16.msra.mxu0 0
        %2245 = vmatprep.subr.bf16.mxu0 0
        %2246 = vmatpush2.bf16.msra.mxu0 0
        %2247 = vmatprep.mubr.bf16.mxu0 0
        %2248 = vmatmul.mubr.bf16.gmra.mxu0 %v1748
        %v2249 = vpop.f32.mrf.mxu0
        %v2250 = vadd.f32 %v2209, %v2249
        %v2251 = vpop.f32.mrf.mxu0
        %v2252 = vpop.f32.mrf.mxu0
        %v2253 = vadd.f32 %v2212, %v2252
        %v2254 = vpop.f32.mrf.mxu0
        %2255 = vdwg.mxu0
        %v2256 = vmax.f32 %v2250, 0.0
        %v2257 = vmax.f32 %v2253, 0.0
        %v2258 = vld [vmem:[%s9] sm:$0xf]
        %v2259 = vld [vmem:[%s9 + $0x4] sm:$0xf]
        %v2260 = vld [vmem:[%s9 + $0x8] sm:$0xf]
        %v2261 = vpack.c.bf16 %v2257, %v2256
        %v2265 = vunpack.c.l.b16 %v2258
        %v2266 = vunpack.c.l.b16 %v2259
        %v2267 = vunpack.c.l.b16 %v2260
        %v2268 = vpack.c.b16 %v2266, %v2265
        %v2269 = vpack.c.b16 %v2267, %v2267
        %vm2270 = vcmask 130048
        %v2272 = vsel %vm2270, %v2268, 0
        %v2275 = vsel %vm2270, %v2269, 0
        %2277 = vmatprep.subr.bf16.mxu0 0
        %2278 = vmatpush1.bf16.msra.mxu0 0
        %2279 = vmatprep.subr.bf16.mxu0 0
        %2280 = vmatpush1.bf16.msra.mxu0 0
        %2281 = vmatprep.subr.bf16.mxu0 0
        %2282 = vmatpush1.bf16.msra.mxu0 0
        %2283 = vmatprep.subr.bf16.mxu0 0
        %2284 = vmatpush1.bf16.msra.mxu0 0
        %2285 = vmatprep.subr.bf16.mxu0 0
        %2286 = vmatpush1.bf16.msra.mxu0 0
        %2287 = vmatprep.subr.bf16.mxu0 0
        %2288 = vmatpush1.bf16.msra.mxu0 0
        %2289 = vmatprep.subr.bf16.mxu0 0
        %2290 = vmatpush1.bf16.msra.mxu0 0
        %2291 = vmatprep.subr.bf16.mxu0 0
        %2292 = vmatpush1.bf16.msra.mxu0 %v2261
        %2293 = vmatprep.subr.bf16.mxu0 0
        %2294 = vmatpush2.bf16.msra.mxu0 0
        %2295 = vmatprep.subr.bf16.mxu0 0
        %2296 = vmatpush2.bf16.msra.mxu0 0
        %2297 = vmatprep.subr.bf16.mxu0 0
        %2298 = vmatpush2.bf16.msra.mxu0 0
        %2299 = vmatprep.subr.bf16.mxu0 0
        %2300 = vmatpush2.bf16.msra.mxu0 0
        %2301 = vmatprep.subr.bf16.mxu0 0
        %2302 = vmatpush2.bf16.msra.mxu0 0
        %2303 = vmatprep.subr.bf16.mxu0 0
        %2304 = vmatpush2.bf16.msra.mxu0 0
        %2305 = vmatprep.subr.bf16.mxu0 0
        %2306 = vmatpush2.bf16.msra.mxu0 0
        %2307 = vmatprep.subr.bf16.mxu0 0
        %2308 = vmatpush2.bf16.msra.mxu0 0
        %2309 = vmatprep.mubr.bf16.mxu0 0
        %2310 = vmatmul.mubr.bf16.gmra.mxu0 %v2272
        %v2311 = vpop.f32.mrf.mxu0
        %v2312 = vadd.f32 0.0, %v2311
        %v2313 = vpop.f32.mrf.mxu0
        %v2314 = vpop.f32.mrf.mxu0
        %v2315 = vadd.f32 0.0, %v2314
        %v2316 = vpop.f32.mrf.mxu0
        %2317 = vmatprep.mubr.bf16.mxu0 0
        %2318 = vmatmul.mubr.bf16.gmra.mxu0 %v2275
        %v2319 = vpop.f32.mrf.mxu0
        %v2320 = vadd.f32 0.0, %v2319
        %v2321 = vpop.f32.mrf.mxu0
        %v2322 = vpop.f32.mrf.mxu0
        %v2323 = vpop.f32.mrf.mxu0
        %2324 = vdwg.mxu0
        %v2325 = vld [vmem:[%s11] sm:$0xff]
        %v2326 = vld [vmem:[%s11 + $0x8] sm:$0xf]
        %v2327 = vld [vmem:[%s11 + $0xc] sm:$0xff]
        %v2328 = vld [vmem:[%s11 + $0x14] sm:$0xf]
        %v2329 = vld [vmem:[%s11 + $0x18] sm:$0xff]
        %v2330 = vld [vmem:[%s11 + $0x20] sm:$0xf]
        %v2331 = vld [vmem:[%s11 + $0x24] sm:$0xff]
        %v2332 = vld [vmem:[%s11 + $0x2c] sm:$0xf]
        %v2333 = vld [vmem:[%s11 + $0x30] sm:$0xff]
        %v2334 = vld [vmem:[%s11 + $0x38] sm:$0xf]
        %v2335 = vld [vmem:[%s11 + $0x3c] sm:$0xff]
        %v2336 = vld [vmem:[%s11 + $0x44] sm:$0xf]
        %v2337 = vld [vmem:[%s11 + $0x48] sm:$0xff]
        %v2338 = vld [vmem:[%s11 + $0x50] sm:$0xf]
        %v2339 = vld [vmem:[%s11 + $0x54] sm:$0xff]
        %v2340 = vld [vmem:[%s11 + $0x5c] sm:$0xf]
        %v2341 = vld [vmem:[%s11 + $0x60] sm:$0xff]
        %v2342 = vld [vmem:[%s11 + $0x68] sm:$0xf]
        %v2343 = vld [vmem:[%s11 + $0x6c] sm:$0xff]
        %v2344 = vld [vmem:[%s11 + $0x74] sm:$0xf]
        %v2345 = vld [vmem:[%s11 + $0x78] sm:$0xff]
        %v2346 = vld [vmem:[%s11 + $0x80] sm:$0xf]
        %v2347 = vld [vmem:[%s11 + $0x84] sm:$0xff]
        %v2348 = vld [vmem:[%s11 + $0x8c] sm:$0xf]
        %v2349 = vld [vmem:[%s11 + $0x90] sm:$0xff]
        %v2350 = vld [vmem:[%s11 + $0x98] sm:$0xf]
        %v2351 = vld [vmem:[%s11 + $0x9c] sm:$0xff]
        %v2352 = vld [vmem:[%s11 + $0xa4] sm:$0xf]
        %v2353 = vld [vmem:[%s11 + $0xa8] sm:$0xff]
        %v2354 = vld [vmem:[%s11 + $0xb0] sm:$0xf]
        %v2355 = vld [vmem:[%s11 + $0xb4] sm:$0xff]
        %v2356 = vld [vmem:[%s11 + $0xbc] sm:$0xf]
        %v2357 = vpack.c.bf16 %v2315, %v2312
        %v2358 = vpack.c.bf16 %v2320, %v2320
        %v2391 = vunpack.c.l.b16 %v2325
        %v2392 = vunpack.c.h.b16 %v2325
        %v2393 = vunpack.c.l.b16 %v2326
        %v2394 = vunpack.c.l.b16 %v2327
        %v2395 = vunpack.c.h.b16 %v2327
        %v2396 = vunpack.c.l.b16 %v2328
        %v2397 = vunpack.c.l.b16 %v2329
        %v2398 = vunpack.c.h.b16 %v2329
        %v2399 = vunpack.c.l.b16 %v2330
        %v2400 = vunpack.c.l.b16 %v2331
        %v2401 = vunpack.c.h.b16 %v2331
        %v2402 = vunpack.c.l.b16 %v2332
        %v2403 = vunpack.c.l.b16 %v2333
        %v2404 = vunpack.c.h.b16 %v2333
        %v2405 = vunpack.c.l.b16 %v2334
        %v2406 = vunpack.c.l.b16 %v2335
        %v2407 = vunpack.c.h.b16 %v2335
        %v2408 = vunpack.c.l.b16 %v2336
        %v2409 = vunpack.c.l.b16 %v2337
        %v2410 = vunpack.c.h.b16 %v2337
        %v2411 = vunpack.c.l.b16 %v2338
        %v2412 = vunpack.c.l.b16 %v2339
        %v2413 = vunpack.c.h.b16 %v2339
        %v2414 = vunpack.c.l.b16 %v2340
        %v2415 = vunpack.c.l.b16 %v2341
        %v2416 = vunpack.c.h.b16 %v2341
        %v2417 = vunpack.c.l.b16 %v2342
        %v2418 = vunpack.c.l.b16 %v2343
        %v2419 = vunpack.c.h.b16 %v2343
        %v2420 = vunpack.c.l.b16 %v2344
        %v2421 = vunpack.c.l.b16 %v2345
        %v2422 = vunpack.c.h.b16 %v2345
        %v2423 = vunpack.c.l.b16 %v2346
        %v2424 = vunpack.c.l.b16 %v2347
        %v2425 = vunpack.c.h.b16 %v2347
        %v2426 = vunpack.c.l.b16 %v2348
        %v2427 = vunpack.c.l.b16 %v2349
        %v2428 = vunpack.c.h.b16 %v2349
        %v2429 = vunpack.c.l.b16 %v2350
        %v2430 = vunpack.c.l.b16 %v2351
        %v2431 = vunpack.c.h.b16 %v2351
        %v2432 = vunpack.c.l.b16 %v2352
        %v2433 = vunpack.c.l.b16 %v2353
        %v2434 = vunpack.c.h.b16 %v2353
        %v2435 = vunpack.c.l.b16 %v2354
        %v2436 = vunpack.c.l.b16 %v2355
        %v2437 = vunpack.c.h.b16 %v2355
        %v2438 = vunpack.c.l.b16 %v2356
        %v2439 = vpack.c.b16 %v2394, %v2391
        %v2440 = vpack.c.b16 %v2395, %v2392
        %v2441 = vpack.c.b16 %v2396, %v2393
        %v2442 = vpack.c.b16 %v2400, %v2397
        %v2443 = vpack.c.b16 %v2401, %v2398
        %v2444 = vpack.c.b16 %v2402, %v2399
        %v2445 = vpack.c.b16 %v2406, %v2403
        %v2446 = vpack.c.b16 %v2407, %v2404
        %v2447 = vpack.c.b16 %v2408, %v2405
        %v2448 = vpack.c.b16 %v2412, %v2409
        %v2449 = vpack.c.b16 %v2413, %v2410
        %v2450 = vpack.c.b16 %v2414, %v2411
        %v2451 = vpack.c.b16 %v2418, %v2415
        %v2452 = vpack.c.b16 %v2419, %v2416
        %v2453 = vpack.c.b16 %v2420, %v2417
        %v2454 = vpack.c.b16 %v2424, %v2421
        %v2455 = vpack.c.b16 %v2425, %v2422
        %v2456 = vpack.c.b16 %v2426, %v2423
        %v2457 = vpack.c.b16 %v2430, %v2427
        %v2458 = vpack.c.b16 %v2431, %v2428
        %v2459 = vpack.c.b16 %v2432, %v2429
        %v2460 = vpack.c.b16 %v2436, %v2433
        %v2461 = vpack.c.b16 %v2437, %v2434
        %v2462 = vpack.c.b16 %v2438, %v2435
        %2487 = vmatprep.subr.bf16.mxu0 %v2461
        %2488 = vmatpush1.bf16.msra.mxu0 %v2460
        %2489 = vmatprep.subr.bf16.mxu0 %v2458
        %2490 = vmatpush1.bf16.msra.mxu0 %v2457
        %2491 = vmatprep.subr.bf16.mxu0 %v2455
        %2492 = vmatpush1.bf16.msra.mxu0 %v2454
        %2493 = vmatprep.subr.bf16.mxu0 %v2452
        %2494 = vmatpush1.bf16.msra.mxu0 %v2451
        %2495 = vmatprep.subr.bf16.mxu0 %v2449
        %2496 = vmatpush1.bf16.msra.mxu0 %v2448
        %2497 = vmatprep.subr.bf16.mxu0 %v2446
        %2498 = vmatpush1.bf16.msra.mxu0 %v2445
        %2499 = vmatprep.subr.bf16.mxu0 %v2443
        %2500 = vmatpush1.bf16.msra.mxu0 %v2442
        %2501 = vmatprep.subr.bf16.mxu0 %v2440
        %2502 = vmatpush1.bf16.msra.mxu0 %v2439
        %2503 = vmatprep.subr.bf16.mxu0 0
        %2504 = vmatpush2.bf16.msra.mxu0 0
        %2505 = vmatprep.subr.bf16.mxu0 0
        %2506 = vmatpush2.bf16.msra.mxu0 0
        %2507 = vmatprep.subr.bf16.mxu0 0
        %2508 = vmatpush2.bf16.msra.mxu0 0
        %2509 = vmatprep.subr.bf16.mxu0 0
        %2510 = vmatpush2.bf16.msra.mxu0 0
        %2511 = vmatprep.subr.bf16.mxu0 0
        %2512 = vmatpush2.bf16.msra.mxu0 0
        %2513 = vmatprep.subr.bf16.mxu0 0
        %2514 = vmatpush2.bf16.msra.mxu0 0
        %2515 = vmatprep.subr.bf16.mxu0 0
        %2516 = vmatpush2.bf16.msra.mxu0 0
        %2517 = vmatprep.subr.bf16.mxu0 0
        %2518 = vmatpush2.bf16.msra.mxu0 0
        %2519 = vmatprep.mubr.bf16.mxu0 0
        %2520 = vmatmul.mubr.bf16.gmra.mxu0 %v2357
        %v2521 = vpop.f32.mrf.mxu0
        %v2522 = vadd.f32 0.0, %v2521
        %v2523 = vpop.f32.mrf.mxu0
        %v2524 = vadd.f32 0.0, %v2523
        %v2525 = vpop.f32.mrf.mxu0
        %v2526 = vadd.f32 0.0, %v2525
        %v2527 = vpop.f32.mrf.mxu0
        %v2528 = vadd.f32 0.0, %v2527
        %2529 = vmatprep.mubr.bf16.mxu0 0
        %2530 = vmatmul.mubr.bf16.gmra.mxu0 %v2358
        %v2531 = vpop.f32.mrf.mxu0
        %v2532 = vadd.f32 0.0, %v2531
        %v2533 = vpop.f32.mrf.mxu0
        %v2534 = vadd.f32 0.0, %v2533
        %v2535 = vpop.f32.mrf.mxu0
        %v2536 = vpop.f32.mrf.mxu0
        %2537 = vdwg.mxu0
        %2538 = vmatprep.subr.bf16.mxu0 0
        %2539 = vmatpush1.bf16.msra.mxu0 %v2462
        %2540 = vmatprep.subr.bf16.mxu0 0
        %2541 = vmatpush1.bf16.msra.mxu0 %v2459
        %2542 = vmatprep.subr.bf16.mxu0 0
        %2543 = vmatpush1.bf16.msra.mxu0 %v2456
        %2544 = vmatprep.subr.bf16.mxu0 0
        %2545 = vmatpush1.bf16.msra.mxu0 %v2453
        %2546 = vmatprep.subr.bf16.mxu0 0
        %2547 = vmatpush1.bf16.msra.mxu0 %v2450
        %2548 = vmatprep.subr.bf16.mxu0 0
        %2549 = vmatpush1.bf16.msra.mxu0 %v2447
        %2550 = vmatprep.subr.bf16.mxu0 0
        %2551 = vmatpush1.bf16.msra.mxu0 %v2444
        %2552 = vmatprep.subr.bf16.mxu0 0
        %2553 = vmatpush1.bf16.msra.mxu0 %v2441
        %2554 = vmatprep.subr.bf16.mxu0 0
        %2555 = vmatpush2.bf16.msra.mxu0 0
        %2556 = vmatprep.subr.bf16.mxu0 0
        %2557 = vmatpush2.bf16.msra.mxu0 0
        %2558 = vmatprep.subr.bf16.mxu0 0
        %2559 = vmatpush2.bf16.msra.mxu0 0
        %2560 = vmatprep.subr.bf16.mxu0 0
        %2561 = vmatpush2.bf16.msra.mxu0 0
        %2562 = vmatprep.subr.bf16.mxu0 0
        %2563 = vmatpush2.bf16.msra.mxu0 0
        %2564 = vmatprep.subr.bf16.mxu0 0
        %2565 = vmatpush2.bf16.msra.mxu0 0
        %2566 = vmatprep.subr.bf16.mxu0 0
        %2567 = vmatpush2.bf16.msra.mxu0 0
        %2568 = vmatprep.subr.bf16.mxu0 0
        %2569 = vmatpush2.bf16.msra.mxu0 0
        %2570 = vmatprep.mubr.bf16.mxu0 0
        %2571 = vmatmul.mubr.bf16.gmra.mxu0 %v2357
        %v2572 = vpop.f32.mrf.mxu0
        %v2573 = vadd.f32 0.0, %v2572
        %v2574 = vpop.f32.mrf.mxu0
        %v2575 = vpop.f32.mrf.mxu0
        %v2576 = vadd.f32 0.0, %v2575
        %v2577 = vpop.f32.mrf.mxu0
        %2578 = vmatprep.mubr.bf16.mxu0 0
        %2579 = vmatmul.mubr.bf16.gmra.mxu0 %v2358
        %v2580 = vpop.f32.mrf.mxu0
        %v2581 = vadd.f32 0.0, %v2580
        %v2582 = vpop.f32.mrf.mxu0
        %v2583 = vpop.f32.mrf.mxu0
        %v2584 = vpop.f32.mrf.mxu0
        %2585 = vdwg.mxu0
        %v2586 = vmax.f32 %v2522, %v2524
        %v2587 = vmax.f32 %v2586, %v2573
        %v2588 = vmax.f32 %v2587, %v2526
        %v2589 = vmax.f32 %v2588, %v2528
        %v2590 = vmax.f32 %v2589, %v2576
        %v2591 = vmax.f32 %v2590, %v2532
        %v2592 = vmax.f32 %v2591, %v2534
        %v2593 = vmax.f32 %v2592, %v2581
        %v2594 = vld [vmem:[%s13] sm:$0xf]
        %v2595 = vld [vmem:[%s13 + $0x4] sm:$0xf]
        %v2596 = vld [vmem:[%s13 + $0x8] sm:$0xf]
        %v2597 = vpack.c.bf16 %v2593, %v2593
        %v2601 = vunpack.c.l.b16 %v2594
        %v2602 = vunpack.c.l.b16 %v2595
        %v2603 = vunpack.c.l.b16 %v2596
        %v2604 = vpack.c.b16 %v2602, %v2601
        %v2605 = vpack.c.b16 %v2603, %v2603
        %vm2606 = vcmask 64512
        %v2608 = vsel %vm2606, %v2604, 0
        %v2611 = vsel %vm2606, %v2605, 0
        %vm2613 = vcmask 1043456
        %v2615 = vsel %vm2613, %v2597, 0
        %2617 = vmatprep.subr.bf16.mxu0 0
        %2618 = vmatpush1.bf16.msra.mxu0 0
        %2619 = vmatprep.subr.bf16.mxu0 0
        %2620 = vmatpush1.bf16.msra.mxu0 0
        %2621 = vmatprep.subr.bf16.mxu0 0
        %2622 = vmatpush1.bf16.msra.mxu0 0
        %2623 = vmatprep.subr.bf16.mxu0 0
        %2624 = vmatpush1.bf16.msra.mxu0 0
        %2625 = vmatprep.subr.bf16.mxu0 0
        %2626 = vmatpush1.bf16.msra.mxu0 0
        %2627 = vmatprep.subr.bf16.mxu0 0
        %2628 = vmatpush1.bf16.msra.mxu0 0
        %2629 = vmatprep.subr.bf16.mxu0 0
        %2630 = vmatpush1.bf16.msra.mxu0 0
        %2631 = vmatprep.subr.bf16.mxu0 0
        %2632 = vmatpush1.bf16.msra.mxu0 %v2615
        %2633 = vmatprep.subr.bf16.mxu0 0
        %2634 = vmatpush2.bf16.msra.mxu0 0
        %2635 = vmatprep.subr.bf16.mxu0 0
        %2636 = vmatpush2.bf16.msra.mxu0 0
        %2637 = vmatprep.subr.bf16.mxu0 0
        %2638 = vmatpush2.bf16.msra.mxu0 0
        %2639 = vmatprep.subr.bf16.mxu0 0
        %2640 = vmatpush2.bf16.msra.mxu0 0
        %2641 = vmatprep.subr.bf16.mxu0 0
        %2642 = vmatpush2.bf16.msra.mxu0 0
        %2643 = vmatprep.subr.bf16.mxu0 0
        %2644 = vmatpush2.bf16.msra.mxu0 0
        %2645 = vmatprep.subr.bf16.mxu0 0
        %2646 = vmatpush2.bf16.msra.mxu0 0
        %2647 = vmatprep.subr.bf16.mxu0 0
        %2648 = vmatpush2.bf16.msra.mxu0 0
        %2649 = vmatprep.mubr.bf16.mxu0 0
        %2650 = vmatmul.mubr.bf16.gmra.mxu0 %v2608
        %v2651 = vpop.f32.mrf.mxu0
        %v2652 = vadd.f32 0.0, %v2651
        %v2653 = vpop.f32.mrf.mxu0
        %v2654 = vpop.f32.mrf.mxu0
        %v2655 = vadd.f32 0.0, %v2654
        %v2656 = vpop.f32.mrf.mxu0
        %2657 = vmatprep.mubr.bf16.mxu0 0
        %2658 = vmatmul.mubr.bf16.gmra.mxu0 %v2611
        %v2659 = vpop.f32.mrf.mxu0
        %v2660 = vadd.f32 0.0, %v2659
        %v2661 = vpop.f32.mrf.mxu0
        %v2662 = vpop.f32.mrf.mxu0
        %v2663 = vpop.f32.mrf.mxu0
        %2664 = vdwg.mxu0
        %v2665 = vld [vmem:[#allocation5] sm:$0xf]
        %v2666 = vld [vmem:[#allocation5 + $0x4] sm:$0xf]
        %v2667 = vld [vmem:[#allocation5 + $0x8] sm:$0xf]
        %v2668 = vld [vmem:[#allocation5 + $0xc] sm:$0xf]
        %v2669 = vld [vmem:[#allocation5 + $0x10] sm:$0xf]
        %v2670 = vld [vmem:[#allocation5 + $0x14] sm:$0xf]
        %v2671 = vld [vmem:[#allocation5 + $0x18] sm:$0xf]
        %v2672 = vld [vmem:[#allocation5 + $0x1c] sm:$0xf]
        %v2673 = vld [vmem:[#allocation5 + $0x20] sm:$0xf]
        %v2674 = vld [vmem:[#allocation5 + $0x24] sm:$0xf]
        %v2675 = vld [vmem:[#allocation5 + $0x28] sm:$0xf]
        %v2676 = vld [vmem:[#allocation5 + $0x2c] sm:$0xf]
        %v2677 = vld [vmem:[#allocation5 + $0x30] sm:$0xf]
        %v2678 = vld [vmem:[#allocation5 + $0x34] sm:$0xf]
        %v2679 = vld [vmem:[#allocation5 + $0x38] sm:$0xf]
        %v2680 = vld [vmem:[#allocation5 + $0x3c] sm:$0xf]
        %v2681 = vld [vmem:[#allocation5 + $0x40] sm:$0xf]
        %v2682 = vld [vmem:[#allocation5 + $0x44] sm:$0xf]
        %v2683 = vld [vmem:[#allocation5 + $0x48] sm:$0xf]
        %v2684 = vld [vmem:[#allocation5 + $0x4c] sm:$0xf]
        %v2685 = vld [vmem:[#allocation5 + $0x50] sm:$0xf]
        %v2686 = vld [vmem:[#allocation5 + $0x54] sm:$0xf]
        %v2687 = vld [vmem:[#allocation5 + $0x58] sm:$0xf]
        %v2688 = vld [vmem:[#allocation5 + $0x5c] sm:$0xf]
        %v2689 = vld [vmem:[#allocation5 + $0x60] sm:$0xf]
        %v2690 = vld [vmem:[#allocation5 + $0x64] sm:$0xf]
        %v2691 = vld [vmem:[#allocation5 + $0x68] sm:$0xf]
        %v2692 = vld [vmem:[#allocation5 + $0x6c] sm:$0xf]
        %v2693 = vld [vmem:[#allocation5 + $0x70] sm:$0xf]
        %v2694 = vld [vmem:[#allocation5 + $0x74] sm:$0xf]
        %v2695 = vld [vmem:[#allocation5 + $0x78] sm:$0xf]
        %v2696 = vld [vmem:[#allocation5 + $0x7c] sm:$0xf]
        %v2697 = vld [vmem:[#allocation5 + $0x80] sm:$0xf]
        %v2698 = vld [vmem:[#allocation5 + $0x84] sm:$0xf]
        %v2699 = vld [vmem:[#allocation5 + $0x88] sm:$0xf]
        %v2700 = vld [vmem:[#allocation5 + $0x8c] sm:$0xf]
        %v2701 = vld [vmem:[#allocation5 + $0x90] sm:$0xf]
        %v2702 = vld [vmem:[#allocation5 + $0x94] sm:$0xf]
        %v2703 = vld [vmem:[#allocation5 + $0x98] sm:$0xf]
        %v2704 = vld [vmem:[#allocation5 + $0x9c] sm:$0xf]
        %v2705 = vld [vmem:[#allocation5 + $0xa0] sm:$0xf]
        %v2706 = vld [vmem:[#allocation5 + $0xa4] sm:$0xf]
        %v2707 = vld [vmem:[#allocation5 + $0xa8] sm:$0xf]
        %v2708 = vld [vmem:[#allocation5 + $0xac] sm:$0xf]
        %v2709 = vld [vmem:[#allocation5 + $0xb0] sm:$0xf]
        %v2710 = vld [vmem:[#allocation5 + $0xb4] sm:$0xf]
        %v2711 = vld [vmem:[#allocation5 + $0xb8] sm:$0xf]
        %v2712 = vld [vmem:[#allocation5 + $0xbc] sm:$0xf]
        %v2713 = vpack.c.bf16 %v2652, %v2652
        %v2714 = vpack.c.bf16 %v2655, %v2655
        %v2715 = vpack.c.bf16 %v2660, %v2660
        %v2716 = vld [vmem:[%s17] sm:$0x1]
        %v2718 = vlaneseq
        %v2719 = vshrl.u32 %v2718, 7
        %v2720 = vsub.s32 0, %v2719
        %v2721 = vrot.slane %v2716, %v2720
        %v2771 = vunpack.c.l.b16 %v2665
        %v2772 = vunpack.c.l.b16 %v2666
        %v2773 = vunpack.c.l.b16 %v2667
        %v2774 = vunpack.c.l.b16 %v2668
        %v2775 = vunpack.c.l.b16 %v2669
        %v2776 = vunpack.c.l.b16 %v2670
        %v2777 = vunpack.c.l.b16 %v2671
        %v2778 = vunpack.c.l.b16 %v2672
        %v2779 = vunpack.c.l.b16 %v2673
        %v2780 = vunpack.c.l.b16 %v2674
        %v2781 = vunpack.c.l.b16 %v2675
        %v2782 = vunpack.c.l.b16 %v2676
        %v2783 = vunpack.c.l.b16 %v2677
        %v2784 = vunpack.c.l.b16 %v2678
        %v2785 = vunpack.c.l.b16 %v2679
        %v2786 = vunpack.c.l.b16 %v2680
        %v2787 = vunpack.c.l.b16 %v2681
        %v2788 = vunpack.c.l.b16 %v2682
        %v2789 = vunpack.c.l.b16 %v2683
        %v2790 = vunpack.c.l.b16 %v2684
        %v2791 = vunpack.c.l.b16 %v2685
        %v2792 = vunpack.c.l.b16 %v2686
        %v2793 = vunpack.c.l.b16 %v2687
        %v2794 = vunpack.c.l.b16 %v2688
        %v2795 = vunpack.c.l.b16 %v2689
        %v2796 = vunpack.c.l.b16 %v2690
        %v2797 = vunpack.c.l.b16 %v2691
        %v2798 = vunpack.c.l.b16 %v2692
        %v2799 = vunpack.c.l.b16 %v2693
        %v2800 = vunpack.c.l.b16 %v2694
        %v2801 = vunpack.c.l.b16 %v2695
        %v2802 = vunpack.c.l.b16 %v2696
        %v2803 = vunpack.c.l.b16 %v2697
        %v2804 = vunpack.c.l.b16 %v2698
        %v2805 = vunpack.c.l.b16 %v2699
        %v2806 = vunpack.c.l.b16 %v2700
        %v2807 = vunpack.c.l.b16 %v2701
        %v2808 = vunpack.c.l.b16 %v2702
        %v2809 = vunpack.c.l.b16 %v2703
        %v2810 = vunpack.c.l.b16 %v2704
        %v2811 = vunpack.c.l.b16 %v2705
        %v2812 = vunpack.c.l.b16 %v2706
        %v2813 = vunpack.c.l.b16 %v2707
        %v2814 = vunpack.c.l.b16 %v2708
        %v2815 = vunpack.c.l.b16 %v2709
        %v2816 = vunpack.c.l.b16 %v2710
        %v2817 = vunpack.c.l.b16 %v2711
        %v2818 = vunpack.c.l.b16 %v2712
        %v2819 = vpack.c.b16 %v2772, %v2771
        %v2820 = vpack.c.b16 %v2774, %v2773
        %v2821 = vpack.c.b16 %v2776, %v2775
        %v2822 = vpack.c.b16 %v2778, %v2777
        %v2823 = vpack.c.b16 %v2780, %v2779
        %v2824 = vpack.c.b16 %v2782, %v2781
        %v2825 = vpack.c.b16 %v2784, %v2783
        %v2826 = vpack.c.b16 %v2786, %v2785
        %v2827 = vpack.c.b16 %v2788, %v2787
        %v2828 = vpack.c.b16 %v2790, %v2789
        %v2829 = vpack.c.b16 %v2792, %v2791
        %v2830 = vpack.c.b16 %v2794, %v2793
        %v2831 = vpack.c.b16 %v2796, %v2795
        %v2832 = vpack.c.b16 %v2798, %v2797
        %v2833 = vpack.c.b16 %v2800, %v2799
        %v2834 = vpack.c.b16 %v2802, %v2801
        %v2835 = vpack.c.b16 %v2804, %v2803
        %v2836 = vpack.c.b16 %v2806, %v2805
        %v2837 = vpack.c.b16 %v2808, %v2807
        %v2838 = vpack.c.b16 %v2810, %v2809
        %v2839 = vpack.c.b16 %v2812, %v2811
        %v2840 = vpack.c.b16 %v2814, %v2813
        %v2841 = vpack.c.b16 %v2816, %v2815
        %v2842 = vpack.c.b16 %v2818, %v2817
        %2867 = vmatprep.subr.bf16.mxu0 0
        %2868 = vmatpush1.bf16.msra.mxu0 %v2826
        %2869 = vmatprep.subr.bf16.mxu0 0
        %2870 = vmatpush1.bf16.msra.mxu0 %v2825
        %2871 = vmatprep.subr.bf16.mxu0 0
        %2872 = vmatpush1.bf16.msra.mxu0 %v2824
        %2873 = vmatprep.subr.bf16.mxu0 0
        %2874 = vmatpush1.bf16.msra.mxu0 %v2823
        %2875 = vmatprep.subr.bf16.mxu0 0
        %2876 = vmatpush1.bf16.msra.mxu0 %v2822
        %2877 = vmatprep.subr.bf16.mxu0 0
        %2878 = vmatpush1.bf16.msra.mxu0 %v2821
        %2879 = vmatprep.subr.bf16.mxu0 0
        %2880 = vmatpush1.bf16.msra.mxu0 %v2820
        %2881 = vmatprep.subr.bf16.mxu0 0
        %2882 = vmatpush1.bf16.msra.mxu0 %v2819
        %2883 = vmatprep.subr.bf16.mxu0 0
        %2884 = vmatpush2.bf16.msra.mxu0 %v2834
        %2885 = vmatprep.subr.bf16.mxu0 0
        %2886 = vmatpush2.bf16.msra.mxu0 %v2833
        %2887 = vmatprep.subr.bf16.mxu0 0
        %2888 = vmatpush2.bf16.msra.mxu0 %v2832
        %2889 = vmatprep.subr.bf16.mxu0 0
        %2890 = vmatpush2.bf16.msra.mxu0 %v2831
        %2891 = vmatprep.subr.bf16.mxu0 0
        %2892 = vmatpush2.bf16.msra.mxu0 %v2830
        %2893 = vmatprep.subr.bf16.mxu0 0
        %2894 = vmatpush2.bf16.msra.mxu0 %v2829
        %2895 = vmatprep.subr.bf16.mxu0 0
        %2896 = vmatpush2.bf16.msra.mxu0 %v2828
        %2897 = vmatprep.subr.bf16.mxu0 0
        %2898 = vmatpush2.bf16.msra.mxu0 %v2827
        %2899 = vmatprep.mubr.bf16.mxu0 %v2714
        %2900 = vmatmul.mubr.bf16.gmra.mxu0 %v2713
        %v2901 = vpop.f32.mrf.mxu0
        %v2902 = vadd.f32 %v2721, %v2901
        %v2903 = vpop.f32.mrf.mxu0
        %v2904 = vpop.f32.mrf.mxu0
        %v2905 = vpop.f32.mrf.mxu0
        %2906 = vdwg.mxu0
        %2907 = vmatprep.subr.bf16.mxu0 0
        %2908 = vmatpush1.bf16.msra.mxu0 %v2842
        %2909 = vmatprep.subr.bf16.mxu0 0
        %2910 = vmatpush1.bf16.msra.mxu0 %v2841
        %2911 = vmatprep.subr.bf16.mxu0 0
        %2912 = vmatpush1.bf16.msra.mxu0 %v2840
        %2913 = vmatprep.subr.bf16.mxu0 0
        %2914 = vmatpush1.bf16.msra.mxu0 %v2839
        %2915 = vmatprep.subr.bf16.mxu0 0
        %2916 = vmatpush1.bf16.msra.mxu0 %v2838
        %2917 = vmatprep.subr.bf16.mxu0 0
        %2918 = vmatpush1.bf16.msra.mxu0 %v2837
        %2919 = vmatprep.subr.bf16.mxu0 0
        %2920 = vmatpush1.bf16.msra.mxu0 %v2836
        %2921 = vmatprep.subr.bf16.mxu0 0
        %2922 = vmatpush1.bf16.msra.mxu0 %v2835
        %2923 = vmatprep.subr.bf16.mxu0 0
        %2924 = vmatpush2.bf16.msra.mxu0 0
        %2925 = vmatprep.subr.bf16.mxu0 0
        %2926 = vmatpush2.bf16.msra.mxu0 0
        %2927 = vmatprep.subr.bf16.mxu0 0
        %2928 = vmatpush2.bf16.msra.mxu0 0
        %2929 = vmatprep.subr.bf16.mxu0 0
        %2930 = vmatpush2.bf16.msra.mxu0 0
        %2931 = vmatprep.subr.bf16.mxu0 0
        %2932 = vmatpush2.bf16.msra.mxu0 0
        %2933 = vmatprep.subr.bf16.mxu0 0
        %2934 = vmatpush2.bf16.msra.mxu0 0
        %2935 = vmatprep.subr.bf16.mxu0 0
        %2936 = vmatpush2.bf16.msra.mxu0 0
        %2937 = vmatprep.subr.bf16.mxu0 0
        %2938 = vmatpush2.bf16.msra.mxu0 0
        %2939 = vmatprep.mubr.bf16.mxu0 0
        %2940 = vmatmul.mubr.bf16.gmra.mxu0 %v2715
        %v2941 = vpop.f32.mrf.mxu0
        %v2942 = vadd.f32 %v2902, %v2941
        %v2943 = vpop.f32.mrf.mxu0
        %v2944 = vpop.f32.mrf.mxu0
        %v2945 = vpop.f32.mrf.mxu0
        %2946 = vdwg.mxu0
        %v2947 = vmax.f32 %v2942, 0.0
        %v2948 = vld [vmem:[%s19] sm:$0xf]
        %v2949 = vld [vmem:[%s19 + $0x4] sm:$0xf]
        %v2950 = vld [vmem:[%s19 + $0x8] sm:$0xf]
        %v2951 = vpack.c.bf16 %v2947, %v2947
        %v2955 = vunpack.c.l.b16 %v2948
        %v2956 = vunpack.c.l.b16 %v2949
        %v2957 = vunpack.c.l.b16 %v2950
        %v2958 = vpack.c.b16 %v2956, %v2955
        %v2959 = vpack.c.b16 %v2957, %v2957
        %v2961 = vsel %vm2606, %v2958, 0
        %v2964 = vsel %vm2606, %v2959, 0
        %v2967 = vsel %vm2613, %v2951, 0
        %2969 = vmatprep.subr.bf16.mxu0 0
        %2970 = vmatpush1.bf16.msra.mxu0 0
        %2971 = vmatprep.subr.bf16.mxu0 0
        %2972 = vmatpush1.bf16.msra.mxu0 0
        %2973 = vmatprep.subr.bf16.mxu0 0
        %2974 = vmatpush1.bf16.msra.mxu0 0
        %2975 = vmatprep.subr.bf16.mxu0 0
        %2976 = vmatpush1.bf16.msra.mxu0 0
        %2977 = vmatprep.subr.bf16.mxu0 0
        %2978 = vmatpush1.bf16.msra.mxu0 0
        %2979 = vmatprep.subr.bf16.mxu0 0
        %2980 = vmatpush1.bf16.msra.mxu0 0
        %2981 = vmatprep.subr.bf16.mxu0 0
        %2982 = vmatpush1.bf16.msra.mxu0 0
        %2983 = vmatprep.subr.bf16.mxu0 0
        %2984 = vmatpush1.bf16.msra.mxu0 %v2967
        %2985 = vmatprep.subr.bf16.mxu0 0
        %2986 = vmatpush2.bf16.msra.mxu0 0
        %2987 = vmatprep.subr.bf16.mxu0 0
        %2988 = vmatpush2.bf16.msra.mxu0 0
        %2989 = vmatprep.subr.bf16.mxu0 0
        %2990 = vmatpush2.bf16.msra.mxu0 0
        %2991 = vmatprep.subr.bf16.mxu0 0
        %2992 = vmatpush2.bf16.msra.mxu0 0
        %2993 = vmatprep.subr.bf16.mxu0 0
        %2994 = vmatpush2.bf16.msra.mxu0 0
        %2995 = vmatprep.subr.bf16.mxu0 0
        %2996 = vmatpush2.bf16.msra.mxu0 0
        %2997 = vmatprep.subr.bf16.mxu0 0
        %2998 = vmatpush2.bf16.msra.mxu0 0
        %2999 = vmatprep.subr.bf16.mxu0 0
        %3000 = vmatpush2.bf16.msra.mxu0 0
        %3001 = vmatprep.mubr.bf16.mxu0 0
        %3002 = vmatmul.mubr.bf16.gmra.mxu0 %v2961
        %v3003 = vpop.f32.mrf.mxu0
        %v3004 = vadd.f32 0.0, %v3003
        %v3005 = vpop.f32.mrf.mxu0
        %v3006 = vpop.f32.mrf.mxu0
        %v3007 = vadd.f32 0.0, %v3006
        %v3008 = vpop.f32.mrf.mxu0
        %3009 = vmatprep.mubr.bf16.mxu0 0
        %3010 = vmatmul.mubr.bf16.gmra.mxu0 %v2964
        %v3011 = vpop.f32.mrf.mxu0
        %v3012 = vadd.f32 0.0, %v3011
        %v3013 = vpop.f32.mrf.mxu0
        %v3014 = vpop.f32.mrf.mxu0
        %v3015 = vpop.f32.mrf.mxu0
        %3016 = vdwg.mxu0
        %v3017 = vld [vmem:[#allocation7] sm:$0xf]
        %v3018 = vld [vmem:[#allocation7 + $0x4] sm:$0xf]
        %v3019 = vld [vmem:[#allocation7 + $0x8] sm:$0xf]
        %v3020 = vld [vmem:[#allocation7 + $0xc] sm:$0xf]
        %v3021 = vld [vmem:[#allocation7 + $0x10] sm:$0xf]
        %v3022 = vld [vmem:[#allocation7 + $0x14] sm:$0xf]
        %v3023 = vld [vmem:[#allocation7 + $0x18] sm:$0xf]
        %v3024 = vld [vmem:[#allocation7 + $0x1c] sm:$0xf]
        %v3025 = vld [vmem:[#allocation7 + $0x20] sm:$0xf]
        %v3026 = vld [vmem:[#allocation7 + $0x24] sm:$0xf]
        %v3027 = vld [vmem:[#allocation7 + $0x28] sm:$0xf]
        %v3028 = vld [vmem:[#allocation7 + $0x2c] sm:$0xf]
        %v3029 = vld [vmem:[#allocation7 + $0x30] sm:$0xf]
        %v3030 = vld [vmem:[#allocation7 + $0x34] sm:$0xf]
        %v3031 = vld [vmem:[#allocation7 + $0x38] sm:$0xf]
        %v3032 = vld [vmem:[#allocation7 + $0x3c] sm:$0xf]
        %v3033 = vld [vmem:[#allocation7 + $0x40] sm:$0xf]
        %v3034 = vld [vmem:[#allocation7 + $0x44] sm:$0xf]
        %v3035 = vld [vmem:[#allocation7 + $0x48] sm:$0xf]
        %v3036 = vld [vmem:[#allocation7 + $0x4c] sm:$0xf]
        %v3037 = vld [vmem:[#allocation7 + $0x50] sm:$0xf]
        %v3038 = vld [vmem:[#allocation7 + $0x54] sm:$0xf]
        %v3039 = vld [vmem:[#allocation7 + $0x58] sm:$0xf]
        %v3040 = vld [vmem:[#allocation7 + $0x5c] sm:$0xf]
        %v3041 = vld [vmem:[#allocation7 + $0x60] sm:$0xf]
        %v3042 = vld [vmem:[#allocation7 + $0x64] sm:$0xf]
        %v3043 = vld [vmem:[#allocation7 + $0x68] sm:$0xf]
        %v3044 = vld [vmem:[#allocation7 + $0x6c] sm:$0xf]
        %v3045 = vld [vmem:[#allocation7 + $0x70] sm:$0xf]
        %v3046 = vld [vmem:[#allocation7 + $0x74] sm:$0xf]
        %v3047 = vld [vmem:[#allocation7 + $0x78] sm:$0xf]
        %v3048 = vld [vmem:[#allocation7 + $0x7c] sm:$0xf]
        %v3049 = vld [vmem:[#allocation7 + $0x80] sm:$0xf]
        %v3050 = vld [vmem:[#allocation7 + $0x84] sm:$0xf]
        %v3051 = vld [vmem:[#allocation7 + $0x88] sm:$0xf]
        %v3052 = vld [vmem:[#allocation7 + $0x8c] sm:$0xf]
        %v3053 = vld [vmem:[#allocation7 + $0x90] sm:$0xf]
        %v3054 = vld [vmem:[#allocation7 + $0x94] sm:$0xf]
        %v3055 = vld [vmem:[#allocation7 + $0x98] sm:$0xf]
        %v3056 = vld [vmem:[#allocation7 + $0x9c] sm:$0xf]
        %v3057 = vld [vmem:[#allocation7 + $0xa0] sm:$0xf]
        %v3058 = vld [vmem:[#allocation7 + $0xa4] sm:$0xf]
        %v3059 = vld [vmem:[#allocation7 + $0xa8] sm:$0xf]
        %v3060 = vld [vmem:[#allocation7 + $0xac] sm:$0xf]
        %v3061 = vld [vmem:[#allocation7 + $0xb0] sm:$0xf]
        %v3062 = vld [vmem:[#allocation7 + $0xb4] sm:$0xf]
        %v3063 = vld [vmem:[#allocation7 + $0xb8] sm:$0xf]
        %v3064 = vld [vmem:[#allocation7 + $0xbc] sm:$0xf]
        %v3065 = vpack.c.bf16 %v3004, %v3004
        %v3066 = vpack.c.bf16 %v3007, %v3007
        %v3067 = vpack.c.bf16 %v3012, %v3012
        %v3068 = vld [vmem:[%s23] sm:$0x1]
        %v3070 = vlaneseq
        %v3071 = vshrl.u32 %v3070, 7
        %v3072 = vsub.s32 0, %v3071
        %v3073 = vrot.slane %v3068, %v3072
        %v3123 = vunpack.c.l.b16 %v3017
        %v3124 = vunpack.c.l.b16 %v3018
        %v3125 = vunpack.c.l.b16 %v3019
        %v3126 = vunpack.c.l.b16 %v3020
        %v3127 = vunpack.c.l.b16 %v3021
        %v3128 = vunpack.c.l.b16 %v3022
        %v3129 = vunpack.c.l.b16 %v3023
        %v3130 = vunpack.c.l.b16 %v3024
        %v3131 = vunpack.c.l.b16 %v3025
        %v3132 = vunpack.c.l.b16 %v3026
        %v3133 = vunpack.c.l.b16 %v3027
        %v3134 = vunpack.c.l.b16 %v3028
        %v3135 = vunpack.c.l.b16 %v3029
        %v3136 = vunpack.c.l.b16 %v3030
        %v3137 = vunpack.c.l.b16 %v3031
        %v3138 = vunpack.c.l.b16 %v3032
        %v3139 = vunpack.c.l.b16 %v3033
        %v3140 = vunpack.c.l.b16 %v3034
        %v3141 = vunpack.c.l.b16 %v3035
        %v3142 = vunpack.c.l.b16 %v3036
        %v3143 = vunpack.c.l.b16 %v3037
        %v3144 = vunpack.c.l.b16 %v3038
        %v3145 = vunpack.c.l.b16 %v3039
        %v3146 = vunpack.c.l.b16 %v3040
        %v3147 = vunpack.c.l.b16 %v3041
        %v3148 = vunpack.c.l.b16 %v3042
        %v3149 = vunpack.c.l.b16 %v3043
        %v3150 = vunpack.c.l.b16 %v3044
        %v3151 = vunpack.c.l.b16 %v3045
        %v3152 = vunpack.c.l.b16 %v3046
        %v3153 = vunpack.c.l.b16 %v3047
        %v3154 = vunpack.c.l.b16 %v3048
        %v3155 = vunpack.c.l.b16 %v3049
        %v3156 = vunpack.c.l.b16 %v3050
        %v3157 = vunpack.c.l.b16 %v3051
        %v3158 = vunpack.c.l.b16 %v3052
        %v3159 = vunpack.c.l.b16 %v3053
        %v3160 = vunpack.c.l.b16 %v3054
        %v3161 = vunpack.c.l.b16 %v3055
        %v3162 = vunpack.c.l.b16 %v3056
        %v3163 = vunpack.c.l.b16 %v3057
        %v3164 = vunpack.c.l.b16 %v3058
        %v3165 = vunpack.c.l.b16 %v3059
        %v3166 = vunpack.c.l.b16 %v3060
        %v3167 = vunpack.c.l.b16 %v3061
        %v3168 = vunpack.c.l.b16 %v3062
        %v3169 = vunpack.c.l.b16 %v3063
        %v3170 = vunpack.c.l.b16 %v3064
        %v3171 = vpack.c.b16 %v3124, %v3123
        %v3172 = vpack.c.b16 %v3126, %v3125
        %v3173 = vpack.c.b16 %v3128, %v3127
        %v3174 = vpack.c.b16 %v3130, %v3129
        %v3175 = vpack.c.b16 %v3132, %v3131
        %v3176 = vpack.c.b16 %v3134, %v3133
        %v3177 = vpack.c.b16 %v3136, %v3135
        %v3178 = vpack.c.b16 %v3138, %v3137
        %v3179 = vpack.c.b16 %v3140, %v3139
        %v3180 = vpack.c.b16 %v3142, %v3141
        %v3181 = vpack.c.b16 %v3144, %v3143
        %v3182 = vpack.c.b16 %v3146, %v3145
        %v3183 = vpack.c.b16 %v3148, %v3147
        %v3184 = vpack.c.b16 %v3150, %v3149
        %v3185 = vpack.c.b16 %v3152, %v3151
        %v3186 = vpack.c.b16 %v3154, %v3153
        %v3187 = vpack.c.b16 %v3156, %v3155
        %v3188 = vpack.c.b16 %v3158, %v3157
        %v3189 = vpack.c.b16 %v3160, %v3159
        %v3190 = vpack.c.b16 %v3162, %v3161
        %v3191 = vpack.c.b16 %v3164, %v3163
        %v3192 = vpack.c.b16 %v3166, %v3165
        %v3193 = vpack.c.b16 %v3168, %v3167
        %v3194 = vpack.c.b16 %v3170, %v3169
        %3219 = vmatprep.subr.bf16.mxu0 0
        %3220 = vmatpush1.bf16.msra.mxu0 %v3178
        %3221 = vmatprep.subr.bf16.mxu0 0
        %3222 = vmatpush1.bf16.msra.mxu0 %v3177
        %3223 = vmatprep.subr.bf16.mxu0 0
        %3224 = vmatpush1.bf16.msra.mxu0 %v3176
        %3225 = vmatprep.subr.bf16.mxu0 0
        %3226 = vmatpush1.bf16.msra.mxu0 %v3175
        %3227 = vmatprep.subr.bf16.mxu0 0
        %3228 = vmatpush1.bf16.msra.mxu0 %v3174
        %3229 = vmatprep.subr.bf16.mxu0 0
        %3230 = vmatpush1.bf16.msra.mxu0 %v3173
        %3231 = vmatprep.subr.bf16.mxu0 0
        %3232 = vmatpush1.bf16.msra.mxu0 %v3172
        %3233 = vmatprep.subr.bf16.mxu0 0
        %3234 = vmatpush1.bf16.msra.mxu0 %v3171
        %3235 = vmatprep.subr.bf16.mxu0 0
        %3236 = vmatpush2.bf16.msra.mxu0 %v3186
        %3237 = vmatprep.subr.bf16.mxu0 0
        %3238 = vmatpush2.bf16.msra.mxu0 %v3185
        %3239 = vmatprep.subr.bf16.mxu0 0
        %3240 = vmatpush2.bf16.msra.mxu0 %v3184
        %3241 = vmatprep.subr.bf16.mxu0 0
        %3242 = vmatpush2.bf16.msra.mxu0 %v3183
        %3243 = vmatprep.subr.bf16.mxu0 0
        %3244 = vmatpush2.bf16.msra.mxu0 %v3182
        %3245 = vmatprep.subr.bf16.mxu0 0
        %3246 = vmatpush2.bf16.msra.mxu0 %v3181
        %3247 = vmatprep.subr.bf16.mxu0 0
        %3248 = vmatpush2.bf16.msra.mxu0 %v3180
        %3249 = vmatprep.subr.bf16.mxu0 0
        %3250 = vmatpush2.bf16.msra.mxu0 %v3179
        %3251 = vmatprep.mubr.bf16.mxu0 %v3066
        %3252 = vmatmul.mubr.bf16.gmra.mxu0 %v3065
        %v3253 = vpop.f32.mrf.mxu0
        %v3254 = vadd.f32 %v3073, %v3253
        %v3255 = vpop.f32.mrf.mxu0
        %v3256 = vpop.f32.mrf.mxu0
        %v3257 = vpop.f32.mrf.mxu0
        %3258 = vdwg.mxu0
        %3259 = vmatprep.subr.bf16.mxu0 0
        %3260 = vmatpush1.bf16.msra.mxu0 %v3194
        %3261 = vmatprep.subr.bf16.mxu0 0
        %3262 = vmatpush1.bf16.msra.mxu0 %v3193
        %3263 = vmatprep.subr.bf16.mxu0 0
        %3264 = vmatpush1.bf16.msra.mxu0 %v3192
        %3265 = vmatprep.subr.bf16.mxu0 0
        %3266 = vmatpush1.bf16.msra.mxu0 %v3191
        %3267 = vmatprep.subr.bf16.mxu0 0
        %3268 = vmatpush1.bf16.msra.mxu0 %v3190
        %3269 = vmatprep.subr.bf16.mxu0 0
        %3270 = vmatpush1.bf16.msra.mxu0 %v3189
        %3271 = vmatprep.subr.bf16.mxu0 0
        %3272 = vmatpush1.bf16.msra.mxu0 %v3188
        %3273 = vmatprep.subr.bf16.mxu0 0
        %3274 = vmatpush1.bf16.msra.mxu0 %v3187
        %3275 = vmatprep.subr.bf16.mxu0 0
        %3276 = vmatpush2.bf16.msra.mxu0 0
        %3277 = vmatprep.subr.bf16.mxu0 0
        %3278 = vmatpush2.bf16.msra.mxu0 0
        %3279 = vmatprep.subr.bf16.mxu0 0
        %3280 = vmatpush2.bf16.msra.mxu0 0
        %3281 = vmatprep.subr.bf16.mxu0 0
        %3282 = vmatpush2.bf16.msra.mxu0 0
        %3283 = vmatprep.subr.bf16.mxu0 0
        %3284 = vmatpush2.bf16.msra.mxu0 0
        %3285 = vmatprep.subr.bf16.mxu0 0
        %3286 = vmatpush2.bf16.msra.mxu0 0
        %3287 = vmatprep.subr.bf16.mxu0 0
        %3288 = vmatpush2.bf16.msra.mxu0 0
        %3289 = vmatprep.subr.bf16.mxu0 0
        %3290 = vmatpush2.bf16.msra.mxu0 0
        %3291 = vmatprep.mubr.bf16.mxu0 0
        %3292 = vmatmul.mubr.bf16.gmra.mxu0 %v3067
        %v3293 = vpop.f32.mrf.mxu0
        %v3294 = vadd.f32 %v3254, %v3293
        %v3295 = vpop.f32.mrf.mxu0
        %v3296 = vpop.f32.mrf.mxu0
        %v3297 = vpop.f32.mrf.mxu0
        %3298 = vdwg.mxu0
        %v3299 = vmax.f32 %v3294, 0.0
        %v3300 = vld [vmem:[%s25] sm:$0xf]
        %v3301 = vld [vmem:[%s25 + $0x4] sm:$0xf]
        %v3302 = vld [vmem:[%s25 + $0x8] sm:$0xf]
        %v3303 = vld [vmem:[%s25 + $0xc] sm:$0xf]
        %v3304 = vld [vmem:[%s25 + $0x10] sm:$0xf]
        %v3305 = vld [vmem:[%s25 + $0x14] sm:$0xf]
        %v3306 = vld [vmem:[%s25 + $0x18] sm:$0xf]
        %v3307 = vld [vmem:[%s25 + $0x1c] sm:$0xf]
        %v3308 = vld [vmem:[%s25 + $0x20] sm:$0xf]
        %v3309 = vld [vmem:[%s25 + $0x24] sm:$0xf]
        %v3310 = vld [vmem:[%s25 + $0x28] sm:$0xf]
        %v3311 = vld [vmem:[%s25 + $0x2c] sm:$0xf]
        %v3312 = vld [vmem:[%s25 + $0x30] sm:$0xf]
        %v3313 = vld [vmem:[%s25 + $0x34] sm:$0xf]
        %v3314 = vld [vmem:[%s25 + $0x38] sm:$0xf]
        %v3315 = vld [vmem:[%s25 + $0x3c] sm:$0xf]
        %v3316 = vpack.c.bf16 %v3299, %v3299
        %v3317 = vld [vmem:[%s27] sm:$0x1]
        %v3319 = vlaneseq
        %v3320 = vshrl.u32 %v3319, 7
        %v3321 = vsub.s32 0, %v3320
        %v3322 = vrot.slane %v3317, %v3321
        %v3340 = vunpack.c.l.b16 %v3300
        %v3341 = vunpack.c.l.b16 %v3301
        %v3342 = vunpack.c.l.b16 %v3302
        %v3343 = vunpack.c.l.b16 %v3303
        %v3344 = vunpack.c.l.b16 %v3304
        %v3345 = vunpack.c.l.b16 %v3305
        %v3346 = vunpack.c.l.b16 %v3306
        %v3347 = vunpack.c.l.b16 %v3307
        %v3348 = vunpack.c.l.b16 %v3308
        %v3349 = vunpack.c.l.b16 %v3309
        %v3350 = vunpack.c.l.b16 %v3310
        %v3351 = vunpack.c.l.b16 %v3311
        %v3352 = vunpack.c.l.b16 %v3312
        %v3353 = vunpack.c.l.b16 %v3313
        %v3354 = vunpack.c.l.b16 %v3314
        %v3355 = vunpack.c.l.b16 %v3315
        %v3356 = vpack.c.b16 %v3341, %v3340
        %v3357 = vpack.c.b16 %v3343, %v3342
        %v3358 = vpack.c.b16 %v3345, %v3344
        %v3359 = vpack.c.b16 %v3347, %v3346
        %v3360 = vpack.c.b16 %v3349, %v3348
        %v3361 = vpack.c.b16 %v3351, %v3350
        %v3362 = vpack.c.b16 %v3353, %v3352
        %v3363 = vpack.c.b16 %v3355, %v3354
        %3372 = vmatprep.subr.bf16.mxu0 0
        %3373 = vmatpush1.bf16.msra.mxu0 %v3363
        %3374 = vmatprep.subr.bf16.mxu0 0
        %3375 = vmatpush1.bf16.msra.mxu0 %v3362
        %3376 = vmatprep.subr.bf16.mxu0 0
        %3377 = vmatpush1.bf16.msra.mxu0 %v3361
        %3378 = vmatprep.subr.bf16.mxu0 0
        %3379 = vmatpush1.bf16.msra.mxu0 %v3360
        %3380 = vmatprep.subr.bf16.mxu0 0
        %3381 = vmatpush1.bf16.msra.mxu0 %v3359
        %3382 = vmatprep.subr.bf16.mxu0 0
        %3383 = vmatpush1.bf16.msra.mxu0 %v3358
        %3384 = vmatprep.subr.bf16.mxu0 0
        %3385 = vmatpush1.bf16.msra.mxu0 %v3357
        %3386 = vmatprep.subr.bf16.mxu0 0
        %3387 = vmatpush1.bf16.msra.mxu0 %v3356
        %3388 = vmatprep.subr.bf16.mxu0 0
        %3389 = vmatpush2.bf16.msra.mxu0 0
        %3390 = vmatprep.subr.bf16.mxu0 0
        %3391 = vmatpush2.bf16.msra.mxu0 0
        %3392 = vmatprep.subr.bf16.mxu0 0
        %3393 = vmatpush2.bf16.msra.mxu0 0
        %3394 = vmatprep.subr.bf16.mxu0 0
        %3395 = vmatpush2.bf16.msra.mxu0 0
        %3396 = vmatprep.subr.bf16.mxu0 0
        %3397 = vmatpush2.bf16.msra.mxu0 0
        %3398 = vmatprep.subr.bf16.mxu0 0
        %3399 = vmatpush2.bf16.msra.mxu0 0
        %3400 = vmatprep.subr.bf16.mxu0 0
        %3401 = vmatpush2.bf16.msra.mxu0 0
        %3402 = vmatprep.subr.bf16.mxu0 0
        %3403 = vmatpush2.bf16.msra.mxu0 0
        %3404 = vmatprep.mubr.bf16.mxu0 0
        %3405 = vmatmul.mubr.bf16.gmra.mxu0 %v3316
        %v3406 = vpop.f32.mrf.mxu0
        %v3407 = vadd.f32 %v3322, %v3406
        %v3408 = vpop.f32.mrf.mxu0
        %v3409 = vpop.f32.mrf.mxu0
        %v3410 = vpop.f32.mrf.mxu0
        %3411 = vdwg.mxu0
        %v3412 = vmax.f32 %v3407, 0.0
        %v3413 = vld [vmem:[%s29] sm:$0x3]
        %v3414 = vpack.c.bf16 %v3412, %v3412
        %v3416 = vsel %vm2606, %v3413, 0
        %v3419 = vsel %vm2613, %v3414, 0
        %3421 = vmatprep.subr.bf16.mxu0 0
        %3422 = vmatpush1.bf16.msra.mxu0 0
        %3423 = vmatprep.subr.bf16.mxu0 0
        %3424 = vmatpush1.bf16.msra.mxu0 0
        %3425 = vmatprep.subr.bf16.mxu0 0
        %3426 = vmatpush1.bf16.msra.mxu0 0
        %3427 = vmatprep.subr.bf16.mxu0 0
        %3428 = vmatpush1.bf16.msra.mxu0 0
        %3429 = vmatprep.subr.bf16.mxu0 0
        %3430 = vmatpush1.bf16.msra.mxu0 0
        %3431 = vmatprep.subr.bf16.mxu0 0
        %3432 = vmatpush1.bf16.msra.mxu0 0
        %3433 = vmatprep.subr.bf16.mxu0 0
        %3434 = vmatpush1.bf16.msra.mxu0 0
        %3435 = vmatprep.subr.bf16.mxu0 0
        %3436 = vmatpush1.bf16.msra.mxu0 %v3419
        %3437 = vmatprep.subr.bf16.mxu0 0
        %3438 = vmatpush2.bf16.msra.mxu0 0
        %3439 = vmatprep.subr.bf16.mxu0 0
        %3440 = vmatpush2.bf16.msra.mxu0 0
        %3441 = vmatprep.subr.bf16.mxu0 0
        %3442 = vmatpush2.bf16.msra.mxu0 0
        %3443 = vmatprep.subr.bf16.mxu0 0
        %3444 = vmatpush2.bf16.msra.mxu0 0
        %3445 = vmatprep.subr.bf16.mxu0 0
        %3446 = vmatpush2.bf16.msra.mxu0 0
        %3447 = vmatprep.subr.bf16.mxu0 0
        %3448 = vmatpush2.bf16.msra.mxu0 0
        %3449 = vmatprep.subr.bf16.mxu0 0
        %3450 = vmatpush2.bf16.msra.mxu0 0
        %3451 = vmatprep.subr.bf16.mxu0 0
        %3452 = vmatpush2.bf16.msra.mxu0 0
        %3453 = vmatprep.mubr.bf16.mxu0 0
        %3454 = vmatmul.mubr.bf16.gmra.mxu0 %v3416
        %v3455 = vpop.f32.mrf.mxu0
        %v3456 = vadd.f32 0.0, %v3455
        %v3457 = vpop.f32.mrf.mxu0
        %v3458 = vpop.f32.mrf.mxu0
        %v3459 = vpop.f32.mrf.mxu0
        %3460 = vdwg.mxu0
        %v3461 = vld [vmem:[%s31] sm:$0xf]
        %v3462 = vld [vmem:[%s31 + $0x4] sm:$0xf]
        %v3463 = vld [vmem:[%s31 + $0x8] sm:$0xf]
        %v3464 = vld [vmem:[%s31 + $0xc] sm:$0xf]
        %v3465 = vld [vmem:[%s31 + $0x10] sm:$0xf]
        %v3466 = vld [vmem:[%s31 + $0x14] sm:$0xf]
        %v3467 = vld [vmem:[%s31 + $0x18] sm:$0xf]
        %v3468 = vld [vmem:[%s31 + $0x1c] sm:$0xf]
        %v3469 = vld [vmem:[%s31 + $0x20] sm:$0xf]
        %v3470 = vld [vmem:[%s31 + $0x24] sm:$0xf]
        %v3471 = vld [vmem:[%s31 + $0x28] sm:$0xf]
        %v3472 = vld [vmem:[%s31 + $0x2c] sm:$0xf]
        %v3473 = vld [vmem:[%s31 + $0x30] sm:$0xf]
        %v3474 = vld [vmem:[%s31 + $0x34] sm:$0xf]
        %v3475 = vld [vmem:[%s31 + $0x38] sm:$0xf]
        %v3476 = vld [vmem:[%s31 + $0x3c] sm:$0xf]
        %v3477 = vpack.c.bf16 %v3456, %v3456
        %v3494 = vunpack.c.l.b16 %v3461
        %v3495 = vunpack.c.l.b16 %v3462
        %v3496 = vunpack.c.l.b16 %v3463
        %v3497 = vunpack.c.l.b16 %v3464
        %v3498 = vunpack.c.l.b16 %v3465
        %v3499 = vunpack.c.l.b16 %v3466
        %v3500 = vunpack.c.l.b16 %v3467
        %v3501 = vunpack.c.l.b16 %v3468
        %v3502 = vunpack.c.l.b16 %v3469
        %v3503 = vunpack.c.l.b16 %v3470
        %v3504 = vunpack.c.l.b16 %v3471
        %v3505 = vunpack.c.l.b16 %v3472
        %v3506 = vunpack.c.l.b16 %v3473
        %v3507 = vunpack.c.l.b16 %v3474
        %v3508 = vunpack.c.l.b16 %v3475
        %v3509 = vunpack.c.l.b16 %v3476
        %v3510 = vpack.c.b16 %v3495, %v3494
        %v3511 = vpack.c.b16 %v3497, %v3496
        %v3512 = vpack.c.b16 %v3499, %v3498
        %v3513 = vpack.c.b16 %v3501, %v3500
        %v3514 = vpack.c.b16 %v3503, %v3502
        %v3515 = vpack.c.b16 %v3505, %v3504
        %v3516 = vpack.c.b16 %v3507, %v3506
        %v3517 = vpack.c.b16 %v3509, %v3508
        %3526 = vmatprep.subr.bf16.mxu0 0
        %3527 = vmatpush1.bf16.msra.mxu0 %v3517
        %3528 = vmatprep.subr.bf16.mxu0 0
        %3529 = vmatpush1.bf16.msra.mxu0 %v3516
        %3530 = vmatprep.subr.bf16.mxu0 0
        %3531 = vmatpush1.bf16.msra.mxu0 %v3515
        %3532 = vmatprep.subr.bf16.mxu0 0
        %3533 = vmatpush1.bf16.msra.mxu0 %v3514
        %3534 = vmatprep.subr.bf16.mxu0 0
        %3535 = vmatpush1.bf16.msra.mxu0 %v3513
        %3536 = vmatprep.subr.bf16.mxu0 0
        %3537 = vmatpush1.bf16.msra.mxu0 %v3512
        %3538 = vmatprep.subr.bf16.mxu0 0
        %3539 = vmatpush1.bf16.msra.mxu0 %v3511
        %3540 = vmatprep.subr.bf16.mxu0 0
        %3541 = vmatpush1.bf16.msra.mxu0 %v3510
        %3542 = vmatprep.subr.bf16.mxu0 0
        %3543 = vmatpush2.bf16.msra.mxu0 0
        %3544 = vmatprep.subr.bf16.mxu0 0
        %3545 = vmatpush2.bf16.msra.mxu0 0
        %3546 = vmatprep.subr.bf16.mxu0 0
        %3547 = vmatpush2.bf16.msra.mxu0 0
        %3548 = vmatprep.subr.bf16.mxu0 0
        %3549 = vmatpush2.bf16.msra.mxu0 0
        %3550 = vmatprep.subr.bf16.mxu0 0
        %3551 = vmatpush2.bf16.msra.mxu0 0
        %3552 = vmatprep.subr.bf16.mxu0 0
        %3553 = vmatpush2.bf16.msra.mxu0 0
        %3554 = vmatprep.subr.bf16.mxu0 0
        %3555 = vmatpush2.bf16.msra.mxu0 0
        %3556 = vmatprep.subr.bf16.mxu0 0
        %3557 = vmatpush2.bf16.msra.mxu0 0
        %3558 = vmatprep.mubr.bf16.mxu0 0
        %3559 = vmatmul.mubr.bf16.gmra.mxu0 %v3477
        %v3560 = vpop.f32.mrf.mxu0
        %v3561 = vadd.f32 0.0, %v3560
        %v3562 = vpop.f32.mrf.mxu0
        %v3563 = vpop.f32.mrf.mxu0
        %v3564 = vpop.f32.mrf.mxu0
        %3565 = vdwg.mxu0
        %v3566 = vld [vmem:[%s33] sm:$0x3]
        %v3567 = vpack.c.bf16 %v3561, %v3561
        %vm3568 = vcmask 31744
        %v3570 = vsel %vm3568, %v3566, 0
        %vm3572 = vcmask 1041408
        %v3574 = vsel %vm3572, %v3567, 0
        %3576 = vmatprep.subr.bf16.mxu0 0
        %3577 = vmatpush1.bf16.msra.mxu0 0
        %3578 = vmatprep.subr.bf16.mxu0 0
        %3579 = vmatpush1.bf16.msra.mxu0 0
        %3580 = vmatprep.subr.bf16.mxu0 0
        %3581 = vmatpush1.bf16.msra.mxu0 0
        %3582 = vmatprep.subr.bf16.mxu0 0
        %3583 = vmatpush1.bf16.msra.mxu0 0
        %3584 = vmatprep.subr.bf16.mxu0 0
        %3585 = vmatpush1.bf16.msra.mxu0 0
        %3586 = vmatprep.subr.bf16.mxu0 0
        %3587 = vmatpush1.bf16.msra.mxu0 0
        %3588 = vmatprep.subr.bf16.mxu0 0
        %3589 = vmatpush1.bf16.msra.mxu0 0
        %3590 = vmatprep.subr.bf16.mxu0 0
        %3591 = vmatpush1.bf16.msra.mxu0 %v3574
        %3592 = vmatprep.subr.bf16.mxu0 0
        %3593 = vmatpush2.bf16.msra.mxu0 0
        %3594 = vmatprep.subr.bf16.mxu0 0
        %3595 = vmatpush2.bf16.msra.mxu0 0
        %3596 = vmatprep.subr.bf16.mxu0 0
        %3597 = vmatpush2.bf16.msra.mxu0 0
        %3598 = vmatprep.subr.bf16.mxu0 0
        %3599 = vmatpush2.bf16.msra.mxu0 0
        %3600 = vmatprep.subr.bf16.mxu0 0
        %3601 = vmatpush2.bf16.msra.mxu0 0
        %3602 = vmatprep.subr.bf16.mxu0 0
        %3603 = vmatpush2.bf16.msra.mxu0 0
        %3604 = vmatprep.subr.bf16.mxu0 0
        %3605 = vmatpush2.bf16.msra.mxu0 0
        %3606 = vmatprep.subr.bf16.mxu0 0
        %3607 = vmatpush2.bf16.msra.mxu0 0
        %3608 = vmatprep.mubr.bf16.mxu0 0
        %3609 = vmatmul.mubr.bf16.gmra.mxu0 %v3570
        %v3610 = vpop.f32.mrf.mxu0
        %v3611 = vadd.f32 0.0, %v3610
        %v3612 = vpop.f32.mrf.mxu0
        %v3613 = vpop.f32.mrf.mxu0
        %v3614 = vpop.f32.mrf.mxu0
        %3615 = vdwg.mxu0
        %s3616 = scalar_lea.vmem %s33, 2
        %v3617 = vld [vmem:[%s3616] sm:$0x3]
        %v3619 = vsel %vm3568, %v3617, 0
        %3621 = vmatprep.subr.bf16.mxu0 0
        %3622 = vmatpush1.bf16.msra.mxu0 0
        %3623 = vmatprep.subr.bf16.mxu0 0
        %3624 = vmatpush1.bf16.msra.mxu0 0
        %3625 = vmatprep.subr.bf16.mxu0 0
        %3626 = vmatpush1.bf16.msra.mxu0 0
        %3627 = vmatprep.subr.bf16.mxu0 0
        %3628 = vmatpush1.bf16.msra.mxu0 0
        %3629 = vmatprep.subr.bf16.mxu0 0
        %3630 = vmatpush1.bf16.msra.mxu0 0
        %3631 = vmatprep.subr.bf16.mxu0 0
        %3632 = vmatpush1.bf16.msra.mxu0 0
        %3633 = vmatprep.subr.bf16.mxu0 0
        %3634 = vmatpush1.bf16.msra.mxu0 0
        %3635 = vmatprep.subr.bf16.mxu0 0
        %3636 = vmatpush1.bf16.msra.mxu0 %v3574
        %3637 = vmatprep.subr.bf16.mxu0 0
        %3638 = vmatpush2.bf16.msra.mxu0 0
        %3639 = vmatprep.subr.bf16.mxu0 0
        %3640 = vmatpush2.bf16.msra.mxu0 0
        %3641 = vmatprep.subr.bf16.mxu0 0
        %3642 = vmatpush2.bf16.msra.mxu0 0
        %3643 = vmatprep.subr.bf16.mxu0 0
        %3644 = vmatpush2.bf16.msra.mxu0 0
        %3645 = vmatprep.subr.bf16.mxu0 0
        %3646 = vmatpush2.bf16.msra.mxu0 0
        %3647 = vmatprep.subr.bf16.mxu0 0
        %3648 = vmatpush2.bf16.msra.mxu0 0
        %3649 = vmatprep.subr.bf16.mxu0 0
        %3650 = vmatpush2.bf16.msra.mxu0 0
        %3651 = vmatprep.subr.bf16.mxu0 0
        %3652 = vmatpush2.bf16.msra.mxu0 0
        %3653 = vmatprep.mubr.bf16.mxu0 0
        %3654 = vmatmul.mubr.bf16.gmra.mxu0 %v3619
        %v3655 = vpop.f32.mrf.mxu0
        %v3656 = vadd.f32 0.0, %v3655
        %v3657 = vpop.f32.mrf.mxu0
        %v3658 = vpop.f32.mrf.mxu0
        %v3659 = vpop.f32.mrf.mxu0
        %3660 = vdwg.mxu0
        %s3661 = scalar_lea.vmem %s33, 4
        %v3662 = vld [vmem:[%s3661] sm:$0x3]
        %v3664 = vsel %vm3568, %v3662, 0
        %3666 = vmatprep.subr.bf16.mxu0 0
        %3667 = vmatpush1.bf16.msra.mxu0 0
        %3668 = vmatprep.subr.bf16.mxu0 0
        %3669 = vmatpush1.bf16.msra.mxu0 0
        %3670 = vmatprep.subr.bf16.mxu0 0
        %3671 = vmatpush1.bf16.msra.mxu0 0
        %3672 = vmatprep.subr.bf16.mxu0 0
        %3673 = vmatpush1.bf16.msra.mxu0 0
        %3674 = vmatprep.subr.bf16.mxu0 0
        %3675 = vmatpush1.bf16.msra.mxu0 0
        %3676 = vmatprep.subr.bf16.mxu0 0
        %3677 = vmatpush1.bf16.msra.mxu0 0
        %3678 = vmatprep.subr.bf16.mxu0 0
        %3679 = vmatpush1.bf16.msra.mxu0 0
        %3680 = vmatprep.subr.bf16.mxu0 0
        %3681 = vmatpush1.bf16.msra.mxu0 %v3574
        %3682 = vmatprep.subr.bf16.mxu0 0
        %3683 = vmatpush2.bf16.msra.mxu0 0
        %3684 = vmatprep.subr.bf16.mxu0 0
        %3685 = vmatpush2.bf16.msra.mxu0 0
        %3686 = vmatprep.subr.bf16.mxu0 0
        %3687 = vmatpush2.bf16.msra.mxu0 0
        %3688 = vmatprep.subr.bf16.mxu0 0
        %3689 = vmatpush2.bf16.msra.mxu0 0
        %3690 = vmatprep.subr.bf16.mxu0 0
        %3691 = vmatpush2.bf16.msra.mxu0 0
        %3692 = vmatprep.subr.bf16.mxu0 0
        %3693 = vmatpush2.bf16.msra.mxu0 0
        %3694 = vmatprep.subr.bf16.mxu0 0
        %3695 = vmatpush2.bf16.msra.mxu0 0
        %3696 = vmatprep.subr.bf16.mxu0 0
        %3697 = vmatpush2.bf16.msra.mxu0 0
        %3698 = vmatprep.mubr.bf16.mxu0 0
        %3699 = vmatmul.mubr.bf16.gmra.mxu0 %v3664
        %v3700 = vpop.f32.mrf.mxu0
        %v3701 = vadd.f32 0.0, %v3700
        %v3702 = vpop.f32.mrf.mxu0
        %v3703 = vpop.f32.mrf.mxu0
        %v3704 = vpop.f32.mrf.mxu0
        %3705 = vdwg.mxu0
        %v3706 = vld [vmem:[#allocation8] sm:$0xf]
        %v3707 = vld [vmem:[#allocation8 + $0x4] sm:$0xf]
        %v3708 = vld [vmem:[#allocation8 + $0x8] sm:$0xf]
        %v3709 = vld [vmem:[#allocation8 + $0xc] sm:$0xf]
        %v3710 = vld [vmem:[#allocation8 + $0x10] sm:$0xf]
        %v3711 = vld [vmem:[#allocation8 + $0x14] sm:$0xf]
        %v3712 = vld [vmem:[#allocation8 + $0x18] sm:$0xf]
        %v3713 = vld [vmem:[#allocation8 + $0x1c] sm:$0xf]
        %v3714 = vld [vmem:[#allocation8 + $0x20] sm:$0xf]
        %v3715 = vld [vmem:[#allocation8 + $0x24] sm:$0xf]
        %v3716 = vld [vmem:[#allocation8 + $0x28] sm:$0xf]
        %v3717 = vld [vmem:[#allocation8 + $0x2c] sm:$0xf]
        %v3718 = vld [vmem:[#allocation8 + $0x30] sm:$0xf]
        %v3719 = vld [vmem:[#allocation8 + $0x34] sm:$0xf]
        %v3720 = vld [vmem:[#allocation8 + $0x38] sm:$0xf]
        %v3721 = vld [vmem:[#allocation8 + $0x3c] sm:$0xf]
        %v3722 = vld [vmem:[#allocation8 + $0x40] sm:$0xf]
        %v3723 = vld [vmem:[#allocation8 + $0x44] sm:$0xf]
        %v3724 = vld [vmem:[#allocation8 + $0x48] sm:$0xf]
        %v3725 = vld [vmem:[#allocation8 + $0x4c] sm:$0xf]
        %v3726 = vld [vmem:[#allocation8 + $0x50] sm:$0xf]
        %v3727 = vld [vmem:[#allocation8 + $0x54] sm:$0xf]
        %v3728 = vld [vmem:[#allocation8 + $0x58] sm:$0xf]
        %v3729 = vld [vmem:[#allocation8 + $0x5c] sm:$0xf]
        %v3730 = vld [vmem:[#allocation8 + $0x60] sm:$0xf]
        %v3731 = vld [vmem:[#allocation8 + $0x64] sm:$0xf]
        %v3732 = vld [vmem:[#allocation8 + $0x68] sm:$0xf]
        %v3733 = vld [vmem:[#allocation8 + $0x6c] sm:$0xf]
        %v3734 = vld [vmem:[#allocation8 + $0x70] sm:$0xf]
        %v3735 = vld [vmem:[#allocation8 + $0x74] sm:$0xf]
        %v3736 = vld [vmem:[#allocation8 + $0x78] sm:$0xf]
        %v3737 = vld [vmem:[#allocation8 + $0x7c] sm:$0xf]
        %v3738 = vld [vmem:[#allocation8 + $0x80] sm:$0xf]
        %v3739 = vld [vmem:[#allocation8 + $0x84] sm:$0xf]
        %v3740 = vld [vmem:[#allocation8 + $0x88] sm:$0xf]
        %v3741 = vld [vmem:[#allocation8 + $0x8c] sm:$0xf]
        %v3742 = vld [vmem:[#allocation8 + $0x90] sm:$0xf]
        %v3743 = vld [vmem:[#allocation8 + $0x94] sm:$0xf]
        %v3744 = vld [vmem:[#allocation8 + $0x98] sm:$0xf]
        %v3745 = vld [vmem:[#allocation8 + $0x9c] sm:$0xf]
        %v3746 = vld [vmem:[#allocation8 + $0xa0] sm:$0xf]
        %v3747 = vld [vmem:[#allocation8 + $0xa4] sm:$0xf]
        %v3748 = vld [vmem:[#allocation8 + $0xa8] sm:$0xf]
        %v3749 = vld [vmem:[#allocation8 + $0xac] sm:$0xf]
        %v3750 = vld [vmem:[#allocation8 + $0xb0] sm:$0xf]
        %v3751 = vld [vmem:[#allocation8 + $0xb4] sm:$0xf]
        %v3752 = vld [vmem:[#allocation8 + $0xb8] sm:$0xf]
        %v3753 = vld [vmem:[#allocation8 + $0xbc] sm:$0xf]
        %v3754 = vpack.c.bf16 %v3611, %v3611
        %v3755 = vpack.c.bf16 %v3656, %v3656
        %v3756 = vpack.c.bf16 %v3701, %v3701
        %v3757 = vld [vmem:[%s37] sm:$0x1]
        %v3759 = vlaneseq
        %v3760 = vshrl.u32 %v3759, 7
        %v3761 = vsub.s32 0, %v3760
        %v3762 = vrot.slane %v3757, %v3761
        %v3812 = vunpack.c.l.b16 %v3706
        %v3813 = vunpack.c.l.b16 %v3707
        %v3814 = vunpack.c.l.b16 %v3708
        %v3815 = vunpack.c.l.b16 %v3709
        %v3816 = vunpack.c.l.b16 %v3710
        %v3817 = vunpack.c.l.b16 %v3711
        %v3818 = vunpack.c.l.b16 %v3712
        %v3819 = vunpack.c.l.b16 %v3713
        %v3820 = vunpack.c.l.b16 %v3714
        %v3821 = vunpack.c.l.b16 %v3715
        %v3822 = vunpack.c.l.b16 %v3716
        %v3823 = vunpack.c.l.b16 %v3717
        %v3824 = vunpack.c.l.b16 %v3718
        %v3825 = vunpack.c.l.b16 %v3719
        %v3826 = vunpack.c.l.b16 %v3720
        %v3827 = vunpack.c.l.b16 %v3721
        %v3828 = vunpack.c.l.b16 %v3722
        %v3829 = vunpack.c.l.b16 %v3723
        %v3830 = vunpack.c.l.b16 %v3724
        %v3831 = vunpack.c.l.b16 %v3725
        %v3832 = vunpack.c.l.b16 %v3726
        %v3833 = vunpack.c.l.b16 %v3727
        %v3834 = vunpack.c.l.b16 %v3728
        %v3835 = vunpack.c.l.b16 %v3729
        %v3836 = vunpack.c.l.b16 %v3730
        %v3837 = vunpack.c.l.b16 %v3731
        %v3838 = vunpack.c.l.b16 %v3732
        %v3839 = vunpack.c.l.b16 %v3733
        %v3840 = vunpack.c.l.b16 %v3734
        %v3841 = vunpack.c.l.b16 %v3735
        %v3842 = vunpack.c.l.b16 %v3736
        %v3843 = vunpack.c.l.b16 %v3737
        %v3844 = vunpack.c.l.b16 %v3738
        %v3845 = vunpack.c.l.b16 %v3739
        %v3846 = vunpack.c.l.b16 %v3740
        %v3847 = vunpack.c.l.b16 %v3741
        %v3848 = vunpack.c.l.b16 %v3742
        %v3849 = vunpack.c.l.b16 %v3743
        %v3850 = vunpack.c.l.b16 %v3744
        %v3851 = vunpack.c.l.b16 %v3745
        %v3852 = vunpack.c.l.b16 %v3746
        %v3853 = vunpack.c.l.b16 %v3747
        %v3854 = vunpack.c.l.b16 %v3748
        %v3855 = vunpack.c.l.b16 %v3749
        %v3856 = vunpack.c.l.b16 %v3750
        %v3857 = vunpack.c.l.b16 %v3751
        %v3858 = vunpack.c.l.b16 %v3752
        %v3859 = vunpack.c.l.b16 %v3753
        %v3860 = vpack.c.b16 %v3813, %v3812
        %v3861 = vpack.c.b16 %v3815, %v3814
        %v3862 = vpack.c.b16 %v3817, %v3816
        %v3863 = vpack.c.b16 %v3819, %v3818
        %v3864 = vpack.c.b16 %v3821, %v3820
        %v3865 = vpack.c.b16 %v3823, %v3822
        %v3866 = vpack.c.b16 %v3825, %v3824
        %v3867 = vpack.c.b16 %v3827, %v3826
        %v3868 = vpack.c.b16 %v3829, %v3828
        %v3869 = vpack.c.b16 %v3831, %v3830
        %v3870 = vpack.c.b16 %v3833, %v3832
        %v3871 = vpack.c.b16 %v3835, %v3834
        %v3872 = vpack.c.b16 %v3837, %v3836
        %v3873 = vpack.c.b16 %v3839, %v3838
        %v3874 = vpack.c.b16 %v3841, %v3840
        %v3875 = vpack.c.b16 %v3843, %v3842
        %v3876 = vpack.c.b16 %v3845, %v3844
        %v3877 = vpack.c.b16 %v3847, %v3846
        %v3878 = vpack.c.b16 %v3849, %v3848
        %v3879 = vpack.c.b16 %v3851, %v3850
        %v3880 = vpack.c.b16 %v3853, %v3852
        %v3881 = vpack.c.b16 %v3855, %v3854
        %v3882 = vpack.c.b16 %v3857, %v3856
        %v3883 = vpack.c.b16 %v3859, %v3858
        %3908 = vmatprep.subr.bf16.mxu0 0
        %3909 = vmatpush1.bf16.msra.mxu0 %v3867
        %3910 = vmatprep.subr.bf16.mxu0 0
        %3911 = vmatpush1.bf16.msra.mxu0 %v3866
        %3912 = vmatprep.subr.bf16.mxu0 0
        %3913 = vmatpush1.bf16.msra.mxu0 %v3865
        %3914 = vmatprep.subr.bf16.mxu0 0
        %3915 = vmatpush1.bf16.msra.mxu0 %v3864
        %3916 = vmatprep.subr.bf16.mxu0 0
        %3917 = vmatpush1.bf16.msra.mxu0 %v3863
        %3918 = vmatprep.subr.bf16.mxu0 0
        %3919 = vmatpush1.bf16.msra.mxu0 %v3862
        %3920 = vmatprep.subr.bf16.mxu0 0
        %3921 = vmatpush1.bf16.msra.mxu0 %v3861
        %3922 = vmatprep.subr.bf16.mxu0 0
        %3923 = vmatpush1.bf16.msra.mxu0 %v3860
        %3924 = vmatprep.subr.bf16.mxu0 0
        %3925 = vmatpush2.bf16.msra.mxu0 %v3875
        %3926 = vmatprep.subr.bf16.mxu0 0
        %3927 = vmatpush2.bf16.msra.mxu0 %v3874
        %3928 = vmatprep.subr.bf16.mxu0 0
        %3929 = vmatpush2.bf16.msra.mxu0 %v3873
        %3930 = vmatprep.subr.bf16.mxu0 0
        %3931 = vmatpush2.bf16.msra.mxu0 %v3872
        %3932 = vmatprep.subr.bf16.mxu0 0
        %3933 = vmatpush2.bf16.msra.mxu0 %v3871
        %3934 = vmatprep.subr.bf16.mxu0 0
        %3935 = vmatpush2.bf16.msra.mxu0 %v3870
        %3936 = vmatprep.subr.bf16.mxu0 0
        %3937 = vmatpush2.bf16.msra.mxu0 %v3869
        %3938 = vmatprep.subr.bf16.mxu0 0
        %3939 = vmatpush2.bf16.msra.mxu0 %v3868
        %3940 = vmatprep.mubr.bf16.mxu0 %v3755
        %3941 = vmatmul.mubr.bf16.gmra.mxu0 %v3754
        %v3942 = vpop.f32.mrf.mxu0
        %v3943 = vadd.f32 %v3762, %v3942
        %v3944 = vpop.f32.mrf.mxu0
        %v3945 = vpop.f32.mrf.mxu0
        %v3946 = vpop.f32.mrf.mxu0
        %3947 = vdwg.mxu0
        %3948 = vmatprep.subr.bf16.mxu0 0
        %3949 = vmatpush1.bf16.msra.mxu0 %v3883
        %3950 = vmatprep.subr.bf16.mxu0 0
        %3951 = vmatpush1.bf16.msra.mxu0 %v3882
        %3952 = vmatprep.subr.bf16.mxu0 0
        %3953 = vmatpush1.bf16.msra.mxu0 %v3881
        %3954 = vmatprep.subr.bf16.mxu0 0
        %3955 = vmatpush1.bf16.msra.mxu0 %v3880
        %3956 = vmatprep.subr.bf16.mxu0 0
        %3957 = vmatpush1.bf16.msra.mxu0 %v3879
        %3958 = vmatprep.subr.bf16.mxu0 0
        %3959 = vmatpush1.bf16.msra.mxu0 %v3878
        %3960 = vmatprep.subr.bf16.mxu0 0
        %3961 = vmatpush1.bf16.msra.mxu0 %v3877
        %3962 = vmatprep.subr.bf16.mxu0 0
        %3963 = vmatpush1.bf16.msra.mxu0 %v3876
        %3964 = vmatprep.subr.bf16.mxu0 0
        %3965 = vmatpush2.bf16.msra.mxu0 0
        %3966 = vmatprep.subr.bf16.mxu0 0
        %3967 = vmatpush2.bf16.msra.mxu0 0
        %3968 = vmatprep.subr.bf16.mxu0 0
        %3969 = vmatpush2.bf16.msra.mxu0 0
        %3970 = vmatprep.subr.bf16.mxu0 0
        %3971 = vmatpush2.bf16.msra.mxu0 0
        %3972 = vmatprep.subr.bf16.mxu0 0
        %3973 = vmatpush2.bf16.msra.mxu0 0
        %3974 = vmatprep.subr.bf16.mxu0 0
        %3975 = vmatpush2.bf16.msra.mxu0 0
        %3976 = vmatprep.subr.bf16.mxu0 0
        %3977 = vmatpush2.bf16.msra.mxu0 0
        %3978 = vmatprep.subr.bf16.mxu0 0
        %3979 = vmatpush2.bf16.msra.mxu0 0
        %3980 = vmatprep.mubr.bf16.mxu0 0
        %3981 = vmatmul.mubr.bf16.gmra.mxu0 %v3756
        %v3982 = vpop.f32.mrf.mxu0
        %v3983 = vadd.f32 %v3943, %v3982
        %v3984 = vpop.f32.mrf.mxu0
        %v3985 = vpop.f32.mrf.mxu0
        %v3986 = vpop.f32.mrf.mxu0
        %3987 = vdwg.mxu0
        %v3988 = vmax.f32 %v3983, 0.0
        %v3989 = vld [vmem:[%s39] sm:$0x3]
        %v3990 = vpack.c.bf16 %v3988, %v3988
        %v3992 = vsel %vm3568, %v3989, 0
        %v3995 = vsel %vm3572, %v3990, 0
        %3997 = vmatprep.subr.bf16.mxu0 0
        %3998 = vmatpush1.bf16.msra.mxu0 0
        %3999 = vmatprep.subr.bf16.mxu0 0
        %4000 = vmatpush1.bf16.msra.mxu0 0
        %4001 = vmatprep.subr.bf16.mxu0 0
        %4002 = vmatpush1.bf16.msra.mxu0 0
        %4003 = vmatprep.subr.bf16.mxu0 0
        %4004 = vmatpush1.bf16.msra.mxu0 0
        %4005 = vmatprep.subr.bf16.mxu0 0
        %4006 = vmatpush1.bf16.msra.mxu0 0
        %4007 = vmatprep.subr.bf16.mxu0 0
        %4008 = vmatpush1.bf16.msra.mxu0 0
        %4009 = vmatprep.subr.bf16.mxu0 0
        %4010 = vmatpush1.bf16.msra.mxu0 0
        %4011 = vmatprep.subr.bf16.mxu0 0
        %4012 = vmatpush1.bf16.msra.mxu0 %v3995
        %4013 = vmatprep.subr.bf16.mxu0 0
        %4014 = vmatpush2.bf16.msra.mxu0 0
        %4015 = vmatprep.subr.bf16.mxu0 0
        %4016 = vmatpush2.bf16.msra.mxu0 0
        %4017 = vmatprep.subr.bf16.mxu0 0
        %4018 = vmatpush2.bf16.msra.mxu0 0
        %4019 = vmatprep.subr.bf16.mxu0 0
        %4020 = vmatpush2.bf16.msra.mxu0 0
        %4021 = vmatprep.subr.bf16.mxu0 0
        %4022 = vmatpush2.bf16.msra.mxu0 0
        %4023 = vmatprep.subr.bf16.mxu0 0
        %4024 = vmatpush2.bf16.msra.mxu0 0
        %4025 = vmatprep.subr.bf16.mxu0 0
        %4026 = vmatpush2.bf16.msra.mxu0 0
        %4027 = vmatprep.subr.bf16.mxu0 0
        %4028 = vmatpush2.bf16.msra.mxu0 0
        %4029 = vmatprep.mubr.bf16.mxu0 0
        %4030 = vmatmul.mubr.bf16.gmra.mxu0 %v3992
        %v4031 = vpop.f32.mrf.mxu0
        %v4032 = vadd.f32 0.0, %v4031
        %v4033 = vpop.f32.mrf.mxu0
        %v4034 = vpop.f32.mrf.mxu0
        %v4035 = vpop.f32.mrf.mxu0
        %4036 = vdwg.mxu0
        %s4037 = scalar_lea.vmem %s39, 2
        %v4038 = vld [vmem:[%s4037] sm:$0x3]
        %v4040 = vsel %vm3568, %v4038, 0
        %4042 = vmatprep.subr.bf16.mxu0 0
        %4043 = vmatpush1.bf16.msra.mxu0 0
        %4044 = vmatprep.subr.bf16.mxu0 0
        %4045 = vmatpush1.bf16.msra.mxu0 0
        %4046 = vmatprep.subr.bf16.mxu0 0
        %4047 = vmatpush1.bf16.msra.mxu0 0
        %4048 = vmatprep.subr.bf16.mxu0 0
        %4049 = vmatpush1.bf16.msra.mxu0 0
        %4050 = vmatprep.subr.bf16.mxu0 0
        %4051 = vmatpush1.bf16.msra.mxu0 0
        %4052 = vmatprep.subr.bf16.mxu0 0
        %4053 = vmatpush1.bf16.msra.mxu0 0
        %4054 = vmatprep.subr.bf16.mxu0 0
        %4055 = vmatpush1.bf16.msra.mxu0 0
        %4056 = vmatprep.subr.bf16.mxu0 0
        %4057 = vmatpush1.bf16.msra.mxu0 %v3995
        %4058 = vmatprep.subr.bf16.mxu0 0
        %4059 = vmatpush2.bf16.msra.mxu0 0
        %4060 = vmatprep.subr.bf16.mxu0 0
        %4061 = vmatpush2.bf16.msra.mxu0 0
        %4062 = vmatprep.subr.bf16.mxu0 0
        %4063 = vmatpush2.bf16.msra.mxu0 0
        %4064 = vmatprep.subr.bf16.mxu0 0
        %4065 = vmatpush2.bf16.msra.mxu0 0
        %4066 = vmatprep.subr.bf16.mxu0 0
        %4067 = vmatpush2.bf16.msra.mxu0 0
        %4068 = vmatprep.subr.bf16.mxu0 0
        %4069 = vmatpush2.bf16.msra.mxu0 0
        %4070 = vmatprep.subr.bf16.mxu0 0
        %4071 = vmatpush2.bf16.msra.mxu0 0
        %4072 = vmatprep.subr.bf16.mxu0 0
        %4073 = vmatpush2.bf16.msra.mxu0 0
        %4074 = vmatprep.mubr.bf16.mxu0 0
        %4075 = vmatmul.mubr.bf16.gmra.mxu0 %v4040
        %v4076 = vpop.f32.mrf.mxu0
        %v4077 = vadd.f32 0.0, %v4076
        %v4078 = vpop.f32.mrf.mxu0
        %v4079 = vpop.f32.mrf.mxu0
        %v4080 = vpop.f32.mrf.mxu0
        %4081 = vdwg.mxu0
        %s4082 = scalar_lea.vmem %s39, 4
        %v4083 = vld [vmem:[%s4082] sm:$0x3]
        %v4085 = vsel %vm3568, %v4083, 0
        %4087 = vmatprep.subr.bf16.mxu0 0
        %4088 = vmatpush1.bf16.msra.mxu0 0
        %4089 = vmatprep.subr.bf16.mxu0 0
        %4090 = vmatpush1.bf16.msra.mxu0 0
        %4091 = vmatprep.subr.bf16.mxu0 0
        %4092 = vmatpush1.bf16.msra.mxu0 0
        %4093 = vmatprep.subr.bf16.mxu0 0
        %4094 = vmatpush1.bf16.msra.mxu0 0
        %4095 = vmatprep.subr.bf16.mxu0 0
        %4096 = vmatpush1.bf16.msra.mxu0 0
        %4097 = vmatprep.subr.bf16.mxu0 0
        %4098 = vmatpush1.bf16.msra.mxu0 0
        %4099 = vmatprep.subr.bf16.mxu0 0
        %4100 = vmatpush1.bf16.msra.mxu0 0
        %4101 = vmatprep.subr.bf16.mxu0 0
        %4102 = vmatpush1.bf16.msra.mxu0 %v3995
        %4103 = vmatprep.subr.bf16.mxu0 0
        %4104 = vmatpush2.bf16.msra.mxu0 0
        %4105 = vmatprep.subr.bf16.mxu0 0
        %4106 = vmatpush2.bf16.msra.mxu0 0
        %4107 = vmatprep.subr.bf16.mxu0 0
        %4108 = vmatpush2.bf16.msra.mxu0 0
        %4109 = vmatprep.subr.bf16.mxu0 0
        %4110 = vmatpush2.bf16.msra.mxu0 0
        %4111 = vmatprep.subr.bf16.mxu0 0
        %4112 = vmatpush2.bf16.msra.mxu0 0
        %4113 = vmatprep.subr.bf16.mxu0 0
        %4114 = vmatpush2.bf16.msra.mxu0 0
        %4115 = vmatprep.subr.bf16.mxu0 0
        %4116 = vmatpush2.bf16.msra.mxu0 0
        %4117 = vmatprep.subr.bf16.mxu0 0
        %4118 = vmatpush2.bf16.msra.mxu0 0
        %4119 = vmatprep.mubr.bf16.mxu0 0
        %4120 = vmatmul.mubr.bf16.gmra.mxu0 %v4085
        %v4121 = vpop.f32.mrf.mxu0
        %v4122 = vadd.f32 0.0, %v4121
        %v4123 = vpop.f32.mrf.mxu0
        %v4124 = vpop.f32.mrf.mxu0
        %v4125 = vpop.f32.mrf.mxu0
        %4126 = vdwg.mxu0
        %v4127 = vld [vmem:[#allocation10] sm:$0xf]
        %v4128 = vld [vmem:[#allocation10 + $0x4] sm:$0xf]
        %v4129 = vld [vmem:[#allocation10 + $0x8] sm:$0xf]
        %v4130 = vld [vmem:[#allocation10 + $0xc] sm:$0xf]
        %v4131 = vld [vmem:[#allocation10 + $0x10] sm:$0xf]
        %v4132 = vld [vmem:[#allocation10 + $0x14] sm:$0xf]
        %v4133 = vld [vmem:[#allocation10 + $0x18] sm:$0xf]
        %v4134 = vld [vmem:[#allocation10 + $0x1c] sm:$0xf]
        %v4135 = vld [vmem:[#allocation10 + $0x20] sm:$0xf]
        %v4136 = vld [vmem:[#allocation10 + $0x24] sm:$0xf]
        %v4137 = vld [vmem:[#allocation10 + $0x28] sm:$0xf]
        %v4138 = vld [vmem:[#allocation10 + $0x2c] sm:$0xf]
        %v4139 = vld [vmem:[#allocation10 + $0x30] sm:$0xf]
        %v4140 = vld [vmem:[#allocation10 + $0x34] sm:$0xf]
        %v4141 = vld [vmem:[#allocation10 + $0x38] sm:$0xf]
        %v4142 = vld [vmem:[#allocation10 + $0x3c] sm:$0xf]
        %v4143 = vld [vmem:[#allocation10 + $0x40] sm:$0xf]
        %v4144 = vld [vmem:[#allocation10 + $0x44] sm:$0xf]
        %v4145 = vld [vmem:[#allocation10 + $0x48] sm:$0xf]
        %v4146 = vld [vmem:[#allocation10 + $0x4c] sm:$0xf]
        %v4147 = vld [vmem:[#allocation10 + $0x50] sm:$0xf]
        %v4148 = vld [vmem:[#allocation10 + $0x54] sm:$0xf]
        %v4149 = vld [vmem:[#allocation10 + $0x58] sm:$0xf]
        %v4150 = vld [vmem:[#allocation10 + $0x5c] sm:$0xf]
        %v4151 = vld [vmem:[#allocation10 + $0x60] sm:$0xf]
        %v4152 = vld [vmem:[#allocation10 + $0x64] sm:$0xf]
        %v4153 = vld [vmem:[#allocation10 + $0x68] sm:$0xf]
        %v4154 = vld [vmem:[#allocation10 + $0x6c] sm:$0xf]
        %v4155 = vld [vmem:[#allocation10 + $0x70] sm:$0xf]
        %v4156 = vld [vmem:[#allocation10 + $0x74] sm:$0xf]
        %v4157 = vld [vmem:[#allocation10 + $0x78] sm:$0xf]
        %v4158 = vld [vmem:[#allocation10 + $0x7c] sm:$0xf]
        %v4159 = vld [vmem:[#allocation10 + $0x80] sm:$0xf]
        %v4160 = vld [vmem:[#allocation10 + $0x84] sm:$0xf]
        %v4161 = vld [vmem:[#allocation10 + $0x88] sm:$0xf]
        %v4162 = vld [vmem:[#allocation10 + $0x8c] sm:$0xf]
        %v4163 = vld [vmem:[#allocation10 + $0x90] sm:$0xf]
        %v4164 = vld [vmem:[#allocation10 + $0x94] sm:$0xf]
        %v4165 = vld [vmem:[#allocation10 + $0x98] sm:$0xf]
        %v4166 = vld [vmem:[#allocation10 + $0x9c] sm:$0xf]
        %v4167 = vld [vmem:[#allocation10 + $0xa0] sm:$0xf]
        %v4168 = vld [vmem:[#allocation10 + $0xa4] sm:$0xf]
        %v4169 = vld [vmem:[#allocation10 + $0xa8] sm:$0xf]
        %v4170 = vld [vmem:[#allocation10 + $0xac] sm:$0xf]
        %v4171 = vld [vmem:[#allocation10 + $0xb0] sm:$0xf]
        %v4172 = vld [vmem:[#allocation10 + $0xb4] sm:$0xf]
        %v4173 = vld [vmem:[#allocation10 + $0xb8] sm:$0xf]
        %v4174 = vld [vmem:[#allocation10 + $0xbc] sm:$0xf]
        %v4175 = vpack.c.bf16 %v4032, %v4032
        %v4176 = vpack.c.bf16 %v4077, %v4077
        %v4177 = vpack.c.bf16 %v4122, %v4122
        %v4178 = vld [vmem:[%s43] sm:$0x1]
        %v4180 = vlaneseq
        %v4181 = vshrl.u32 %v4180, 7
        %v4182 = vsub.s32 0, %v4181
        %v4183 = vrot.slane %v4178, %v4182
        %v4233 = vunpack.c.l.b16 %v4127
        %v4234 = vunpack.c.l.b16 %v4128
        %v4235 = vunpack.c.l.b16 %v4129
        %v4236 = vunpack.c.l.b16 %v4130
        %v4237 = vunpack.c.l.b16 %v4131
        %v4238 = vunpack.c.l.b16 %v4132
        %v4239 = vunpack.c.l.b16 %v4133
        %v4240 = vunpack.c.l.b16 %v4134
        %v4241 = vunpack.c.l.b16 %v4135
        %v4242 = vunpack.c.l.b16 %v4136
        %v4243 = vunpack.c.l.b16 %v4137
        %v4244 = vunpack.c.l.b16 %v4138
        %v4245 = vunpack.c.l.b16 %v4139
        %v4246 = vunpack.c.l.b16 %v4140
        %v4247 = vunpack.c.l.b16 %v4141
        %v4248 = vunpack.c.l.b16 %v4142
        %v4249 = vunpack.c.l.b16 %v4143
        %v4250 = vunpack.c.l.b16 %v4144
        %v4251 = vunpack.c.l.b16 %v4145
        %v4252 = vunpack.c.l.b16 %v4146
        %v4253 = vunpack.c.l.b16 %v4147
        %v4254 = vunpack.c.l.b16 %v4148
        %v4255 = vunpack.c.l.b16 %v4149
        %v4256 = vunpack.c.l.b16 %v4150
        %v4257 = vunpack.c.l.b16 %v4151
        %v4258 = vunpack.c.l.b16 %v4152
        %v4259 = vunpack.c.l.b16 %v4153
        %v4260 = vunpack.c.l.b16 %v4154
        %v4261 = vunpack.c.l.b16 %v4155
        %v4262 = vunpack.c.l.b16 %v4156
        %v4263 = vunpack.c.l.b16 %v4157
        %v4264 = vunpack.c.l.b16 %v4158
        %v4265 = vunpack.c.l.b16 %v4159
        %v4266 = vunpack.c.l.b16 %v4160
        %v4267 = vunpack.c.l.b16 %v4161
        %v4268 = vunpack.c.l.b16 %v4162
        %v4269 = vunpack.c.l.b16 %v4163
        %v4270 = vunpack.c.l.b16 %v4164
        %v4271 = vunpack.c.l.b16 %v4165
        %v4272 = vunpack.c.l.b16 %v4166
        %v4273 = vunpack.c.l.b16 %v4167
        %v4274 = vunpack.c.l.b16 %v4168
        %v4275 = vunpack.c.l.b16 %v4169
        %v4276 = vunpack.c.l.b16 %v4170
        %v4277 = vunpack.c.l.b16 %v4171
        %v4278 = vunpack.c.l.b16 %v4172
        %v4279 = vunpack.c.l.b16 %v4173
        %v4280 = vunpack.c.l.b16 %v4174
        %v4281 = vpack.c.b16 %v4234, %v4233
        %v4282 = vpack.c.b16 %v4236, %v4235
        %v4283 = vpack.c.b16 %v4238, %v4237
        %v4284 = vpack.c.b16 %v4240, %v4239
        %v4285 = vpack.c.b16 %v4242, %v4241
        %v4286 = vpack.c.b16 %v4244, %v4243
        %v4287 = vpack.c.b16 %v4246, %v4245
        %v4288 = vpack.c.b16 %v4248, %v4247
        %v4289 = vpack.c.b16 %v4250, %v4249
        %v4290 = vpack.c.b16 %v4252, %v4251
        %v4291 = vpack.c.b16 %v4254, %v4253
        %v4292 = vpack.c.b16 %v4256, %v4255
        %v4293 = vpack.c.b16 %v4258, %v4257
        %v4294 = vpack.c.b16 %v4260, %v4259
        %v4295 = vpack.c.b16 %v4262, %v4261
        %v4296 = vpack.c.b16 %v4264, %v4263
        %v4297 = vpack.c.b16 %v4266, %v4265
        %v4298 = vpack.c.b16 %v4268, %v4267
        %v4299 = vpack.c.b16 %v4270, %v4269
        %v4300 = vpack.c.b16 %v4272, %v4271
        %v4301 = vpack.c.b16 %v4274, %v4273
        %v4302 = vpack.c.b16 %v4276, %v4275
        %v4303 = vpack.c.b16 %v4278, %v4277
        %v4304 = vpack.c.b16 %v4280, %v4279
        %4329 = vmatprep.subr.bf16.mxu0 0
        %4330 = vmatpush1.bf16.msra.mxu0 %v4288
        %4331 = vmatprep.subr.bf16.mxu0 0
        %4332 = vmatpush1.bf16.msra.mxu0 %v4287
        %4333 = vmatprep.subr.bf16.mxu0 0
        %4334 = vmatpush1.bf16.msra.mxu0 %v4286
        %4335 = vmatprep.subr.bf16.mxu0 0
        %4336 = vmatpush1.bf16.msra.mxu0 %v4285
        %4337 = vmatprep.subr.bf16.mxu0 0
        %4338 = vmatpush1.bf16.msra.mxu0 %v4284
        %4339 = vmatprep.subr.bf16.mxu0 0
        %4340 = vmatpush1.bf16.msra.mxu0 %v4283
        %4341 = vmatprep.subr.bf16.mxu0 0
        %4342 = vmatpush1.bf16.msra.mxu0 %v4282
        %4343 = vmatprep.subr.bf16.mxu0 0
        %4344 = vmatpush1.bf16.msra.mxu0 %v4281
        %4345 = vmatprep.subr.bf16.mxu0 0
        %4346 = vmatpush2.bf16.msra.mxu0 %v4296
        %4347 = vmatprep.subr.bf16.mxu0 0
        %4348 = vmatpush2.bf16.msra.mxu0 %v4295
        %4349 = vmatprep.subr.bf16.mxu0 0
        %4350 = vmatpush2.bf16.msra.mxu0 %v4294
        %4351 = vmatprep.subr.bf16.mxu0 0
        %4352 = vmatpush2.bf16.msra.mxu0 %v4293
        %4353 = vmatprep.subr.bf16.mxu0 0
        %4354 = vmatpush2.bf16.msra.mxu0 %v4292
        %4355 = vmatprep.subr.bf16.mxu0 0
        %4356 = vmatpush2.bf16.msra.mxu0 %v4291
        %4357 = vmatprep.subr.bf16.mxu0 0
        %4358 = vmatpush2.bf16.msra.mxu0 %v4290
        %4359 = vmatprep.subr.bf16.mxu0 0
        %4360 = vmatpush2.bf16.msra.mxu0 %v4289
        %4361 = vmatprep.mubr.bf16.mxu0 %v4176
        %4362 = vmatmul.mubr.bf16.gmra.mxu0 %v4175
        %v4363 = vpop.f32.mrf.mxu0
        %v4364 = vadd.f32 %v4183, %v4363
        %v4365 = vpop.f32.mrf.mxu0
        %v4366 = vpop.f32.mrf.mxu0
        %v4367 = vpop.f32.mrf.mxu0
        %4368 = vdwg.mxu0
        %4369 = vmatprep.subr.bf16.mxu0 0
        %4370 = vmatpush1.bf16.msra.mxu0 %v4304
        %4371 = vmatprep.subr.bf16.mxu0 0
        %4372 = vmatpush1.bf16.msra.mxu0 %v4303
        %4373 = vmatprep.subr.bf16.mxu0 0
        %4374 = vmatpush1.bf16.msra.mxu0 %v4302
        %4375 = vmatprep.subr.bf16.mxu0 0
        %4376 = vmatpush1.bf16.msra.mxu0 %v4301
        %4377 = vmatprep.subr.bf16.mxu0 0
        %4378 = vmatpush1.bf16.msra.mxu0 %v4300
        %4379 = vmatprep.subr.bf16.mxu0 0
        %4380 = vmatpush1.bf16.msra.mxu0 %v4299
        %4381 = vmatprep.subr.bf16.mxu0 0
        %4382 = vmatpush1.bf16.msra.mxu0 %v4298
        %4383 = vmatprep.subr.bf16.mxu0 0
        %4384 = vmatpush1.bf16.msra.mxu0 %v4297
        %4385 = vmatprep.subr.bf16.mxu0 0
        %4386 = vmatpush2.bf16.msra.mxu0 0
        %4387 = vmatprep.subr.bf16.mxu0 0
        %4388 = vmatpush2.bf16.msra.mxu0 0
        %4389 = vmatprep.subr.bf16.mxu0 0
        %4390 = vmatpush2.bf16.msra.mxu0 0
        %4391 = vmatprep.subr.bf16.mxu0 0
        %4392 = vmatpush2.bf16.msra.mxu0 0
        %4393 = vmatprep.subr.bf16.mxu0 0
        %4394 = vmatpush2.bf16.msra.mxu0 0
        %4395 = vmatprep.subr.bf16.mxu0 0
        %4396 = vmatpush2.bf16.msra.mxu0 0
        %4397 = vmatprep.subr.bf16.mxu0 0
        %4398 = vmatpush2.bf16.msra.mxu0 0
        %4399 = vmatprep.subr.bf16.mxu0 0
        %4400 = vmatpush2.bf16.msra.mxu0 0
        %4401 = vmatprep.mubr.bf16.mxu0 0
        %4402 = vmatmul.mubr.bf16.gmra.mxu0 %v4177
        %v4403 = vpop.f32.mrf.mxu0
        %v4404 = vadd.f32 %v4364, %v4403
        %v4405 = vpop.f32.mrf.mxu0
        %v4406 = vpop.f32.mrf.mxu0
        %v4407 = vpop.f32.mrf.mxu0
        %4408 = vdwg.mxu0
        %v4409 = vmax.f32 %v4404, 0.0
        %v4410 = vld [vmem:[#allocation11] sm:$0xf]
        %v4411 = vld [vmem:[#allocation11 + $0x4] sm:$0xf]
        %v4412 = vld [vmem:[#allocation11 + $0x8] sm:$0xf]
        %v4413 = vld [vmem:[#allocation11 + $0xc] sm:$0xf]
        %v4414 = vld [vmem:[#allocation11 + $0x10] sm:$0xf]
        %v4415 = vld [vmem:[#allocation11 + $0x14] sm:$0xf]
        %v4416 = vld [vmem:[#allocation11 + $0x18] sm:$0xf]
        %v4417 = vld [vmem:[#allocation11 + $0x1c] sm:$0xf]
        %v4418 = vld [vmem:[#allocation11 + $0x20] sm:$0xf]
        %v4419 = vld [vmem:[#allocation11 + $0x24] sm:$0xf]
        %v4420 = vld [vmem:[#allocation11 + $0x28] sm:$0xf]
        %v4421 = vld [vmem:[#allocation11 + $0x2c] sm:$0xf]
        %v4422 = vld [vmem:[#allocation11 + $0x30] sm:$0xf]
        %v4423 = vld [vmem:[#allocation11 + $0x34] sm:$0xf]
        %v4424 = vld [vmem:[#allocation11 + $0x38] sm:$0xf]
        %v4425 = vld [vmem:[#allocation11 + $0x3c] sm:$0xf]
        %v4426 = vpack.c.bf16 %v4409, %v4409
        %v4427 = vld [vmem:[%s47] sm:$0x1]
        %v4429 = vlaneseq
        %v4430 = vshrl.u32 %v4429, 7
        %v4431 = vsub.s32 0, %v4430
        %v4432 = vrot.slane %v4427, %v4431
        %v4450 = vunpack.c.l.b16 %v4410
        %v4451 = vunpack.c.l.b16 %v4411
        %v4452 = vunpack.c.l.b16 %v4412
        %v4453 = vunpack.c.l.b16 %v4413
        %v4454 = vunpack.c.l.b16 %v4414
        %v4455 = vunpack.c.l.b16 %v4415
        %v4456 = vunpack.c.l.b16 %v4416
        %v4457 = vunpack.c.l.b16 %v4417
        %v4458 = vunpack.c.l.b16 %v4418
        %v4459 = vunpack.c.l.b16 %v4419
        %v4460 = vunpack.c.l.b16 %v4420
        %v4461 = vunpack.c.l.b16 %v4421
        %v4462 = vunpack.c.l.b16 %v4422
        %v4463 = vunpack.c.l.b16 %v4423
        %v4464 = vunpack.c.l.b16 %v4424
        %v4465 = vunpack.c.l.b16 %v4425
        %v4466 = vpack.c.b16 %v4451, %v4450
        %v4467 = vpack.c.b16 %v4453, %v4452
        %v4468 = vpack.c.b16 %v4455, %v4454
        %v4469 = vpack.c.b16 %v4457, %v4456
        %v4470 = vpack.c.b16 %v4459, %v4458
        %v4471 = vpack.c.b16 %v4461, %v4460
        %v4472 = vpack.c.b16 %v4463, %v4462
        %v4473 = vpack.c.b16 %v4465, %v4464
        %4482 = vmatprep.subr.bf16.mxu0 0
        %4483 = vmatpush1.bf16.msra.mxu0 %v4473
        %4484 = vmatprep.subr.bf16.mxu0 0
        %4485 = vmatpush1.bf16.msra.mxu0 %v4472
        %4486 = vmatprep.subr.bf16.mxu0 0
        %4487 = vmatpush1.bf16.msra.mxu0 %v4471
        %4488 = vmatprep.subr.bf16.mxu0 0
        %4489 = vmatpush1.bf16.msra.mxu0 %v4470
        %4490 = vmatprep.subr.bf16.mxu0 0
        %4491 = vmatpush1.bf16.msra.mxu0 %v4469
        %4492 = vmatprep.subr.bf16.mxu0 0
        %4493 = vmatpush1.bf16.msra.mxu0 %v4468
        %4494 = vmatprep.subr.bf16.mxu0 0
        %4495 = vmatpush1.bf16.msra.mxu0 %v4467
        %4496 = vmatprep.subr.bf16.mxu0 0
        %4497 = vmatpush1.bf16.msra.mxu0 %v4466
        %4498 = vmatprep.subr.bf16.mxu0 0
        %4499 = vmatpush2.bf16.msra.mxu0 0
        %4500 = vmatprep.subr.bf16.mxu0 0
        %4501 = vmatpush2.bf16.msra.mxu0 0
        %4502 = vmatprep.subr.bf16.mxu0 0
        %4503 = vmatpush2.bf16.msra.mxu0 0
        %4504 = vmatprep.subr.bf16.mxu0 0
        %4505 = vmatpush2.bf16.msra.mxu0 0
        %4506 = vmatprep.subr.bf16.mxu0 0
        %4507 = vmatpush2.bf16.msra.mxu0 0
        %4508 = vmatprep.subr.bf16.mxu0 0
        %4509 = vmatpush2.bf16.msra.mxu0 0
        %4510 = vmatprep.subr.bf16.mxu0 0
        %4511 = vmatpush2.bf16.msra.mxu0 0
        %4512 = vmatprep.subr.bf16.mxu0 0
        %4513 = vmatpush2.bf16.msra.mxu0 0
        %4514 = vmatprep.mubr.bf16.mxu0 0
        %4515 = vmatmul.mubr.bf16.gmra.mxu0 %v4426
        %v4516 = vpop.f32.mrf.mxu0
        %v4517 = vadd.f32 %v4432, %v4516
        %v4518 = vpop.f32.mrf.mxu0
        %v4519 = vpop.f32.mrf.mxu0
        %v4520 = vpop.f32.mrf.mxu0
        %4521 = vdwg.mxu0
        %v4522 = vmax.f32 %v4517, 0.0
        %v4523 = vld [vmem:[%s49] sm:$0x1]
        %v4524 = vpack.c.bf16 %v4522, %v4522
        %v4526 = vsel %vm3568, %v4523, 0
        %v4529 = vsel %vm3572, %v4524, 0
        %4531 = vmatprep.subr.bf16.mxu0 0
        %4532 = vmatpush1.bf16.msra.mxu0 0
        %4533 = vmatprep.subr.bf16.mxu0 0
        %4534 = vmatpush1.bf16.msra.mxu0 0
        %4535 = vmatprep.subr.bf16.mxu0 0
        %4536 = vmatpush1.bf16.msra.mxu0 0
        %4537 = vmatprep.subr.bf16.mxu0 0
        %4538 = vmatpush1.bf16.msra.mxu0 0
        %4539 = vmatprep.subr.bf16.mxu0 0
        %4540 = vmatpush1.bf16.msra.mxu0 0
        %4541 = vmatprep.subr.bf16.mxu0 0
        %4542 = vmatpush1.bf16.msra.mxu0 0
        %4543 = vmatprep.subr.bf16.mxu0 0
        %4544 = vmatpush1.bf16.msra.mxu0 0
        %4545 = vmatprep.subr.bf16.mxu0 0
        %4546 = vmatpush1.bf16.msra.mxu0 %v4529
        %4547 = vmatprep.subr.bf16.mxu0 0
        %4548 = vmatpush2.bf16.msra.mxu0 0
        %4549 = vmatprep.subr.bf16.mxu0 0
        %4550 = vmatpush2.bf16.msra.mxu0 0
        %4551 = vmatprep.subr.bf16.mxu0 0
        %4552 = vmatpush2.bf16.msra.mxu0 0
        %4553 = vmatprep.subr.bf16.mxu0 0
        %4554 = vmatpush2.bf16.msra.mxu0 0
        %4555 = vmatprep.subr.bf16.mxu0 0
        %4556 = vmatpush2.bf16.msra.mxu0 0
        %4557 = vmatprep.subr.bf16.mxu0 0
        %4558 = vmatpush2.bf16.msra.mxu0 0
        %4559 = vmatprep.subr.bf16.mxu0 0
        %4560 = vmatpush2.bf16.msra.mxu0 0
        %4561 = vmatprep.subr.bf16.mxu0 0
        %4562 = vmatpush2.bf16.msra.mxu0 0
        %4563 = vmatprep.mubr.bf16.mxu0 0
        %4564 = vmatmul.mubr.bf16.gmra.mxu0 %v4526
        %v4565 = vpop.f32.mrf.mxu0
        %v4566 = vadd.f32 0.0, %v4565
        %v4567 = vpop.f32.mrf.mxu0
        %v4568 = vpop.f32.mrf.mxu0
        %v4569 = vpop.f32.mrf.mxu0
        %4570 = vdwg.mxu0
        %v4571 = vld [vmem:[#allocation13] sm:$0xf]
        %v4572 = vld [vmem:[#allocation13 + $0x4] sm:$0xf]
        %v4573 = vld [vmem:[#allocation13 + $0x8] sm:$0xf]
        %v4574 = vld [vmem:[#allocation13 + $0xc] sm:$0xf]
        %v4575 = vld [vmem:[#allocation13 + $0x10] sm:$0xf]
        %v4576 = vld [vmem:[#allocation13 + $0x14] sm:$0xf]
        %v4577 = vld [vmem:[#allocation13 + $0x18] sm:$0xf]
        %v4578 = vld [vmem:[#allocation13 + $0x1c] sm:$0xf]
        %v4579 = vld [vmem:[#allocation13 + $0x20] sm:$0xf]
        %v4580 = vld [vmem:[#allocation13 + $0x24] sm:$0xf]
        %v4581 = vld [vmem:[#allocation13 + $0x28] sm:$0xf]
        %v4582 = vld [vmem:[#allocation13 + $0x2c] sm:$0xf]
        %v4583 = vld [vmem:[#allocation13 + $0x30] sm:$0xf]
        %v4584 = vld [vmem:[#allocation13 + $0x34] sm:$0xf]
        %v4585 = vld [vmem:[#allocation13 + $0x38] sm:$0xf]
        %v4586 = vld [vmem:[#allocation13 + $0x3c] sm:$0xf]
        %v4587 = vpack.c.bf16 %v4566, %v4566
        %v4604 = vunpack.c.l.b16 %v4571
        %v4605 = vunpack.c.l.b16 %v4572
        %v4606 = vunpack.c.l.b16 %v4573
        %v4607 = vunpack.c.l.b16 %v4574
        %v4608 = vunpack.c.l.b16 %v4575
        %v4609 = vunpack.c.l.b16 %v4576
        %v4610 = vunpack.c.l.b16 %v4577
        %v4611 = vunpack.c.l.b16 %v4578
        %v4612 = vunpack.c.l.b16 %v4579
        %v4613 = vunpack.c.l.b16 %v4580
        %v4614 = vunpack.c.l.b16 %v4581
        %v4615 = vunpack.c.l.b16 %v4582
        %v4616 = vunpack.c.l.b16 %v4583
        %v4617 = vunpack.c.l.b16 %v4584
        %v4618 = vunpack.c.l.b16 %v4585
        %v4619 = vunpack.c.l.b16 %v4586
        %v4620 = vpack.c.b16 %v4605, %v4604
        %v4621 = vpack.c.b16 %v4607, %v4606
        %v4622 = vpack.c.b16 %v4609, %v4608
        %v4623 = vpack.c.b16 %v4611, %v4610
        %v4624 = vpack.c.b16 %v4613, %v4612
        %v4625 = vpack.c.b16 %v4615, %v4614
        %v4626 = vpack.c.b16 %v4617, %v4616
        %v4627 = vpack.c.b16 %v4619, %v4618
        %4636 = vmatprep.subr.bf16.mxu0 0
        %4637 = vmatpush1.bf16.msra.mxu0 %v4627
        %4638 = vmatprep.subr.bf16.mxu0 0
        %4639 = vmatpush1.bf16.msra.mxu0 %v4626
        %4640 = vmatprep.subr.bf16.mxu0 0
        %4641 = vmatpush1.bf16.msra.mxu0 %v4625
        %4642 = vmatprep.subr.bf16.mxu0 0
        %4643 = vmatpush1.bf16.msra.mxu0 %v4624
        %4644 = vmatprep.subr.bf16.mxu0 0
        %4645 = vmatpush1.bf16.msra.mxu0 %v4623
        %4646 = vmatprep.subr.bf16.mxu0 0
        %4647 = vmatpush1.bf16.msra.mxu0 %v4622
        %4648 = vmatprep.subr.bf16.mxu0 0
        %4649 = vmatpush1.bf16.msra.mxu0 %v4621
        %4650 = vmatprep.subr.bf16.mxu0 0
        %4651 = vmatpush1.bf16.msra.mxu0 %v4620
        %4652 = vmatprep.subr.bf16.mxu0 0
        %4653 = vmatpush2.bf16.msra.mxu0 0
        %4654 = vmatprep.subr.bf16.mxu0 0
        %4655 = vmatpush2.bf16.msra.mxu0 0
        %4656 = vmatprep.subr.bf16.mxu0 0
        %4657 = vmatpush2.bf16.msra.mxu0 0
        %4658 = vmatprep.subr.bf16.mxu0 0
        %4659 = vmatpush2.bf16.msra.mxu0 0
        %4660 = vmatprep.subr.bf16.mxu0 0
        %4661 = vmatpush2.bf16.msra.mxu0 0
        %4662 = vmatprep.subr.bf16.mxu0 0
        %4663 = vmatpush2.bf16.msra.mxu0 0
        %4664 = vmatprep.subr.bf16.mxu0 0
        %4665 = vmatpush2.bf16.msra.mxu0 0
        %4666 = vmatprep.subr.bf16.mxu0 0
        %4667 = vmatpush2.bf16.msra.mxu0 0
        %4668 = vmatprep.mubr.bf16.mxu0 0
        %4669 = vmatmul.mubr.bf16.gmra.mxu0 %v4587
        %v4670 = vpop.f32.mrf.mxu0
        %v4671 = vadd.f32 0.0, %v4670
        %v4672 = vpop.f32.mrf.mxu0
        %v4673 = vpop.f32.mrf.mxu0
        %v4674 = vpop.f32.mrf.mxu0
        %4675 = vdwg.mxu0
        %v4676 = vld [vmem:[%s53] sm:$0x1]
        %v4677 = vpack.c.bf16 %v4671, %v4671
        %vm4678 = vcmask 15360
        %v4680 = vsel %vm4678, %v4676, 0
        %vm4682 = vcmask 1040384
        %v4684 = vsel %vm4682, %v4677, 0
        %4686 = vmatprep.subr.bf16.mxu0 0
        %4687 = vmatpush1.bf16.msra.mxu0 0
        %4688 = vmatprep.subr.bf16.mxu0 0
        %4689 = vmatpush1.bf16.msra.mxu0 0
        %4690 = vmatprep.subr.bf16.mxu0 0
        %4691 = vmatpush1.bf16.msra.mxu0 0
        %4692 = vmatprep.subr.bf16.mxu0 0
        %4693 = vmatpush1.bf16.msra.mxu0 0
        %4694 = vmatprep.subr.bf16.mxu0 0
        %4695 = vmatpush1.bf16.msra.mxu0 0
        %4696 = vmatprep.subr.bf16.mxu0 0
        %4697 = vmatpush1.bf16.msra.mxu0 0
        %4698 = vmatprep.subr.bf16.mxu0 0
        %4699 = vmatpush1.bf16.msra.mxu0 0
        %4700 = vmatprep.subr.bf16.mxu0 0
        %4701 = vmatpush1.bf16.msra.mxu0 %v4684
        %4702 = vmatprep.subr.bf16.mxu0 0
        %4703 = vmatpush2.bf16.msra.mxu0 0
        %4704 = vmatprep.subr.bf16.mxu0 0
        %4705 = vmatpush2.bf16.msra.mxu0 0
        %4706 = vmatprep.subr.bf16.mxu0 0
        %4707 = vmatpush2.bf16.msra.mxu0 0
        %4708 = vmatprep.subr.bf16.mxu0 0
        %4709 = vmatpush2.bf16.msra.mxu0 0
        %4710 = vmatprep.subr.bf16.mxu0 0
        %4711 = vmatpush2.bf16.msra.mxu0 0
        %4712 = vmatprep.subr.bf16.mxu0 0
        %4713 = vmatpush2.bf16.msra.mxu0 0
        %4714 = vmatprep.subr.bf16.mxu0 0
        %4715 = vmatpush2.bf16.msra.mxu0 0
        %4716 = vmatprep.subr.bf16.mxu0 0
        %4717 = vmatpush2.bf16.msra.mxu0 0
        %4718 = vmatprep.mubr.bf16.mxu0 0
        %4719 = vmatmul.mubr.bf16.gmra.mxu0 %v4680
        %v4720 = vpop.f32.mrf.mxu0
        %v4721 = vadd.f32 0.0, %v4720
        %v4722 = vpop.f32.mrf.mxu0
        %v4723 = vpop.f32.mrf.mxu0
        %v4724 = vpop.f32.mrf.mxu0
        %4725 = vdwg.mxu0
        %s4726 = scalar_lea.vmem %s53, 1
        %v4727 = vld [vmem:[%s4726] sm:$0x1]
        %v4729 = vsel %vm4678, %v4727, 0
        %4731 = vmatprep.subr.bf16.mxu0 0
        %4732 = vmatpush1.bf16.msra.mxu0 0
        %4733 = vmatprep.subr.bf16.mxu0 0
        %4734 = vmatpush1.bf16.msra.mxu0 0
        %4735 = vmatprep.subr.bf16.mxu0 0
        %4736 = vmatpush1.bf16.msra.mxu0 0
        %4737 = vmatprep.subr.bf16.mxu0 0
        %4738 = vmatpush1.bf16.msra.mxu0 0
        %4739 = vmatprep.subr.bf16.mxu0 0
        %4740 = vmatpush1.bf16.msra.mxu0 0
        %4741 = vmatprep.subr.bf16.mxu0 0
        %4742 = vmatpush1.bf16.msra.mxu0 0
        %4743 = vmatprep.subr.bf16.mxu0 0
        %4744 = vmatpush1.bf16.msra.mxu0 0
        %4745 = vmatprep.subr.bf16.mxu0 0
        %4746 = vmatpush1.bf16.msra.mxu0 %v4684
        %4747 = vmatprep.subr.bf16.mxu0 0
        %4748 = vmatpush2.bf16.msra.mxu0 0
        %4749 = vmatprep.subr.bf16.mxu0 0
        %4750 = vmatpush2.bf16.msra.mxu0 0
        %4751 = vmatprep.subr.bf16.mxu0 0
        %4752 = vmatpush2.bf16.msra.mxu0 0
        %4753 = vmatprep.subr.bf16.mxu0 0
        %4754 = vmatpush2.bf16.msra.mxu0 0
        %4755 = vmatprep.subr.bf16.mxu0 0
        %4756 = vmatpush2.bf16.msra.mxu0 0
        %4757 = vmatprep.subr.bf16.mxu0 0
        %4758 = vmatpush2.bf16.msra.mxu0 0
        %4759 = vmatprep.subr.bf16.mxu0 0
        %4760 = vmatpush2.bf16.msra.mxu0 0
        %4761 = vmatprep.subr.bf16.mxu0 0
        %4762 = vmatpush2.bf16.msra.mxu0 0
        %4763 = vmatprep.mubr.bf16.mxu0 0
        %4764 = vmatmul.mubr.bf16.gmra.mxu0 %v4729
        %v4765 = vpop.f32.mrf.mxu0
        %v4766 = vadd.f32 0.0, %v4765
        %v4767 = vpop.f32.mrf.mxu0
        %v4768 = vpop.f32.mrf.mxu0
        %v4769 = vpop.f32.mrf.mxu0
        %4770 = vdwg.mxu0
        %s4771 = scalar_lea.vmem %s53, 2
        %v4772 = vld [vmem:[%s4771] sm:$0x1]
        %v4774 = vsel %vm4678, %v4772, 0
        %4776 = vmatprep.subr.bf16.mxu0 0
        %4777 = vmatpush1.bf16.msra.mxu0 0
        %4778 = vmatprep.subr.bf16.mxu0 0
        %4779 = vmatpush1.bf16.msra.mxu0 0
        %4780 = vmatprep.subr.bf16.mxu0 0
        %4781 = vmatpush1.bf16.msra.mxu0 0
        %4782 = vmatprep.subr.bf16.mxu0 0
        %4783 = vmatpush1.bf16.msra.mxu0 0
        %4784 = vmatprep.subr.bf16.mxu0 0
        %4785 = vmatpush1.bf16.msra.mxu0 0
        %4786 = vmatprep.subr.bf16.mxu0 0
        %4787 = vmatpush1.bf16.msra.mxu0 0
        %4788 = vmatprep.subr.bf16.mxu0 0
        %4789 = vmatpush1.bf16.msra.mxu0 0
        %4790 = vmatprep.subr.bf16.mxu0 0
        %4791 = vmatpush1.bf16.msra.mxu0 %v4684
        %4792 = vmatprep.subr.bf16.mxu0 0
        %4793 = vmatpush2.bf16.msra.mxu0 0
        %4794 = vmatprep.subr.bf16.mxu0 0
        %4795 = vmatpush2.bf16.msra.mxu0 0
        %4796 = vmatprep.subr.bf16.mxu0 0
        %4797 = vmatpush2.bf16.msra.mxu0 0
        %4798 = vmatprep.subr.bf16.mxu0 0
        %4799 = vmatpush2.bf16.msra.mxu0 0
        %4800 = vmatprep.subr.bf16.mxu0 0
        %4801 = vmatpush2.bf16.msra.mxu0 0
        %4802 = vmatprep.subr.bf16.mxu0 0
        %4803 = vmatpush2.bf16.msra.mxu0 0
        %4804 = vmatprep.subr.bf16.mxu0 0
        %4805 = vmatpush2.bf16.msra.mxu0 0
        %4806 = vmatprep.subr.bf16.mxu0 0
        %4807 = vmatpush2.bf16.msra.mxu0 0
        %4808 = vmatprep.mubr.bf16.mxu0 0
        %4809 = vmatmul.mubr.bf16.gmra.mxu0 %v4774
        %v4810 = vpop.f32.mrf.mxu0
        %v4811 = vadd.f32 0.0, %v4810
        %v4812 = vpop.f32.mrf.mxu0
        %v4813 = vpop.f32.mrf.mxu0
        %v4814 = vpop.f32.mrf.mxu0
        %4815 = vdwg.mxu0
        %v4816 = vld [vmem:[#allocation14] sm:$0xf]
        %v4817 = vld [vmem:[#allocation14 + $0x4] sm:$0xf]
        %v4818 = vld [vmem:[#allocation14 + $0x8] sm:$0xf]
        %v4819 = vld [vmem:[#allocation14 + $0xc] sm:$0xf]
        %v4820 = vld [vmem:[#allocation14 + $0x10] sm:$0xf]
        %v4821 = vld [vmem:[#allocation14 + $0x14] sm:$0xf]
        %v4822 = vld [vmem:[#allocation14 + $0x18] sm:$0xf]
        %v4823 = vld [vmem:[#allocation14 + $0x1c] sm:$0xf]
        %v4824 = vld [vmem:[#allocation14 + $0x20] sm:$0xf]
        %v4825 = vld [vmem:[#allocation14 + $0x24] sm:$0xf]
        %v4826 = vld [vmem:[#allocation14 + $0x28] sm:$0xf]
        %v4827 = vld [vmem:[#allocation14 + $0x2c] sm:$0xf]
        %v4828 = vld [vmem:[#allocation14 + $0x30] sm:$0xf]
        %v4829 = vld [vmem:[#allocation14 + $0x34] sm:$0xf]
        %v4830 = vld [vmem:[#allocation14 + $0x38] sm:$0xf]
        %v4831 = vld [vmem:[#allocation14 + $0x3c] sm:$0xf]
        %v4832 = vld [vmem:[#allocation14 + $0x40] sm:$0xf]
        %v4833 = vld [vmem:[#allocation14 + $0x44] sm:$0xf]
        %v4834 = vld [vmem:[#allocation14 + $0x48] sm:$0xf]
        %v4835 = vld [vmem:[#allocation14 + $0x4c] sm:$0xf]
        %v4836 = vld [vmem:[#allocation14 + $0x50] sm:$0xf]
        %v4837 = vld [vmem:[#allocation14 + $0x54] sm:$0xf]
        %v4838 = vld [vmem:[#allocation14 + $0x58] sm:$0xf]
        %v4839 = vld [vmem:[#allocation14 + $0x5c] sm:$0xf]
        %v4840 = vld [vmem:[#allocation14 + $0x60] sm:$0xf]
        %v4841 = vld [vmem:[#allocation14 + $0x64] sm:$0xf]
        %v4842 = vld [vmem:[#allocation14 + $0x68] sm:$0xf]
        %v4843 = vld [vmem:[#allocation14 + $0x6c] sm:$0xf]
        %v4844 = vld [vmem:[#allocation14 + $0x70] sm:$0xf]
        %v4845 = vld [vmem:[#allocation14 + $0x74] sm:$0xf]
        %v4846 = vld [vmem:[#allocation14 + $0x78] sm:$0xf]
        %v4847 = vld [vmem:[#allocation14 + $0x7c] sm:$0xf]
        %v4848 = vld [vmem:[#allocation14 + $0x80] sm:$0xf]
        %v4849 = vld [vmem:[#allocation14 + $0x84] sm:$0xf]
        %v4850 = vld [vmem:[#allocation14 + $0x88] sm:$0xf]
        %v4851 = vld [vmem:[#allocation14 + $0x8c] sm:$0xf]
        %v4852 = vld [vmem:[#allocation14 + $0x90] sm:$0xf]
        %v4853 = vld [vmem:[#allocation14 + $0x94] sm:$0xf]
        %v4854 = vld [vmem:[#allocation14 + $0x98] sm:$0xf]
        %v4855 = vld [vmem:[#allocation14 + $0x9c] sm:$0xf]
        %v4856 = vld [vmem:[#allocation14 + $0xa0] sm:$0xf]
        %v4857 = vld [vmem:[#allocation14 + $0xa4] sm:$0xf]
        %v4858 = vld [vmem:[#allocation14 + $0xa8] sm:$0xf]
        %v4859 = vld [vmem:[#allocation14 + $0xac] sm:$0xf]
        %v4860 = vld [vmem:[#allocation14 + $0xb0] sm:$0xf]
        %v4861 = vld [vmem:[#allocation14 + $0xb4] sm:$0xf]
        %v4862 = vld [vmem:[#allocation14 + $0xb8] sm:$0xf]
        %v4863 = vld [vmem:[#allocation14 + $0xbc] sm:$0xf]
        %v4864 = vpack.c.bf16 %v4721, %v4721
        %v4865 = vpack.c.bf16 %v4766, %v4766
        %v4866 = vpack.c.bf16 %v4811, %v4811
        %v4867 = vld [vmem:[%s57] sm:$0x1]
        %v4869 = vlaneseq
        %v4870 = vshrl.u32 %v4869, 7
        %v4871 = vsub.s32 0, %v4870
        %v4872 = vrot.slane %v4867, %v4871
        %v4922 = vunpack.c.l.b16 %v4816
        %v4923 = vunpack.c.l.b16 %v4817
        %v4924 = vunpack.c.l.b16 %v4818
        %v4925 = vunpack.c.l.b16 %v4819
        %v4926 = vunpack.c.l.b16 %v4820
        %v4927 = vunpack.c.l.b16 %v4821
        %v4928 = vunpack.c.l.b16 %v4822
        %v4929 = vunpack.c.l.b16 %v4823
        %v4930 = vunpack.c.l.b16 %v4824
        %v4931 = vunpack.c.l.b16 %v4825
        %v4932 = vunpack.c.l.b16 %v4826
        %v4933 = vunpack.c.l.b16 %v4827
        %v4934 = vunpack.c.l.b16 %v4828
        %v4935 = vunpack.c.l.b16 %v4829
        %v4936 = vunpack.c.l.b16 %v4830
        %v4937 = vunpack.c.l.b16 %v4831
        %v4938 = vunpack.c.l.b16 %v4832
        %v4939 = vunpack.c.l.b16 %v4833
        %v4940 = vunpack.c.l.b16 %v4834
        %v4941 = vunpack.c.l.b16 %v4835
        %v4942 = vunpack.c.l.b16 %v4836
        %v4943 = vunpack.c.l.b16 %v4837
        %v4944 = vunpack.c.l.b16 %v4838
        %v4945 = vunpack.c.l.b16 %v4839
        %v4946 = vunpack.c.l.b16 %v4840
        %v4947 = vunpack.c.l.b16 %v4841
        %v4948 = vunpack.c.l.b16 %v4842
        %v4949 = vunpack.c.l.b16 %v4843
        %v4950 = vunpack.c.l.b16 %v4844
        %v4951 = vunpack.c.l.b16 %v4845
        %v4952 = vunpack.c.l.b16 %v4846
        %v4953 = vunpack.c.l.b16 %v4847
        %v4954 = vunpack.c.l.b16 %v4848
        %v4955 = vunpack.c.l.b16 %v4849
        %v4956 = vunpack.c.l.b16 %v4850
        %v4957 = vunpack.c.l.b16 %v4851
        %v4958 = vunpack.c.l.b16 %v4852
        %v4959 = vunpack.c.l.b16 %v4853
        %v4960 = vunpack.c.l.b16 %v4854
        %v4961 = vunpack.c.l.b16 %v4855
        %v4962 = vunpack.c.l.b16 %v4856
        %v4963 = vunpack.c.l.b16 %v4857
        %v4964 = vunpack.c.l.b16 %v4858
        %v4965 = vunpack.c.l.b16 %v4859
        %v4966 = vunpack.c.l.b16 %v4860
        %v4967 = vunpack.c.l.b16 %v4861
        %v4968 = vunpack.c.l.b16 %v4862
        %v4969 = vunpack.c.l.b16 %v4863
        %v4970 = vpack.c.b16 %v4923, %v4922
        %v4971 = vpack.c.b16 %v4925, %v4924
        %v4972 = vpack.c.b16 %v4927, %v4926
        %v4973 = vpack.c.b16 %v4929, %v4928
        %v4974 = vpack.c.b16 %v4931, %v4930
        %v4975 = vpack.c.b16 %v4933, %v4932
        %v4976 = vpack.c.b16 %v4935, %v4934
        %v4977 = vpack.c.b16 %v4937, %v4936
        %v4978 = vpack.c.b16 %v4939, %v4938
        %v4979 = vpack.c.b16 %v4941, %v4940
        %v4980 = vpack.c.b16 %v4943, %v4942
        %v4981 = vpack.c.b16 %v4945, %v4944
        %v4982 = vpack.c.b16 %v4947, %v4946
        %v4983 = vpack.c.b16 %v4949, %v4948
        %v4984 = vpack.c.b16 %v4951, %v4950
        %v4985 = vpack.c.b16 %v4953, %v4952
        %v4986 = vpack.c.b16 %v4955, %v4954
        %v4987 = vpack.c.b16 %v4957, %v4956
        %v4988 = vpack.c.b16 %v4959, %v4958
        %v4989 = vpack.c.b16 %v4961, %v4960
        %v4990 = vpack.c.b16 %v4963, %v4962
        %v4991 = vpack.c.b16 %v4965, %v4964
        %v4992 = vpack.c.b16 %v4967, %v4966
        %v4993 = vpack.c.b16 %v4969, %v4968
        %5018 = vmatprep.subr.bf16.mxu0 0
        %5019 = vmatpush1.bf16.msra.mxu0 %v4977
        %5020 = vmatprep.subr.bf16.mxu0 0
        %5021 = vmatpush1.bf16.msra.mxu0 %v4976
        %5022 = vmatprep.subr.bf16.mxu0 0
        %5023 = vmatpush1.bf16.msra.mxu0 %v4975
        %5024 = vmatprep.subr.bf16.mxu0 0
        %5025 = vmatpush1.bf16.msra.mxu0 %v4974
        %5026 = vmatprep.subr.bf16.mxu0 0
        %5027 = vmatpush1.bf16.msra.mxu0 %v4973
        %5028 = vmatprep.subr.bf16.mxu0 0
        %5029 = vmatpush1.bf16.msra.mxu0 %v4972
        %5030 = vmatprep.subr.bf16.mxu0 0
        %5031 = vmatpush1.bf16.msra.mxu0 %v4971
        %5032 = vmatprep.subr.bf16.mxu0 0
        %5033 = vmatpush1.bf16.msra.mxu0 %v4970
        %5034 = vmatprep.subr.bf16.mxu0 0
        %5035 = vmatpush2.bf16.msra.mxu0 %v4985
        %5036 = vmatprep.subr.bf16.mxu0 0
        %5037 = vmatpush2.bf16.msra.mxu0 %v4984
        %5038 = vmatprep.subr.bf16.mxu0 0
        %5039 = vmatpush2.bf16.msra.mxu0 %v4983
        %5040 = vmatprep.subr.bf16.mxu0 0
        %5041 = vmatpush2.bf16.msra.mxu0 %v4982
        %5042 = vmatprep.subr.bf16.mxu0 0
        %5043 = vmatpush2.bf16.msra.mxu0 %v4981
        %5044 = vmatprep.subr.bf16.mxu0 0
        %5045 = vmatpush2.bf16.msra.mxu0 %v4980
        %5046 = vmatprep.subr.bf16.mxu0 0
        %5047 = vmatpush2.bf16.msra.mxu0 %v4979
        %5048 = vmatprep.subr.bf16.mxu0 0
        %5049 = vmatpush2.bf16.msra.mxu0 %v4978
        %5050 = vmatprep.mubr.bf16.mxu0 %v4865
        %5051 = vmatmul.mubr.bf16.gmra.mxu0 %v4864
        %v5052 = vpop.f32.mrf.mxu0
        %v5053 = vadd.f32 %v4872, %v5052
        %v5054 = vpop.f32.mrf.mxu0
        %v5055 = vpop.f32.mrf.mxu0
        %v5056 = vpop.f32.mrf.mxu0
        %5057 = vdwg.mxu0
        %5058 = vmatprep.subr.bf16.mxu0 0
        %5059 = vmatpush1.bf16.msra.mxu0 %v4993
        %5060 = vmatprep.subr.bf16.mxu0 0
        %5061 = vmatpush1.bf16.msra.mxu0 %v4992
        %5062 = vmatprep.subr.bf16.mxu0 0
        %5063 = vmatpush1.bf16.msra.mxu0 %v4991
        %5064 = vmatprep.subr.bf16.mxu0 0
        %5065 = vmatpush1.bf16.msra.mxu0 %v4990
        %5066 = vmatprep.subr.bf16.mxu0 0
        %5067 = vmatpush1.bf16.msra.mxu0 %v4989
        %5068 = vmatprep.subr.bf16.mxu0 0
        %5069 = vmatpush1.bf16.msra.mxu0 %v4988
        %5070 = vmatprep.subr.bf16.mxu0 0
        %5071 = vmatpush1.bf16.msra.mxu0 %v4987
        %5072 = vmatprep.subr.bf16.mxu0 0
        %5073 = vmatpush1.bf16.msra.mxu0 %v4986
        %5074 = vmatprep.subr.bf16.mxu0 0
        %5075 = vmatpush2.bf16.msra.mxu0 0
        %5076 = vmatprep.subr.bf16.mxu0 0
        %5077 = vmatpush2.bf16.msra.mxu0 0
        %5078 = vmatprep.subr.bf16.mxu0 0
        %5079 = vmatpush2.bf16.msra.mxu0 0
        %5080 = vmatprep.subr.bf16.mxu0 0
        %5081 = vmatpush2.bf16.msra.mxu0 0
        %5082 = vmatprep.subr.bf16.mxu0 0
        %5083 = vmatpush2.bf16.msra.mxu0 0
        %5084 = vmatprep.subr.bf16.mxu0 0
        %5085 = vmatpush2.bf16.msra.mxu0 0
        %5086 = vmatprep.subr.bf16.mxu0 0
        %5087 = vmatpush2.bf16.msra.mxu0 0
        %5088 = vmatprep.subr.bf16.mxu0 0
        %5089 = vmatpush2.bf16.msra.mxu0 0
        %5090 = vmatprep.mubr.bf16.mxu0 0
        %5091 = vmatmul.mubr.bf16.gmra.mxu0 %v4866
        %v5092 = vpop.f32.mrf.mxu0
        %v5093 = vadd.f32 %v5053, %v5092
        %v5094 = vpop.f32.mrf.mxu0
        %v5095 = vpop.f32.mrf.mxu0
        %v5096 = vpop.f32.mrf.mxu0
        %5097 = vdwg.mxu0
        %v5098 = vmax.f32 %v5093, 0.0
        %v5099 = vld [vmem:[%s59] sm:$0x1]
        %v5100 = vpack.c.bf16 %v5098, %v5098
        %v5102 = vsel %vm4678, %v5099, 0
        %v5105 = vsel %vm4682, %v5100, 0
        %5107 = vmatprep.subr.bf16.mxu0 0
        %5108 = vmatpush1.bf16.msra.mxu0 0
        %5109 = vmatprep.subr.bf16.mxu0 0
        %5110 = vmatpush1.bf16.msra.mxu0 0
        %5111 = vmatprep.subr.bf16.mxu0 0
        %5112 = vmatpush1.bf16.msra.mxu0 0
        %5113 = vmatprep.subr.bf16.mxu0 0
        %5114 = vmatpush1.bf16.msra.mxu0 0
        %5115 = vmatprep.subr.bf16.mxu0 0
        %5116 = vmatpush1.bf16.msra.mxu0 0
        %5117 = vmatprep.subr.bf16.mxu0 0
        %5118 = vmatpush1.bf16.msra.mxu0 0
        %5119 = vmatprep.subr.bf16.mxu0 0
        %5120 = vmatpush1.bf16.msra.mxu0 0
        %5121 = vmatprep.subr.bf16.mxu0 0
        %5122 = vmatpush1.bf16.msra.mxu0 %v5105
        %5123 = vmatprep.subr.bf16.mxu0 0
        %5124 = vmatpush2.bf16.msra.mxu0 0
        %5125 = vmatprep.subr.bf16.mxu0 0
        %5126 = vmatpush2.bf16.msra.mxu0 0
        %5127 = vmatprep.subr.bf16.mxu0 0
        %5128 = vmatpush2.bf16.msra.mxu0 0
        %5129 = vmatprep.subr.bf16.mxu0 0
        %5130 = vmatpush2.bf16.msra.mxu0 0
        %5131 = vmatprep.subr.bf16.mxu0 0
        %5132 = vmatpush2.bf16.msra.mxu0 0
        %5133 = vmatprep.subr.bf16.mxu0 0
        %5134 = vmatpush2.bf16.msra.mxu0 0
        %5135 = vmatprep.subr.bf16.mxu0 0
        %5136 = vmatpush2.bf16.msra.mxu0 0
        %5137 = vmatprep.subr.bf16.mxu0 0
        %5138 = vmatpush2.bf16.msra.mxu0 0
        %5139 = vmatprep.mubr.bf16.mxu0 0
        %5140 = vmatmul.mubr.bf16.gmra.mxu0 %v5102
        %v5141 = vpop.f32.mrf.mxu0
        %v5142 = vadd.f32 0.0, %v5141
        %v5143 = vpop.f32.mrf.mxu0
        %v5144 = vpop.f32.mrf.mxu0
        %v5145 = vpop.f32.mrf.mxu0
        %5146 = vdwg.mxu0
        %s5147 = scalar_lea.vmem %s59, 1
        %v5148 = vld [vmem:[%s5147] sm:$0x1]
        %v5150 = vsel %vm4678, %v5148, 0
        %5152 = vmatprep.subr.bf16.mxu0 0
        %5153 = vmatpush1.bf16.msra.mxu0 0
        %5154 = vmatprep.subr.bf16.mxu0 0
        %5155 = vmatpush1.bf16.msra.mxu0 0
        %5156 = vmatprep.subr.bf16.mxu0 0
        %5157 = vmatpush1.bf16.msra.mxu0 0
        %5158 = vmatprep.subr.bf16.mxu0 0
        %5159 = vmatpush1.bf16.msra.mxu0 0
        %5160 = vmatprep.subr.bf16.mxu0 0
        %5161 = vmatpush1.bf16.msra.mxu0 0
        %5162 = vmatprep.subr.bf16.mxu0 0
        %5163 = vmatpush1.bf16.msra.mxu0 0
        %5164 = vmatprep.subr.bf16.mxu0 0
        %5165 = vmatpush1.bf16.msra.mxu0 0
        %5166 = vmatprep.subr.bf16.mxu0 0
        %5167 = vmatpush1.bf16.msra.mxu0 %v5105
        %5168 = vmatprep.subr.bf16.mxu0 0
        %5169 = vmatpush2.bf16.msra.mxu0 0
        %5170 = vmatprep.subr.bf16.mxu0 0
        %5171 = vmatpush2.bf16.msra.mxu0 0
        %5172 = vmatprep.subr.bf16.mxu0 0
        %5173 = vmatpush2.bf16.msra.mxu0 0
        %5174 = vmatprep.subr.bf16.mxu0 0
        %5175 = vmatpush2.bf16.msra.mxu0 0
        %5176 = vmatprep.subr.bf16.mxu0 0
        %5177 = vmatpush2.bf16.msra.mxu0 0
        %5178 = vmatprep.subr.bf16.mxu0 0
        %5179 = vmatpush2.bf16.msra.mxu0 0
        %5180 = vmatprep.subr.bf16.mxu0 0
        %5181 = vmatpush2.bf16.msra.mxu0 0
        %5182 = vmatprep.subr.bf16.mxu0 0
        %5183 = vmatpush2.bf16.msra.mxu0 0
        %5184 = vmatprep.mubr.bf16.mxu0 0
        %5185 = vmatmul.mubr.bf16.gmra.mxu0 %v5150
        %v5186 = vpop.f32.mrf.mxu0
        %v5187 = vadd.f32 0.0, %v5186
        %v5188 = vpop.f32.mrf.mxu0
        %v5189 = vpop.f32.mrf.mxu0
        %v5190 = vpop.f32.mrf.mxu0
        %5191 = vdwg.mxu0
        %s5192 = scalar_lea.vmem %s59, 2
        %v5193 = vld [vmem:[%s5192] sm:$0x1]
        %v5195 = vsel %vm4678, %v5193, 0
        %5197 = vmatprep.subr.bf16.mxu0 0
        %5198 = vmatpush1.bf16.msra.mxu0 0
        %5199 = vmatprep.subr.bf16.mxu0 0
        %5200 = vmatpush1.bf16.msra.mxu0 0
        %5201 = vmatprep.subr.bf16.mxu0 0
        %5202 = vmatpush1.bf16.msra.mxu0 0
        %5203 = vmatprep.subr.bf16.mxu0 0
        %5204 = vmatpush1.bf16.msra.mxu0 0
        %5205 = vmatprep.subr.bf16.mxu0 0
        %5206 = vmatpush1.bf16.msra.mxu0 0
        %5207 = vmatprep.subr.bf16.mxu0 0
        %5208 = vmatpush1.bf16.msra.mxu0 0
        %5209 = vmatprep.subr.bf16.mxu0 0
        %5210 = vmatpush1.bf16.msra.mxu0 0
        %5211 = vmatprep.subr.bf16.mxu0 0
        %5212 = vmatpush1.bf16.msra.mxu0 %v5105
        %5213 = vmatprep.subr.bf16.mxu0 0
        %5214 = vmatpush2.bf16.msra.mxu0 0
        %5215 = vmatprep.subr.bf16.mxu0 0
        %5216 = vmatpush2.bf16.msra.mxu0 0
        %5217 = vmatprep.subr.bf16.mxu0 0
        %5218 = vmatpush2.bf16.msra.mxu0 0
        %5219 = vmatprep.subr.bf16.mxu0 0
        %5220 = vmatpush2.bf16.msra.mxu0 0
        %5221 = vmatprep.subr.bf16.mxu0 0
        %5222 = vmatpush2.bf16.msra.mxu0 0
        %5223 = vmatprep.subr.bf16.mxu0 0
        %5224 = vmatpush2.bf16.msra.mxu0 0
        %5225 = vmatprep.subr.bf16.mxu0 0
        %5226 = vmatpush2.bf16.msra.mxu0 0
        %5227 = vmatprep.subr.bf16.mxu0 0
        %5228 = vmatpush2.bf16.msra.mxu0 0
        %5229 = vmatprep.mubr.bf16.mxu0 0
        %5230 = vmatmul.mubr.bf16.gmra.mxu0 %v5195
        %v5231 = vpop.f32.mrf.mxu0
        %v5232 = vadd.f32 0.0, %v5231
        %v5233 = vpop.f32.mrf.mxu0
        %v5234 = vpop.f32.mrf.mxu0
        %v5235 = vpop.f32.mrf.mxu0
        %5236 = vdwg.mxu0
        %v5237 = vld [vmem:[#allocation16] sm:$0xf]
        %v5238 = vld [vmem:[#allocation16 + $0x4] sm:$0xf]
        %v5239 = vld [vmem:[#allocation16 + $0x8] sm:$0xf]
        %v5240 = vld [vmem:[#allocation16 + $0xc] sm:$0xf]
        %v5241 = vld [vmem:[#allocation16 + $0x10] sm:$0xf]
        %v5242 = vld [vmem:[#allocation16 + $0x14] sm:$0xf]
        %v5243 = vld [vmem:[#allocation16 + $0x18] sm:$0xf]
        %v5244 = vld [vmem:[#allocation16 + $0x1c] sm:$0xf]
        %v5245 = vld [vmem:[#allocation16 + $0x20] sm:$0xf]
        %v5246 = vld [vmem:[#allocation16 + $0x24] sm:$0xf]
        %v5247 = vld [vmem:[#allocation16 + $0x28] sm:$0xf]
        %v5248 = vld [vmem:[#allocation16 + $0x2c] sm:$0xf]
        %v5249 = vld [vmem:[#allocation16 + $0x30] sm:$0xf]
        %v5250 = vld [vmem:[#allocation16 + $0x34] sm:$0xf]
        %v5251 = vld [vmem:[#allocation16 + $0x38] sm:$0xf]
        %v5252 = vld [vmem:[#allocation16 + $0x3c] sm:$0xf]
        %v5253 = vld [vmem:[#allocation16 + $0x40] sm:$0xf]
        %v5254 = vld [vmem:[#allocation16 + $0x44] sm:$0xf]
        %v5255 = vld [vmem:[#allocation16 + $0x48] sm:$0xf]
        %v5256 = vld [vmem:[#allocation16 + $0x4c] sm:$0xf]
        %v5257 = vld [vmem:[#allocation16 + $0x50] sm:$0xf]
        %v5258 = vld [vmem:[#allocation16 + $0x54] sm:$0xf]
        %v5259 = vld [vmem:[#allocation16 + $0x58] sm:$0xf]
        %v5260 = vld [vmem:[#allocation16 + $0x5c] sm:$0xf]
        %v5261 = vld [vmem:[#allocation16 + $0x60] sm:$0xf]
        %v5262 = vld [vmem:[#allocation16 + $0x64] sm:$0xf]
        %v5263 = vld [vmem:[#allocation16 + $0x68] sm:$0xf]
        %v5264 = vld [vmem:[#allocation16 + $0x6c] sm:$0xf]
        %v5265 = vld [vmem:[#allocation16 + $0x70] sm:$0xf]
        %v5266 = vld [vmem:[#allocation16 + $0x74] sm:$0xf]
        %v5267 = vld [vmem:[#allocation16 + $0x78] sm:$0xf]
        %v5268 = vld [vmem:[#allocation16 + $0x7c] sm:$0xf]
        %v5269 = vld [vmem:[#allocation16 + $0x80] sm:$0xf]
        %v5270 = vld [vmem:[#allocation16 + $0x84] sm:$0xf]
        %v5271 = vld [vmem:[#allocation16 + $0x88] sm:$0xf]
        %v5272 = vld [vmem:[#allocation16 + $0x8c] sm:$0xf]
        %v5273 = vld [vmem:[#allocation16 + $0x90] sm:$0xf]
        %v5274 = vld [vmem:[#allocation16 + $0x94] sm:$0xf]
        %v5275 = vld [vmem:[#allocation16 + $0x98] sm:$0xf]
        %v5276 = vld [vmem:[#allocation16 + $0x9c] sm:$0xf]
        %v5277 = vld [vmem:[#allocation16 + $0xa0] sm:$0xf]
        %v5278 = vld [vmem:[#allocation16 + $0xa4] sm:$0xf]
        %v5279 = vld [vmem:[#allocation16 + $0xa8] sm:$0xf]
        %v5280 = vld [vmem:[#allocation16 + $0xac] sm:$0xf]
        %v5281 = vld [vmem:[#allocation16 + $0xb0] sm:$0xf]
        %v5282 = vld [vmem:[#allocation16 + $0xb4] sm:$0xf]
        %v5283 = vld [vmem:[#allocation16 + $0xb8] sm:$0xf]
        %v5284 = vld [vmem:[#allocation16 + $0xbc] sm:$0xf]
        %v5285 = vpack.c.bf16 %v5142, %v5142
        %v5286 = vpack.c.bf16 %v5187, %v5187
        %v5287 = vpack.c.bf16 %v5232, %v5232
        %v5288 = vld [vmem:[%s63] sm:$0x1]
        %v5290 = vlaneseq
        %v5291 = vshrl.u32 %v5290, 7
        %v5292 = vsub.s32 0, %v5291
        %v5293 = vrot.slane %v5288, %v5292
        %v5343 = vunpack.c.l.b16 %v5237
        %v5344 = vunpack.c.l.b16 %v5238
        %v5345 = vunpack.c.l.b16 %v5239
        %v5346 = vunpack.c.l.b16 %v5240
        %v5347 = vunpack.c.l.b16 %v5241
        %v5348 = vunpack.c.l.b16 %v5242
        %v5349 = vunpack.c.l.b16 %v5243
        %v5350 = vunpack.c.l.b16 %v5244
        %v5351 = vunpack.c.l.b16 %v5245
        %v5352 = vunpack.c.l.b16 %v5246
        %v5353 = vunpack.c.l.b16 %v5247
        %v5354 = vunpack.c.l.b16 %v5248
        %v5355 = vunpack.c.l.b16 %v5249
        %v5356 = vunpack.c.l.b16 %v5250
        %v5357 = vunpack.c.l.b16 %v5251
        %v5358 = vunpack.c.l.b16 %v5252
        %v5359 = vunpack.c.l.b16 %v5253
        %v5360 = vunpack.c.l.b16 %v5254
        %v5361 = vunpack.c.l.b16 %v5255
        %v5362 = vunpack.c.l.b16 %v5256
        %v5363 = vunpack.c.l.b16 %v5257
        %v5364 = vunpack.c.l.b16 %v5258
        %v5365 = vunpack.c.l.b16 %v5259
        %v5366 = vunpack.c.l.b16 %v5260
        %v5367 = vunpack.c.l.b16 %v5261
        %v5368 = vunpack.c.l.b16 %v5262
        %v5369 = vunpack.c.l.b16 %v5263
        %v5370 = vunpack.c.l.b16 %v5264
        %v5371 = vunpack.c.l.b16 %v5265
        %v5372 = vunpack.c.l.b16 %v5266
        %v5373 = vunpack.c.l.b16 %v5267
        %v5374 = vunpack.c.l.b16 %v5268
        %v5375 = vunpack.c.l.b16 %v5269
        %v5376 = vunpack.c.l.b16 %v5270
        %v5377 = vunpack.c.l.b16 %v5271
        %v5378 = vunpack.c.l.b16 %v5272
        %v5379 = vunpack.c.l.b16 %v5273
        %v5380 = vunpack.c.l.b16 %v5274
        %v5381 = vunpack.c.l.b16 %v5275
        %v5382 = vunpack.c.l.b16 %v5276
        %v5383 = vunpack.c.l.b16 %v5277
        %v5384 = vunpack.c.l.b16 %v5278
        %v5385 = vunpack.c.l.b16 %v5279
        %v5386 = vunpack.c.l.b16 %v5280
        %v5387 = vunpack.c.l.b16 %v5281
        %v5388 = vunpack.c.l.b16 %v5282
        %v5389 = vunpack.c.l.b16 %v5283
        %v5390 = vunpack.c.l.b16 %v5284
        %v5391 = vpack.c.b16 %v5344, %v5343
        %v5392 = vpack.c.b16 %v5346, %v5345
        %v5393 = vpack.c.b16 %v5348, %v5347
        %v5394 = vpack.c.b16 %v5350, %v5349
        %v5395 = vpack.c.b16 %v5352, %v5351
        %v5396 = vpack.c.b16 %v5354, %v5353
        %v5397 = vpack.c.b16 %v5356, %v5355
        %v5398 = vpack.c.b16 %v5358, %v5357
        %v5399 = vpack.c.b16 %v5360, %v5359
        %v5400 = vpack.c.b16 %v5362, %v5361
        %v5401 = vpack.c.b16 %v5364, %v5363
        %v5402 = vpack.c.b16 %v5366, %v5365
        %v5403 = vpack.c.b16 %v5368, %v5367
        %v5404 = vpack.c.b16 %v5370, %v5369
        %v5405 = vpack.c.b16 %v5372, %v5371
        %v5406 = vpack.c.b16 %v5374, %v5373
        %v5407 = vpack.c.b16 %v5376, %v5375
        %v5408 = vpack.c.b16 %v5378, %v5377
        %v5409 = vpack.c.b16 %v5380, %v5379
        %v5410 = vpack.c.b16 %v5382, %v5381
        %v5411 = vpack.c.b16 %v5384, %v5383
        %v5412 = vpack.c.b16 %v5386, %v5385
        %v5413 = vpack.c.b16 %v5388, %v5387
        %v5414 = vpack.c.b16 %v5390, %v5389
        %5439 = vmatprep.subr.bf16.mxu0 0
        %5440 = vmatpush1.bf16.msra.mxu0 %v5398
        %5441 = vmatprep.subr.bf16.mxu0 0
        %5442 = vmatpush1.bf16.msra.mxu0 %v5397
        %5443 = vmatprep.subr.bf16.mxu0 0
        %5444 = vmatpush1.bf16.msra.mxu0 %v5396
        %5445 = vmatprep.subr.bf16.mxu0 0
        %5446 = vmatpush1.bf16.msra.mxu0 %v5395
        %5447 = vmatprep.subr.bf16.mxu0 0
        %5448 = vmatpush1.bf16.msra.mxu0 %v5394
        %5449 = vmatprep.subr.bf16.mxu0 0
        %5450 = vmatpush1.bf16.msra.mxu0 %v5393
        %5451 = vmatprep.subr.bf16.mxu0 0
        %5452 = vmatpush1.bf16.msra.mxu0 %v5392
        %5453 = vmatprep.subr.bf16.mxu0 0
        %5454 = vmatpush1.bf16.msra.mxu0 %v5391
        %5455 = vmatprep.subr.bf16.mxu0 0
        %5456 = vmatpush2.bf16.msra.mxu0 %v5406
        %5457 = vmatprep.subr.bf16.mxu0 0
        %5458 = vmatpush2.bf16.msra.mxu0 %v5405
        %5459 = vmatprep.subr.bf16.mxu0 0
        %5460 = vmatpush2.bf16.msra.mxu0 %v5404
        %5461 = vmatprep.subr.bf16.mxu0 0
        %5462 = vmatpush2.bf16.msra.mxu0 %v5403
        %5463 = vmatprep.subr.bf16.mxu0 0
        %5464 = vmatpush2.bf16.msra.mxu0 %v5402
        %5465 = vmatprep.subr.bf16.mxu0 0
        %5466 = vmatpush2.bf16.msra.mxu0 %v5401
        %5467 = vmatprep.subr.bf16.mxu0 0
        %5468 = vmatpush2.bf16.msra.mxu0 %v5400
        %5469 = vmatprep.subr.bf16.mxu0 0
        %5470 = vmatpush2.bf16.msra.mxu0 %v5399
        %5471 = vmatprep.mubr.bf16.mxu0 %v5286
        %5472 = vmatmul.mubr.bf16.gmra.mxu0 %v5285
        %v5473 = vpop.f32.mrf.mxu0
        %v5474 = vadd.f32 %v5293, %v5473
        %v5475 = vpop.f32.mrf.mxu0
        %v5476 = vpop.f32.mrf.mxu0
        %v5477 = vpop.f32.mrf.mxu0
        %5478 = vdwg.mxu0
        %5479 = vmatprep.subr.bf16.mxu0 0
        %5480 = vmatpush1.bf16.msra.mxu0 %v5414
        %5481 = vmatprep.subr.bf16.mxu0 0
        %5482 = vmatpush1.bf16.msra.mxu0 %v5413
        %5483 = vmatprep.subr.bf16.mxu0 0
        %5484 = vmatpush1.bf16.msra.mxu0 %v5412
        %5485 = vmatprep.subr.bf16.mxu0 0
        %5486 = vmatpush1.bf16.msra.mxu0 %v5411
        %5487 = vmatprep.subr.bf16.mxu0 0
        %5488 = vmatpush1.bf16.msra.mxu0 %v5410
        %5489 = vmatprep.subr.bf16.mxu0 0
        %5490 = vmatpush1.bf16.msra.mxu0 %v5409
        %5491 = vmatprep.subr.bf16.mxu0 0
        %5492 = vmatpush1.bf16.msra.mxu0 %v5408
        %5493 = vmatprep.subr.bf16.mxu0 0
        %5494 = vmatpush1.bf16.msra.mxu0 %v5407
        %5495 = vmatprep.subr.bf16.mxu0 0
        %5496 = vmatpush2.bf16.msra.mxu0 0
        %5497 = vmatprep.subr.bf16.mxu0 0
        %5498 = vmatpush2.bf16.msra.mxu0 0
        %5499 = vmatprep.subr.bf16.mxu0 0
        %5500 = vmatpush2.bf16.msra.mxu0 0
        %5501 = vmatprep.subr.bf16.mxu0 0
        %5502 = vmatpush2.bf16.msra.mxu0 0
        %5503 = vmatprep.subr.bf16.mxu0 0
        %5504 = vmatpush2.bf16.msra.mxu0 0
        %5505 = vmatprep.subr.bf16.mxu0 0
        %5506 = vmatpush2.bf16.msra.mxu0 0
        %5507 = vmatprep.subr.bf16.mxu0 0
        %5508 = vmatpush2.bf16.msra.mxu0 0
        %5509 = vmatprep.subr.bf16.mxu0 0
        %5510 = vmatpush2.bf16.msra.mxu0 0
        %5511 = vmatprep.mubr.bf16.mxu0 0
        %5512 = vmatmul.mubr.bf16.gmra.mxu0 %v5287
        %v5513 = vpop.f32.mrf.mxu0
        %v5514 = vadd.f32 %v5474, %v5513
        %v5515 = vpop.f32.mrf.mxu0
        %v5516 = vpop.f32.mrf.mxu0
        %v5517 = vpop.f32.mrf.mxu0
        %5518 = vdwg.mxu0
        %v5519 = vmax.f32 %v5514, 0.0
        %v5520 = vld [vmem:[#allocation17] sm:$0xf]
        %v5521 = vld [vmem:[#allocation17 + $0x4] sm:$0xf]
        %v5522 = vld [vmem:[#allocation17 + $0x8] sm:$0xf]
        %v5523 = vld [vmem:[#allocation17 + $0xc] sm:$0xf]
        %v5524 = vld [vmem:[#allocation17 + $0x10] sm:$0xf]
        %v5525 = vld [vmem:[#allocation17 + $0x14] sm:$0xf]
        %v5526 = vld [vmem:[#allocation17 + $0x18] sm:$0xf]
        %v5527 = vld [vmem:[#allocation17 + $0x1c] sm:$0xf]
        %v5528 = vld [vmem:[#allocation17 + $0x20] sm:$0xf]
        %v5529 = vld [vmem:[#allocation17 + $0x24] sm:$0xf]
        %v5530 = vld [vmem:[#allocation17 + $0x28] sm:$0xf]
        %v5531 = vld [vmem:[#allocation17 + $0x2c] sm:$0xf]
        %v5532 = vld [vmem:[#allocation17 + $0x30] sm:$0xf]
        %v5533 = vld [vmem:[#allocation17 + $0x34] sm:$0xf]
        %v5534 = vld [vmem:[#allocation17 + $0x38] sm:$0xf]
        %v5535 = vld [vmem:[#allocation17 + $0x3c] sm:$0xf]
        %v5536 = vpack.c.bf16 %v5519, %v5519
        %v5537 = vld [vmem:[%s67] sm:$0x1]
        %v5539 = vlaneseq
        %v5540 = vshrl.u32 %v5539, 7
        %v5541 = vsub.s32 0, %v5540
        %v5542 = vrot.slane %v5537, %v5541
        %v5560 = vunpack.c.l.b16 %v5520
        %v5561 = vunpack.c.l.b16 %v5521
        %v5562 = vunpack.c.l.b16 %v5522
        %v5563 = vunpack.c.l.b16 %v5523
        %v5564 = vunpack.c.l.b16 %v5524
        %v5565 = vunpack.c.l.b16 %v5525
        %v5566 = vunpack.c.l.b16 %v5526
        %v5567 = vunpack.c.l.b16 %v5527
        %v5568 = vunpack.c.l.b16 %v5528
        %v5569 = vunpack.c.l.b16 %v5529
        %v5570 = vunpack.c.l.b16 %v5530
        %v5571 = vunpack.c.l.b16 %v5531
        %v5572 = vunpack.c.l.b16 %v5532
        %v5573 = vunpack.c.l.b16 %v5533
        %v5574 = vunpack.c.l.b16 %v5534
        %v5575 = vunpack.c.l.b16 %v5535
        %v5576 = vpack.c.b16 %v5561, %v5560
        %v5577 = vpack.c.b16 %v5563, %v5562
        %v5578 = vpack.c.b16 %v5565, %v5564
        %v5579 = vpack.c.b16 %v5567, %v5566
        %v5580 = vpack.c.b16 %v5569, %v5568
        %v5581 = vpack.c.b16 %v5571, %v5570
        %v5582 = vpack.c.b16 %v5573, %v5572
        %v5583 = vpack.c.b16 %v5575, %v5574
        %5592 = vmatprep.subr.bf16.mxu0 0
        %5593 = vmatpush1.bf16.msra.mxu0 %v5583
        %5594 = vmatprep.subr.bf16.mxu0 0
        %5595 = vmatpush1.bf16.msra.mxu0 %v5582
        %5596 = vmatprep.subr.bf16.mxu0 0
        %5597 = vmatpush1.bf16.msra.mxu0 %v5581
        %5598 = vmatprep.subr.bf16.mxu0 0
        %5599 = vmatpush1.bf16.msra.mxu0 %v5580
        %5600 = vmatprep.subr.bf16.mxu0 0
        %5601 = vmatpush1.bf16.msra.mxu0 %v5579
        %5602 = vmatprep.subr.bf16.mxu0 0
        %5603 = vmatpush1.bf16.msra.mxu0 %v5578
        %5604 = vmatprep.subr.bf16.mxu0 0
        %5605 = vmatpush1.bf16.msra.mxu0 %v5577
        %5606 = vmatprep.subr.bf16.mxu0 0
        %5607 = vmatpush1.bf16.msra.mxu0 %v5576
        %5608 = vmatprep.subr.bf16.mxu0 0
        %5609 = vmatpush2.bf16.msra.mxu0 0
        %5610 = vmatprep.subr.bf16.mxu0 0
        %5611 = vmatpush2.bf16.msra.mxu0 0
        %5612 = vmatprep.subr.bf16.mxu0 0
        %5613 = vmatpush2.bf16.msra.mxu0 0
        %5614 = vmatprep.subr.bf16.mxu0 0
        %5615 = vmatpush2.bf16.msra.mxu0 0
        %5616 = vmatprep.subr.bf16.mxu0 0
        %5617 = vmatpush2.bf16.msra.mxu0 0
        %5618 = vmatprep.subr.bf16.mxu0 0
        %5619 = vmatpush2.bf16.msra.mxu0 0
        %5620 = vmatprep.subr.bf16.mxu0 0
        %5621 = vmatpush2.bf16.msra.mxu0 0
        %5622 = vmatprep.subr.bf16.mxu0 0
        %5623 = vmatpush2.bf16.msra.mxu0 0
        %5624 = vmatprep.mubr.bf16.mxu0 0
        %5625 = vmatmul.mubr.bf16.gmra.mxu0 %v5536
        %v5626 = vpop.f32.mrf.mxu0
        %v5627 = vadd.f32 %v5542, %v5626
        %v5628 = vpop.f32.mrf.mxu0
        %v5629 = vpop.f32.mrf.mxu0
        %v5630 = vpop.f32.mrf.mxu0
        %5631 = vdwg.mxu0
        %v5632 = vmax.f32 %v5627, 0.0
        %v5633 = vld [vmem:[%s69] sm:$0x1]
        %v5634 = vpack.c.bf16 %v5632, %v5632
        %v5636 = vsel %vm4678, %v5633, 0
        %v5639 = vsel %vm4682, %v5634, 0
        %5641 = vmatprep.subr.bf16.mxu0 0
        %5642 = vmatpush1.bf16.msra.mxu0 0
        %5643 = vmatprep.subr.bf16.mxu0 0
        %5644 = vmatpush1.bf16.msra.mxu0 0
        %5645 = vmatprep.subr.bf16.mxu0 0
        %5646 = vmatpush1.bf16.msra.mxu0 0
        %5647 = vmatprep.subr.bf16.mxu0 0
        %5648 = vmatpush1.bf16.msra.mxu0 0
        %5649 = vmatprep.subr.bf16.mxu0 0
        %5650 = vmatpush1.bf16.msra.mxu0 0
        %5651 = vmatprep.subr.bf16.mxu0 0
        %5652 = vmatpush1.bf16.msra.mxu0 0
        %5653 = vmatprep.subr.bf16.mxu0 0
        %5654 = vmatpush1.bf16.msra.mxu0 0
        %5655 = vmatprep.subr.bf16.mxu0 0
        %5656 = vmatpush1.bf16.msra.mxu0 %v5639
        %5657 = vmatprep.subr.bf16.mxu0 0
        %5658 = vmatpush2.bf16.msra.mxu0 0
        %5659 = vmatprep.subr.bf16.mxu0 0
        %5660 = vmatpush2.bf16.msra.mxu0 0
        %5661 = vmatprep.subr.bf16.mxu0 0
        %5662 = vmatpush2.bf16.msra.mxu0 0
        %5663 = vmatprep.subr.bf16.mxu0 0
        %5664 = vmatpush2.bf16.msra.mxu0 0
        %5665 = vmatprep.subr.bf16.mxu0 0
        %5666 = vmatpush2.bf16.msra.mxu0 0
        %5667 = vmatprep.subr.bf16.mxu0 0
        %5668 = vmatpush2.bf16.msra.mxu0 0
        %5669 = vmatprep.subr.bf16.mxu0 0
        %5670 = vmatpush2.bf16.msra.mxu0 0
        %5671 = vmatprep.subr.bf16.mxu0 0
        %5672 = vmatpush2.bf16.msra.mxu0 0
        %5673 = vmatprep.mubr.bf16.mxu0 0
        %5674 = vmatmul.mubr.bf16.gmra.mxu0 %v5636
        %v5675 = vpop.f32.mrf.mxu0
        %v5676 = vadd.f32 0.0, %v5675
        %v5677 = vpop.f32.mrf.mxu0
        %v5678 = vpop.f32.mrf.mxu0
        %v5679 = vpop.f32.mrf.mxu0
        %5680 = vdwg.mxu0
        %v5681 = vld [vmem:[#allocation19] sm:$0xf]
        %v5682 = vld [vmem:[#allocation19 + $0x4] sm:$0xf]
        %v5683 = vld [vmem:[#allocation19 + $0x8] sm:$0xf]
        %v5684 = vld [vmem:[#allocation19 + $0xc] sm:$0xf]
        %v5685 = vld [vmem:[#allocation19 + $0x10] sm:$0xf]
        %v5686 = vld [vmem:[#allocation19 + $0x14] sm:$0xf]
        %v5687 = vld [vmem:[#allocation19 + $0x18] sm:$0xf]
        %v5688 = vld [vmem:[#allocation19 + $0x1c] sm:$0xf]
        %v5689 = vld [vmem:[#allocation19 + $0x20] sm:$0xf]
        %v5690 = vld [vmem:[#allocation19 + $0x24] sm:$0xf]
        %v5691 = vld [vmem:[#allocation19 + $0x28] sm:$0xf]
        %v5692 = vld [vmem:[#allocation19 + $0x2c] sm:$0xf]
        %v5693 = vld [vmem:[#allocation19 + $0x30] sm:$0xf]
        %v5694 = vld [vmem:[#allocation19 + $0x34] sm:$0xf]
        %v5695 = vld [vmem:[#allocation19 + $0x38] sm:$0xf]
        %v5696 = vld [vmem:[#allocation19 + $0x3c] sm:$0xf]
        %v5697 = vpack.c.bf16 %v5676, %v5676
        %v5714 = vunpack.c.l.b16 %v5681
        %v5715 = vunpack.c.l.b16 %v5682
        %v5716 = vunpack.c.l.b16 %v5683
        %v5717 = vunpack.c.l.b16 %v5684
        %v5718 = vunpack.c.l.b16 %v5685
        %v5719 = vunpack.c.l.b16 %v5686
        %v5720 = vunpack.c.l.b16 %v5687
        %v5721 = vunpack.c.l.b16 %v5688
        %v5722 = vunpack.c.l.b16 %v5689
        %v5723 = vunpack.c.l.b16 %v5690
        %v5724 = vunpack.c.l.b16 %v5691
        %v5725 = vunpack.c.l.b16 %v5692
        %v5726 = vunpack.c.l.b16 %v5693
        %v5727 = vunpack.c.l.b16 %v5694
        %v5728 = vunpack.c.l.b16 %v5695
        %v5729 = vunpack.c.l.b16 %v5696
        %v5730 = vpack.c.b16 %v5715, %v5714
        %v5731 = vpack.c.b16 %v5717, %v5716
        %v5732 = vpack.c.b16 %v5719, %v5718
        %v5733 = vpack.c.b16 %v5721, %v5720
        %v5734 = vpack.c.b16 %v5723, %v5722
        %v5735 = vpack.c.b16 %v5725, %v5724
        %v5736 = vpack.c.b16 %v5727, %v5726
        %v5737 = vpack.c.b16 %v5729, %v5728
        %5746 = vmatprep.subr.bf16.mxu0 0
        %5747 = vmatpush1.bf16.msra.mxu0 %v5737
        %5748 = vmatprep.subr.bf16.mxu0 0
        %5749 = vmatpush1.bf16.msra.mxu0 %v5736
        %5750 = vmatprep.subr.bf16.mxu0 0
        %5751 = vmatpush1.bf16.msra.mxu0 %v5735
        %5752 = vmatprep.subr.bf16.mxu0 0
        %5753 = vmatpush1.bf16.msra.mxu0 %v5734
        %5754 = vmatprep.subr.bf16.mxu0 0
        %5755 = vmatpush1.bf16.msra.mxu0 %v5733
        %5756 = vmatprep.subr.bf16.mxu0 0
        %5757 = vmatpush1.bf16.msra.mxu0 %v5732
        %5758 = vmatprep.subr.bf16.mxu0 0
        %5759 = vmatpush1.bf16.msra.mxu0 %v5731
        %5760 = vmatprep.subr.bf16.mxu0 0
        %5761 = vmatpush1.bf16.msra.mxu0 %v5730
        %5762 = vmatprep.subr.bf16.mxu0 0
        %5763 = vmatpush2.bf16.msra.mxu0 0
        %5764 = vmatprep.subr.bf16.mxu0 0
        %5765 = vmatpush2.bf16.msra.mxu0 0
        %5766 = vmatprep.subr.bf16.mxu0 0
        %5767 = vmatpush2.bf16.msra.mxu0 0
        %5768 = vmatprep.subr.bf16.mxu0 0
        %5769 = vmatpush2.bf16.msra.mxu0 0
        %5770 = vmatprep.subr.bf16.mxu0 0
        %5771 = vmatpush2.bf16.msra.mxu0 0
        %5772 = vmatprep.subr.bf16.mxu0 0
        %5773 = vmatpush2.bf16.msra.mxu0 0
        %5774 = vmatprep.subr.bf16.mxu0 0
        %5775 = vmatpush2.bf16.msra.mxu0 0
        %5776 = vmatprep.subr.bf16.mxu0 0
        %5777 = vmatpush2.bf16.msra.mxu0 0
        %5778 = vmatprep.mubr.bf16.mxu0 0
        %5779 = vmatmul.mubr.bf16.gmra.mxu0 %v5697
        %v5780 = vpop.f32.mrf.mxu0
        %v5781 = vadd.f32 0.0, %v5780
        %v5782 = vpop.f32.mrf.mxu0
        %v5783 = vpop.f32.mrf.mxu0
        %v5784 = vpop.f32.mrf.mxu0
        %5785 = vdwg.mxu0
        %v5786 = vld [vmem:[#allocation20] sm:$0xf]
        %v5787 = vld [vmem:[#allocation20 + $0x4] sm:$0xf]
        %v5788 = vld [vmem:[#allocation20 + $0x8] sm:$0xf]
        %v5789 = vld [vmem:[#allocation20 + $0xc] sm:$0xf]
        %v5790 = vld [vmem:[#allocation20 + $0x10] sm:$0xf]
        %v5791 = vld [vmem:[#allocation20 + $0x14] sm:$0xf]
        %v5792 = vld [vmem:[#allocation20 + $0x18] sm:$0xf]
        %v5793 = vld [vmem:[#allocation20 + $0x1c] sm:$0xf]
        %v5794 = vld [vmem:[#allocation20 + $0x20] sm:$0xf]
        %v5795 = vld [vmem:[#allocation20 + $0x24] sm:$0xf]
        %v5796 = vld [vmem:[#allocation20 + $0x28] sm:$0xf]
        %v5797 = vld [vmem:[#allocation20 + $0x2c] sm:$0xf]
        %v5798 = vld [vmem:[#allocation20 + $0x30] sm:$0xf]
        %v5799 = vld [vmem:[#allocation20 + $0x34] sm:$0xf]
        %v5800 = vld [vmem:[#allocation20 + $0x38] sm:$0xf]
        %v5801 = vld [vmem:[#allocation20 + $0x3c] sm:$0xf]
        %v5802 = vpack.c.bf16 %v5781, %v5781
        %v5803 = vld [vmem:[%s75] sm:$0x1]
        %v5820 = vunpack.c.l.b16 %v5786
        %v5821 = vunpack.c.l.b16 %v5787
        %v5822 = vunpack.c.l.b16 %v5788
        %v5823 = vunpack.c.l.b16 %v5789
        %v5824 = vunpack.c.l.b16 %v5790
        %v5825 = vunpack.c.l.b16 %v5791
        %v5826 = vunpack.c.l.b16 %v5792
        %v5827 = vunpack.c.l.b16 %v5793
        %v5828 = vunpack.c.l.b16 %v5794
        %v5829 = vunpack.c.l.b16 %v5795
        %v5830 = vunpack.c.l.b16 %v5796
        %v5831 = vunpack.c.l.b16 %v5797
        %v5832 = vunpack.c.l.b16 %v5798
        %v5833 = vunpack.c.l.b16 %v5799
        %v5834 = vunpack.c.l.b16 %v5800
        %v5835 = vunpack.c.l.b16 %v5801
        %v5836 = vpack.c.b16 %v5821, %v5820
        %v5837 = vpack.c.b16 %v5823, %v5822
        %v5838 = vpack.c.b16 %v5825, %v5824
        %v5839 = vpack.c.b16 %v5827, %v5826
        %v5840 = vpack.c.b16 %v5829, %v5828
        %v5841 = vpack.c.b16 %v5831, %v5830
        %v5842 = vpack.c.b16 %v5833, %v5832
        %v5843 = vpack.c.b16 %v5835, %v5834
        %5852 = vmatprep.subr.bf16.mxu0 0
        %5853 = vmatpush1.bf16.msra.mxu0 %v5843
        %5854 = vmatprep.subr.bf16.mxu0 0
        %5855 = vmatpush1.bf16.msra.mxu0 %v5842
        %5856 = vmatprep.subr.bf16.mxu0 0
        %5857 = vmatpush1.bf16.msra.mxu0 %v5841
        %5858 = vmatprep.subr.bf16.mxu0 0
        %5859 = vmatpush1.bf16.msra.mxu0 %v5840
        %5860 = vmatprep.subr.bf16.mxu0 0
        %5861 = vmatpush1.bf16.msra.mxu0 %v5839
        %5862 = vmatprep.subr.bf16.mxu0 0
        %5863 = vmatpush1.bf16.msra.mxu0 %v5838
        %5864 = vmatprep.subr.bf16.mxu0 0
        %5865 = vmatpush1.bf16.msra.mxu0 %v5837
        %5866 = vmatprep.subr.bf16.mxu0 0
        %5867 = vmatpush1.bf16.msra.mxu0 %v5836
        %5868 = vmatprep.subr.bf16.mxu0 0
        %5869 = vmatpush2.bf16.msra.mxu0 0
        %5870 = vmatprep.subr.bf16.mxu0 0
        %5871 = vmatpush2.bf16.msra.mxu0 0
        %5872 = vmatprep.subr.bf16.mxu0 0
        %5873 = vmatpush2.bf16.msra.mxu0 0
        %5874 = vmatprep.subr.bf16.mxu0 0
        %5875 = vmatpush2.bf16.msra.mxu0 0
        %5876 = vmatprep.subr.bf16.mxu0 0
        %5877 = vmatpush2.bf16.msra.mxu0 0
        %5878 = vmatprep.subr.bf16.mxu0 0
        %5879 = vmatpush2.bf16.msra.mxu0 0
        %5880 = vmatprep.subr.bf16.mxu0 0
        %5881 = vmatpush2.bf16.msra.mxu0 0
        %5882 = vmatprep.subr.bf16.mxu0 0
        %5883 = vmatpush2.bf16.msra.mxu0 0
        %5884 = vmatprep.mubr.bf16.mxu0 0
        %5885 = vmatmul.mubr.bf16.gmra.mxu0 %v5802
        %v5886 = vpop.f32.mrf.mxu0
        %v5887 = vadd.f32 %v5803, %v5886
        %v5888 = vpop.f32.mrf.mxu0
        %v5889 = vpop.f32.mrf.mxu0
        %v5890 = vpop.f32.mrf.mxu0
        %5891 = vdwg.mxu0
        %v5892 = vmax.f32 %v5887, 0.0
        %v5893 = vld [vmem:[#allocation22] sm:$0xf]
        %v5894 = vld [vmem:[#allocation22 + $0x4] sm:$0xf]
        %v5895 = vld [vmem:[#allocation22 + $0x8] sm:$0xf]
        %v5896 = vld [vmem:[#allocation22 + $0xc] sm:$0xf]
        %v5897 = vld [vmem:[#allocation22 + $0x10] sm:$0xf]
        %v5898 = vld [vmem:[#allocation22 + $0x14] sm:$0xf]
        %v5899 = vld [vmem:[#allocation22 + $0x18] sm:$0xf]
        %v5900 = vld [vmem:[#allocation22 + $0x1c] sm:$0xf]
        %v5901 = vld [vmem:[#allocation22 + $0x20] sm:$0xf]
        %v5902 = vld [vmem:[#allocation22 + $0x24] sm:$0xf]
        %v5903 = vld [vmem:[#allocation22 + $0x28] sm:$0xf]
        %v5904 = vld [vmem:[#allocation22 + $0x2c] sm:$0xf]
        %v5905 = vld [vmem:[#allocation22 + $0x30] sm:$0xf]
        %v5906 = vld [vmem:[#allocation22 + $0x34] sm:$0xf]
        %v5907 = vld [vmem:[#allocation22 + $0x38] sm:$0xf]
        %v5908 = vld [vmem:[#allocation22 + $0x3c] sm:$0xf]
        %v5909 = vpack.c.bf16 %v5892, %v5892
        %v5926 = vunpack.c.l.b16 %v5893
        %v5927 = vunpack.c.l.b16 %v5894
        %v5928 = vunpack.c.l.b16 %v5895
        %v5929 = vunpack.c.l.b16 %v5896
        %v5930 = vunpack.c.l.b16 %v5897
        %v5931 = vunpack.c.l.b16 %v5898
        %v5932 = vunpack.c.l.b16 %v5899
        %v5933 = vunpack.c.l.b16 %v5900
        %v5934 = vunpack.c.l.b16 %v5901
        %v5935 = vunpack.c.l.b16 %v5902
        %v5936 = vunpack.c.l.b16 %v5903
        %v5937 = vunpack.c.l.b16 %v5904
        %v5938 = vunpack.c.l.b16 %v5905
        %v5939 = vunpack.c.l.b16 %v5906
        %v5940 = vunpack.c.l.b16 %v5907
        %v5941 = vunpack.c.l.b16 %v5908
        %v5942 = vpack.c.b16 %v5927, %v5926
        %v5943 = vpack.c.b16 %v5929, %v5928
        %v5944 = vpack.c.b16 %v5931, %v5930
        %v5945 = vpack.c.b16 %v5933, %v5932
        %v5946 = vpack.c.b16 %v5935, %v5934
        %v5947 = vpack.c.b16 %v5937, %v5936
        %v5948 = vpack.c.b16 %v5939, %v5938
        %v5949 = vpack.c.b16 %v5941, %v5940
        %5958 = vmatprep.subr.bf16.mxu0 0
        %5959 = vmatpush1.bf16.msra.mxu0 %v5949
        %5960 = vmatprep.subr.bf16.mxu0 0
        %5961 = vmatpush1.bf16.msra.mxu0 %v5948
        %5962 = vmatprep.subr.bf16.mxu0 0
        %5963 = vmatpush1.bf16.msra.mxu0 %v5947
        %5964 = vmatprep.subr.bf16.mxu0 0
        %5965 = vmatpush1.bf16.msra.mxu0 %v5946
        %5966 = vmatprep.subr.bf16.mxu0 0
        %5967 = vmatpush1.bf16.msra.mxu0 %v5945
        %5968 = vmatprep.subr.bf16.mxu0 0
        %5969 = vmatpush1.bf16.msra.mxu0 %v5944
        %5970 = vmatprep.subr.bf16.mxu0 0
        %5971 = vmatpush1.bf16.msra.mxu0 %v5943
        %5972 = vmatprep.subr.bf16.mxu0 0
        %5973 = vmatpush1.bf16.msra.mxu0 %v5942
        %5974 = vmatprep.subr.bf16.mxu0 0
        %5975 = vmatpush2.bf16.msra.mxu0 0
        %5976 = vmatprep.subr.bf16.mxu0 0
        %5977 = vmatpush2.bf16.msra.mxu0 0
        %5978 = vmatprep.subr.bf16.mxu0 0
        %5979 = vmatpush2.bf16.msra.mxu0 0
        %5980 = vmatprep.subr.bf16.mxu0 0
        %5981 = vmatpush2.bf16.msra.mxu0 0
        %5982 = vmatprep.subr.bf16.mxu0 0
        %5983 = vmatpush2.bf16.msra.mxu0 0
        %5984 = vmatprep.subr.bf16.mxu0 0
        %5985 = vmatpush2.bf16.msra.mxu0 0
        %5986 = vmatprep.subr.bf16.mxu0 0
        %5987 = vmatpush2.bf16.msra.mxu0 0
        %5988 = vmatprep.subr.bf16.mxu0 0
        %5989 = vmatpush2.bf16.msra.mxu0 0
        %5990 = vmatprep.mubr.bf16.mxu0 0
        %5991 = vmatmul.mubr.bf16.gmra.mxu0 %v5909
        %v5992 = vpop.f32.mrf.mxu0
        %v5993 = vadd.f32 0.0, %v5992
        %v5994 = vpop.f32.mrf.mxu0
        %v5995 = vpop.f32.mrf.mxu0
        %v5996 = vpop.f32.mrf.mxu0
        %5997 = vdwg.mxu0
        %v5998 = vld [vmem:[%s79] sm:$0xf]
        %v5999 = vld [vmem:[%s79 + $0x4] sm:$0xf]
        %v6000 = vld [vmem:[%s79 + $0x8] sm:$0xf]
        %v6001 = vld [vmem:[%s79 + $0xc] sm:$0xf]
        %v6002 = vpack.c.bf16 %v5993, %v5993
        %v6003 = vld [vmem:[%s81] sm:$0x1]
        %v6008 = vunpack.c.l.b16 %v5998
        %v6009 = vunpack.c.l.b16 %v5999
        %v6010 = vunpack.c.l.b16 %v6000
        %v6011 = vunpack.c.l.b16 %v6001
        %v6012 = vpack.c.b16 %v6009, %v6008
        %v6013 = vpack.c.b16 %v6011, %v6010
        %v6017 = vsel %vm1519, %v6002, 0
        %6019 = vmatprep.subr.bf16.mxu0 0
        %6020 = vmatpush1.bf16.msra.mxu0 0
        %6021 = vmatprep.subr.bf16.mxu0 0
        %6022 = vmatpush1.bf16.msra.mxu0 0
        %6023 = vmatprep.subr.bf16.mxu0 0
        %6024 = vmatpush1.bf16.msra.mxu0 0
        %6025 = vmatprep.subr.bf16.mxu0 0
        %6026 = vmatpush1.bf16.msra.mxu0 0
        %6027 = vmatprep.subr.bf16.mxu0 0
        %6028 = vmatpush1.bf16.msra.mxu0 0
        %6029 = vmatprep.subr.bf16.mxu0 0
        %6030 = vmatpush1.bf16.msra.mxu0 0
        %6031 = vmatprep.subr.bf16.mxu0 0
        %6032 = vmatpush1.bf16.msra.mxu0 %v6013
        %6033 = vmatprep.subr.bf16.mxu0 0
        %6034 = vmatpush1.bf16.msra.mxu0 %v6012
        %6035 = vmatprep.subr.bf16.mxu0 0
        %6036 = vmatpush2.bf16.msra.mxu0 0
        %6037 = vmatprep.subr.bf16.mxu0 0
        %6038 = vmatpush2.bf16.msra.mxu0 0
        %6039 = vmatprep.subr.bf16.mxu0 0
        %6040 = vmatpush2.bf16.msra.mxu0 0
        %6041 = vmatprep.subr.bf16.mxu0 0
        %6042 = vmatpush2.bf16.msra.mxu0 0
        %6043 = vmatprep.subr.bf16.mxu0 0
        %6044 = vmatpush2.bf16.msra.mxu0 0
        %6045 = vmatprep.subr.bf16.mxu0 0
        %6046 = vmatpush2.bf16.msra.mxu0 0
        %6047 = vmatprep.subr.bf16.mxu0 0
        %6048 = vmatpush2.bf16.msra.mxu0 0
        %6049 = vmatprep.subr.bf16.mxu0 0
        %6050 = vmatpush2.bf16.msra.mxu0 0
        %6051 = vmatprep.mubr.bf16.mxu0 0
        %6052 = vmatmul.mubr.bf16.gmra.mxu0 %v6017
        %v6053 = vpop.f32.mrf.mxu0
        %v6054 = vadd.f32 %v6003, %v6053
        %v6055 = vpop.f32.mrf.mxu0
        %v6056 = vpop.f32.mrf.mxu0
        %v6057 = vpop.f32.mrf.mxu0
        %6058 = vdwg.mxu0
        %vm6059 = vcmask 253952
        %6060 = vst.msk [vmem:[%s1451] sm:$0x1] %vm6059, %v5993
        %vm6061 = vcmask 122880
        %6062 = vst.msk [vmem:[%s1457] sm:$0x1] %vm6061, %v6054
        %s6063 = sand.u32 %s984, 1
        %s6064 = scalar_lea.sflag [#allocation4], %s6063
        %s6065 = sand.u32 %s984, 1
        %s6066 = scalar_lea.vmem [#allocation23], %s6065
        %s6067 = sand.u32 %s1010, 1
        %s6068 = scalar_lea.sflag [#allocation25], %s6067
        %s6069 = sand.u32 %s1010, 1
        %s6070 = scalar_lea.vmem [#allocation24], %s6069
        // Predicated region
        $region237: #{_run.1} parent=183 // pred_check
          %p6071 = pneg %p994
        $region238: #{_run.1} parent=183 // pred_check_branch
          %6073 = sbr.rel (%p6071) target = $region240
        $region239: #{_run.1} parent=183 // pred_region
          %s6075 = ssub.s32 16, 16
          %6076 = vsyncadd %s6064, %s6075
          %s6077 = smul.addr %s110, 16
          %s6078 = scalar_lea.hbm %s83, %s6077
          %s6080 = sshll.u32 %s6066, 4
          %s6081 = int_to_ptr.vmem [resolvable:$true] %s6080
          %6083 = dma.vmem_to_hbm [thread:$0]  %s6081, 16, %s6078, %s6064
        $region240: #{_run.1} parent=183 // pred_fallthru
          _
        // Predicated region
        $region241: #{_run.1} parent=183 // pred_check
          %p6084 = pneg %p1020
        $region242: #{_run.1} parent=183 // pred_check_branch
          %6086 = sbr.rel (%p6084) target = $region244
        $region243: #{_run.1} parent=183 // pred_region
          %s6088 = ssub.s32 16, 16
          %6089 = vsyncadd %s6068, %s6088
          %s6090 = smul.addr %s110, 16
          %s6091 = scalar_lea.hbm %s85, %s6090
          %s6093 = sshll.u32 %s6070, 4
          %s6094 = int_to_ptr.vmem [resolvable:$true] %s6093
          %6096 = dma.vmem_to_hbm [thread:$0]  %s6094, 16, %s6091, %s6068
        $region244: #{_run.1} parent=183 // pred_fallthru
          _
      $region184: #{_run.1} parent=5 // pred_fallthru
        _
      %p6097 = scmp.le.s32.totalorder 2, %s105
      // Predicated region
      $region245: #{_run.1} parent=5 // pred_check
        %p6098 = pneg %p6097
      $region246: #{_run.1} parent=5 // pred_check_branch
        %6100 = sbr.rel (%p6098) target = $region248
      $region247: #{_run.1} parent=5 // pred_region
        %s6101 = ssub.s32 %s105, 2
        // Predicated region
        $region249: #{_run.1} parent=247 // pred_check
          %p6102 = pneg %p1000
        $region250: #{_run.1} parent=247 // pred_check_branch
          %6104 = sbr.rel (%p6102) target = $region252
        $region251: #{_run.1} parent=247 // pred_region
          %s6105 = sand.u32 %s985, 1
          %s6106 = scalar_lea.sflag [#allocation4], %s6105
          %s6107 = sand.u32 %s985, 1
          %s6108 = scalar_lea.vmem [#allocation23], %s6107
          %6109 = dma.done %s6106, 16
        $region252: #{_run.1} parent=247 // pred_fallthru
          _
        // Predicated region
        $region253: #{_run.1} parent=247 // pred_check
          %p6110 = pneg %p1026
        $region254: #{_run.1} parent=247 // pred_check_branch
          %6112 = sbr.rel (%p6110) target = $region256
        $region255: #{_run.1} parent=247 // pred_region
          %s6113 = sand.u32 %s1011, 1
          %s6114 = scalar_lea.sflag [#allocation25], %s6113
          %s6115 = sand.u32 %s1011, 1
          %s6116 = scalar_lea.vmem [#allocation24], %s6115
          %6117 = dma.done %s6114, 16
        $region256: #{_run.1} parent=247 // pred_fallthru
          _
      $region248: #{_run.1} parent=5 // pred_fallthru
        _
    $region6: #{_run.1} parent=1 // loop_footer
      %s109 = sadd.s32 1, %s105
    $region7: #{_run.1} parent=1 // loop_footer_branch
      %104 = sbr.rel target = $region3
    $region8: #{_run.1} parent=1 // loop_exit
      _
    %6118 = vsyncpa [#allocation3], 1
    %s6119 = scalar_lea.sflag [#allocation3], 1
    %6120 = vsyncpa %s6119, 1
    %6121 = vsyncpa [#allocation6], 1
    %6122 = vsyncpa [#allocation9], 1
    %6123 = vsyncpa [#allocation12], 1
    %6124 = vsyncpa [#allocation15], 1
    %6125 = vsyncpa [#allocation18], 1
    %6126 = vsyncpa [#allocation21], 1
    %6127 = vsyncpa [#allocation4], 1
    %s6128 = scalar_lea.sflag [#allocation4], 1
    %6129 = vsyncpa %s6128, 1
    %6130 = vsyncpa [#allocation25], 1
    %s6131 = scalar_lea.sflag [#allocation25], 1
    %6132 = vsyncpa %s6131, 1

</llo_original>
